<compile_context>
chip_gen: v6e
topology: v6e:2x2x1
jax: 0.10.0
libtpu: 0.0.40
codegen_flags: <defaults>
</compile_context>

<pallas_src>
import functools
import math

import jax
import jax.numpy as jnp
from jax.experimental import pallas as pl
from jax.experimental.pallas import tpu as pltpu


def _round_up(n, m):
    return ((n + m - 1) // m) * m


# ----------------------------------------------------------------------------
# Pallas kernel: single-K-pass tiled matmul with fused bias + LeakyReLU.
# ----------------------------------------------------------------------------
def _matmul_bias_act_kernel(a_ref, b_ref, bias_ref, o_ref, *, negative_slope):
    # Full K in one MXU pass: no accumulator scratch, no init/finalize phases.
    y = jnp.dot(a_ref[...], b_ref[...], preferred_element_type=jnp.float32)
    y = y + bias_ref[...]                       # (1, tn) broadcasts over rows
    if negative_slope is not None:
        y = jnp.where(y >= 0, y, negative_slope * y)
    o_ref[...] = y.astype(o_ref.dtype)


def _pick_tm(m):
    """Largest M tile <= 2048 dividing M (padded to 8) with >= 2 tiles when
    possible, so a dual-TensorCore chip (v7x) can split the parallel M axis."""
    m8 = _round_up(m, 8)
    for tm in (2048, 1024, 512, 256, 128, 64, 32, 16, 8):
        if m8 % tm == 0 and m8 // tm >= 2:
            return tm
    return min(m8, 2048)


def matmul_bias_act(a, b_p, bias_p, *, negative_slope=None,
                    out_dtype=jnp.float32, tm=None, tn=128):
    """act(a @ b_p + bias_p) on the MXU (bf16 inputs, f32 accumulation).

    a:      (M, K)   preferably already bf16 and K-padded to Kp (conv path).
    b_p:    (Kp, Np) bf16, pre-transposed and pre-padded to tile multiples.
    bias_p: (1, Np)  f32, pre-padded with zeros.
    Returns (M, Np) in out_dtype; caller slices off padded N columns.
    """
    M, K = a.shape
    Kp, Np = b_p.shape
    assert Kp >= K and Kp % 128 == 0 and Np % tn == 0, (K, Kp, Np, tn)

    if tm is None:
        tm = _pick_tm(M)
    Mp = _round_up(M, tm)

    # No-op for the conv path (patches arrive bf16 and already (Mp, Kp)).
    if M != Mp or K != Kp or a.dtype != jnp.bfloat16:
        a = jnp.pad(a.astype(jnp.bfloat16), ((0, Mp - M), (0, Kp - K)))
    bias_p = bias_p.astype(jnp.float32)

    out_bytes = Mp * Np * jnp.dtype(out_dtype).itemsize
    cost = pl.CostEstimate(
        flops=2 * Mp * Kp * Np,
        transcendentals=0,
        bytes_accessed=Mp * Kp * 2 + Kp * Np * 2 + Np * 4 + out_bytes)

    grid = (Mp // tm, Np // tn)
    kernel = functools.partial(_matmul_bias_act_kernel,
                               negative_slope=negative_slope)
    out = pl.pallas_call(
        kernel,
        out_shape=jax.ShapeDtypeStruct((Mp, Np), out_dtype),
        grid_spec=pltpu.PrefetchScalarGridSpec(
            num_scalar_prefetch=0,
            grid=grid,
            in_specs=[
                pl.BlockSpec((tm, Kp), lambda i, j: (i, 0)),
                pl.BlockSpec((Kp, tn), lambda i, j: (0, j)),
                pl.BlockSpec((1, tn), lambda i, j: (0, j)),
            ],
            out_specs=pl.BlockSpec((tm, tn), lambda i, j: (i, j)),
        ),
        compiler_params=pltpu.CompilerParams(
            dimension_semantics=("parallel", "parallel"),
            vmem_limit_bytes=32 * 1024 * 1024),
        cost_estimate=cost,
    )(a, b_p, bias_p)

    return out[:M]


# ----------------------------------------------------------------------------
# Conv2d(k=3, stride=2, pad=1) via NHWC im2col (glue) + Pallas matmul.
# im2col emits patches already bf16 and K-padded (zeros appended in the same
# concat), so no extra pad/cast pass runs before the pallas_call.
# ----------------------------------------------------------------------------
# TODO(synk): fully fuse im2col into the conv kernel (DMA NHWC tile with halo,
# accumulate 9 shifted taps in-kernel) to drop the patch materialization.
def _im2col_s2k3p1_nhwc(x, kp, dtype=jnp.bfloat16):
    """x: (B, H, W, C) -> patches (B*Ho*Wo, kp) in (kh, kw, C) feature order,
    K zero-padded from 9*C up to kp, cast to `dtype`."""
    B, H, W, C = x.shape
    k, s, p = 3, 2, 1
    Ho = (H + 2 * p - k) // s + 1
    Wo = (W + 2 * p - k) // s + 1
    xp = jnp.pad(x.astype(dtype), ((0, 0), (p, p), (p, p), (0, 0)))
    cols = []
    for ky in range(k):
        for kx in range(k):
            cols.append(xp[:, ky:ky + s * Ho:s, kx:kx + s * Wo:s, :])
    kk = k * k * C
    if kp > kk:                                   # K padding folded into concat
        cols.append(jnp.zeros((B, Ho, Wo, kp - kk), dtype))
    pat = jnp.concatenate(cols, axis=-1)          # (B, Ho, Wo, kp)
    return pat.reshape(B * Ho * Wo, kp), Ho, Wo


def conv2d_lrelu_nhwc(x, w_mat, bias_p, out_c, *, negative_slope=0.2):
    """x: (B,H,W,C); w_mat: (Kp, Np) bf16 pre-padded; bias_p: (1, Np) f32."""
    B = x.shape[0]
    Kp, Np = w_mat.shape
    patches, Ho, Wo = _im2col_s2k3p1_nhwc(x, Kp)
    tn = 256 if Np % 256 == 0 else 128            # fill 256-wide MXU on conv4
    y = matmul_bias_act(patches, w_mat, bias_p,
                        negative_slope=negative_slope,
                        out_dtype=jnp.bfloat16, tn=tn)
    if out_c < Np:
        y = y[:, :out_c]
    return y.reshape(B, Ho, Wo, out_c)


# ----------------------------------------------------------------------------
# Parameters: PyTorch-style init, then one-time relayout for the kernels.
# ----------------------------------------------------------------------------
def _init_conv(key, out_c, in_c, k=3):
    fan_in = in_c * k * k
    bound = 1.0 / math.sqrt(fan_in)
    kw, kb = jax.random.split(key)
    w = jax.random.uniform(kw, (out_c, in_c, k, k), jnp.float32, -bound, bound)
    b = jax.random.uniform(kb, (out_c,), jnp.float32, -bound, bound)
    return w, b


def _init_linear(key, out_f, in_f):
    bound = 1.0 / math.sqrt(in_f)
    kw, kb = jax.random.split(key)
    w = jax.random.uniform(kw, (out_f, in_f), jnp.float32, -bound, bound)
    b = jax.random.uniform(kb, (out_f,), jnp.float32, -bound, bound)
    return w, b


def init_dccnn_params(key, in_channels=2):
    keys = jax.random.split(key, 6)
    return {
        "conv1": _init_conv(keys[0], 32, in_channels),
        "conv2": _init_conv(keys[1], 64, 32),
        "conv3": _init_conv(keys[2], 128, 64),
        "conv4": _init_conv(keys[3], 256, 128),
        "fc1": _init_linear(keys[4], 1024, 256 * 64),
        "fc2": _init_linear(keys[5], 1, 1024),
    }


def prepare_params(params, final_c=256, final_hw=8):
    """One-time weight relayout:

    * Conv weights: (O,C,kh,kw) -> (kh*kw*C, O), padded to (Kp, Np), bf16, so
      the flatten order matches the NHWC im2col patch order.
    * fc1 columns permuted from NCHW-flatten (c,h,w) to NHWC-flatten (h,w,c),
      then fc2 is FOLDED into fc1 (valid: the reference applies no activation
      between the two Linear layers), giving one Linear(16384 -> 1) in f32.
    """
    prepped = {}
    for name in ("conv1", "conv2", "conv3", "conv4"):
        w, b = params[name]
        O, C, kh, kw = w.shape
        w_mat = jnp.transpose(w, (2, 3, 1, 0)).reshape(kh * kw * C, O)
        Kp = _round_up(kh * kw * C, 128)
        Np = _round_up(O, 128)
        w_mat = jnp.pad(w_mat, ((0, Kp - w_mat.shape[0]), (0, Np - O)))
        b_p = jnp.pad(b.reshape(1, -1), ((0, 0), (0, Np - O)))
        prepped[name] = (w_mat.astype(jnp.bfloat16), b_p.astype(jnp.float32))

    w1, b1 = params["fc1"]                      # (1024, 16384), cols in (c,h,w)
    w2, b2 = params["fc2"]                      # (1, 1024), (1,)
    out_f = w1.shape[0]
    w1p = w1.reshape(out_f, final_c, final_hw, final_hw)
    w1p = jnp.transpose(w1p, (0, 2, 3, 1)).reshape(out_f, -1)  # cols -> (h,w,c)
    w_eff = jnp.transpose(w2 @ w1p).astype(jnp.float32)        # (16384, 1)
    b_eff = (w2 @ b1 + b2).astype(jnp.float32)                 # (1,)
    prepped["fc"] = (w_eff, b_eff)
    return prepped


# ----------------------------------------------------------------------------
# Forward pass.
# ----------------------------------------------------------------------------
def dccnn_forward(prepped, x):
    x = x.astype(jnp.float32)                            # x.type(FloatTensor)
    # Single cheap NCHW->NHWC relayout of the input; convs then stay NHWC.
    x = jnp.transpose(x, (0, 2, 3, 1))

    for name, out_c in (("conv1", 32), ("conv2", 64),
                        ("conv3", 128), ("conv4", 256)):
        w_mat, b_p = prepped[name]
        x = conv2d_lrelu_nhwc(x, w_mat, b_p, out_c, negative_slope=0.2)

    B = x.shape[0]
    x = x.reshape(B, -1).astype(jnp.float32)             # NHWC flatten (16384)

    # fc1+fc2 folded to one Linear(16384->1): 64 KiB weight read instead of
    # streaming the 32 MiB fc1 matrix. A padded Pallas call here (N=1) would
    # be >99% wasted lanes, so this stays a plain XLA dot.
    w_eff, b_eff = prepped["fc"]
    return x @ w_eff + b_eff                             # (B, 1)


if __name__ == "__main__":
    key = jax.random.PRNGKey(0)
    k_param, k_x = jax.random.split(key)

    # Input spatial size is fixed at 128x128 by Linear(256*64, 1024)
    # (four stride-2 convs: 128 -> 64 -> 32 -> 16 -> 8, 8*8 = 64).
    x = jax.random.normal(k_x, (2, 2, 128, 128), dtype=jnp.float32)

    params = init_dccnn_params(k_param, in_channels=2)
    prepped = prepare_params(params)                     # one-time relayout

    out = jax.jit(dccnn_forward)(prepped, x)
    out = jax.block_until_ready(out)

    assert out.shape == (2, 1), out.shape
    assert bool(jnp.all(jnp.isfinite(out)))
    print("KERNEL_OK")
</pallas_src>

<mosaic_0001>
module attributes {stable_mosaic.version = 11 : i64} {
  func.func @_matmul_bias_act_kernel(%arg0: i32, %arg1: i32, %arg2: memref<2048x128xbf16, #tpu.memory_space<vmem>>, %arg3: memref<128x128xbf16, #tpu.memory_space<vmem>>, %arg4: memref<1x128xf32, #tpu.memory_space<vmem>>, %arg5: memref<2048x128xbf16, #tpu.memory_space<vmem>>) attributes {dimension_semantics = [#tpu.dimension_semantics<parallel>, #tpu.dimension_semantics<parallel>], iteration_bounds = array<i64: 4, 1>, scalar_prefetch = 0 : i64, scratch_operands = 0 : i64, tpu.core_type = #tpu.core_type<tc>, window_params = [{transform_indices = @transform_0, window_bounds = array<i64: 2048, 128>}, {transform_indices = @transform_1, window_bounds = array<i64: 128, 128>}, {transform_indices = @transform_2, window_bounds = array<i64: 1, 128>}, {transform_indices = @transform_3, window_bounds = array<i64: 2048, 128>}]} {
    %c0 = arith.constant 0 : index
    %c0_0 = arith.constant 0 : index
    %0 = vector.load %arg2[%c0, %c0_0] : memref<2048x128xbf16, #tpu.memory_space<vmem>>, vector<2048x128xbf16>
    %c0_1 = arith.constant 0 : index
    %c0_2 = arith.constant 0 : index
    %1 = vector.load %arg3[%c0_1, %c0_2] : memref<128x128xbf16, #tpu.memory_space<vmem>>, vector<128x128xbf16>
    %cst = arith.constant dense<0.000000e+00> : vector<2048x128xf32>
    %2 = tpu.matmul %0, %1, %cst {dimension_numbers = #tpu.dot_dimension_numbers<[1], [0], [0], [1], [0, 0, 1, 1], [], []>} : vector<2048x128xbf16>, vector<128x128xbf16>, vector<2048x128xf32> -> vector<2048x128xf32>
    %c0_3 = arith.constant 0 : index
    %c0_4 = arith.constant 0 : index
    %3 = vector.load %arg4[%c0_3, %c0_4] : memref<1x128xf32, #tpu.memory_space<vmem>>, vector<1x128xf32>
    %4 = vector.broadcast %3 : vector<1x128xf32> to vector<2048x128xf32>
    %5 = arith.addf %2, %4 : vector<2048x128xf32>
    %cst_5 = arith.constant 0.000000e+00 : f32
    %6 = vector.broadcast %cst_5 : f32 to vector<2048x128xf32>
    %7 = arith.cmpf oge, %5, %6 : vector<2048x128xf32>
    %cst_6 = arith.constant 2.000000e-01 : f32
    %8 = vector.broadcast %cst_6 : f32 to vector<2048x128xf32>
    %9 = arith.mulf %8, %5 : vector<2048x128xf32>
    %10 = arith.select %7, %5, %9 : vector<2048x128xi1>, vector<2048x128xf32>
    %11 = arith.truncf %10 : vector<2048x128xf32> to vector<2048x128xbf16>
    %c0_7 = arith.constant 0 : index
    %c0_8 = arith.constant 0 : index
    %12 = vector.load %arg5[%c0_7, %c0_8] : memref<2048x128xbf16, #tpu.memory_space<vmem>>, vector<2048x128xbf16>
    tpu.vector_store %arg5[%c0_7, %c0_8], %11 {strides = array<i32>} : memref<2048x128xbf16, #tpu.memory_space<vmem>>, vector<2048x128xbf16>,
    return
  }
  func.func @transform_0(%arg0: i32, %arg1: i32) -> (i32, i32) {
    %c0_i32 = arith.constant 0 : i32
    %c0_i32_0 = arith.constant 0 : i32
    return %arg0, %c0_i32 : i32, i32
  }
  func.func @transform_1(%arg0: i32, %arg1: i32) -> (i32, i32) {
    %c0_i32 = arith.constant 0 : i32
    %c0_i32_0 = arith.constant 0 : i32
    return %c0_i32, %arg1 : i32, i32
  }
  func.func @transform_2(%arg0: i32, %arg1: i32) -> (i32, i32) {
    %c0_i32 = arith.constant 0 : i32
    %c0_i32_0 = arith.constant 0 : i32
    return %c0_i32, %arg1 : i32, i32
  }
  func.func @transform_3(%arg0: i32, %arg1: i32) -> (i32, i32) {
    %c0_i32 = arith.constant 0 : i32
    return %arg0, %arg1 : i32, i32
  }
}

module attributes {stable_mosaic.version = 11 : i64} {
  func.func @_matmul_bias_act_kernel(%arg0: i32, %arg1: i32, %arg2: memref<1024x384xbf16, #tpu.memory_space<vmem>>, %arg3: memref<384x128xbf16, #tpu.memory_space<vmem>>, %arg4: memref<1x128xf32, #tpu.memory_space<vmem>>, %arg5: memref<1024x128xbf16, #tpu.memory_space<vmem>>) attributes {dimension_semantics = [#tpu.dimension_semantics<parallel>, #tpu.dimension_semantics<parallel>], iteration_bounds = array<i64: 2, 1>, scalar_prefetch = 0 : i64, scratch_operands = 0 : i64, tpu.core_type = #tpu.core_type<tc>, window_params = [{transform_indices = @transform_0, window_bounds = array<i64: 1024, 384>}, {transform_indices = @transform_1, window_bounds = array<i64: 384, 128>}, {transform_indices = @transform_2, window_bounds = array<i64: 1, 128>}, {transform_indices = @transform_3, window_bounds = array<i64: 1024, 128>}]} {
    %c0 = arith.constant 0 : index
    %c0_0 = arith.constant 0 : index
    %0 = vector.load %arg2[%c0, %c0_0] : memref<1024x384xbf16, #tpu.memory_space<vmem>>, vector<1024x384xbf16>
    %c0_1 = arith.constant 0 : index
    %c0_2 = arith.constant 0 : index
    %1 = vector.load %arg3[%c0_1, %c0_2] : memref<384x128xbf16, #tpu.memory_space<vmem>>, vector<384x128xbf16>
    %cst = arith.constant dense<0.000000e+00> : vector<1024x128xf32>
    %2 = tpu.matmul %0, %1, %cst {dimension_numbers = #tpu.dot_dimension_numbers<[1], [0], [0], [1], [0, 0, 1, 1], [], []>} : vector<1024x384xbf16>, vector<384x128xbf16>, vector<1024x128xf32> -> vector<1024x128xf32>
    %c0_3 = arith.constant 0 : index
    %c0_4 = arith.constant 0 : index
    %3 = vector.load %arg4[%c0_3, %c0_4] : memref<1x128xf32, #tpu.memory_space<vmem>>, vector<1x128xf32>
    %4 = vector.broadcast %3 : vector<1x128xf32> to vector<1024x128xf32>
    %5 = arith.addf %2, %4 : vector<1024x128xf32>
    %cst_5 = arith.constant 0.000000e+00 : f32
    %6 = vector.broadcast %cst_5 : f32 to vector<1024x128xf32>
    %7 = arith.cmpf oge, %5, %6 : vector<1024x128xf32>
    %cst_6 = arith.constant 2.000000e-01 : f32
    %8 = vector.broadcast %cst_6 : f32 to vector<1024x128xf32>
    %9 = arith.mulf %8, %5 : vector<1024x128xf32>
    %10 = arith.select %7, %5, %9 : vector<1024x128xi1>, vector<1024x128xf32>
    %11 = arith.truncf %10 : vector<1024x128xf32> to vector<1024x128xbf16>
    %c0_7 = arith.constant 0 : index
    %c0_8 = arith.constant 0 : index
    %12 = vector.load %arg5[%c0_7, %c0_8] : memref<1024x128xbf16, #tpu.memory_space<vmem>>, vector<1024x128xbf16>
    tpu.vector_store %arg5[%c0_7, %c0_8], %11 {strides = array<i32>} : memref<1024x128xbf16, #tpu.memory_space<vmem>>, vector<1024x128xbf16>,
    return
  }
  func.func @transform_0(%arg0: i32, %arg1: i32) -> (i32, i32) {
    %c0_i32 = arith.constant 0 : i32
    %c0_i32_0 = arith.constant 0 : i32
    return %arg0, %c0_i32 : i32, i32
  }
  func.func @transform_1(%arg0: i32, %arg1: i32) -> (i32, i32) {
    %c0_i32 = arith.constant 0 : i32
    %c0_i32_0 = arith.constant 0 : i32
    return %c0_i32, %arg1 : i32, i32
  }
  func.func @transform_2(%arg0: i32, %arg1: i32) -> (i32, i32) {
    %c0_i32 = arith.constant 0 : i32
    %c0_i32_0 = arith.constant 0 : i32
    return %c0_i32, %arg1 : i32, i32
  }
  func.func @transform_3(%arg0: i32, %arg1: i32) -> (i32, i32) {
    %c0_i32 = arith.constant 0 : i32
    return %arg0, %arg1 : i32, i32
  }
}

module attributes {stable_mosaic.version = 11 : i64} {
  func.func @_matmul_bias_act_kernel(%arg0: i32, %arg1: i32, %arg2: memref<256x640xbf16, #tpu.memory_space<vmem>>, %arg3: memref<640x128xbf16, #tpu.memory_space<vmem>>, %arg4: memref<1x128xf32, #tpu.memory_space<vmem>>, %arg5: memref<256x128xbf16, #tpu.memory_space<vmem>>) attributes {dimension_semantics = [#tpu.dimension_semantics<parallel>, #tpu.dimension_semantics<parallel>], iteration_bounds = array<i64: 2, 1>, scalar_prefetch = 0 : i64, scratch_operands = 0 : i64, tpu.core_type = #tpu.core_type<tc>, window_params = [{transform_indices = @transform_0, window_bounds = array<i64: 256, 640>}, {transform_indices = @transform_1, window_bounds = array<i64: 640, 128>}, {transform_indices = @transform_2, window_bounds = array<i64: 1, 128>}, {transform_indices = @transform_3, window_bounds = array<i64: 256, 128>}]} {
    %c0 = arith.constant 0 : index
    %c0_0 = arith.constant 0 : index
    %0 = vector.load %arg2[%c0, %c0_0] : memref<256x640xbf16, #tpu.memory_space<vmem>>, vector<256x640xbf16>
    %c0_1 = arith.constant 0 : index
    %c0_2 = arith.constant 0 : index
    %1 = vector.load %arg3[%c0_1, %c0_2] : memref<640x128xbf16, #tpu.memory_space<vmem>>, vector<640x128xbf16>
    %cst = arith.constant dense<0.000000e+00> : vector<256x128xf32>
    %2 = tpu.matmul %0, %1, %cst {dimension_numbers = #tpu.dot_dimension_numbers<[1], [0], [0], [1], [0, 0, 1, 1], [], []>} : vector<256x640xbf16>, vector<640x128xbf16>, vector<256x128xf32> -> vector<256x128xf32>
    %c0_3 = arith.constant 0 : index
    %c0_4 = arith.constant 0 : index
    %3 = vector.load %arg4[%c0_3, %c0_4] : memref<1x128xf32, #tpu.memory_space<vmem>>, vector<1x128xf32>
    %4 = vector.broadcast %3 : vector<1x128xf32> to vector<256x128xf32>
    %5 = arith.addf %2, %4 : vector<256x128xf32>
    %cst_5 = arith.constant 0.000000e+00 : f32
    %6 = vector.broadcast %cst_5 : f32 to vector<256x128xf32>
    %7 = arith.cmpf oge, %5, %6 : vector<256x128xf32>
    %cst_6 = arith.constant 2.000000e-01 : f32
    %8 = vector.broadcast %cst_6 : f32 to vector<256x128xf32>
    %9 = arith.mulf %8, %5 : vector<256x128xf32>
    %10 = arith.select %7, %5, %9 : vector<256x128xi1>, vector<256x128xf32>
    %11 = arith.truncf %10 : vector<256x128xf32> to vector<256x128xbf16>
    %c0_7 = arith.constant 0 : index
    %c0_8 = arith.constant 0 : index
    %12 = vector.load %arg5[%c0_7, %c0_8] : memref<256x128xbf16, #tpu.memory_space<vmem>>, vector<256x128xbf16>
    tpu.vector_store %arg5[%c0_7, %c0_8], %11 {strides = array<i32>} : memref<256x128xbf16, #tpu.memory_space<vmem>>, vector<256x128xbf16>,
    return
  }
  func.func @transform_0(%arg0: i32, %arg1: i32) -> (i32, i32) {
    %c0_i32 = arith.constant 0 : i32
    %c0_i32_0 = arith.constant 0 : i32
    return %arg0, %c0_i32 : i32, i32
  }
  func.func @transform_1(%arg0: i32, %arg1: i32) -> (i32, i32) {
    %c0_i32 = arith.constant 0 : i32
    %c0_i32_0 = arith.constant 0 : i32
    return %c0_i32, %arg1 : i32, i32
  }
  func.func @transform_2(%arg0: i32, %arg1: i32) -> (i32, i32) {
    %c0_i32 = arith.constant 0 : i32
    %c0_i32_0 = arith.constant 0 : i32
    return %c0_i32, %arg1 : i32, i32
  }
  func.func @transform_3(%arg0: i32, %arg1: i32) -> (i32, i32) {
    %c0_i32 = arith.constant 0 : i32
    return %arg0, %arg1 : i32, i32
  }
}

module attributes {stable_mosaic.version = 11 : i64} {
  func.func @_matmul_bias_act_kernel(%arg0: i32, %arg1: i32, %arg2: memref<64x1152xbf16, #tpu.memory_space<vmem>>, %arg3: memref<1152x256xbf16, #tpu.memory_space<vmem>>, %arg4: memref<1x256xf32, #tpu.memory_space<vmem>>, %arg5: memref<64x256xbf16, #tpu.memory_space<vmem>>) attributes {dimension_semantics = [#tpu.dimension_semantics<parallel>, #tpu.dimension_semantics<parallel>], iteration_bounds = array<i64: 2, 1>, scalar_prefetch = 0 : i64, scratch_operands = 0 : i64, tpu.core_type = #tpu.core_type<tc>, window_params = [{transform_indices = @transform_0, window_bounds = array<i64: 64, 1152>}, {transform_indices = @transform_1, window_bounds = array<i64: 1152, 256>}, {transform_indices = @transform_2, window_bounds = array<i64: 1, 256>}, {transform_indices = @transform_3, window_bounds = array<i64: 64, 256>}]} {
    %c0 = arith.constant 0 : index
    %c0_0 = arith.constant 0 : index
    %0 = vector.load %arg2[%c0, %c0_0] : memref<64x1152xbf16, #tpu.memory_space<vmem>>, vector<64x1152xbf16>
    %c0_1 = arith.constant 0 : index
    %c0_2 = arith.constant 0 : index
    %1 = vector.load %arg3[%c0_1, %c0_2] : memref<1152x256xbf16, #tpu.memory_space<vmem>>, vector<1152x256xbf16>
    %cst = arith.constant dense<0.000000e+00> : vector<64x256xf32>
    %2 = tpu.matmul %0, %1, %cst {dimension_numbers = #tpu.dot_dimension_numbers<[1], [0], [0], [1], [0, 0, 1, 1], [], []>} : vector<64x1152xbf16>, vector<1152x256xbf16>, vector<64x256xf32> -> vector<64x256xf32>
    %c0_3 = arith.constant 0 : index
    %c0_4 = arith.constant 0 : index
    %3 = vector.load %arg4[%c0_3, %c0_4] : memref<1x256xf32, #tpu.memory_space<vmem>>, vector<1x256xf32>
    %4 = vector.broadcast %3 : vector<1x256xf32> to vector<64x256xf32>
    %5 = arith.addf %2, %4 : vector<64x256xf32>
    %cst_5 = arith.constant 0.000000e+00 : f32
    %6 = vector.broadcast %cst_5 : f32 to vector<64x256xf32>
    %7 = arith.cmpf oge, %5, %6 : vector<64x256xf32>
    %cst_6 = arith.constant 2.000000e-01 : f32
    %8 = vector.broadcast %cst_6 : f32 to vector<64x256xf32>
    %9 = arith.mulf %8, %5 : vector<64x256xf32>
    %10 = arith.select %7, %5, %9 : vector<64x256xi1>, vector<64x256xf32>
    %11 = arith.truncf %10 : vector<64x256xf32> to vector<64x256xbf16>
    %c0_7 = arith.constant 0 : index
    %c0_8 = arith.constant 0 : index
    %12 = vector.load %arg5[%c0_7, %c0_8] : memref<64x256xbf16, #tpu.memory_space<vmem>>, vector<64x256xbf16>
    tpu.vector_store %arg5[%c0_7, %c0_8], %11 {strides = array<i32>} : memref<64x256xbf16, #tpu.memory_space<vmem>>, vector<64x256xbf16>,
    return
  }
  func.func @transform_0(%arg0: i32, %arg1: i32) -> (i32, i32) {
    %c0_i32 = arith.constant 0 : i32
    %c0_i32_0 = arith.constant 0 : i32
    return %arg0, %c0_i32 : i32, i32
  }
  func.func @transform_1(%arg0: i32, %arg1: i32) -> (i32, i32) {
    %c0_i32 = arith.constant 0 : i32
    %c0_i32_0 = arith.constant 0 : i32
    return %c0_i32, %arg1 : i32, i32
  }
  func.func @transform_2(%arg0: i32, %arg1: i32) -> (i32, i32) {
    %c0_i32 = arith.constant 0 : i32
    %c0_i32_0 = arith.constant 0 : i32
    return %c0_i32, %arg1 : i32, i32
  }
  func.func @transform_3(%arg0: i32, %arg1: i32) -> (i32, i32) {
    %c0_i32 = arith.constant 0 : i32
    return %arg0, %arg1 : i32, i32
  }
}

</mosaic_0001>

<llo_original>
// kernel: dccnn_forward.4
$region0: #{dccnn_forward.4}
  #allocation0 [shape = 'u32[]', space=smem, size = 0x4, offset = 0x4, fixed_abs, tag = 'smem constant byte address 0x4 - core index']
  #allocation1 [shape = 'u32[144,128]{1,0:T(1,128)}', space=vmem, size = 0x12000, scoped, tag = 'internal scratch']
  %s0 = inlined_call_operand.vmem [shape: bf16[8192,128], index: 0, kind: input, shape index: {}]
  %s1 = inlined_call_operand.vmem [shape: bf16[128,128], index: 1, kind: input, shape index: {}]
  %s2 = inlined_call_operand.vmem [shape: f32[1,128], index: 2, kind: input, shape index: {}]
  %s3 = inlined_call_operand.vmem [shape: bf16[8192,128], index: 3, kind: output, shape index: {}]
  %s4 = sld [smem:[#allocation0]]
  $region45: #{dccnn_forward.4} parent=0
    _
  %s6 = ssub.s32 1, %s4
  %s7 = scalar_select 0, %s6, %s4
  loop: start=0, step=1, limit=6
  $region2: #{dccnn_forward.4} parent=0 // loop_pre_header
    _
  $region3: #{dccnn_forward.4} parent=0 // loop_header
    %s9 = sphi 0, %s13
    %p10 = scmp.ge.s32.totalorder %s9, 6
    %s16 = sphi 0, %s28
    %s17 = sphi 0, %s24
    %s18 = sphi 0, %s16
    %s19 = sphi 0, %s17
    %s20 = sphi 0, %s18
    %s21 = sphi 0, %s19
    %s31 = sphi 0, %s33
    %s34 = sphi 0, %s31
    %s35 = sphi 0, %s34
    %s51 = sphi 0, %s35
    %s57 = sphi 0, %s59
    %s60 = sphi 0, %s57
    %s61 = sphi 0, %s60
    %s77 = sphi 0, %s61
    %s83 = sphi 0, %s85
    %s86 = sphi 0, %s83
    %s87 = sphi 0, %s86
    %s103 = sphi 0, %s87
    %s111 = sphi 0, %s113
    %s114 = sphi 0, %s111
    %s115 = sphi 0, %s114
    %s131 = sphi 0, %s115
  $region4: #{dccnn_forward.4} parent=0 // loop_header_branch
    %12 = sbr.rel (%p10) target = $region8
  $region5: #{dccnn_forward.4} parent=0 // loop_body
    %s14 = ssub.s32 %s9, 1
    %s15 = ssub.s32 %s9, 2
    %s22 = sadd.s32 1, %s17
    %p23 = scmp.ge.s32.totalorder %s22, 1
    %s24 = scalar_select %p23, 0, %s22
    %s25 = sadd.s32 1, %s16
    %s26 = scalar_select %p23, %s25, %s16
    %p27 = scmp.ge.s32.totalorder %s26, 4
    %s28 = scalar_select %p27, 0, %s26
    %s29 = ssub.s32 %s16, %s28
    %p30 = scmp.eq.s32.totalorder %s29, 0
    %s32 = sadd.s32 %s31, 1
    %s33 = scalar_select %p30, %s31, %s32
    %p36 = pneg %p30
    %p37 = scmp.eq.s32.totalorder %s9, 3
    %p38 = por %p36, %p37
    %p39 = scmp.ne.s32.totalorder %s31, %s34
    %p40 = scmp.eq.s32.totalorder %s9, 0
    %p41 = por %p39, %p40
    %p42 = scmp.ne.s32.totalorder %s31, %s34
    %p43 = scmp.eq.s32.totalorder %s14, 3
    %p44 = por %p42, %p43
    %p45 = scmp.ne.s32.totalorder %s34, %s35
    %p46 = scmp.eq.s32.totalorder %s14, 0
    %p47 = por %p45, %p46
    %p48 = scmp.ne.s32.totalorder %s34, %s35
    %p49 = scmp.eq.s32.totalorder %s15, 3
    %p50 = por %p48, %p49
    %p52 = scmp.ne.s32.totalorder %s35, %s51
    %p53 = scmp.eq.s32.totalorder %s15, 0
    %p54 = por %p52, %p53
    %s55 = ssub.s32 %s17, %s24
    %p56 = scmp.eq.s32.totalorder %s55, 0
    %s58 = sadd.s32 %s57, 1
    %s59 = scalar_select %p56, %s57, %s58
    %p62 = pneg %p56
    %p63 = scmp.eq.s32.totalorder %s9, 3
    %p64 = por %p62, %p63
    %p65 = scmp.ne.s32.totalorder %s57, %s60
    %p66 = scmp.eq.s32.totalorder %s9, 0
    %p67 = por %p65, %p66
    %p68 = scmp.ne.s32.totalorder %s57, %s60
    %p69 = scmp.eq.s32.totalorder %s14, 3
    %p70 = por %p68, %p69
    %p71 = scmp.ne.s32.totalorder %s60, %s61
    %p72 = scmp.eq.s32.totalorder %s14, 0
    %p73 = por %p71, %p72
    %p74 = scmp.ne.s32.totalorder %s60, %s61
    %p75 = scmp.eq.s32.totalorder %s15, 3
    %p76 = por %p74, %p75
    %p78 = scmp.ne.s32.totalorder %s61, %s77
    %p79 = scmp.eq.s32.totalorder %s15, 0
    %p80 = por %p78, %p79
    %s81 = ssub.s32 %s17, %s24
    %p82 = scmp.eq.s32.totalorder %s81, 0
    %s84 = sadd.s32 %s83, 1
    %s85 = scalar_select %p82, %s83, %s84
    %p88 = pneg %p82
    %p89 = scmp.eq.s32.totalorder %s9, 3
    %p90 = por %p88, %p89
    %p91 = scmp.ne.s32.totalorder %s83, %s86
    %p92 = scmp.eq.s32.totalorder %s9, 0
    %p93 = por %p91, %p92
    %p94 = scmp.ne.s32.totalorder %s83, %s86
    %p95 = scmp.eq.s32.totalorder %s14, 3
    %p96 = por %p94, %p95
    %p97 = scmp.ne.s32.totalorder %s86, %s87
    %p98 = scmp.eq.s32.totalorder %s14, 0
    %p99 = por %p97, %p98
    %p100 = scmp.ne.s32.totalorder %s86, %s87
    %p101 = scmp.eq.s32.totalorder %s15, 3
    %p102 = por %p100, %p101
    %p104 = scmp.ne.s32.totalorder %s87, %s103
    %p105 = scmp.eq.s32.totalorder %s15, 0
    %p106 = por %p104, %p105
    %s107 = ssub.s32 %s16, %s28
    %s108 = ssub.s32 %s17, %s24
    %s109 = sor.u32 %s107, %s108
    %p110 = scmp.eq.s32.totalorder %s109, 0
    %s112 = sadd.s32 %s111, 1
    %s113 = scalar_select %p110, %s111, %s112
    %p116 = pneg %p110
    %p117 = scmp.eq.s32.totalorder %s9, 3
    %p118 = por %p116, %p117
    %p119 = scmp.ne.s32.totalorder %s111, %s114
    %p120 = scmp.eq.s32.totalorder %s9, 0
    %p121 = por %p119, %p120
    %p122 = scmp.ne.s32.totalorder %s111, %s114
    %p123 = scmp.eq.s32.totalorder %s14, 3
    %p124 = por %p122, %p123
    %p125 = scmp.ne.s32.totalorder %s114, %s115
    %p126 = scmp.eq.s32.totalorder %s14, 0
    %p127 = por %p125, %p126
    %p128 = scmp.ne.s32.totalorder %s114, %s115
    %p129 = scmp.eq.s32.totalorder %s15, 3
    %p130 = por %p128, %p129
    %p132 = scmp.ne.s32.totalorder %s115, %s131
    %p133 = scmp.eq.s32.totalorder %s15, 0
    %p134 = por %p132, %p133
    %p135 = scmp.le.s32.totalorder 1, %s9
    %p136 = scmp.lt.s32.totalorder %s9, 5
    %p137 = pnand %p135, %p136
    %p138 = pneg %p137
    // Predicated region
    $region9: #{dccnn_forward.4} parent=5 // pred_check
      _
    $region10: #{dccnn_forward.4} parent=5 // pred_check_branch
      %140 = sbr.rel (%p137) target = $region12
    $region11: #{dccnn_forward.4} parent=5 // pred_region
      %s141 = ssub.s32 %s9, 1
      // Predicated region
      $region13: #{dccnn_forward.4} parent=11 // pred_check
        %p142 = pneg %p73
      $region14: #{dccnn_forward.4} parent=11 // pred_check_branch
        %144 = sbr.rel (%p142) target = $region16
      $region15: #{dccnn_forward.4} parent=11 // pred_region
        %p145 = scmp.lt.s32.totalorder %s19, 0
        %s146 = scalar_select %p145, %s19, 0
        %s147 = smul.addr %s146, 4
        %s148 = scalar_lea.vmem %s1, %s147
      $region16: #{dccnn_forward.4} parent=11 // pred_fallthru
        _
      // Predicated region
      $region17: #{dccnn_forward.4} parent=11 // pred_check
        %p149 = pneg %p99
      $region18: #{dccnn_forward.4} parent=11 // pred_check_branch
        %151 = sbr.rel (%p149) target = $region20
      $region19: #{dccnn_forward.4} parent=11 // pred_region
        %p152 = scmp.lt.s32.totalorder %s19, 0
        %s153 = scalar_select %p152, %s19, 0
        %s154 = scalar_lea.vmem %s2, %s153
      $region20: #{dccnn_forward.4} parent=11 // pred_fallthru
        _
    $region12: #{dccnn_forward.4} parent=5 // pred_fallthru
      _
    %p155 = scmp.lt.s32.totalorder %s9, 4
    // Predicated region
    $region21: #{dccnn_forward.4} parent=5 // pred_check
      %p156 = pneg %p155
    $region22: #{dccnn_forward.4} parent=5 // pred_check_branch
      %158 = sbr.rel (%p156) target = $region24
    $region23: #{dccnn_forward.4} parent=5 // pred_region
      // Predicated region
      $region25: #{dccnn_forward.4} parent=23 // pred_check
        %p159 = pneg %p41
      $region26: #{dccnn_forward.4} parent=23 // pred_check_branch
        %161 = sbr.rel (%p159) target = $region28
      $region27: #{dccnn_forward.4} parent=23 // pred_region
        %s162 = smul.u32 256, %s16
        %p163 = scmp.lt.s32.totalorder %s162, 1023
        %s164 = scalar_select %p163, %s162, 1023
        %s165 = smul.addr %s164, 4
        %s166 = scalar_lea.vmem %s0, %s165
        %s167 = smul.u32 256, %s16
      $region28: #{dccnn_forward.4} parent=23 // pred_fallthru
        _
    $region24: #{dccnn_forward.4} parent=5 // pred_fallthru
      _
    %p168 = scmp.le.s32.totalorder 1, %s9
    %p169 = scmp.lt.s32.totalorder %s9, 5
    %p170 = pnand %p168, %p169
    %p171 = pneg %p170
    // Predicated region
    $region29: #{dccnn_forward.4} parent=5 // pred_check
      _
    $region30: #{dccnn_forward.4} parent=5 // pred_check_branch
      %173 = sbr.rel (%p170) target = $region32
    $region31: #{dccnn_forward.4} parent=5 // pred_region
      %s174 = ssub.s32 %s9, 1
      %s175 = smul.u32 256, %s18
      %p176 = scmp.lt.s32.totalorder %s175, 1023
      %s177 = scalar_select %p176, %s175, 1023
      %s178 = smul.addr %s177, 4
      %s179 = scalar_lea.vmem %s0, %s178
      %p180 = pneg %p47
      %p181 = pneg %p44
      %p182 = scmp.lt.s32.totalorder %s19, 0
      %s183 = scalar_select %p182, %s19, 0
      %s184 = smul.addr %s183, 4
      %s185 = scalar_lea.vmem %s1, %s184
      %p186 = pneg %p73
      %p187 = pneg %p70
      %p188 = scmp.lt.s32.totalorder %s19, 0
      %s189 = scalar_select %p188, %s19, 0
      %s190 = scalar_lea.vmem %s2, %s189
      %p191 = pneg %p99
      %p192 = pneg %p96
      %p193 = pneg %p127
      %p194 = pneg %p124
      %s195 = smul.u32 256, %s18
      %p196 = scmp.lt.s32.totalorder %s195, 1023
      %s197 = scalar_select %p196, %s195, 1023
      %p198 = scmp.lt.s32.totalorder %s19, 0
      %s199 = scalar_select %p198, %s19, 0
      %s200 = sadd.s32 %s199, %s197
      %s201 = smul.addr %s200, 4
      %s202 = scalar_lea.vmem %s3, %s201
      %s203 = smul.u32 256, %s18
      %p204 = scmp.lt.s32.totalorder %s203, 1023
      %s205 = scalar_select %p204, %s203, 1023
      %s206 = smul.addr %s205, 4
      %s207 = scalar_lea.vmem %s0, %s206
      %s208 = smul.u32 256, %s18
      %p209 = scmp.lt.s32.totalorder %s19, 0
      %s210 = scalar_select %p209, %s19, 0
      %s211 = smul.addr %s210, 4
      %s212 = scalar_lea.vmem %s1, %s211
      %p213 = scmp.lt.s32.totalorder %s19, 0
      %s214 = scalar_select %p213, %s19, 0
      %s215 = scalar_lea.vmem %s2, %s214
      %s216 = smul.u32 256, %s18
      %p217 = scmp.lt.s32.totalorder %s216, 1023
      %s218 = scalar_select %p217, %s216, 1023
      %p219 = scmp.lt.s32.totalorder %s19, 0
      %s220 = scalar_select %p219, %s19, 0
      %s221 = sadd.s32 %s220, %s218
      %s222 = smul.addr %s221, 4
      %s223 = scalar_lea.vmem %s3, %s222
      %s224 = smul.u32 256, %s18
      %v226 = vld [vmem:[%s207] sm:$0xf]
      %v227 = vld [vmem:[%s207 + $0x4] sm:$0xf]
      %v228 = vld [vmem:[%s207 + $0x8] sm:$0xf]
      %v229 = vld [vmem:[%s207 + $0xc] sm:$0xf]
      %v230 = vld [vmem:[%s207 + $0x10] sm:$0xf]
      %v231 = vld [vmem:[%s207 + $0x14] sm:$0xf]
      %v232 = vld [vmem:[%s207 + $0x18] sm:$0xf]
      %v233 = vld [vmem:[%s207 + $0x1c] sm:$0xf]
      %v234 = vld [vmem:[%s207 + $0x20] sm:$0xf]
      %v235 = vld [vmem:[%s207 + $0x24] sm:$0xf]
      %v236 = vld [vmem:[%s207 + $0x28] sm:$0xf]
      %v237 = vld [vmem:[%s207 + $0x2c] sm:$0xf]
      %v238 = vld [vmem:[%s207 + $0x30] sm:$0xf]
      %v239 = vld [vmem:[%s207 + $0x34] sm:$0xf]
      %v240 = vld [vmem:[%s207 + $0x38] sm:$0xf]
      %v241 = vld [vmem:[%s207 + $0x3c] sm:$0xf]
      %v242 = vld [vmem:[%s207 + $0x40] sm:$0xf]
      %v243 = vld [vmem:[%s207 + $0x44] sm:$0xf]
      %v244 = vld [vmem:[%s207 + $0x48] sm:$0xf]
      %v245 = vld [vmem:[%s207 + $0x4c] sm:$0xf]
      %v246 = vld [vmem:[%s207 + $0x50] sm:$0xf]
      %v247 = vld [vmem:[%s207 + $0x54] sm:$0xf]
      %v248 = vld [vmem:[%s207 + $0x58] sm:$0xf]
      %v249 = vld [vmem:[%s207 + $0x5c] sm:$0xf]
      %v250 = vld [vmem:[%s207 + $0x60] sm:$0xf]
      %v251 = vld [vmem:[%s207 + $0x64] sm:$0xf]
      %v252 = vld [vmem:[%s207 + $0x68] sm:$0xf]
      %v253 = vld [vmem:[%s207 + $0x6c] sm:$0xf]
      %v254 = vld [vmem:[%s207 + $0x70] sm:$0xf]
      %v255 = vld [vmem:[%s207 + $0x74] sm:$0xf]
      %v256 = vld [vmem:[%s207 + $0x78] sm:$0xf]
      %v257 = vld [vmem:[%s207 + $0x7c] sm:$0xf]
      %v258 = vld [vmem:[%s207 + $0x80] sm:$0xf]
      %v259 = vld [vmem:[%s207 + $0x84] sm:$0xf]
      %v260 = vld [vmem:[%s207 + $0x88] sm:$0xf]
      %v261 = vld [vmem:[%s207 + $0x8c] sm:$0xf]
      %v262 = vld [vmem:[%s207 + $0x90] sm:$0xf]
      %v263 = vld [vmem:[%s207 + $0x94] sm:$0xf]
      %v264 = vld [vmem:[%s207 + $0x98] sm:$0xf]
      %v265 = vld [vmem:[%s207 + $0x9c] sm:$0xf]
      %v266 = vld [vmem:[%s207 + $0xa0] sm:$0xf]
      %v267 = vld [vmem:[%s207 + $0xa4] sm:$0xf]
      %v268 = vld [vmem:[%s207 + $0xa8] sm:$0xf]
      %v269 = vld [vmem:[%s207 + $0xac] sm:$0xf]
      %v270 = vld [vmem:[%s207 + $0xb0] sm:$0xf]
      %v271 = vld [vmem:[%s207 + $0xb4] sm:$0xf]
      %v272 = vld [vmem:[%s207 + $0xb8] sm:$0xf]
      %v273 = vld [vmem:[%s207 + $0xbc] sm:$0xf]
      %v274 = vld [vmem:[%s207 + $0xc0] sm:$0xf]
      %v275 = vld [vmem:[%s207 + $0xc4] sm:$0xf]
      %v276 = vld [vmem:[%s207 + $0xc8] sm:$0xf]
      %v277 = vld [vmem:[%s207 + $0xcc] sm:$0xf]
      %v278 = vld [vmem:[%s207 + $0xd0] sm:$0xf]
      %v279 = vld [vmem:[%s207 + $0xd4] sm:$0xf]
      %v280 = vld [vmem:[%s207 + $0xd8] sm:$0xf]
      %v281 = vld [vmem:[%s207 + $0xdc] sm:$0xf]
      %v282 = vld [vmem:[%s207 + $0xe0] sm:$0xf]
      %v283 = vld [vmem:[%s207 + $0xe4] sm:$0xf]
      %v284 = vld [vmem:[%s207 + $0xe8] sm:$0xf]
      %v285 = vld [vmem:[%s207 + $0xec] sm:$0xf]
      %v286 = vld [vmem:[%s207 + $0xf0] sm:$0xf]
      %v287 = vld [vmem:[%s207 + $0xf4] sm:$0xf]
      %v288 = vld [vmem:[%s207 + $0xf8] sm:$0xf]
      %v289 = vld [vmem:[%s207 + $0xfc] sm:$0xf]
      %v290 = vld [vmem:[%s207 + $0x100] sm:$0xf]
      %v291 = vld [vmem:[%s207 + $0x104] sm:$0xf]
      %v292 = vld [vmem:[%s207 + $0x108] sm:$0xf]
      %v293 = vld [vmem:[%s207 + $0x10c] sm:$0xf]
      %v294 = vld [vmem:[%s207 + $0x110] sm:$0xf]
      %v295 = vld [vmem:[%s207 + $0x114] sm:$0xf]
      %v296 = vld [vmem:[%s207 + $0x118] sm:$0xf]
      %v297 = vld [vmem:[%s207 + $0x11c] sm:$0xf]
      %v298 = vld [vmem:[%s207 + $0x120] sm:$0xf]
      %v299 = vld [vmem:[%s207 + $0x124] sm:$0xf]
      %v300 = vld [vmem:[%s207 + $0x128] sm:$0xf]
      %v301 = vld [vmem:[%s207 + $0x12c] sm:$0xf]
      %v302 = vld [vmem:[%s207 + $0x130] sm:$0xf]
      %v303 = vld [vmem:[%s207 + $0x134] sm:$0xf]
      %v304 = vld [vmem:[%s207 + $0x138] sm:$0xf]
      %v305 = vld [vmem:[%s207 + $0x13c] sm:$0xf]
      %v306 = vld [vmem:[%s207 + $0x140] sm:$0xf]
      %v307 = vld [vmem:[%s207 + $0x144] sm:$0xf]
      %v308 = vld [vmem:[%s207 + $0x148] sm:$0xf]
      %v309 = vld [vmem:[%s207 + $0x14c] sm:$0xf]
      %v310 = vld [vmem:[%s207 + $0x150] sm:$0xf]
      %v311 = vld [vmem:[%s207 + $0x154] sm:$0xf]
      %v312 = vld [vmem:[%s207 + $0x158] sm:$0xf]
      %v313 = vld [vmem:[%s207 + $0x15c] sm:$0xf]
      %v314 = vld [vmem:[%s207 + $0x160] sm:$0xf]
      %v315 = vld [vmem:[%s207 + $0x164] sm:$0xf]
      %v316 = vld [vmem:[%s207 + $0x168] sm:$0xf]
      %v317 = vld [vmem:[%s207 + $0x16c] sm:$0xf]
      %v318 = vld [vmem:[%s207 + $0x170] sm:$0xf]
      %v319 = vld [vmem:[%s207 + $0x174] sm:$0xf]
      %v320 = vld [vmem:[%s207 + $0x178] sm:$0xf]
      %v321 = vld [vmem:[%s207 + $0x17c] sm:$0xf]
      %v322 = vld [vmem:[%s207 + $0x180] sm:$0xf]
      %v323 = vld [vmem:[%s207 + $0x184] sm:$0xf]
      %v324 = vld [vmem:[%s207 + $0x188] sm:$0xf]
      %v325 = vld [vmem:[%s207 + $0x18c] sm:$0xf]
      %v326 = vld [vmem:[%s207 + $0x190] sm:$0xf]
      %v327 = vld [vmem:[%s207 + $0x194] sm:$0xf]
      %v328 = vld [vmem:[%s207 + $0x198] sm:$0xf]
      %v329 = vld [vmem:[%s207 + $0x19c] sm:$0xf]
      %v330 = vld [vmem:[%s207 + $0x1a0] sm:$0xf]
      %v331 = vld [vmem:[%s207 + $0x1a4] sm:$0xf]
      %v332 = vld [vmem:[%s207 + $0x1a8] sm:$0xf]
      %v333 = vld [vmem:[%s207 + $0x1ac] sm:$0xf]
      %v334 = vld [vmem:[%s207 + $0x1b0] sm:$0xf]
      %v335 = vld [vmem:[%s207 + $0x1b4] sm:$0xf]
      %v336 = vld [vmem:[%s207 + $0x1b8] sm:$0xf]
      %v337 = vld [vmem:[%s207 + $0x1bc] sm:$0xf]
      %v338 = vld [vmem:[%s207 + $0x1c0] sm:$0xf]
      %v339 = vld [vmem:[%s207 + $0x1c4] sm:$0xf]
      %v340 = vld [vmem:[%s207 + $0x1c8] sm:$0xf]
      %v341 = vld [vmem:[%s207 + $0x1cc] sm:$0xf]
      %v342 = vld [vmem:[%s207 + $0x1d0] sm:$0xf]
      %v343 = vld [vmem:[%s207 + $0x1d4] sm:$0xf]
      %v344 = vld [vmem:[%s207 + $0x1d8] sm:$0xf]
      %v345 = vld [vmem:[%s207 + $0x1dc] sm:$0xf]
      %v346 = vld [vmem:[%s207 + $0x1e0] sm:$0xf]
      %v347 = vld [vmem:[%s207 + $0x1e4] sm:$0xf]
      %v348 = vld [vmem:[%s207 + $0x1e8] sm:$0xf]
      %v349 = vld [vmem:[%s207 + $0x1ec] sm:$0xf]
      %v350 = vld [vmem:[%s207 + $0x1f0] sm:$0xf]
      %v351 = vld [vmem:[%s207 + $0x1f4] sm:$0xf]
      %v352 = vld [vmem:[%s207 + $0x1f8] sm:$0xf]
      %v353 = vld [vmem:[%s207 + $0x1fc] sm:$0xf]
      %v354 = vld [vmem:[%s207 + $0x200] sm:$0xf]
      %v355 = vld [vmem:[%s207 + $0x204] sm:$0xf]
      %v356 = vld [vmem:[%s207 + $0x208] sm:$0xf]
      %v357 = vld [vmem:[%s207 + $0x20c] sm:$0xf]
      %v358 = vld [vmem:[%s207 + $0x210] sm:$0xf]
      %v359 = vld [vmem:[%s207 + $0x214] sm:$0xf]
      %v360 = vld [vmem:[%s207 + $0x218] sm:$0xf]
      %v361 = vld [vmem:[%s207 + $0x21c] sm:$0xf]
      %v362 = vld [vmem:[%s207 + $0x220] sm:$0xf]
      %v363 = vld [vmem:[%s207 + $0x224] sm:$0xf]
      %v364 = vld [vmem:[%s207 + $0x228] sm:$0xf]
      %v365 = vld [vmem:[%s207 + $0x22c] sm:$0xf]
      %v366 = vld [vmem:[%s207 + $0x230] sm:$0xf]
      %v367 = vld [vmem:[%s207 + $0x234] sm:$0xf]
      %v368 = vld [vmem:[%s207 + $0x238] sm:$0xf]
      %v369 = vld [vmem:[%s207 + $0x23c] sm:$0xf]
      %v370 = vld [vmem:[%s207 + $0x240] sm:$0xf]
      %v371 = vld [vmem:[%s207 + $0x244] sm:$0xf]
      %v372 = vld [vmem:[%s207 + $0x248] sm:$0xf]
      %v373 = vld [vmem:[%s207 + $0x24c] sm:$0xf]
      %v374 = vld [vmem:[%s207 + $0x250] sm:$0xf]
      %v375 = vld [vmem:[%s207 + $0x254] sm:$0xf]
      %v376 = vld [vmem:[%s207 + $0x258] sm:$0xf]
      %v377 = vld [vmem:[%s207 + $0x25c] sm:$0xf]
      %v378 = vld [vmem:[%s207 + $0x260] sm:$0xf]
      %v379 = vld [vmem:[%s207 + $0x264] sm:$0xf]
      %v380 = vld [vmem:[%s207 + $0x268] sm:$0xf]
      %v381 = vld [vmem:[%s207 + $0x26c] sm:$0xf]
      %v382 = vld [vmem:[%s207 + $0x270] sm:$0xf]
      %v383 = vld [vmem:[%s207 + $0x274] sm:$0xf]
      %v384 = vld [vmem:[%s207 + $0x278] sm:$0xf]
      %v385 = vld [vmem:[%s207 + $0x27c] sm:$0xf]
      %v386 = vld [vmem:[%s207 + $0x280] sm:$0xf]
      %v387 = vld [vmem:[%s207 + $0x284] sm:$0xf]
      %v388 = vld [vmem:[%s207 + $0x288] sm:$0xf]
      %v389 = vld [vmem:[%s207 + $0x28c] sm:$0xf]
      %v390 = vld [vmem:[%s207 + $0x290] sm:$0xf]
      %v391 = vld [vmem:[%s207 + $0x294] sm:$0xf]
      %v392 = vld [vmem:[%s207 + $0x298] sm:$0xf]
      %v393 = vld [vmem:[%s207 + $0x29c] sm:$0xf]
      %v394 = vld [vmem:[%s207 + $0x2a0] sm:$0xf]
      %v395 = vld [vmem:[%s207 + $0x2a4] sm:$0xf]
      %v396 = vld [vmem:[%s207 + $0x2a8] sm:$0xf]
      %v397 = vld [vmem:[%s207 + $0x2ac] sm:$0xf]
      %v398 = vld [vmem:[%s207 + $0x2b0] sm:$0xf]
      %v399 = vld [vmem:[%s207 + $0x2b4] sm:$0xf]
      %v400 = vld [vmem:[%s207 + $0x2b8] sm:$0xf]
      %v401 = vld [vmem:[%s207 + $0x2bc] sm:$0xf]
      %v402 = vld [vmem:[%s207 + $0x2c0] sm:$0xf]
      %v403 = vld [vmem:[%s207 + $0x2c4] sm:$0xf]
      %v404 = vld [vmem:[%s207 + $0x2c8] sm:$0xf]
      %v405 = vld [vmem:[%s207 + $0x2cc] sm:$0xf]
      %v406 = vld [vmem:[%s207 + $0x2d0] sm:$0xf]
      %v407 = vld [vmem:[%s207 + $0x2d4] sm:$0xf]
      %v408 = vld [vmem:[%s207 + $0x2d8] sm:$0xf]
      %v409 = vld [vmem:[%s207 + $0x2dc] sm:$0xf]
      %v410 = vld [vmem:[%s207 + $0x2e0] sm:$0xf]
      %v411 = vld [vmem:[%s207 + $0x2e4] sm:$0xf]
      %v412 = vld [vmem:[%s207 + $0x2e8] sm:$0xf]
      %v413 = vld [vmem:[%s207 + $0x2ec] sm:$0xf]
      %v414 = vld [vmem:[%s207 + $0x2f0] sm:$0xf]
      %v415 = vld [vmem:[%s207 + $0x2f4] sm:$0xf]
      %v416 = vld [vmem:[%s207 + $0x2f8] sm:$0xf]
      %v417 = vld [vmem:[%s207 + $0x2fc] sm:$0xf]
      %v418 = vld [vmem:[%s207 + $0x300] sm:$0xf]
      %v419 = vld [vmem:[%s207 + $0x304] sm:$0xf]
      %v420 = vld [vmem:[%s207 + $0x308] sm:$0xf]
      %v421 = vld [vmem:[%s207 + $0x30c] sm:$0xf]
      %v422 = vld [vmem:[%s207 + $0x310] sm:$0xf]
      %v423 = vld [vmem:[%s207 + $0x314] sm:$0xf]
      %v424 = vld [vmem:[%s207 + $0x318] sm:$0xf]
      %v425 = vld [vmem:[%s207 + $0x31c] sm:$0xf]
      %v426 = vld [vmem:[%s207 + $0x320] sm:$0xf]
      %v427 = vld [vmem:[%s207 + $0x324] sm:$0xf]
      %v428 = vld [vmem:[%s207 + $0x328] sm:$0xf]
      %v429 = vld [vmem:[%s207 + $0x32c] sm:$0xf]
      %v430 = vld [vmem:[%s207 + $0x330] sm:$0xf]
      %v431 = vld [vmem:[%s207 + $0x334] sm:$0xf]
      %v432 = vld [vmem:[%s207 + $0x338] sm:$0xf]
      %v433 = vld [vmem:[%s207 + $0x33c] sm:$0xf]
      %v434 = vld [vmem:[%s207 + $0x340] sm:$0xf]
      %v435 = vld [vmem:[%s207 + $0x344] sm:$0xf]
      %v436 = vld [vmem:[%s207 + $0x348] sm:$0xf]
      %v437 = vld [vmem:[%s207 + $0x34c] sm:$0xf]
      %v438 = vld [vmem:[%s207 + $0x350] sm:$0xf]
      %v439 = vld [vmem:[%s207 + $0x354] sm:$0xf]
      %v440 = vld [vmem:[%s207 + $0x358] sm:$0xf]
      %v441 = vld [vmem:[%s207 + $0x35c] sm:$0xf]
      %v442 = vld [vmem:[%s207 + $0x360] sm:$0xf]
      %v443 = vld [vmem:[%s207 + $0x364] sm:$0xf]
      %v444 = vld [vmem:[%s207 + $0x368] sm:$0xf]
      %v445 = vld [vmem:[%s207 + $0x36c] sm:$0xf]
      %v446 = vld [vmem:[%s207 + $0x370] sm:$0xf]
      %v447 = vld [vmem:[%s207 + $0x374] sm:$0xf]
      %v448 = vld [vmem:[%s207 + $0x378] sm:$0xf]
      %v449 = vld [vmem:[%s207 + $0x37c] sm:$0xf]
      %v450 = vld [vmem:[%s207 + $0x380] sm:$0xf]
      %v451 = vld [vmem:[%s207 + $0x384] sm:$0xf]
      %v452 = vld [vmem:[%s207 + $0x388] sm:$0xf]
      %v453 = vld [vmem:[%s207 + $0x38c] sm:$0xf]
      %v454 = vld [vmem:[%s207 + $0x390] sm:$0xf]
      %v455 = vld [vmem:[%s207 + $0x394] sm:$0xf]
      %v456 = vld [vmem:[%s207 + $0x398] sm:$0xf]
      %v457 = vld [vmem:[%s207 + $0x39c] sm:$0xf]
      %v458 = vld [vmem:[%s207 + $0x3a0] sm:$0xf]
      %v459 = vld [vmem:[%s207 + $0x3a4] sm:$0xf]
      %v460 = vld [vmem:[%s207 + $0x3a8] sm:$0xf]
      %v461 = vld [vmem:[%s207 + $0x3ac] sm:$0xf]
      %v462 = vld [vmem:[%s207 + $0x3b0] sm:$0xf]
      %v463 = vld [vmem:[%s207 + $0x3b4] sm:$0xf]
      %v464 = vld [vmem:[%s207 + $0x3b8] sm:$0xf]
      %v465 = vld [vmem:[%s207 + $0x3bc] sm:$0xf]
      %v466 = vld [vmem:[%s207 + $0x3c0] sm:$0xf]
      %v467 = vld [vmem:[%s207 + $0x3c4] sm:$0xf]
      %v468 = vld [vmem:[%s207 + $0x3c8] sm:$0xf]
      %v469 = vld [vmem:[%s207 + $0x3cc] sm:$0xf]
      %v470 = vld [vmem:[%s207 + $0x3d0] sm:$0xf]
      %v471 = vld [vmem:[%s207 + $0x3d4] sm:$0xf]
      %v472 = vld [vmem:[%s207 + $0x3d8] sm:$0xf]
      %v473 = vld [vmem:[%s207 + $0x3dc] sm:$0xf]
      %v474 = vld [vmem:[%s207 + $0x3e0] sm:$0xf]
      %v475 = vld [vmem:[%s207 + $0x3e4] sm:$0xf]
      %v476 = vld [vmem:[%s207 + $0x3e8] sm:$0xf]
      %v477 = vld [vmem:[%s207 + $0x3ec] sm:$0xf]
      %v478 = vld [vmem:[%s207 + $0x3f0] sm:$0xf]
      %v479 = vld [vmem:[%s207 + $0x3f4] sm:$0xf]
      %v480 = vld [vmem:[%s207 + $0x3f8] sm:$0xf]
      %v481 = vld [vmem:[%s207 + $0x3fc] sm:$0xf]
      %v482 = vld [vmem:[%s212] sm:$0xf]
      %v483 = vld [vmem:[%s212 + $0x4] sm:$0xf]
      %v484 = vld [vmem:[%s212 + $0x8] sm:$0xf]
      %v485 = vld [vmem:[%s212 + $0xc] sm:$0xf]
      %v486 = vld [vmem:[%s212 + $0x10] sm:$0xf]
      %v487 = vld [vmem:[%s212 + $0x14] sm:$0xf]
      %v488 = vld [vmem:[%s212 + $0x18] sm:$0xf]
      %v489 = vld [vmem:[%s212 + $0x1c] sm:$0xf]
      %v490 = vld [vmem:[%s212 + $0x20] sm:$0xf]
      %v491 = vld [vmem:[%s212 + $0x24] sm:$0xf]
      %v492 = vld [vmem:[%s212 + $0x28] sm:$0xf]
      %v493 = vld [vmem:[%s212 + $0x2c] sm:$0xf]
      %v494 = vld [vmem:[%s212 + $0x30] sm:$0xf]
      %v495 = vld [vmem:[%s212 + $0x34] sm:$0xf]
      %v496 = vld [vmem:[%s212 + $0x38] sm:$0xf]
      %v497 = vld [vmem:[%s212 + $0x3c] sm:$0xf]
      %v498 = vld [vmem:[%s215] sm:$0x1]
      %v500 = vlaneseq
      %v501 = vshrl.u32 %v500, 7
      %v502 = vsub.s32 0, %v501
      %v503 = vrot.slane %v498, %v502
      %v761 = vunpack.c.l.b16 %v226
      %v762 = vunpack.c.l.b16 %v227
      %v763 = vunpack.c.l.b16 %v228
      %v764 = vunpack.c.l.b16 %v229
      %v765 = vunpack.c.l.b16 %v230
      %v766 = vunpack.c.l.b16 %v231
      %v767 = vunpack.c.l.b16 %v232
      %v768 = vunpack.c.l.b16 %v233
      %v769 = vunpack.c.l.b16 %v234
      %v770 = vunpack.c.l.b16 %v235
      %v771 = vunpack.c.l.b16 %v236
      %v772 = vunpack.c.l.b16 %v237
      %v773 = vunpack.c.l.b16 %v238
      %v774 = vunpack.c.l.b16 %v239
      %v775 = vunpack.c.l.b16 %v240
      %v776 = vunpack.c.l.b16 %v241
      %v777 = vunpack.c.l.b16 %v242
      %v778 = vunpack.c.l.b16 %v243
      %v779 = vunpack.c.l.b16 %v244
      %v780 = vunpack.c.l.b16 %v245
      %v781 = vunpack.c.l.b16 %v246
      %v782 = vunpack.c.l.b16 %v247
      %v783 = vunpack.c.l.b16 %v248
      %v784 = vunpack.c.l.b16 %v249
      %v785 = vunpack.c.l.b16 %v250
      %v786 = vunpack.c.l.b16 %v251
      %v787 = vunpack.c.l.b16 %v252
      %v788 = vunpack.c.l.b16 %v253
      %v789 = vunpack.c.l.b16 %v254
      %v790 = vunpack.c.l.b16 %v255
      %v791 = vunpack.c.l.b16 %v256
      %v792 = vunpack.c.l.b16 %v257
      %v793 = vunpack.c.l.b16 %v258
      %v794 = vunpack.c.l.b16 %v259
      %v795 = vunpack.c.l.b16 %v260
      %v796 = vunpack.c.l.b16 %v261
      %v797 = vunpack.c.l.b16 %v262
      %v798 = vunpack.c.l.b16 %v263
      %v799 = vunpack.c.l.b16 %v264
      %v800 = vunpack.c.l.b16 %v265
      %v801 = vunpack.c.l.b16 %v266
      %v802 = vunpack.c.l.b16 %v267
      %v803 = vunpack.c.l.b16 %v268
      %v804 = vunpack.c.l.b16 %v269
      %v805 = vunpack.c.l.b16 %v270
      %v806 = vunpack.c.l.b16 %v271
      %v807 = vunpack.c.l.b16 %v272
      %v808 = vunpack.c.l.b16 %v273
      %v809 = vunpack.c.l.b16 %v274
      %v810 = vunpack.c.l.b16 %v275
      %v811 = vunpack.c.l.b16 %v276
      %v812 = vunpack.c.l.b16 %v277
      %v813 = vunpack.c.l.b16 %v278
      %v814 = vunpack.c.l.b16 %v279
      %v815 = vunpack.c.l.b16 %v280
      %v816 = vunpack.c.l.b16 %v281
      %v817 = vunpack.c.l.b16 %v282
      %v818 = vunpack.c.l.b16 %v283
      %v819 = vunpack.c.l.b16 %v284
      %v820 = vunpack.c.l.b16 %v285
      %v821 = vunpack.c.l.b16 %v286
      %v822 = vunpack.c.l.b16 %v287
      %v823 = vunpack.c.l.b16 %v288
      %v824 = vunpack.c.l.b16 %v289
      %v825 = vunpack.c.l.b16 %v290
      %v826 = vunpack.c.l.b16 %v291
      %v827 = vunpack.c.l.b16 %v292
      %v828 = vunpack.c.l.b16 %v293
      %v829 = vunpack.c.l.b16 %v294
      %v830 = vunpack.c.l.b16 %v295
      %v831 = vunpack.c.l.b16 %v296
      %v832 = vunpack.c.l.b16 %v297
      %v833 = vunpack.c.l.b16 %v298
      %v834 = vunpack.c.l.b16 %v299
      %v835 = vunpack.c.l.b16 %v300
      %v836 = vunpack.c.l.b16 %v301
      %v837 = vunpack.c.l.b16 %v302
      %v838 = vunpack.c.l.b16 %v303
      %v839 = vunpack.c.l.b16 %v304
      %v840 = vunpack.c.l.b16 %v305
      %v841 = vunpack.c.l.b16 %v306
      %v842 = vunpack.c.l.b16 %v307
      %v843 = vunpack.c.l.b16 %v308
      %v844 = vunpack.c.l.b16 %v309
      %v845 = vunpack.c.l.b16 %v310
      %v846 = vunpack.c.l.b16 %v311
      %v847 = vunpack.c.l.b16 %v312
      %v848 = vunpack.c.l.b16 %v313
      %v849 = vunpack.c.l.b16 %v314
      %v850 = vunpack.c.l.b16 %v315
      %v851 = vunpack.c.l.b16 %v316
      %v852 = vunpack.c.l.b16 %v317
      %v853 = vunpack.c.l.b16 %v318
      %v854 = vunpack.c.l.b16 %v319
      %v855 = vunpack.c.l.b16 %v320
      %v856 = vunpack.c.l.b16 %v321
      %v857 = vunpack.c.l.b16 %v322
      %v858 = vunpack.c.l.b16 %v323
      %v859 = vunpack.c.l.b16 %v324
      %v860 = vunpack.c.l.b16 %v325
      %v861 = vunpack.c.l.b16 %v326
      %v862 = vunpack.c.l.b16 %v327
      %v863 = vunpack.c.l.b16 %v328
      %v864 = vunpack.c.l.b16 %v329
      %v865 = vunpack.c.l.b16 %v330
      %v866 = vunpack.c.l.b16 %v331
      %v867 = vunpack.c.l.b16 %v332
      %v868 = vunpack.c.l.b16 %v333
      %v869 = vunpack.c.l.b16 %v334
      %v870 = vunpack.c.l.b16 %v335
      %v871 = vunpack.c.l.b16 %v336
      %v872 = vunpack.c.l.b16 %v337
      %v873 = vunpack.c.l.b16 %v338
      %v874 = vunpack.c.l.b16 %v339
      %v875 = vunpack.c.l.b16 %v340
      %v876 = vunpack.c.l.b16 %v341
      %v877 = vunpack.c.l.b16 %v342
      %v878 = vunpack.c.l.b16 %v343
      %v879 = vunpack.c.l.b16 %v344
      %v880 = vunpack.c.l.b16 %v345
      %v881 = vunpack.c.l.b16 %v346
      %v882 = vunpack.c.l.b16 %v347
      %v883 = vunpack.c.l.b16 %v348
      %v884 = vunpack.c.l.b16 %v349
      %v885 = vunpack.c.l.b16 %v350
      %v886 = vunpack.c.l.b16 %v351
      %v887 = vunpack.c.l.b16 %v352
      %v888 = vunpack.c.l.b16 %v353
      %v889 = vunpack.c.l.b16 %v354
      %v890 = vunpack.c.l.b16 %v355
      %v891 = vunpack.c.l.b16 %v356
      %v892 = vunpack.c.l.b16 %v357
      %v893 = vunpack.c.l.b16 %v358
      %v894 = vunpack.c.l.b16 %v359
      %v895 = vunpack.c.l.b16 %v360
      %v896 = vunpack.c.l.b16 %v361
      %v897 = vunpack.c.l.b16 %v362
      %v898 = vunpack.c.l.b16 %v363
      %v899 = vunpack.c.l.b16 %v364
      %v900 = vunpack.c.l.b16 %v365
      %v901 = vunpack.c.l.b16 %v366
      %v902 = vunpack.c.l.b16 %v367
      %v903 = vunpack.c.l.b16 %v368
      %v904 = vunpack.c.l.b16 %v369
      %v905 = vunpack.c.l.b16 %v370
      %v906 = vunpack.c.l.b16 %v371
      %v907 = vunpack.c.l.b16 %v372
      %v908 = vunpack.c.l.b16 %v373
      %v909 = vunpack.c.l.b16 %v374
      %v910 = vunpack.c.l.b16 %v375
      %v911 = vunpack.c.l.b16 %v376
      %v912 = vunpack.c.l.b16 %v377
      %v913 = vunpack.c.l.b16 %v378
      %v914 = vunpack.c.l.b16 %v379
      %v915 = vunpack.c.l.b16 %v380
      %v916 = vunpack.c.l.b16 %v381
      %v917 = vunpack.c.l.b16 %v382
      %v918 = vunpack.c.l.b16 %v383
      %v919 = vunpack.c.l.b16 %v384
      %v920 = vunpack.c.l.b16 %v385
      %v921 = vunpack.c.l.b16 %v386
      %v922 = vunpack.c.l.b16 %v387
      %v923 = vunpack.c.l.b16 %v388
      %v924 = vunpack.c.l.b16 %v389
      %v925 = vunpack.c.l.b16 %v390
      %v926 = vunpack.c.l.b16 %v391
      %v927 = vunpack.c.l.b16 %v392
      %v928 = vunpack.c.l.b16 %v393
      %v929 = vunpack.c.l.b16 %v394
      %v930 = vunpack.c.l.b16 %v395
      %v931 = vunpack.c.l.b16 %v396
      %v932 = vunpack.c.l.b16 %v397
      %v933 = vunpack.c.l.b16 %v398
      %v934 = vunpack.c.l.b16 %v399
      %v935 = vunpack.c.l.b16 %v400
      %v936 = vunpack.c.l.b16 %v401
      %v937 = vunpack.c.l.b16 %v402
      %v938 = vunpack.c.l.b16 %v403
      %v939 = vunpack.c.l.b16 %v404
      %v940 = vunpack.c.l.b16 %v405
      %v941 = vunpack.c.l.b16 %v406
      %v942 = vunpack.c.l.b16 %v407
      %v943 = vunpack.c.l.b16 %v408
      %v944 = vunpack.c.l.b16 %v409
      %v945 = vunpack.c.l.b16 %v410
      %v946 = vunpack.c.l.b16 %v411
      %v947 = vunpack.c.l.b16 %v412
      %v948 = vunpack.c.l.b16 %v413
      %v949 = vunpack.c.l.b16 %v414
      %v950 = vunpack.c.l.b16 %v415
      %v951 = vunpack.c.l.b16 %v416
      %v952 = vunpack.c.l.b16 %v417
      %v953 = vunpack.c.l.b16 %v418
      %v954 = vunpack.c.l.b16 %v419
      %v955 = vunpack.c.l.b16 %v420
      %v956 = vunpack.c.l.b16 %v421
      %v957 = vunpack.c.l.b16 %v422
      %v958 = vunpack.c.l.b16 %v423
      %v959 = vunpack.c.l.b16 %v424
      %v960 = vunpack.c.l.b16 %v425
      %v961 = vunpack.c.l.b16 %v426
      %v962 = vunpack.c.l.b16 %v427
      %v963 = vunpack.c.l.b16 %v428
      %v964 = vunpack.c.l.b16 %v429
      %v965 = vunpack.c.l.b16 %v430
      %v966 = vunpack.c.l.b16 %v431
      %v967 = vunpack.c.l.b16 %v432
      %v968 = vunpack.c.l.b16 %v433
      %v969 = vunpack.c.l.b16 %v434
      %v970 = vunpack.c.l.b16 %v435
      %v971 = vunpack.c.l.b16 %v436
      %v972 = vunpack.c.l.b16 %v437
      %v973 = vunpack.c.l.b16 %v438
      %v974 = vunpack.c.l.b16 %v439
      %v975 = vunpack.c.l.b16 %v440
      %v976 = vunpack.c.l.b16 %v441
      %v977 = vunpack.c.l.b16 %v442
      %v978 = vunpack.c.l.b16 %v443
      %v979 = vunpack.c.l.b16 %v444
      %v980 = vunpack.c.l.b16 %v445
      %v981 = vunpack.c.l.b16 %v446
      %v982 = vunpack.c.l.b16 %v447
      %v983 = vunpack.c.l.b16 %v448
      %v984 = vunpack.c.l.b16 %v449
      %v985 = vunpack.c.l.b16 %v450
      %v986 = vunpack.c.l.b16 %v451
      %v987 = vunpack.c.l.b16 %v452
      %v988 = vunpack.c.l.b16 %v453
      %v989 = vunpack.c.l.b16 %v454
      %v990 = vunpack.c.l.b16 %v455
      %v991 = vunpack.c.l.b16 %v456
      %v992 = vunpack.c.l.b16 %v457
      %v993 = vunpack.c.l.b16 %v458
      %v994 = vunpack.c.l.b16 %v459
      %v995 = vunpack.c.l.b16 %v460
      %v996 = vunpack.c.l.b16 %v461
      %v997 = vunpack.c.l.b16 %v462
      %v998 = vunpack.c.l.b16 %v463
      %v999 = vunpack.c.l.b16 %v464
      %v1000 = vunpack.c.l.b16 %v465
      %v1001 = vunpack.c.l.b16 %v466
      %v1002 = vunpack.c.l.b16 %v467
      %v1003 = vunpack.c.l.b16 %v468
      %v1004 = vunpack.c.l.b16 %v469
      %v1005 = vunpack.c.l.b16 %v470
      %v1006 = vunpack.c.l.b16 %v471
      %v1007 = vunpack.c.l.b16 %v472
      %v1008 = vunpack.c.l.b16 %v473
      %v1009 = vunpack.c.l.b16 %v474
      %v1010 = vunpack.c.l.b16 %v475
      %v1011 = vunpack.c.l.b16 %v476
      %v1012 = vunpack.c.l.b16 %v477
      %v1013 = vunpack.c.l.b16 %v478
      %v1014 = vunpack.c.l.b16 %v479
      %v1015 = vunpack.c.l.b16 %v480
      %v1016 = vunpack.c.l.b16 %v481
      %v1017 = vpack.c.b16 %v762, %v761
      %v1018 = vpack.c.b16 %v764, %v763
      %v1019 = vpack.c.b16 %v766, %v765
      %v1020 = vpack.c.b16 %v768, %v767
      %v1021 = vpack.c.b16 %v770, %v769
      %v1022 = vpack.c.b16 %v772, %v771
      %v1023 = vpack.c.b16 %v774, %v773
      %v1024 = vpack.c.b16 %v776, %v775
      %v1025 = vpack.c.b16 %v778, %v777
      %v1026 = vpack.c.b16 %v780, %v779
      %v1027 = vpack.c.b16 %v782, %v781
      %v1028 = vpack.c.b16 %v784, %v783
      %v1029 = vpack.c.b16 %v786, %v785
      %v1030 = vpack.c.b16 %v788, %v787
      %v1031 = vpack.c.b16 %v790, %v789
      %v1032 = vpack.c.b16 %v792, %v791
      %v1033 = vpack.c.b16 %v794, %v793
      %v1034 = vpack.c.b16 %v796, %v795
      %v1035 = vpack.c.b16 %v798, %v797
      %v1036 = vpack.c.b16 %v800, %v799
      %v1037 = vpack.c.b16 %v802, %v801
      %v1038 = vpack.c.b16 %v804, %v803
      %v1039 = vpack.c.b16 %v806, %v805
      %v1040 = vpack.c.b16 %v808, %v807
      %v1041 = vpack.c.b16 %v810, %v809
      %v1042 = vpack.c.b16 %v812, %v811
      %v1043 = vpack.c.b16 %v814, %v813
      %v1044 = vpack.c.b16 %v816, %v815
      %v1045 = vpack.c.b16 %v818, %v817
      %v1046 = vpack.c.b16 %v820, %v819
      %v1047 = vpack.c.b16 %v822, %v821
      %v1048 = vpack.c.b16 %v824, %v823
      %v1049 = vpack.c.b16 %v826, %v825
      %v1050 = vpack.c.b16 %v828, %v827
      %v1051 = vpack.c.b16 %v830, %v829
      %v1052 = vpack.c.b16 %v832, %v831
      %v1053 = vpack.c.b16 %v834, %v833
      %v1054 = vpack.c.b16 %v836, %v835
      %v1055 = vpack.c.b16 %v838, %v837
      %v1056 = vpack.c.b16 %v840, %v839
      %v1057 = vpack.c.b16 %v842, %v841
      %v1058 = vpack.c.b16 %v844, %v843
      %v1059 = vpack.c.b16 %v846, %v845
      %v1060 = vpack.c.b16 %v848, %v847
      %v1061 = vpack.c.b16 %v850, %v849
      %v1062 = vpack.c.b16 %v852, %v851
      %v1063 = vpack.c.b16 %v854, %v853
      %v1064 = vpack.c.b16 %v856, %v855
      %v1065 = vpack.c.b16 %v858, %v857
      %v1066 = vpack.c.b16 %v860, %v859
      %v1067 = vpack.c.b16 %v862, %v861
      %v1068 = vpack.c.b16 %v864, %v863
      %v1069 = vpack.c.b16 %v866, %v865
      %v1070 = vpack.c.b16 %v868, %v867
      %v1071 = vpack.c.b16 %v870, %v869
      %v1072 = vpack.c.b16 %v872, %v871
      %v1073 = vpack.c.b16 %v874, %v873
      %v1074 = vpack.c.b16 %v876, %v875
      %v1075 = vpack.c.b16 %v878, %v877
      %v1076 = vpack.c.b16 %v880, %v879
      %v1077 = vpack.c.b16 %v882, %v881
      %v1078 = vpack.c.b16 %v884, %v883
      %v1079 = vpack.c.b16 %v886, %v885
      %v1080 = vpack.c.b16 %v888, %v887
      %v1081 = vpack.c.b16 %v890, %v889
      %v1082 = vpack.c.b16 %v892, %v891
      %v1083 = vpack.c.b16 %v894, %v893
      %v1084 = vpack.c.b16 %v896, %v895
      %v1085 = vpack.c.b16 %v898, %v897
      %v1086 = vpack.c.b16 %v900, %v899
      %v1087 = vpack.c.b16 %v902, %v901
      %v1088 = vpack.c.b16 %v904, %v903
      %v1089 = vpack.c.b16 %v906, %v905
      %v1090 = vpack.c.b16 %v908, %v907
      %v1091 = vpack.c.b16 %v910, %v909
      %v1092 = vpack.c.b16 %v912, %v911
      %v1093 = vpack.c.b16 %v914, %v913
      %v1094 = vpack.c.b16 %v916, %v915
      %v1095 = vpack.c.b16 %v918, %v917
      %v1096 = vpack.c.b16 %v920, %v919
      %v1097 = vpack.c.b16 %v922, %v921
      %v1098 = vpack.c.b16 %v924, %v923
      %v1099 = vpack.c.b16 %v926, %v925
      %v1100 = vpack.c.b16 %v928, %v927
      %v1101 = vpack.c.b16 %v930, %v929
      %v1102 = vpack.c.b16 %v932, %v931
      %v1103 = vpack.c.b16 %v934, %v933
      %v1104 = vpack.c.b16 %v936, %v935
      %v1105 = vpack.c.b16 %v938, %v937
      %v1106 = vpack.c.b16 %v940, %v939
      %v1107 = vpack.c.b16 %v942, %v941
      %v1108 = vpack.c.b16 %v944, %v943
      %v1109 = vpack.c.b16 %v946, %v945
      %v1110 = vpack.c.b16 %v948, %v947
      %v1111 = vpack.c.b16 %v950, %v949
      %v1112 = vpack.c.b16 %v952, %v951
      %v1113 = vpack.c.b16 %v954, %v953
      %v1114 = vpack.c.b16 %v956, %v955
      %v1115 = vpack.c.b16 %v958, %v957
      %v1116 = vpack.c.b16 %v960, %v959
      %v1117 = vpack.c.b16 %v962, %v961
      %v1118 = vpack.c.b16 %v964, %v963
      %v1119 = vpack.c.b16 %v966, %v965
      %v1120 = vpack.c.b16 %v968, %v967
      %v1121 = vpack.c.b16 %v970, %v969
      %v1122 = vpack.c.b16 %v972, %v971
      %v1123 = vpack.c.b16 %v974, %v973
      %v1124 = vpack.c.b16 %v976, %v975
      %v1125 = vpack.c.b16 %v978, %v977
      %v1126 = vpack.c.b16 %v980, %v979
      %v1127 = vpack.c.b16 %v982, %v981
      %v1128 = vpack.c.b16 %v984, %v983
      %v1129 = vpack.c.b16 %v986, %v985
      %v1130 = vpack.c.b16 %v988, %v987
      %v1131 = vpack.c.b16 %v990, %v989
      %v1132 = vpack.c.b16 %v992, %v991
      %v1133 = vpack.c.b16 %v994, %v993
      %v1134 = vpack.c.b16 %v996, %v995
      %v1135 = vpack.c.b16 %v998, %v997
      %v1136 = vpack.c.b16 %v1000, %v999
      %v1137 = vpack.c.b16 %v1002, %v1001
      %v1138 = vpack.c.b16 %v1004, %v1003
      %v1139 = vpack.c.b16 %v1006, %v1005
      %v1140 = vpack.c.b16 %v1008, %v1007
      %v1141 = vpack.c.b16 %v1010, %v1009
      %v1142 = vpack.c.b16 %v1012, %v1011
      %v1143 = vpack.c.b16 %v1014, %v1013
      %v1144 = vpack.c.b16 %v1016, %v1015
      %v1289 = vunpack.c.l.b16 %v482
      %v1290 = vunpack.c.l.b16 %v483
      %v1291 = vunpack.c.l.b16 %v484
      %v1292 = vunpack.c.l.b16 %v485
      %v1293 = vunpack.c.l.b16 %v486
      %v1294 = vunpack.c.l.b16 %v487
      %v1295 = vunpack.c.l.b16 %v488
      %v1296 = vunpack.c.l.b16 %v489
      %v1297 = vunpack.c.l.b16 %v490
      %v1298 = vunpack.c.l.b16 %v491
      %v1299 = vunpack.c.l.b16 %v492
      %v1300 = vunpack.c.l.b16 %v493
      %v1301 = vunpack.c.l.b16 %v494
      %v1302 = vunpack.c.l.b16 %v495
      %v1303 = vunpack.c.l.b16 %v496
      %v1304 = vunpack.c.l.b16 %v497
      %v1305 = vpack.c.b16 %v1290, %v1289
      %v1306 = vpack.c.b16 %v1292, %v1291
      %v1307 = vpack.c.b16 %v1294, %v1293
      %v1308 = vpack.c.b16 %v1296, %v1295
      %v1309 = vpack.c.b16 %v1298, %v1297
      %v1310 = vpack.c.b16 %v1300, %v1299
      %v1311 = vpack.c.b16 %v1302, %v1301
      %v1312 = vpack.c.b16 %v1304, %v1303
      %1321 = vmatprep.subr.bf16.mxu0 0
      %1322 = vmatpush1.bf16.msra.mxu0 %v1312
      %1323 = vmatprep.subr.bf16.mxu0 0
      %1324 = vmatpush1.bf16.msra.mxu0 %v1311
      %1325 = vmatprep.subr.bf16.mxu0 0
      %1326 = vmatpush1.bf16.msra.mxu0 %v1310
      %1327 = vmatprep.subr.bf16.mxu0 0
      %1328 = vmatpush1.bf16.msra.mxu0 %v1309
      %1329 = vmatprep.subr.bf16.mxu0 0
      %1330 = vmatpush1.bf16.msra.mxu0 %v1308
      %1331 = vmatprep.subr.bf16.mxu0 0
      %1332 = vmatpush1.bf16.msra.mxu0 %v1307
      %1333 = vmatprep.subr.bf16.mxu0 0
      %1334 = vmatpush1.bf16.msra.mxu0 %v1306
      %1335 = vmatprep.subr.bf16.mxu0 0
      %1336 = vmatpush1.bf16.msra.mxu0 %v1305
      %1337 = vmatprep.subr.bf16.mxu0 0
      %1338 = vmatpush2.bf16.msra.mxu0 0
      %1339 = vmatprep.subr.bf16.mxu0 0
      %1340 = vmatpush2.bf16.msra.mxu0 0
      %1341 = vmatprep.subr.bf16.mxu0 0
      %1342 = vmatpush2.bf16.msra.mxu0 0
      %1343 = vmatprep.subr.bf16.mxu0 0
      %1344 = vmatpush2.bf16.msra.mxu0 0
      %1345 = vmatprep.subr.bf16.mxu0 0
      %1346 = vmatpush2.bf16.msra.mxu0 0
      %1347 = vmatprep.subr.bf16.mxu0 0
      %1348 = vmatpush2.bf16.msra.mxu0 0
      %1349 = vmatprep.subr.bf16.mxu0 0
      %1350 = vmatpush2.bf16.msra.mxu0 0
      %1351 = vmatprep.subr.bf16.mxu0 0
      %1352 = vmatpush2.bf16.msra.mxu0 0
      %1353 = vmatprep.mubr.bf16.mxu0 0
      %1354 = vmatmul.mubr.bf16.gmra.mxu0 %v1017
      %v1355 = vpop.f32.mrf.mxu0
      %v1356 = vadd.f32 %v503, %v1355
      %v1357 = vpop.f32.mrf.mxu0
      %v1358 = vpop.f32.mrf.mxu0
      %v1359 = vadd.f32 %v503, %v1358
      %v1360 = vpop.f32.mrf.mxu0
      %1361 = vmatprep.mubr.bf16.mxu0 0
      %1362 = vmatmul.mubr.bf16.gmra.mxu0 %v1018
      %v1363 = vpop.f32.mrf.mxu0
      %v1364 = vadd.f32 %v503, %v1363
      %v1365 = vpop.f32.mrf.mxu0
      %v1366 = vpop.f32.mrf.mxu0
      %v1367 = vadd.f32 %v503, %v1366
      %v1368 = vpop.f32.mrf.mxu0
      %1369 = vmatprep.mubr.bf16.mxu0 0
      %1370 = vmatmul.mubr.bf16.gmra.mxu0 %v1019
      %v1371 = vpop.f32.mrf.mxu0
      %v1372 = vadd.f32 %v503, %v1371
      %v1373 = vpop.f32.mrf.mxu0
      %v1374 = vpop.f32.mrf.mxu0
      %v1375 = vadd.f32 %v503, %v1374
      %v1376 = vpop.f32.mrf.mxu0
      %1377 = vmatprep.mubr.bf16.mxu0 0
      %1378 = vmatmul.mubr.bf16.gmra.mxu0 %v1020
      %v1379 = vpop.f32.mrf.mxu0
      %v1380 = vadd.f32 %v503, %v1379
      %v1381 = vpop.f32.mrf.mxu0
      %v1382 = vpop.f32.mrf.mxu0
      %v1383 = vadd.f32 %v503, %v1382
      %v1384 = vpop.f32.mrf.mxu0
      %1385 = vmatprep.mubr.bf16.mxu0 0
      %1386 = vmatmul.mubr.bf16.gmra.mxu0 %v1021
      %v1387 = vpop.f32.mrf.mxu0
      %v1388 = vadd.f32 %v503, %v1387
      %v1389 = vpop.f32.mrf.mxu0
      %v1390 = vpop.f32.mrf.mxu0
      %v1391 = vadd.f32 %v503, %v1390
      %v1392 = vpop.f32.mrf.mxu0
      %1393 = vmatprep.mubr.bf16.mxu0 0
      %1394 = vmatmul.mubr.bf16.gmra.mxu0 %v1022
      %v1395 = vpop.f32.mrf.mxu0
      %v1396 = vadd.f32 %v503, %v1395
      %v1397 = vpop.f32.mrf.mxu0
      %v1398 = vpop.f32.mrf.mxu0
      %v1399 = vadd.f32 %v503, %v1398
      %v1400 = vpop.f32.mrf.mxu0
      %1401 = vmatprep.mubr.bf16.mxu0 0
      %1402 = vmatmul.mubr.bf16.gmra.mxu0 %v1023
      %v1403 = vpop.f32.mrf.mxu0
      %v1404 = vadd.f32 %v503, %v1403
      %v1405 = vpop.f32.mrf.mxu0
      %v1406 = vpop.f32.mrf.mxu0
      %v1407 = vadd.f32 %v503, %v1406
      %v1408 = vpop.f32.mrf.mxu0
      %1409 = vmatprep.mubr.bf16.mxu0 0
      %1410 = vmatmul.mubr.bf16.gmra.mxu0 %v1024
      %v1411 = vpop.f32.mrf.mxu0
      %v1412 = vadd.f32 %v503, %v1411
      %v1413 = vpop.f32.mrf.mxu0
      %v1414 = vpop.f32.mrf.mxu0
      %v1415 = vadd.f32 %v503, %v1414
      %v1416 = vpop.f32.mrf.mxu0
      %1417 = vmatprep.mubr.bf16.mxu0 0
      %1418 = vmatmul.mubr.bf16.gmra.mxu0 %v1025
      %v1419 = vpop.f32.mrf.mxu0
      %v1420 = vadd.f32 %v503, %v1419
      %v1421 = vpop.f32.mrf.mxu0
      %v1422 = vpop.f32.mrf.mxu0
      %v1423 = vadd.f32 %v503, %v1422
      %v1424 = vpop.f32.mrf.mxu0
      %1425 = vmatprep.mubr.bf16.mxu0 0
      %1426 = vmatmul.mubr.bf16.gmra.mxu0 %v1026
      %v1427 = vpop.f32.mrf.mxu0
      %v1428 = vadd.f32 %v503, %v1427
      %v1429 = vpop.f32.mrf.mxu0
      %v1430 = vpop.f32.mrf.mxu0
      %v1431 = vadd.f32 %v503, %v1430
      %v1432 = vpop.f32.mrf.mxu0
      %1433 = vmatprep.mubr.bf16.mxu0 0
      %1434 = vmatmul.mubr.bf16.gmra.mxu0 %v1027
      %v1435 = vpop.f32.mrf.mxu0
      %v1436 = vadd.f32 %v503, %v1435
      %v1437 = vpop.f32.mrf.mxu0
      %v1438 = vpop.f32.mrf.mxu0
      %v1439 = vadd.f32 %v503, %v1438
      %v1440 = vpop.f32.mrf.mxu0
      %1441 = vmatprep.mubr.bf16.mxu0 0
      %1442 = vmatmul.mubr.bf16.gmra.mxu0 %v1028
      %v1443 = vpop.f32.mrf.mxu0
      %v1444 = vadd.f32 %v503, %v1443
      %v1445 = vpop.f32.mrf.mxu0
      %v1446 = vpop.f32.mrf.mxu0
      %v1447 = vadd.f32 %v503, %v1446
      %v1448 = vpop.f32.mrf.mxu0
      %1449 = vmatprep.mubr.bf16.mxu0 0
      %1450 = vmatmul.mubr.bf16.gmra.mxu0 %v1029
      %v1451 = vpop.f32.mrf.mxu0
      %v1452 = vadd.f32 %v503, %v1451
      %v1453 = vpop.f32.mrf.mxu0
      %v1454 = vpop.f32.mrf.mxu0
      %v1455 = vadd.f32 %v503, %v1454
      %v1456 = vpop.f32.mrf.mxu0
      %1457 = vmatprep.mubr.bf16.mxu0 0
      %1458 = vmatmul.mubr.bf16.gmra.mxu0 %v1030
      %v1459 = vpop.f32.mrf.mxu0
      %v1460 = vadd.f32 %v503, %v1459
      %v1461 = vpop.f32.mrf.mxu0
      %v1462 = vpop.f32.mrf.mxu0
      %v1463 = vadd.f32 %v503, %v1462
      %v1464 = vpop.f32.mrf.mxu0
      %1465 = vmatprep.mubr.bf16.mxu0 0
      %1466 = vmatmul.mubr.bf16.gmra.mxu0 %v1031
      %v1467 = vpop.f32.mrf.mxu0
      %v1468 = vadd.f32 %v503, %v1467
      %v1469 = vpop.f32.mrf.mxu0
      %v1470 = vpop.f32.mrf.mxu0
      %v1471 = vadd.f32 %v503, %v1470
      %v1472 = vpop.f32.mrf.mxu0
      %1473 = vmatprep.mubr.bf16.mxu0 0
      %1474 = vmatmul.mubr.bf16.gmra.mxu0 %v1032
      %v1475 = vpop.f32.mrf.mxu0
      %v1476 = vadd.f32 %v503, %v1475
      %v1477 = vpop.f32.mrf.mxu0
      %v1478 = vpop.f32.mrf.mxu0
      %v1479 = vadd.f32 %v503, %v1478
      %v1480 = vpop.f32.mrf.mxu0
      %1481 = vmatprep.mubr.bf16.mxu0 0
      %1482 = vmatmul.mubr.bf16.gmra.mxu0 %v1033
      %v1483 = vpop.f32.mrf.mxu0
      %v1484 = vadd.f32 %v503, %v1483
      %v1485 = vpop.f32.mrf.mxu0
      %v1486 = vpop.f32.mrf.mxu0
      %v1487 = vadd.f32 %v503, %v1486
      %v1488 = vpop.f32.mrf.mxu0
      %1489 = vmatprep.mubr.bf16.mxu0 0
      %1490 = vmatmul.mubr.bf16.gmra.mxu0 %v1034
      %v1491 = vpop.f32.mrf.mxu0
      %v1492 = vadd.f32 %v503, %v1491
      %v1493 = vpop.f32.mrf.mxu0
      %v1494 = vpop.f32.mrf.mxu0
      %v1495 = vadd.f32 %v503, %v1494
      %v1496 = vpop.f32.mrf.mxu0
      %1497 = vmatprep.mubr.bf16.mxu0 0
      %1498 = vmatmul.mubr.bf16.gmra.mxu0 %v1035
      %v1499 = vpop.f32.mrf.mxu0
      %v1500 = vadd.f32 %v503, %v1499
      %v1501 = vpop.f32.mrf.mxu0
      %v1502 = vpop.f32.mrf.mxu0
      %v1503 = vadd.f32 %v503, %v1502
      %v1504 = vpop.f32.mrf.mxu0
      %1505 = vmatprep.mubr.bf16.mxu0 0
      %1506 = vmatmul.mubr.bf16.gmra.mxu0 %v1036
      %v1507 = vpop.f32.mrf.mxu0
      %v1508 = vadd.f32 %v503, %v1507
      %v1509 = vpop.f32.mrf.mxu0
      %v1510 = vpop.f32.mrf.mxu0
      %v1511 = vadd.f32 %v503, %v1510
      %v1512 = vpop.f32.mrf.mxu0
      %1513 = vmatprep.mubr.bf16.mxu0 0
      %1514 = vmatmul.mubr.bf16.gmra.mxu0 %v1037
      %v1515 = vpop.f32.mrf.mxu0
      %v1516 = vadd.f32 %v503, %v1515
      %v1517 = vpop.f32.mrf.mxu0
      %v1518 = vpop.f32.mrf.mxu0
      %v1519 = vadd.f32 %v503, %v1518
      %v1520 = vpop.f32.mrf.mxu0
      %1521 = vmatprep.mubr.bf16.mxu0 0
      %1522 = vmatmul.mubr.bf16.gmra.mxu0 %v1038
      %v1523 = vpop.f32.mrf.mxu0
      %v1524 = vadd.f32 %v503, %v1523
      %v1525 = vpop.f32.mrf.mxu0
      %v1526 = vpop.f32.mrf.mxu0
      %v1527 = vadd.f32 %v503, %v1526
      %v1528 = vpop.f32.mrf.mxu0
      %1529 = vmatprep.mubr.bf16.mxu0 0
      %1530 = vmatmul.mubr.bf16.gmra.mxu0 %v1039
      %v1531 = vpop.f32.mrf.mxu0
      %v1532 = vadd.f32 %v503, %v1531
      %v1533 = vpop.f32.mrf.mxu0
      %v1534 = vpop.f32.mrf.mxu0
      %v1535 = vadd.f32 %v503, %v1534
      %v1536 = vpop.f32.mrf.mxu0
      %1537 = vmatprep.mubr.bf16.mxu0 0
      %1538 = vmatmul.mubr.bf16.gmra.mxu0 %v1040
      %v1539 = vpop.f32.mrf.mxu0
      %v1540 = vadd.f32 %v503, %v1539
      %v1541 = vpop.f32.mrf.mxu0
      %v1542 = vpop.f32.mrf.mxu0
      %v1543 = vadd.f32 %v503, %v1542
      %v1544 = vpop.f32.mrf.mxu0
      %1545 = vmatprep.mubr.bf16.mxu0 0
      %1546 = vmatmul.mubr.bf16.gmra.mxu0 %v1041
      %v1547 = vpop.f32.mrf.mxu0
      %v1548 = vadd.f32 %v503, %v1547
      %v1549 = vpop.f32.mrf.mxu0
      %v1550 = vpop.f32.mrf.mxu0
      %v1551 = vadd.f32 %v503, %v1550
      %v1552 = vpop.f32.mrf.mxu0
      %1553 = vmatprep.mubr.bf16.mxu0 0
      %1554 = vmatmul.mubr.bf16.gmra.mxu0 %v1042
      %v1555 = vpop.f32.mrf.mxu0
      %v1556 = vadd.f32 %v503, %v1555
      %v1557 = vpop.f32.mrf.mxu0
      %v1558 = vpop.f32.mrf.mxu0
      %v1559 = vadd.f32 %v503, %v1558
      %v1560 = vpop.f32.mrf.mxu0
      %1561 = vmatprep.mubr.bf16.mxu0 0
      %1562 = vmatmul.mubr.bf16.gmra.mxu0 %v1043
      %v1563 = vpop.f32.mrf.mxu0
      %v1564 = vadd.f32 %v503, %v1563
      %v1565 = vpop.f32.mrf.mxu0
      %v1566 = vpop.f32.mrf.mxu0
      %v1567 = vadd.f32 %v503, %v1566
      %v1568 = vpop.f32.mrf.mxu0
      %1569 = vmatprep.mubr.bf16.mxu0 0
      %1570 = vmatmul.mubr.bf16.gmra.mxu0 %v1044
      %v1571 = vpop.f32.mrf.mxu0
      %v1572 = vadd.f32 %v503, %v1571
      %v1573 = vpop.f32.mrf.mxu0
      %v1574 = vpop.f32.mrf.mxu0
      %v1575 = vadd.f32 %v503, %v1574
      %v1576 = vpop.f32.mrf.mxu0
      %1577 = vmatprep.mubr.bf16.mxu0 0
      %1578 = vmatmul.mubr.bf16.gmra.mxu0 %v1045
      %v1579 = vpop.f32.mrf.mxu0
      %v1580 = vadd.f32 %v503, %v1579
      %v1581 = vpop.f32.mrf.mxu0
      %v1582 = vpop.f32.mrf.mxu0
      %v1583 = vadd.f32 %v503, %v1582
      %v1584 = vpop.f32.mrf.mxu0
      %1585 = vmatprep.mubr.bf16.mxu0 0
      %1586 = vmatmul.mubr.bf16.gmra.mxu0 %v1046
      %v1587 = vpop.f32.mrf.mxu0
      %v1588 = vadd.f32 %v503, %v1587
      %v1589 = vpop.f32.mrf.mxu0
      %v1590 = vpop.f32.mrf.mxu0
      %v1591 = vadd.f32 %v503, %v1590
      %v1592 = vpop.f32.mrf.mxu0
      %1593 = vmatprep.mubr.bf16.mxu0 0
      %1594 = vmatmul.mubr.bf16.gmra.mxu0 %v1047
      %v1595 = vpop.f32.mrf.mxu0
      %v1596 = vadd.f32 %v503, %v1595
      %v1597 = vpop.f32.mrf.mxu0
      %v1598 = vpop.f32.mrf.mxu0
      %v1599 = vadd.f32 %v503, %v1598
      %v1600 = vpop.f32.mrf.mxu0
      %1601 = vmatprep.mubr.bf16.mxu0 0
      %1602 = vmatmul.mubr.bf16.gmra.mxu0 %v1048
      %v1603 = vpop.f32.mrf.mxu0
      %v1604 = vadd.f32 %v503, %v1603
      %v1605 = vpop.f32.mrf.mxu0
      %v1606 = vpop.f32.mrf.mxu0
      %v1607 = vadd.f32 %v503, %v1606
      %v1608 = vpop.f32.mrf.mxu0
      %1609 = vmatprep.mubr.bf16.mxu0 0
      %1610 = vmatmul.mubr.bf16.gmra.mxu0 %v1049
      %v1611 = vpop.f32.mrf.mxu0
      %v1612 = vadd.f32 %v503, %v1611
      %v1613 = vpop.f32.mrf.mxu0
      %v1614 = vpop.f32.mrf.mxu0
      %v1615 = vadd.f32 %v503, %v1614
      %v1616 = vpop.f32.mrf.mxu0
      %1617 = vmatprep.mubr.bf16.mxu0 0
      %1618 = vmatmul.mubr.bf16.gmra.mxu0 %v1050
      %v1619 = vpop.f32.mrf.mxu0
      %v1620 = vadd.f32 %v503, %v1619
      %v1621 = vpop.f32.mrf.mxu0
      %v1622 = vpop.f32.mrf.mxu0
      %v1623 = vadd.f32 %v503, %v1622
      %v1624 = vpop.f32.mrf.mxu0
      %1625 = vmatprep.mubr.bf16.mxu0 0
      %1626 = vmatmul.mubr.bf16.gmra.mxu0 %v1051
      %v1627 = vpop.f32.mrf.mxu0
      %v1628 = vadd.f32 %v503, %v1627
      %v1629 = vpop.f32.mrf.mxu0
      %v1630 = vpop.f32.mrf.mxu0
      %v1631 = vadd.f32 %v503, %v1630
      %v1632 = vpop.f32.mrf.mxu0
      %1633 = vmatprep.mubr.bf16.mxu0 0
      %1634 = vmatmul.mubr.bf16.gmra.mxu0 %v1052
      %v1635 = vpop.f32.mrf.mxu0
      %v1636 = vadd.f32 %v503, %v1635
      %v1637 = vpop.f32.mrf.mxu0
      %v1638 = vpop.f32.mrf.mxu0
      %v1639 = vadd.f32 %v503, %v1638
      %v1640 = vpop.f32.mrf.mxu0
      %1641 = vmatprep.mubr.bf16.mxu0 0
      %1642 = vmatmul.mubr.bf16.gmra.mxu0 %v1053
      %v1643 = vpop.f32.mrf.mxu0
      %v1644 = vadd.f32 %v503, %v1643
      %v1645 = vpop.f32.mrf.mxu0
      %v1646 = vpop.f32.mrf.mxu0
      %v1647 = vadd.f32 %v503, %v1646
      %v1648 = vpop.f32.mrf.mxu0
      %1649 = vmatprep.mubr.bf16.mxu0 0
      %1650 = vmatmul.mubr.bf16.gmra.mxu0 %v1054
      %v1651 = vpop.f32.mrf.mxu0
      %v1652 = vadd.f32 %v503, %v1651
      %v1653 = vpop.f32.mrf.mxu0
      %v1654 = vpop.f32.mrf.mxu0
      %v1655 = vadd.f32 %v503, %v1654
      %v1656 = vpop.f32.mrf.mxu0
      %1657 = vmatprep.mubr.bf16.mxu0 0
      %1658 = vmatmul.mubr.bf16.gmra.mxu0 %v1055
      %v1659 = vpop.f32.mrf.mxu0
      %v1660 = vadd.f32 %v503, %v1659
      %v1661 = vpop.f32.mrf.mxu0
      %v1662 = vpop.f32.mrf.mxu0
      %v1663 = vadd.f32 %v503, %v1662
      %v1664 = vpop.f32.mrf.mxu0
      %1665 = vmatprep.mubr.bf16.mxu0 0
      %1666 = vmatmul.mubr.bf16.gmra.mxu0 %v1056
      %v1667 = vpop.f32.mrf.mxu0
      %v1668 = vadd.f32 %v503, %v1667
      %v1669 = vpop.f32.mrf.mxu0
      %v1670 = vpop.f32.mrf.mxu0
      %v1671 = vadd.f32 %v503, %v1670
      %v1672 = vpop.f32.mrf.mxu0
      %1673 = vmatprep.mubr.bf16.mxu0 0
      %1674 = vmatmul.mubr.bf16.gmra.mxu0 %v1057
      %v1675 = vpop.f32.mrf.mxu0
      %v1676 = vadd.f32 %v503, %v1675
      %v1677 = vpop.f32.mrf.mxu0
      %v1678 = vpop.f32.mrf.mxu0
      %v1679 = vadd.f32 %v503, %v1678
      %v1680 = vpop.f32.mrf.mxu0
      %1681 = vmatprep.mubr.bf16.mxu0 0
      %1682 = vmatmul.mubr.bf16.gmra.mxu0 %v1058
      %v1683 = vpop.f32.mrf.mxu0
      %v1684 = vadd.f32 %v503, %v1683
      %v1685 = vpop.f32.mrf.mxu0
      %v1686 = vpop.f32.mrf.mxu0
      %v1687 = vadd.f32 %v503, %v1686
      %v1688 = vpop.f32.mrf.mxu0
      %1689 = vmatprep.mubr.bf16.mxu0 0
      %1690 = vmatmul.mubr.bf16.gmra.mxu0 %v1059
      %v1691 = vpop.f32.mrf.mxu0
      %v1692 = vadd.f32 %v503, %v1691
      %v1693 = vpop.f32.mrf.mxu0
      %v1694 = vpop.f32.mrf.mxu0
      %v1695 = vadd.f32 %v503, %v1694
      %v1696 = vpop.f32.mrf.mxu0
      %1697 = vmatprep.mubr.bf16.mxu0 0
      %1698 = vmatmul.mubr.bf16.gmra.mxu0 %v1060
      %v1699 = vpop.f32.mrf.mxu0
      %v1700 = vadd.f32 %v503, %v1699
      %v1701 = vpop.f32.mrf.mxu0
      %v1702 = vpop.f32.mrf.mxu0
      %v1703 = vadd.f32 %v503, %v1702
      %v1704 = vpop.f32.mrf.mxu0
      %1705 = vmatprep.mubr.bf16.mxu0 0
      %1706 = vmatmul.mubr.bf16.gmra.mxu0 %v1061
      %v1707 = vpop.f32.mrf.mxu0
      %v1708 = vadd.f32 %v503, %v1707
      %v1709 = vpop.f32.mrf.mxu0
      %v1710 = vpop.f32.mrf.mxu0
      %v1711 = vadd.f32 %v503, %v1710
      %v1712 = vpop.f32.mrf.mxu0
      %1713 = vmatprep.mubr.bf16.mxu0 0
      %1714 = vmatmul.mubr.bf16.gmra.mxu0 %v1062
      %v1715 = vpop.f32.mrf.mxu0
      %v1716 = vadd.f32 %v503, %v1715
      %v1717 = vpop.f32.mrf.mxu0
      %v1718 = vpop.f32.mrf.mxu0
      %v1719 = vadd.f32 %v503, %v1718
      %v1720 = vpop.f32.mrf.mxu0
      %1721 = vmatprep.mubr.bf16.mxu0 0
      %1722 = vmatmul.mubr.bf16.gmra.mxu0 %v1063
      %v1723 = vpop.f32.mrf.mxu0
      %v1724 = vadd.f32 %v503, %v1723
      %v1725 = vpop.f32.mrf.mxu0
      %v1726 = vpop.f32.mrf.mxu0
      %v1727 = vadd.f32 %v503, %v1726
      %v1728 = vpop.f32.mrf.mxu0
      %1729 = vmatprep.mubr.bf16.mxu0 0
      %1730 = vmatmul.mubr.bf16.gmra.mxu0 %v1064
      %v1731 = vpop.f32.mrf.mxu0
      %v1732 = vadd.f32 %v503, %v1731
      %v1733 = vpop.f32.mrf.mxu0
      %v1734 = vpop.f32.mrf.mxu0
      %v1735 = vadd.f32 %v503, %v1734
      %v1736 = vpop.f32.mrf.mxu0
      %1737 = vmatprep.mubr.bf16.mxu0 0
      %1738 = vmatmul.mubr.bf16.gmra.mxu0 %v1065
      %v1739 = vpop.f32.mrf.mxu0
      %v1740 = vadd.f32 %v503, %v1739
      %v1741 = vpop.f32.mrf.mxu0
      %v1742 = vpop.f32.mrf.mxu0
      %v1743 = vadd.f32 %v503, %v1742
      %v1744 = vpop.f32.mrf.mxu0
      %1745 = vmatprep.mubr.bf16.mxu0 0
      %1746 = vmatmul.mubr.bf16.gmra.mxu0 %v1066
      %v1747 = vpop.f32.mrf.mxu0
      %v1748 = vadd.f32 %v503, %v1747
      %v1749 = vpop.f32.mrf.mxu0
      %v1750 = vpop.f32.mrf.mxu0
      %v1751 = vadd.f32 %v503, %v1750
      %v1752 = vpop.f32.mrf.mxu0
      %1753 = vmatprep.mubr.bf16.mxu0 0
      %1754 = vmatmul.mubr.bf16.gmra.mxu0 %v1067
      %v1755 = vpop.f32.mrf.mxu0
      %v1756 = vadd.f32 %v503, %v1755
      %v1757 = vpop.f32.mrf.mxu0
      %v1758 = vpop.f32.mrf.mxu0
      %v1759 = vadd.f32 %v503, %v1758
      %v1760 = vpop.f32.mrf.mxu0
      %1761 = vmatprep.mubr.bf16.mxu0 0
      %1762 = vmatmul.mubr.bf16.gmra.mxu0 %v1068
      %v1763 = vpop.f32.mrf.mxu0
      %v1764 = vadd.f32 %v503, %v1763
      %v1765 = vpop.f32.mrf.mxu0
      %v1766 = vpop.f32.mrf.mxu0
      %v1767 = vadd.f32 %v503, %v1766
      %v1768 = vpop.f32.mrf.mxu0
      %1769 = vmatprep.mubr.bf16.mxu0 0
      %1770 = vmatmul.mubr.bf16.gmra.mxu0 %v1069
      %v1771 = vpop.f32.mrf.mxu0
      %v1772 = vadd.f32 %v503, %v1771
      %v1773 = vpop.f32.mrf.mxu0
      %v1774 = vpop.f32.mrf.mxu0
      %v1775 = vadd.f32 %v503, %v1774
      %v1776 = vpop.f32.mrf.mxu0
      %1777 = vmatprep.mubr.bf16.mxu0 0
      %1778 = vmatmul.mubr.bf16.gmra.mxu0 %v1070
      %v1779 = vpop.f32.mrf.mxu0
      %v1780 = vadd.f32 %v503, %v1779
      %v1781 = vpop.f32.mrf.mxu0
      %v1782 = vpop.f32.mrf.mxu0
      %v1783 = vadd.f32 %v503, %v1782
      %v1784 = vpop.f32.mrf.mxu0
      %1785 = vmatprep.mubr.bf16.mxu0 0
      %1786 = vmatmul.mubr.bf16.gmra.mxu0 %v1071
      %v1787 = vpop.f32.mrf.mxu0
      %v1788 = vadd.f32 %v503, %v1787
      %v1789 = vpop.f32.mrf.mxu0
      %v1790 = vpop.f32.mrf.mxu0
      %v1791 = vadd.f32 %v503, %v1790
      %v1792 = vpop.f32.mrf.mxu0
      %1793 = vmatprep.mubr.bf16.mxu0 0
      %1794 = vmatmul.mubr.bf16.gmra.mxu0 %v1072
      %v1795 = vpop.f32.mrf.mxu0
      %v1796 = vadd.f32 %v503, %v1795
      %v1797 = vpop.f32.mrf.mxu0
      %v1798 = vpop.f32.mrf.mxu0
      %v1799 = vadd.f32 %v503, %v1798
      %v1800 = vpop.f32.mrf.mxu0
      %1801 = vmatprep.mubr.bf16.mxu0 0
      %1802 = vmatmul.mubr.bf16.gmra.mxu0 %v1073
      %v1803 = vpop.f32.mrf.mxu0
      %v1804 = vadd.f32 %v503, %v1803
      %v1805 = vpop.f32.mrf.mxu0
      %v1806 = vpop.f32.mrf.mxu0
      %v1807 = vadd.f32 %v503, %v1806
      %v1808 = vpop.f32.mrf.mxu0
      %1809 = vmatprep.mubr.bf16.mxu0 0
      %1810 = vmatmul.mubr.bf16.gmra.mxu0 %v1074
      %v1811 = vpop.f32.mrf.mxu0
      %v1812 = vadd.f32 %v503, %v1811
      %v1813 = vpop.f32.mrf.mxu0
      %v1814 = vpop.f32.mrf.mxu0
      %v1815 = vadd.f32 %v503, %v1814
      %v1816 = vpop.f32.mrf.mxu0
      %1817 = vmatprep.mubr.bf16.mxu0 0
      %1818 = vmatmul.mubr.bf16.gmra.mxu0 %v1075
      %v1819 = vpop.f32.mrf.mxu0
      %v1820 = vadd.f32 %v503, %v1819
      %v1821 = vpop.f32.mrf.mxu0
      %v1822 = vpop.f32.mrf.mxu0
      %v1823 = vadd.f32 %v503, %v1822
      %v1824 = vpop.f32.mrf.mxu0
      %1825 = vmatprep.mubr.bf16.mxu0 0
      %1826 = vmatmul.mubr.bf16.gmra.mxu0 %v1076
      %v1827 = vpop.f32.mrf.mxu0
      %v1828 = vadd.f32 %v503, %v1827
      %v1829 = vpop.f32.mrf.mxu0
      %v1830 = vpop.f32.mrf.mxu0
      %v1831 = vadd.f32 %v503, %v1830
      %v1832 = vpop.f32.mrf.mxu0
      %1833 = vmatprep.mubr.bf16.mxu0 0
      %1834 = vmatmul.mubr.bf16.gmra.mxu0 %v1077
      %v1835 = vpop.f32.mrf.mxu0
      %v1836 = vadd.f32 %v503, %v1835
      %v1837 = vpop.f32.mrf.mxu0
      %v1838 = vpop.f32.mrf.mxu0
      %v1839 = vadd.f32 %v503, %v1838
      %v1840 = vpop.f32.mrf.mxu0
      %1841 = vmatprep.mubr.bf16.mxu0 0
      %1842 = vmatmul.mubr.bf16.gmra.mxu0 %v1078
      %v1843 = vpop.f32.mrf.mxu0
      %v1844 = vadd.f32 %v503, %v1843
      %v1845 = vpop.f32.mrf.mxu0
      %v1846 = vpop.f32.mrf.mxu0
      %v1847 = vadd.f32 %v503, %v1846
      %v1848 = vpop.f32.mrf.mxu0
      %1849 = vmatprep.mubr.bf16.mxu0 0
      %1850 = vmatmul.mubr.bf16.gmra.mxu0 %v1079
      %v1851 = vpop.f32.mrf.mxu0
      %v1852 = vadd.f32 %v503, %v1851
      %v1853 = vpop.f32.mrf.mxu0
      %v1854 = vpop.f32.mrf.mxu0
      %v1855 = vadd.f32 %v503, %v1854
      %v1856 = vpop.f32.mrf.mxu0
      %1857 = vmatprep.mubr.bf16.mxu0 0
      %1858 = vmatmul.mubr.bf16.gmra.mxu0 %v1080
      %v1859 = vpop.f32.mrf.mxu0
      %v1860 = vadd.f32 %v503, %v1859
      %v1861 = vpop.f32.mrf.mxu0
      %v1862 = vpop.f32.mrf.mxu0
      %v1863 = vadd.f32 %v503, %v1862
      %v1864 = vpop.f32.mrf.mxu0
      %1865 = vmatprep.mubr.bf16.mxu0 0
      %1866 = vmatmul.mubr.bf16.gmra.mxu0 %v1081
      %v1867 = vpop.f32.mrf.mxu0
      %v1868 = vadd.f32 %v503, %v1867
      %v1869 = vpop.f32.mrf.mxu0
      %v1870 = vpop.f32.mrf.mxu0
      %v1871 = vadd.f32 %v503, %v1870
      %v1872 = vpop.f32.mrf.mxu0
      %1873 = vmatprep.mubr.bf16.mxu0 0
      %1874 = vmatmul.mubr.bf16.gmra.mxu0 %v1082
      %v1875 = vpop.f32.mrf.mxu0
      %v1876 = vadd.f32 %v503, %v1875
      %v1877 = vpop.f32.mrf.mxu0
      %v1878 = vpop.f32.mrf.mxu0
      %v1879 = vadd.f32 %v503, %v1878
      %v1880 = vpop.f32.mrf.mxu0
      %1881 = vmatprep.mubr.bf16.mxu0 0
      %1882 = vmatmul.mubr.bf16.gmra.mxu0 %v1083
      %v1883 = vpop.f32.mrf.mxu0
      %v1884 = vadd.f32 %v503, %v1883
      %v1885 = vpop.f32.mrf.mxu0
      %v1886 = vpop.f32.mrf.mxu0
      %v1887 = vadd.f32 %v503, %v1886
      %v1888 = vpop.f32.mrf.mxu0
      %1889 = vmatprep.mubr.bf16.mxu0 0
      %1890 = vmatmul.mubr.bf16.gmra.mxu0 %v1084
      %v1891 = vpop.f32.mrf.mxu0
      %v1892 = vadd.f32 %v503, %v1891
      %v1893 = vpop.f32.mrf.mxu0
      %v1894 = vpop.f32.mrf.mxu0
      %v1895 = vadd.f32 %v503, %v1894
      %v1896 = vpop.f32.mrf.mxu0
      %1897 = vmatprep.mubr.bf16.mxu0 0
      %1898 = vmatmul.mubr.bf16.gmra.mxu0 %v1085
      %v1899 = vpop.f32.mrf.mxu0
      %v1900 = vadd.f32 %v503, %v1899
      %v1901 = vpop.f32.mrf.mxu0
      %v1902 = vpop.f32.mrf.mxu0
      %v1903 = vadd.f32 %v503, %v1902
      %v1904 = vpop.f32.mrf.mxu0
      %1905 = vmatprep.mubr.bf16.mxu0 0
      %1906 = vmatmul.mubr.bf16.gmra.mxu0 %v1086
      %v1907 = vpop.f32.mrf.mxu0
      %v1908 = vadd.f32 %v503, %v1907
      %v1909 = vpop.f32.mrf.mxu0
      %v1910 = vpop.f32.mrf.mxu0
      %v1911 = vadd.f32 %v503, %v1910
      %v1912 = vpop.f32.mrf.mxu0
      %1913 = vmatprep.mubr.bf16.mxu0 0
      %1914 = vmatmul.mubr.bf16.gmra.mxu0 %v1087
      %v1915 = vpop.f32.mrf.mxu0
      %v1916 = vadd.f32 %v503, %v1915
      %v1917 = vpop.f32.mrf.mxu0
      %v1918 = vpop.f32.mrf.mxu0
      %v1919 = vadd.f32 %v503, %v1918
      %v1920 = vpop.f32.mrf.mxu0
      %1921 = vmatprep.mubr.bf16.mxu0 0
      %1922 = vmatmul.mubr.bf16.gmra.mxu0 %v1088
      %v1923 = vpop.f32.mrf.mxu0
      %v1924 = vadd.f32 %v503, %v1923
      %v1925 = vpop.f32.mrf.mxu0
      %v1926 = vpop.f32.mrf.mxu0
      %v1927 = vadd.f32 %v503, %v1926
      %v1928 = vpop.f32.mrf.mxu0
      %1929 = vmatprep.mubr.bf16.mxu0 0
      %1930 = vmatmul.mubr.bf16.gmra.mxu0 %v1089
      %v1931 = vpop.f32.mrf.mxu0
      %v1932 = vadd.f32 %v503, %v1931
      %v1933 = vpop.f32.mrf.mxu0
      %v1934 = vpop.f32.mrf.mxu0
      %v1935 = vadd.f32 %v503, %v1934
      %v1936 = vpop.f32.mrf.mxu0
      %1937 = vmatprep.mubr.bf16.mxu0 0
      %1938 = vmatmul.mubr.bf16.gmra.mxu0 %v1090
      %v1939 = vpop.f32.mrf.mxu0
      %v1940 = vadd.f32 %v503, %v1939
      %v1941 = vpop.f32.mrf.mxu0
      %v1942 = vpop.f32.mrf.mxu0
      %v1943 = vadd.f32 %v503, %v1942
      %v1944 = vpop.f32.mrf.mxu0
      %1945 = vmatprep.mubr.bf16.mxu0 0
      %1946 = vmatmul.mubr.bf16.gmra.mxu0 %v1091
      %v1947 = vpop.f32.mrf.mxu0
      %v1948 = vadd.f32 %v503, %v1947
      %v1949 = vpop.f32.mrf.mxu0
      %v1950 = vpop.f32.mrf.mxu0
      %v1951 = vadd.f32 %v503, %v1950
      %v1952 = vpop.f32.mrf.mxu0
      %1953 = vmatprep.mubr.bf16.mxu0 0
      %1954 = vmatmul.mubr.bf16.gmra.mxu0 %v1092
      %v1955 = vpop.f32.mrf.mxu0
      %v1956 = vadd.f32 %v503, %v1955
      %v1957 = vpop.f32.mrf.mxu0
      %v1958 = vpop.f32.mrf.mxu0
      %v1959 = vadd.f32 %v503, %v1958
      %v1960 = vpop.f32.mrf.mxu0
      %1961 = vmatprep.mubr.bf16.mxu0 0
      %1962 = vmatmul.mubr.bf16.gmra.mxu0 %v1093
      %v1963 = vpop.f32.mrf.mxu0
      %v1964 = vadd.f32 %v503, %v1963
      %v1965 = vpop.f32.mrf.mxu0
      %v1966 = vpop.f32.mrf.mxu0
      %v1967 = vadd.f32 %v503, %v1966
      %v1968 = vpop.f32.mrf.mxu0
      %1969 = vmatprep.mubr.bf16.mxu0 0
      %1970 = vmatmul.mubr.bf16.gmra.mxu0 %v1094
      %v1971 = vpop.f32.mrf.mxu0
      %v1972 = vadd.f32 %v503, %v1971
      %v1973 = vpop.f32.mrf.mxu0
      %v1974 = vpop.f32.mrf.mxu0
      %v1975 = vadd.f32 %v503, %v1974
      %v1976 = vpop.f32.mrf.mxu0
      %1977 = vmatprep.mubr.bf16.mxu0 0
      %1978 = vmatmul.mubr.bf16.gmra.mxu0 %v1095
      %v1979 = vpop.f32.mrf.mxu0
      %v1980 = vadd.f32 %v503, %v1979
      %v1981 = vpop.f32.mrf.mxu0
      %v1982 = vpop.f32.mrf.mxu0
      %v1983 = vadd.f32 %v503, %v1982
      %v1984 = vpop.f32.mrf.mxu0
      %1985 = vmatprep.mubr.bf16.mxu0 0
      %1986 = vmatmul.mubr.bf16.gmra.mxu0 %v1096
      %v1987 = vpop.f32.mrf.mxu0
      %v1988 = vadd.f32 %v503, %v1987
      %v1989 = vpop.f32.mrf.mxu0
      %v1990 = vpop.f32.mrf.mxu0
      %v1991 = vadd.f32 %v503, %v1990
      %v1992 = vpop.f32.mrf.mxu0
      %1993 = vmatprep.mubr.bf16.mxu0 0
      %1994 = vmatmul.mubr.bf16.gmra.mxu0 %v1097
      %v1995 = vpop.f32.mrf.mxu0
      %v1996 = vadd.f32 %v503, %v1995
      %v1997 = vpop.f32.mrf.mxu0
      %v1998 = vpop.f32.mrf.mxu0
      %v1999 = vadd.f32 %v503, %v1998
      %v2000 = vpop.f32.mrf.mxu0
      %2001 = vmatprep.mubr.bf16.mxu0 0
      %2002 = vmatmul.mubr.bf16.gmra.mxu0 %v1098
      %v2003 = vpop.f32.mrf.mxu0
      %v2004 = vadd.f32 %v503, %v2003
      %v2005 = vpop.f32.mrf.mxu0
      %v2006 = vpop.f32.mrf.mxu0
      %v2007 = vadd.f32 %v503, %v2006
      %v2008 = vpop.f32.mrf.mxu0
      %2009 = vmatprep.mubr.bf16.mxu0 0
      %2010 = vmatmul.mubr.bf16.gmra.mxu0 %v1099
      %v2011 = vpop.f32.mrf.mxu0
      %v2012 = vadd.f32 %v503, %v2011
      %v2013 = vpop.f32.mrf.mxu0
      %v2014 = vpop.f32.mrf.mxu0
      %v2015 = vadd.f32 %v503, %v2014
      %v2016 = vpop.f32.mrf.mxu0
      %2017 = vmatprep.mubr.bf16.mxu0 0
      %2018 = vmatmul.mubr.bf16.gmra.mxu0 %v1100
      %v2019 = vpop.f32.mrf.mxu0
      %v2020 = vadd.f32 %v503, %v2019
      %v2021 = vpop.f32.mrf.mxu0
      %v2022 = vpop.f32.mrf.mxu0
      %v2023 = vadd.f32 %v503, %v2022
      %v2024 = vpop.f32.mrf.mxu0
      %2025 = vmatprep.mubr.bf16.mxu0 0
      %2026 = vmatmul.mubr.bf16.gmra.mxu0 %v1101
      %v2027 = vpop.f32.mrf.mxu0
      %v2028 = vadd.f32 %v503, %v2027
      %v2029 = vpop.f32.mrf.mxu0
      %v2030 = vpop.f32.mrf.mxu0
      %v2031 = vadd.f32 %v503, %v2030
      %v2032 = vpop.f32.mrf.mxu0
      %2033 = vmatprep.mubr.bf16.mxu0 0
      %2034 = vmatmul.mubr.bf16.gmra.mxu0 %v1102
      %v2035 = vpop.f32.mrf.mxu0
      %v2036 = vadd.f32 %v503, %v2035
      %v2037 = vpop.f32.mrf.mxu0
      %v2038 = vpop.f32.mrf.mxu0
      %v2039 = vadd.f32 %v503, %v2038
      %v2040 = vpop.f32.mrf.mxu0
      %2041 = vmatprep.mubr.bf16.mxu0 0
      %2042 = vmatmul.mubr.bf16.gmra.mxu0 %v1103
      %v2043 = vpop.f32.mrf.mxu0
      %v2044 = vadd.f32 %v503, %v2043
      %v2045 = vpop.f32.mrf.mxu0
      %v2046 = vpop.f32.mrf.mxu0
      %v2047 = vadd.f32 %v503, %v2046
      %v2048 = vpop.f32.mrf.mxu0
      %2049 = vmatprep.mubr.bf16.mxu0 0
      %2050 = vmatmul.mubr.bf16.gmra.mxu0 %v1104
      %v2051 = vpop.f32.mrf.mxu0
      %v2052 = vadd.f32 %v503, %v2051
      %v2053 = vpop.f32.mrf.mxu0
      %v2054 = vpop.f32.mrf.mxu0
      %v2055 = vadd.f32 %v503, %v2054
      %v2056 = vpop.f32.mrf.mxu0
      %2057 = vmatprep.mubr.bf16.mxu0 0
      %2058 = vmatmul.mubr.bf16.gmra.mxu0 %v1105
      %v2059 = vpop.f32.mrf.mxu0
      %v2060 = vadd.f32 %v503, %v2059
      %v2061 = vpop.f32.mrf.mxu0
      %v2062 = vpop.f32.mrf.mxu0
      %v2063 = vadd.f32 %v503, %v2062
      %v2064 = vpop.f32.mrf.mxu0
      %2065 = vmatprep.mubr.bf16.mxu0 0
      %2066 = vmatmul.mubr.bf16.gmra.mxu0 %v1106
      %v2067 = vpop.f32.mrf.mxu0
      %v2068 = vadd.f32 %v503, %v2067
      %v2069 = vpop.f32.mrf.mxu0
      %v2070 = vpop.f32.mrf.mxu0
      %v2071 = vadd.f32 %v503, %v2070
      %v2072 = vpop.f32.mrf.mxu0
      %2073 = vmatprep.mubr.bf16.mxu0 0
      %2074 = vmatmul.mubr.bf16.gmra.mxu0 %v1107
      %v2075 = vpop.f32.mrf.mxu0
      %v2076 = vadd.f32 %v503, %v2075
      %v2077 = vpop.f32.mrf.mxu0
      %v2078 = vpop.f32.mrf.mxu0
      %v2079 = vadd.f32 %v503, %v2078
      %v2080 = vpop.f32.mrf.mxu0
      %2081 = vmatprep.mubr.bf16.mxu0 0
      %2082 = vmatmul.mubr.bf16.gmra.mxu0 %v1108
      %v2083 = vpop.f32.mrf.mxu0
      %v2084 = vadd.f32 %v503, %v2083
      %v2085 = vpop.f32.mrf.mxu0
      %v2086 = vpop.f32.mrf.mxu0
      %v2087 = vadd.f32 %v503, %v2086
      %v2088 = vpop.f32.mrf.mxu0
      %2089 = vmatprep.mubr.bf16.mxu0 0
      %2090 = vmatmul.mubr.bf16.gmra.mxu0 %v1109
      %v2091 = vpop.f32.mrf.mxu0
      %v2092 = vadd.f32 %v503, %v2091
      %v2093 = vpop.f32.mrf.mxu0
      %v2094 = vpop.f32.mrf.mxu0
      %v2095 = vadd.f32 %v503, %v2094
      %v2096 = vpop.f32.mrf.mxu0
      %2097 = vmatprep.mubr.bf16.mxu0 0
      %2098 = vmatmul.mubr.bf16.gmra.mxu0 %v1110
      %v2099 = vpop.f32.mrf.mxu0
      %v2100 = vadd.f32 %v503, %v2099
      %v2101 = vpop.f32.mrf.mxu0
      %v2102 = vpop.f32.mrf.mxu0
      %v2103 = vadd.f32 %v503, %v2102
      %v2104 = vpop.f32.mrf.mxu0
      %2105 = vmatprep.mubr.bf16.mxu0 0
      %2106 = vmatmul.mubr.bf16.gmra.mxu0 %v1111
      %v2107 = vpop.f32.mrf.mxu0
      %v2108 = vadd.f32 %v503, %v2107
      %v2109 = vpop.f32.mrf.mxu0
      %v2110 = vpop.f32.mrf.mxu0
      %v2111 = vadd.f32 %v503, %v2110
      %v2112 = vpop.f32.mrf.mxu0
      %2113 = vmatprep.mubr.bf16.mxu0 0
      %2114 = vmatmul.mubr.bf16.gmra.mxu0 %v1112
      %v2115 = vpop.f32.mrf.mxu0
      %v2116 = vadd.f32 %v503, %v2115
      %v2117 = vpop.f32.mrf.mxu0
      %v2118 = vpop.f32.mrf.mxu0
      %v2119 = vadd.f32 %v503, %v2118
      %v2120 = vpop.f32.mrf.mxu0
      %2121 = vmatprep.mubr.bf16.mxu0 0
      %2122 = vmatmul.mubr.bf16.gmra.mxu0 %v1113
      %v2123 = vpop.f32.mrf.mxu0
      %v2124 = vadd.f32 %v503, %v2123
      %v2125 = vpop.f32.mrf.mxu0
      %v2126 = vpop.f32.mrf.mxu0
      %v2127 = vadd.f32 %v503, %v2126
      %v2128 = vpop.f32.mrf.mxu0
      %2129 = vmatprep.mubr.bf16.mxu0 0
      %2130 = vmatmul.mubr.bf16.gmra.mxu0 %v1114
      %v2131 = vpop.f32.mrf.mxu0
      %v2132 = vadd.f32 %v503, %v2131
      %v2133 = vpop.f32.mrf.mxu0
      %v2134 = vpop.f32.mrf.mxu0
      %v2135 = vadd.f32 %v503, %v2134
      %v2136 = vpop.f32.mrf.mxu0
      %2137 = vmatprep.mubr.bf16.mxu0 0
      %2138 = vmatmul.mubr.bf16.gmra.mxu0 %v1115
      %v2139 = vpop.f32.mrf.mxu0
      %v2140 = vadd.f32 %v503, %v2139
      %v2141 = vpop.f32.mrf.mxu0
      %v2142 = vpop.f32.mrf.mxu0
      %v2143 = vadd.f32 %v503, %v2142
      %v2144 = vpop.f32.mrf.mxu0
      %2145 = vmatprep.mubr.bf16.mxu0 0
      %2146 = vmatmul.mubr.bf16.gmra.mxu0 %v1116
      %v2147 = vpop.f32.mrf.mxu0
      %v2148 = vadd.f32 %v503, %v2147
      %v2149 = vpop.f32.mrf.mxu0
      %v2150 = vpop.f32.mrf.mxu0
      %v2151 = vadd.f32 %v503, %v2150
      %v2152 = vpop.f32.mrf.mxu0
      %2153 = vmatprep.mubr.bf16.mxu0 0
      %2154 = vmatmul.mubr.bf16.gmra.mxu0 %v1117
      %v2155 = vpop.f32.mrf.mxu0
      %v2156 = vadd.f32 %v503, %v2155
      %v2157 = vpop.f32.mrf.mxu0
      %v2158 = vpop.f32.mrf.mxu0
      %v2159 = vadd.f32 %v503, %v2158
      %v2160 = vpop.f32.mrf.mxu0
      %2161 = vmatprep.mubr.bf16.mxu0 0
      %2162 = vmatmul.mubr.bf16.gmra.mxu0 %v1118
      %v2163 = vpop.f32.mrf.mxu0
      %v2164 = vadd.f32 %v503, %v2163
      %v2165 = vpop.f32.mrf.mxu0
      %v2166 = vpop.f32.mrf.mxu0
      %v2167 = vadd.f32 %v503, %v2166
      %v2168 = vpop.f32.mrf.mxu0
      %2169 = vmatprep.mubr.bf16.mxu0 0
      %2170 = vmatmul.mubr.bf16.gmra.mxu0 %v1119
      %v2171 = vpop.f32.mrf.mxu0
      %v2172 = vadd.f32 %v503, %v2171
      %v2173 = vpop.f32.mrf.mxu0
      %v2174 = vpop.f32.mrf.mxu0
      %v2175 = vadd.f32 %v503, %v2174
      %v2176 = vpop.f32.mrf.mxu0
      %2177 = vmatprep.mubr.bf16.mxu0 0
      %2178 = vmatmul.mubr.bf16.gmra.mxu0 %v1120
      %v2179 = vpop.f32.mrf.mxu0
      %v2180 = vadd.f32 %v503, %v2179
      %v2181 = vpop.f32.mrf.mxu0
      %v2182 = vpop.f32.mrf.mxu0
      %v2183 = vadd.f32 %v503, %v2182
      %v2184 = vpop.f32.mrf.mxu0
      %2185 = vmatprep.mubr.bf16.mxu0 0
      %2186 = vmatmul.mubr.bf16.gmra.mxu0 %v1121
      %v2187 = vpop.f32.mrf.mxu0
      %v2188 = vadd.f32 %v503, %v2187
      %v2189 = vpop.f32.mrf.mxu0
      %v2190 = vpop.f32.mrf.mxu0
      %v2191 = vadd.f32 %v503, %v2190
      %v2192 = vpop.f32.mrf.mxu0
      %2193 = vmatprep.mubr.bf16.mxu0 0
      %2194 = vmatmul.mubr.bf16.gmra.mxu0 %v1122
      %v2195 = vpop.f32.mrf.mxu0
      %v2196 = vadd.f32 %v503, %v2195
      %v2197 = vpop.f32.mrf.mxu0
      %v2198 = vpop.f32.mrf.mxu0
      %v2199 = vadd.f32 %v503, %v2198
      %v2200 = vpop.f32.mrf.mxu0
      %2201 = vmatprep.mubr.bf16.mxu0 0
      %2202 = vmatmul.mubr.bf16.gmra.mxu0 %v1123
      %v2203 = vpop.f32.mrf.mxu0
      %v2204 = vadd.f32 %v503, %v2203
      %v2205 = vpop.f32.mrf.mxu0
      %v2206 = vpop.f32.mrf.mxu0
      %v2207 = vadd.f32 %v503, %v2206
      %v2208 = vpop.f32.mrf.mxu0
      %2209 = vmatprep.mubr.bf16.mxu0 0
      %2210 = vmatmul.mubr.bf16.gmra.mxu0 %v1124
      %v2211 = vpop.f32.mrf.mxu0
      %v2212 = vadd.f32 %v503, %v2211
      %v2213 = vpop.f32.mrf.mxu0
      %v2214 = vpop.f32.mrf.mxu0
      %v2215 = vadd.f32 %v503, %v2214
      %v2216 = vpop.f32.mrf.mxu0
      %2217 = vmatprep.mubr.bf16.mxu0 0
      %2218 = vmatmul.mubr.bf16.gmra.mxu0 %v1125
      %v2219 = vpop.f32.mrf.mxu0
      %v2220 = vadd.f32 %v503, %v2219
      %v2221 = vpop.f32.mrf.mxu0
      %v2222 = vpop.f32.mrf.mxu0
      %v2223 = vadd.f32 %v503, %v2222
      %v2224 = vpop.f32.mrf.mxu0
      %2225 = vmatprep.mubr.bf16.mxu0 0
      %2226 = vmatmul.mubr.bf16.gmra.mxu0 %v1126
      %v2227 = vpop.f32.mrf.mxu0
      %v2228 = vadd.f32 %v503, %v2227
      %v2229 = vpop.f32.mrf.mxu0
      %v2230 = vpop.f32.mrf.mxu0
      %v2231 = vadd.f32 %v503, %v2230
      %v2232 = vpop.f32.mrf.mxu0
      %2233 = vmatprep.mubr.bf16.mxu0 0
      %2234 = vmatmul.mubr.bf16.gmra.mxu0 %v1127
      %v2235 = vpop.f32.mrf.mxu0
      %v2236 = vadd.f32 %v503, %v2235
      %v2237 = vpop.f32.mrf.mxu0
      %v2238 = vpop.f32.mrf.mxu0
      %v2239 = vadd.f32 %v503, %v2238
      %v2240 = vpop.f32.mrf.mxu0
      %2241 = vmatprep.mubr.bf16.mxu0 0
      %2242 = vmatmul.mubr.bf16.gmra.mxu0 %v1128
      %v2243 = vpop.f32.mrf.mxu0
      %v2244 = vadd.f32 %v503, %v2243
      %v2245 = vpop.f32.mrf.mxu0
      %v2246 = vpop.f32.mrf.mxu0
      %v2247 = vadd.f32 %v503, %v2246
      %v2248 = vpop.f32.mrf.mxu0
      %2249 = vmatprep.mubr.bf16.mxu0 0
      %2250 = vmatmul.mubr.bf16.gmra.mxu0 %v1129
      %v2251 = vpop.f32.mrf.mxu0
      %v2252 = vadd.f32 %v503, %v2251
      %v2253 = vpop.f32.mrf.mxu0
      %v2254 = vpop.f32.mrf.mxu0
      %v2255 = vadd.f32 %v503, %v2254
      %v2256 = vpop.f32.mrf.mxu0
      %2257 = vmatprep.mubr.bf16.mxu0 0
      %2258 = vmatmul.mubr.bf16.gmra.mxu0 %v1130
      %v2259 = vpop.f32.mrf.mxu0
      %v2260 = vadd.f32 %v503, %v2259
      %v2261 = vpop.f32.mrf.mxu0
      %v2262 = vpop.f32.mrf.mxu0
      %v2263 = vadd.f32 %v503, %v2262
      %v2264 = vpop.f32.mrf.mxu0
      %2265 = vmatprep.mubr.bf16.mxu0 0
      %2266 = vmatmul.mubr.bf16.gmra.mxu0 %v1131
      %v2267 = vpop.f32.mrf.mxu0
      %v2268 = vadd.f32 %v503, %v2267
      %v2269 = vpop.f32.mrf.mxu0
      %v2270 = vpop.f32.mrf.mxu0
      %v2271 = vadd.f32 %v503, %v2270
      %v2272 = vpop.f32.mrf.mxu0
      %2273 = vmatprep.mubr.bf16.mxu0 0
      %2274 = vmatmul.mubr.bf16.gmra.mxu0 %v1132
      %v2275 = vpop.f32.mrf.mxu0
      %v2276 = vadd.f32 %v503, %v2275
      %v2277 = vpop.f32.mrf.mxu0
      %v2278 = vpop.f32.mrf.mxu0
      %v2279 = vadd.f32 %v503, %v2278
      %v2280 = vpop.f32.mrf.mxu0
      %2281 = vmatprep.mubr.bf16.mxu0 0
      %2282 = vmatmul.mubr.bf16.gmra.mxu0 %v1133
      %v2283 = vpop.f32.mrf.mxu0
      %v2284 = vadd.f32 %v503, %v2283
      %v2285 = vpop.f32.mrf.mxu0
      %v2286 = vpop.f32.mrf.mxu0
      %v2287 = vadd.f32 %v503, %v2286
      %v2288 = vpop.f32.mrf.mxu0
      %2289 = vmatprep.mubr.bf16.mxu0 0
      %2290 = vmatmul.mubr.bf16.gmra.mxu0 %v1134
      %v2291 = vpop.f32.mrf.mxu0
      %v2292 = vadd.f32 %v503, %v2291
      %v2293 = vpop.f32.mrf.mxu0
      %v2294 = vpop.f32.mrf.mxu0
      %v2295 = vadd.f32 %v503, %v2294
      %v2296 = vpop.f32.mrf.mxu0
      %2297 = vmatprep.mubr.bf16.mxu0 0
      %2298 = vmatmul.mubr.bf16.gmra.mxu0 %v1135
      %v2299 = vpop.f32.mrf.mxu0
      %v2300 = vadd.f32 %v503, %v2299
      %v2301 = vpop.f32.mrf.mxu0
      %v2302 = vpop.f32.mrf.mxu0
      %v2303 = vadd.f32 %v503, %v2302
      %v2304 = vpop.f32.mrf.mxu0
      %2305 = vmatprep.mubr.bf16.mxu0 0
      %2306 = vmatmul.mubr.bf16.gmra.mxu0 %v1136
      %v2307 = vpop.f32.mrf.mxu0
      %v2308 = vadd.f32 %v503, %v2307
      %v2309 = vpop.f32.mrf.mxu0
      %v2310 = vpop.f32.mrf.mxu0
      %v2311 = vadd.f32 %v503, %v2310
      %v2312 = vpop.f32.mrf.mxu0
      %2313 = vmatprep.mubr.bf16.mxu0 0
      %2314 = vmatmul.mubr.bf16.gmra.mxu0 %v1137
      %v2315 = vpop.f32.mrf.mxu0
      %v2316 = vadd.f32 %v503, %v2315
      %v2317 = vpop.f32.mrf.mxu0
      %v2318 = vpop.f32.mrf.mxu0
      %v2319 = vadd.f32 %v503, %v2318
      %v2320 = vpop.f32.mrf.mxu0
      %2321 = vmatprep.mubr.bf16.mxu0 0
      %2322 = vmatmul.mubr.bf16.gmra.mxu0 %v1138
      %v2323 = vpop.f32.mrf.mxu0
      %v2324 = vadd.f32 %v503, %v2323
      %v2325 = vpop.f32.mrf.mxu0
      %v2326 = vpop.f32.mrf.mxu0
      %v2327 = vadd.f32 %v503, %v2326
      %v2328 = vpop.f32.mrf.mxu0
      %2329 = vmatprep.mubr.bf16.mxu0 0
      %2330 = vmatmul.mubr.bf16.gmra.mxu0 %v1139
      %v2331 = vpop.f32.mrf.mxu0
      %v2332 = vadd.f32 %v503, %v2331
      %v2333 = vpop.f32.mrf.mxu0
      %v2334 = vpop.f32.mrf.mxu0
      %v2335 = vadd.f32 %v503, %v2334
      %v2336 = vpop.f32.mrf.mxu0
      %2337 = vmatprep.mubr.bf16.mxu0 0
      %2338 = vmatmul.mubr.bf16.gmra.mxu0 %v1140
      %v2339 = vpop.f32.mrf.mxu0
      %v2340 = vadd.f32 %v503, %v2339
      %v2341 = vpop.f32.mrf.mxu0
      %v2342 = vpop.f32.mrf.mxu0
      %v2343 = vadd.f32 %v503, %v2342
      %v2344 = vpop.f32.mrf.mxu0
      %2345 = vmatprep.mubr.bf16.mxu0 0
      %2346 = vmatmul.mubr.bf16.gmra.mxu0 %v1141
      %v2347 = vpop.f32.mrf.mxu0
      %v2348 = vadd.f32 %v503, %v2347
      %v2349 = vpop.f32.mrf.mxu0
      %v2350 = vpop.f32.mrf.mxu0
      %v2351 = vadd.f32 %v503, %v2350
      %v2352 = vpop.f32.mrf.mxu0
      %2353 = vmatprep.mubr.bf16.mxu0 0
      %2354 = vmatmul.mubr.bf16.gmra.mxu0 %v1142
      %v2355 = vpop.f32.mrf.mxu0
      %v2356 = vadd.f32 %v503, %v2355
      %v2357 = vpop.f32.mrf.mxu0
      %v2358 = vpop.f32.mrf.mxu0
      %v2359 = vadd.f32 %v503, %v2358
      %v2360 = vpop.f32.mrf.mxu0
      %2361 = vmatprep.mubr.bf16.mxu0 0
      %2362 = vmatmul.mubr.bf16.gmra.mxu0 %v1143
      %v2363 = vpop.f32.mrf.mxu0
      %v2364 = vadd.f32 %v503, %v2363
      %v2365 = vpop.f32.mrf.mxu0
      %v2366 = vpop.f32.mrf.mxu0
      %v2367 = vadd.f32 %v503, %v2366
      %v2368 = vpop.f32.mrf.mxu0
      %2369 = vmatprep.mubr.bf16.mxu0 0
      %2370 = vmatmul.mubr.bf16.gmra.mxu0 %v1144
      %v2371 = vpop.f32.mrf.mxu0
      %v2372 = vadd.f32 %v503, %v2371
      %v2373 = vpop.f32.mrf.mxu0
      %v2374 = vpop.f32.mrf.mxu0
      %v2375 = vadd.f32 %v503, %v2374
      %v2376 = vpop.f32.mrf.mxu0
      %2377 = vdwg.mxu0
      %vm2378 = vcmp.ge.f32.partialorder %v1356, 0.0
      %vm2379 = vcmp.ge.f32.partialorder %v1359, 0.0
      %vm2380 = vcmp.ge.f32.partialorder %v1364, 0.0
      %vm2381 = vcmp.ge.f32.partialorder %v1367, 0.0
      %vm2382 = vcmp.ge.f32.partialorder %v1372, 0.0
      %vm2383 = vcmp.ge.f32.partialorder %v1375, 0.0
      %vm2384 = vcmp.ge.f32.partialorder %v1380, 0.0
      %vm2385 = vcmp.ge.f32.partialorder %v1383, 0.0
      %vm2386 = vcmp.ge.f32.partialorder %v1388, 0.0
      %vm2387 = vcmp.ge.f32.partialorder %v1391, 0.0
      %vm2388 = vcmp.ge.f32.partialorder %v1396, 0.0
      %vm2389 = vcmp.ge.f32.partialorder %v1399, 0.0
      %vm2390 = vcmp.ge.f32.partialorder %v1404, 0.0
      %vm2391 = vcmp.ge.f32.partialorder %v1407, 0.0
      %vm2392 = vcmp.ge.f32.partialorder %v1412, 0.0
      %vm2393 = vcmp.ge.f32.partialorder %v1415, 0.0
      %vm2394 = vcmp.ge.f32.partialorder %v1420, 0.0
      %vm2395 = vcmp.ge.f32.partialorder %v1423, 0.0
      %vm2396 = vcmp.ge.f32.partialorder %v1428, 0.0
      %vm2397 = vcmp.ge.f32.partialorder %v1431, 0.0
      %vm2398 = vcmp.ge.f32.partialorder %v1436, 0.0
      %vm2399 = vcmp.ge.f32.partialorder %v1439, 0.0
      %vm2400 = vcmp.ge.f32.partialorder %v1444, 0.0
      %vm2401 = vcmp.ge.f32.partialorder %v1447, 0.0
      %vm2402 = vcmp.ge.f32.partialorder %v1452, 0.0
      %vm2403 = vcmp.ge.f32.partialorder %v1455, 0.0
      %vm2404 = vcmp.ge.f32.partialorder %v1460, 0.0
      %vm2405 = vcmp.ge.f32.partialorder %v1463, 0.0
      %vm2406 = vcmp.ge.f32.partialorder %v1468, 0.0
      %vm2407 = vcmp.ge.f32.partialorder %v1471, 0.0
      %vm2408 = vcmp.ge.f32.partialorder %v1476, 0.0
      %vm2409 = vcmp.ge.f32.partialorder %v1479, 0.0
      %vm2410 = vcmp.ge.f32.partialorder %v1484, 0.0
      %vm2411 = vcmp.ge.f32.partialorder %v1487, 0.0
      %vm2412 = vcmp.ge.f32.partialorder %v1492, 0.0
      %vm2413 = vcmp.ge.f32.partialorder %v1495, 0.0
      %vm2414 = vcmp.ge.f32.partialorder %v1500, 0.0
      %vm2415 = vcmp.ge.f32.partialorder %v1503, 0.0
      %vm2416 = vcmp.ge.f32.partialorder %v1508, 0.0
      %vm2417 = vcmp.ge.f32.partialorder %v1511, 0.0
      %vm2418 = vcmp.ge.f32.partialorder %v1516, 0.0
      %vm2419 = vcmp.ge.f32.partialorder %v1519, 0.0
      %vm2420 = vcmp.ge.f32.partialorder %v1524, 0.0
      %vm2421 = vcmp.ge.f32.partialorder %v1527, 0.0
      %vm2422 = vcmp.ge.f32.partialorder %v1532, 0.0
      %vm2423 = vcmp.ge.f32.partialorder %v1535, 0.0
      %vm2424 = vcmp.ge.f32.partialorder %v1540, 0.0
      %vm2425 = vcmp.ge.f32.partialorder %v1543, 0.0
      %vm2426 = vcmp.ge.f32.partialorder %v1548, 0.0
      %vm2427 = vcmp.ge.f32.partialorder %v1551, 0.0
      %vm2428 = vcmp.ge.f32.partialorder %v1556, 0.0
      %vm2429 = vcmp.ge.f32.partialorder %v1559, 0.0
      %vm2430 = vcmp.ge.f32.partialorder %v1564, 0.0
      %vm2431 = vcmp.ge.f32.partialorder %v1567, 0.0
      %vm2432 = vcmp.ge.f32.partialorder %v1572, 0.0
      %vm2433 = vcmp.ge.f32.partialorder %v1575, 0.0
      %vm2434 = vcmp.ge.f32.partialorder %v1580, 0.0
      %vm2435 = vcmp.ge.f32.partialorder %v1583, 0.0
      %vm2436 = vcmp.ge.f32.partialorder %v1588, 0.0
      %vm2437 = vcmp.ge.f32.partialorder %v1591, 0.0
      %vm2438 = vcmp.ge.f32.partialorder %v1596, 0.0
      %vm2439 = vcmp.ge.f32.partialorder %v1599, 0.0
      %vm2440 = vcmp.ge.f32.partialorder %v1604, 0.0
      %vm2441 = vcmp.ge.f32.partialorder %v1607, 0.0
      %vm2442 = vcmp.ge.f32.partialorder %v1612, 0.0
      %vm2443 = vcmp.ge.f32.partialorder %v1615, 0.0
      %vm2444 = vcmp.ge.f32.partialorder %v1620, 0.0
      %vm2445 = vcmp.ge.f32.partialorder %v1623, 0.0
      %vm2446 = vcmp.ge.f32.partialorder %v1628, 0.0
      %vm2447 = vcmp.ge.f32.partialorder %v1631, 0.0
      %vm2448 = vcmp.ge.f32.partialorder %v1636, 0.0
      %vm2449 = vcmp.ge.f32.partialorder %v1639, 0.0
      %vm2450 = vcmp.ge.f32.partialorder %v1644, 0.0
      %vm2451 = vcmp.ge.f32.partialorder %v1647, 0.0
      %vm2452 = vcmp.ge.f32.partialorder %v1652, 0.0
      %vm2453 = vcmp.ge.f32.partialorder %v1655, 0.0
      %vm2454 = vcmp.ge.f32.partialorder %v1660, 0.0
      %vm2455 = vcmp.ge.f32.partialorder %v1663, 0.0
      %vm2456 = vcmp.ge.f32.partialorder %v1668, 0.0
      %vm2457 = vcmp.ge.f32.partialorder %v1671, 0.0
      %vm2458 = vcmp.ge.f32.partialorder %v1676, 0.0
      %vm2459 = vcmp.ge.f32.partialorder %v1679, 0.0
      %vm2460 = vcmp.ge.f32.partialorder %v1684, 0.0
      %vm2461 = vcmp.ge.f32.partialorder %v1687, 0.0
      %vm2462 = vcmp.ge.f32.partialorder %v1692, 0.0
      %vm2463 = vcmp.ge.f32.partialorder %v1695, 0.0
      %vm2464 = vcmp.ge.f32.partialorder %v1700, 0.0
      %vm2465 = vcmp.ge.f32.partialorder %v1703, 0.0
      %vm2466 = vcmp.ge.f32.partialorder %v1708, 0.0
      %vm2467 = vcmp.ge.f32.partialorder %v1711, 0.0
      %vm2468 = vcmp.ge.f32.partialorder %v1716, 0.0
      %vm2469 = vcmp.ge.f32.partialorder %v1719, 0.0
      %vm2470 = vcmp.ge.f32.partialorder %v1724, 0.0
      %vm2471 = vcmp.ge.f32.partialorder %v1727, 0.0
      %vm2472 = vcmp.ge.f32.partialorder %v1732, 0.0
      %vm2473 = vcmp.ge.f32.partialorder %v1735, 0.0
      %vm2474 = vcmp.ge.f32.partialorder %v1740, 0.0
      %vm2475 = vcmp.ge.f32.partialorder %v1743, 0.0
      %vm2476 = vcmp.ge.f32.partialorder %v1748, 0.0
      %vm2477 = vcmp.ge.f32.partialorder %v1751, 0.0
      %vm2478 = vcmp.ge.f32.partialorder %v1756, 0.0
      %vm2479 = vcmp.ge.f32.partialorder %v1759, 0.0
      %vm2480 = vcmp.ge.f32.partialorder %v1764, 0.0
      %vm2481 = vcmp.ge.f32.partialorder %v1767, 0.0
      %vm2482 = vcmp.ge.f32.partialorder %v1772, 0.0
      %vm2483 = vcmp.ge.f32.partialorder %v1775, 0.0
      %vm2484 = vcmp.ge.f32.partialorder %v1780, 0.0
      %vm2485 = vcmp.ge.f32.partialorder %v1783, 0.0
      %vm2486 = vcmp.ge.f32.partialorder %v1788, 0.0
      %vm2487 = vcmp.ge.f32.partialorder %v1791, 0.0
      %vm2488 = vcmp.ge.f32.partialorder %v1796, 0.0
      %vm2489 = vcmp.ge.f32.partialorder %v1799, 0.0
      %vm2490 = vcmp.ge.f32.partialorder %v1804, 0.0
      %vm2491 = vcmp.ge.f32.partialorder %v1807, 0.0
      %vm2492 = vcmp.ge.f32.partialorder %v1812, 0.0
      %vm2493 = vcmp.ge.f32.partialorder %v1815, 0.0
      %vm2494 = vcmp.ge.f32.partialorder %v1820, 0.0
      %vm2495 = vcmp.ge.f32.partialorder %v1823, 0.0
      %vm2496 = vcmp.ge.f32.partialorder %v1828, 0.0
      %vm2497 = vcmp.ge.f32.partialorder %v1831, 0.0
      %vm2498 = vcmp.ge.f32.partialorder %v1836, 0.0
      %vm2499 = vcmp.ge.f32.partialorder %v1839, 0.0
      %vm2500 = vcmp.ge.f32.partialorder %v1844, 0.0
      %vm2501 = vcmp.ge.f32.partialorder %v1847, 0.0
      %vm2502 = vcmp.ge.f32.partialorder %v1852, 0.0
      %vm2503 = vcmp.ge.f32.partialorder %v1855, 0.0
      %vm2504 = vcmp.ge.f32.partialorder %v1860, 0.0
      %vm2505 = vcmp.ge.f32.partialorder %v1863, 0.0
      %vm2506 = vcmp.ge.f32.partialorder %v1868, 0.0
      %vm2507 = vcmp.ge.f32.partialorder %v1871, 0.0
      %vm2508 = vcmp.ge.f32.partialorder %v1876, 0.0
      %vm2509 = vcmp.ge.f32.partialorder %v1879, 0.0
      %vm2510 = vcmp.ge.f32.partialorder %v1884, 0.0
      %vm2511 = vcmp.ge.f32.partialorder %v1887, 0.0
      %vm2512 = vcmp.ge.f32.partialorder %v1892, 0.0
      %vm2513 = vcmp.ge.f32.partialorder %v1895, 0.0
      %vm2514 = vcmp.ge.f32.partialorder %v1900, 0.0
      %vm2515 = vcmp.ge.f32.partialorder %v1903, 0.0
      %vm2516 = vcmp.ge.f32.partialorder %v1908, 0.0
      %vm2517 = vcmp.ge.f32.partialorder %v1911, 0.0
      %vm2518 = vcmp.ge.f32.partialorder %v1916, 0.0
      %vm2519 = vcmp.ge.f32.partialorder %v1919, 0.0
      %vm2520 = vcmp.ge.f32.partialorder %v1924, 0.0
      %vm2521 = vcmp.ge.f32.partialorder %v1927, 0.0
      %vm2522 = vcmp.ge.f32.partialorder %v1932, 0.0
      %vm2523 = vcmp.ge.f32.partialorder %v1935, 0.0
      %vm2524 = vcmp.ge.f32.partialorder %v1940, 0.0
      %vm2525 = vcmp.ge.f32.partialorder %v1943, 0.0
      %vm2526 = vcmp.ge.f32.partialorder %v1948, 0.0
      %vm2527 = vcmp.ge.f32.partialorder %v1951, 0.0
      %vm2528 = vcmp.ge.f32.partialorder %v1956, 0.0
      %vm2529 = vcmp.ge.f32.partialorder %v1959, 0.0
      %vm2530 = vcmp.ge.f32.partialorder %v1964, 0.0
      %vm2531 = vcmp.ge.f32.partialorder %v1967, 0.0
      %vm2532 = vcmp.ge.f32.partialorder %v1972, 0.0
      %vm2533 = vcmp.ge.f32.partialorder %v1975, 0.0
      %vm2534 = vcmp.ge.f32.partialorder %v1980, 0.0
      %vm2535 = vcmp.ge.f32.partialorder %v1983, 0.0
      %vm2536 = vcmp.ge.f32.partialorder %v1988, 0.0
      %vm2537 = vcmp.ge.f32.partialorder %v1991, 0.0
      %vm2538 = vcmp.ge.f32.partialorder %v1996, 0.0
      %vm2539 = vcmp.ge.f32.partialorder %v1999, 0.0
      %vm2540 = vcmp.ge.f32.partialorder %v2004, 0.0
      %vm2541 = vcmp.ge.f32.partialorder %v2007, 0.0
      %vm2542 = vcmp.ge.f32.partialorder %v2012, 0.0
      %vm2543 = vcmp.ge.f32.partialorder %v2015, 0.0
      %vm2544 = vcmp.ge.f32.partialorder %v2020, 0.0
      %vm2545 = vcmp.ge.f32.partialorder %v2023, 0.0
      %vm2546 = vcmp.ge.f32.partialorder %v2028, 0.0
      %vm2547 = vcmp.ge.f32.partialorder %v2031, 0.0
      %vm2548 = vcmp.ge.f32.partialorder %v2036, 0.0
      %vm2549 = vcmp.ge.f32.partialorder %v2039, 0.0
      %vm2550 = vcmp.ge.f32.partialorder %v2044, 0.0
      %vm2551 = vcmp.ge.f32.partialorder %v2047, 0.0
      %vm2552 = vcmp.ge.f32.partialorder %v2052, 0.0
      %vm2553 = vcmp.ge.f32.partialorder %v2055, 0.0
      %vm2554 = vcmp.ge.f32.partialorder %v2060, 0.0
      %vm2555 = vcmp.ge.f32.partialorder %v2063, 0.0
      %vm2556 = vcmp.ge.f32.partialorder %v2068, 0.0
      %vm2557 = vcmp.ge.f32.partialorder %v2071, 0.0
      %vm2558 = vcmp.ge.f32.partialorder %v2076, 0.0
      %vm2559 = vcmp.ge.f32.partialorder %v2079, 0.0
      %vm2560 = vcmp.ge.f32.partialorder %v2084, 0.0
      %vm2561 = vcmp.ge.f32.partialorder %v2087, 0.0
      %vm2562 = vcmp.ge.f32.partialorder %v2092, 0.0
      %vm2563 = vcmp.ge.f32.partialorder %v2095, 0.0
      %vm2564 = vcmp.ge.f32.partialorder %v2100, 0.0
      %vm2565 = vcmp.ge.f32.partialorder %v2103, 0.0
      %vm2566 = vcmp.ge.f32.partialorder %v2108, 0.0
      %vm2567 = vcmp.ge.f32.partialorder %v2111, 0.0
      %vm2568 = vcmp.ge.f32.partialorder %v2116, 0.0
      %vm2569 = vcmp.ge.f32.partialorder %v2119, 0.0
      %vm2570 = vcmp.ge.f32.partialorder %v2124, 0.0
      %vm2571 = vcmp.ge.f32.partialorder %v2127, 0.0
      %vm2572 = vcmp.ge.f32.partialorder %v2132, 0.0
      %vm2573 = vcmp.ge.f32.partialorder %v2135, 0.0
      %vm2574 = vcmp.ge.f32.partialorder %v2140, 0.0
      %vm2575 = vcmp.ge.f32.partialorder %v2143, 0.0
      %vm2576 = vcmp.ge.f32.partialorder %v2148, 0.0
      %vm2577 = vcmp.ge.f32.partialorder %v2151, 0.0
      %vm2578 = vcmp.ge.f32.partialorder %v2156, 0.0
      %vm2579 = vcmp.ge.f32.partialorder %v2159, 0.0
      %vm2580 = vcmp.ge.f32.partialorder %v2164, 0.0
      %vm2581 = vcmp.ge.f32.partialorder %v2167, 0.0
      %vm2582 = vcmp.ge.f32.partialorder %v2172, 0.0
      %vm2583 = vcmp.ge.f32.partialorder %v2175, 0.0
      %vm2584 = vcmp.ge.f32.partialorder %v2180, 0.0
      %vm2585 = vcmp.ge.f32.partialorder %v2183, 0.0
      %vm2586 = vcmp.ge.f32.partialorder %v2188, 0.0
      %vm2587 = vcmp.ge.f32.partialorder %v2191, 0.0
      %vm2588 = vcmp.ge.f32.partialorder %v2196, 0.0
      %vm2589 = vcmp.ge.f32.partialorder %v2199, 0.0
      %vm2590 = vcmp.ge.f32.partialorder %v2204, 0.0
      %vm2591 = vcmp.ge.f32.partialorder %v2207, 0.0
      %vm2592 = vcmp.ge.f32.partialorder %v2212, 0.0
      %vm2593 = vcmp.ge.f32.partialorder %v2215, 0.0
      %vm2594 = vcmp.ge.f32.partialorder %v2220, 0.0
      %vm2595 = vcmp.ge.f32.partialorder %v2223, 0.0
      %vm2596 = vcmp.ge.f32.partialorder %v2228, 0.0
      %vm2597 = vcmp.ge.f32.partialorder %v2231, 0.0
      %vm2598 = vcmp.ge.f32.partialorder %v2236, 0.0
      %vm2599 = vcmp.ge.f32.partialorder %v2239, 0.0
      %vm2600 = vcmp.ge.f32.partialorder %v2244, 0.0
      %vm2601 = vcmp.ge.f32.partialorder %v2247, 0.0
      %vm2602 = vcmp.ge.f32.partialorder %v2252, 0.0
      %vm2603 = vcmp.ge.f32.partialorder %v2255, 0.0
      %vm2604 = vcmp.ge.f32.partialorder %v2260, 0.0
      %vm2605 = vcmp.ge.f32.partialorder %v2263, 0.0
      %vm2606 = vcmp.ge.f32.partialorder %v2268, 0.0
      %vm2607 = vcmp.ge.f32.partialorder %v2271, 0.0
      %vm2608 = vcmp.ge.f32.partialorder %v2276, 0.0
      %vm2609 = vcmp.ge.f32.partialorder %v2279, 0.0
      %vm2610 = vcmp.ge.f32.partialorder %v2284, 0.0
      %vm2611 = vcmp.ge.f32.partialorder %v2287, 0.0
      %vm2612 = vcmp.ge.f32.partialorder %v2292, 0.0
      %vm2613 = vcmp.ge.f32.partialorder %v2295, 0.0
      %vm2614 = vcmp.ge.f32.partialorder %v2300, 0.0
      %vm2615 = vcmp.ge.f32.partialorder %v2303, 0.0
      %vm2616 = vcmp.ge.f32.partialorder %v2308, 0.0
      %vm2617 = vcmp.ge.f32.partialorder %v2311, 0.0
      %vm2618 = vcmp.ge.f32.partialorder %v2316, 0.0
      %vm2619 = vcmp.ge.f32.partialorder %v2319, 0.0
      %vm2620 = vcmp.ge.f32.partialorder %v2324, 0.0
      %vm2621 = vcmp.ge.f32.partialorder %v2327, 0.0
      %vm2622 = vcmp.ge.f32.partialorder %v2332, 0.0
      %vm2623 = vcmp.ge.f32.partialorder %v2335, 0.0
      %vm2624 = vcmp.ge.f32.partialorder %v2340, 0.0
      %vm2625 = vcmp.ge.f32.partialorder %v2343, 0.0
      %vm2626 = vcmp.ge.f32.partialorder %v2348, 0.0
      %vm2627 = vcmp.ge.f32.partialorder %v2351, 0.0
      %vm2628 = vcmp.ge.f32.partialorder %v2356, 0.0
      %vm2629 = vcmp.ge.f32.partialorder %v2359, 0.0
      %vm2630 = vcmp.ge.f32.partialorder %v2364, 0.0
      %vm2631 = vcmp.ge.f32.partialorder %v2367, 0.0
      %vm2632 = vcmp.ge.f32.partialorder %v2372, 0.0
      %vm2633 = vcmp.ge.f32.partialorder %v2375, 0.0
      %v2634 = vmul.f32 %v1356, 0.2
      %v2635 = vmul.f32 %v1359, 0.2
      %v2636 = vmul.f32 %v1364, 0.2
      %v2637 = vmul.f32 %v1367, 0.2
      %v2638 = vmul.f32 %v1372, 0.2
      %v2639 = vmul.f32 %v1375, 0.2
      %v2640 = vmul.f32 %v1380, 0.2
      %v2641 = vmul.f32 %v1383, 0.2
      %v2642 = vmul.f32 %v1388, 0.2
      %v2643 = vmul.f32 %v1391, 0.2
      %v2644 = vmul.f32 %v1396, 0.2
      %v2645 = vmul.f32 %v1399, 0.2
      %v2646 = vmul.f32 %v1404, 0.2
      %v2647 = vmul.f32 %v1407, 0.2
      %v2648 = vmul.f32 %v1412, 0.2
      %v2649 = vmul.f32 %v1415, 0.2
      %v2650 = vmul.f32 %v1420, 0.2
      %v2651 = vmul.f32 %v1423, 0.2
      %v2652 = vmul.f32 %v1428, 0.2
      %v2653 = vmul.f32 %v1431, 0.2
      %v2654 = vmul.f32 %v1436, 0.2
      %v2655 = vmul.f32 %v1439, 0.2
      %v2656 = vmul.f32 %v1444, 0.2
      %v2657 = vmul.f32 %v1447, 0.2
      %v2658 = vmul.f32 %v1452, 0.2
      %v2659 = vmul.f32 %v1455, 0.2
      %v2660 = vmul.f32 %v1460, 0.2
      %v2661 = vmul.f32 %v1463, 0.2
      %v2662 = vmul.f32 %v1468, 0.2
      %v2663 = vmul.f32 %v1471, 0.2
      %v2664 = vmul.f32 %v1476, 0.2
      %v2665 = vmul.f32 %v1479, 0.2
      %v2666 = vmul.f32 %v1484, 0.2
      %v2667 = vmul.f32 %v1487, 0.2
      %v2668 = vmul.f32 %v1492, 0.2
      %v2669 = vmul.f32 %v1495, 0.2
      %v2670 = vmul.f32 %v1500, 0.2
      %v2671 = vmul.f32 %v1503, 0.2
      %v2672 = vmul.f32 %v1508, 0.2
      %v2673 = vmul.f32 %v1511, 0.2
      %v2674 = vmul.f32 %v1516, 0.2
      %v2675 = vmul.f32 %v1519, 0.2
      %v2676 = vmul.f32 %v1524, 0.2
      %v2677 = vmul.f32 %v1527, 0.2
      %v2678 = vmul.f32 %v1532, 0.2
      %v2679 = vmul.f32 %v1535, 0.2
      %v2680 = vmul.f32 %v1540, 0.2
      %v2681 = vmul.f32 %v1543, 0.2
      %v2682 = vmul.f32 %v1548, 0.2
      %v2683 = vmul.f32 %v1551, 0.2
      %v2684 = vmul.f32 %v1556, 0.2
      %v2685 = vmul.f32 %v1559, 0.2
      %v2686 = vmul.f32 %v1564, 0.2
      %v2687 = vmul.f32 %v1567, 0.2
      %v2688 = vmul.f32 %v1572, 0.2
      %v2689 = vmul.f32 %v1575, 0.2
      %v2690 = vmul.f32 %v1580, 0.2
      %v2691 = vmul.f32 %v1583, 0.2
      %v2692 = vmul.f32 %v1588, 0.2
      %v2693 = vmul.f32 %v1591, 0.2
      %v2694 = vmul.f32 %v1596, 0.2
      %v2695 = vmul.f32 %v1599, 0.2
      %v2696 = vmul.f32 %v1604, 0.2
      %v2697 = vmul.f32 %v1607, 0.2
      %v2698 = vmul.f32 %v1612, 0.2
      %v2699 = vmul.f32 %v1615, 0.2
      %v2700 = vmul.f32 %v1620, 0.2
      %v2701 = vmul.f32 %v1623, 0.2
      %v2702 = vmul.f32 %v1628, 0.2
      %v2703 = vmul.f32 %v1631, 0.2
      %v2704 = vmul.f32 %v1636, 0.2
      %v2705 = vmul.f32 %v1639, 0.2
      %v2706 = vmul.f32 %v1644, 0.2
      %v2707 = vmul.f32 %v1647, 0.2
      %v2708 = vmul.f32 %v1652, 0.2
      %v2709 = vmul.f32 %v1655, 0.2
      %v2710 = vmul.f32 %v1660, 0.2
      %v2711 = vmul.f32 %v1663, 0.2
      %v2712 = vmul.f32 %v1668, 0.2
      %v2713 = vmul.f32 %v1671, 0.2
      %v2714 = vmul.f32 %v1676, 0.2
      %v2715 = vmul.f32 %v1679, 0.2
      %v2716 = vmul.f32 %v1684, 0.2
      %v2717 = vmul.f32 %v1687, 0.2
      %v2718 = vmul.f32 %v1692, 0.2
      %v2719 = vmul.f32 %v1695, 0.2
      %v2720 = vmul.f32 %v1700, 0.2
      %v2721 = vmul.f32 %v1703, 0.2
      %v2722 = vmul.f32 %v1708, 0.2
      %v2723 = vmul.f32 %v1711, 0.2
      %v2724 = vmul.f32 %v1716, 0.2
      %v2725 = vmul.f32 %v1719, 0.2
      %v2726 = vmul.f32 %v1724, 0.2
      %v2727 = vmul.f32 %v1727, 0.2
      %v2728 = vmul.f32 %v1732, 0.2
      %v2729 = vmul.f32 %v1735, 0.2
      %v2730 = vmul.f32 %v1740, 0.2
      %v2731 = vmul.f32 %v1743, 0.2
      %v2732 = vmul.f32 %v1748, 0.2
      %v2733 = vmul.f32 %v1751, 0.2
      %v2734 = vmul.f32 %v1756, 0.2
      %v2735 = vmul.f32 %v1759, 0.2
      %v2736 = vmul.f32 %v1764, 0.2
      %v2737 = vmul.f32 %v1767, 0.2
      %v2738 = vmul.f32 %v1772, 0.2
      %v2739 = vmul.f32 %v1775, 0.2
      %v2740 = vmul.f32 %v1780, 0.2
      %v2741 = vmul.f32 %v1783, 0.2
      %v2742 = vmul.f32 %v1788, 0.2
      %v2743 = vmul.f32 %v1791, 0.2
      %v2744 = vmul.f32 %v1796, 0.2
      %v2745 = vmul.f32 %v1799, 0.2
      %v2746 = vmul.f32 %v1804, 0.2
      %v2747 = vmul.f32 %v1807, 0.2
      %v2748 = vmul.f32 %v1812, 0.2
      %v2749 = vmul.f32 %v1815, 0.2
      %v2750 = vmul.f32 %v1820, 0.2
      %v2751 = vmul.f32 %v1823, 0.2
      %v2752 = vmul.f32 %v1828, 0.2
      %v2753 = vmul.f32 %v1831, 0.2
      %v2754 = vmul.f32 %v1836, 0.2
      %v2755 = vmul.f32 %v1839, 0.2
      %v2756 = vmul.f32 %v1844, 0.2
      %v2757 = vmul.f32 %v1847, 0.2
      %v2758 = vmul.f32 %v1852, 0.2
      %v2759 = vmul.f32 %v1855, 0.2
      %v2760 = vmul.f32 %v1860, 0.2
      %v2761 = vmul.f32 %v1863, 0.2
      %v2762 = vmul.f32 %v1868, 0.2
      %v2763 = vmul.f32 %v1871, 0.2
      %v2764 = vmul.f32 %v1876, 0.2
      %v2765 = vmul.f32 %v1879, 0.2
      %v2766 = vmul.f32 %v1884, 0.2
      %v2767 = vmul.f32 %v1887, 0.2
      %v2768 = vmul.f32 %v1892, 0.2
      %v2769 = vmul.f32 %v1895, 0.2
      %v2770 = vmul.f32 %v1900, 0.2
      %v2771 = vmul.f32 %v1903, 0.2
      %v2772 = vmul.f32 %v1908, 0.2
      %v2773 = vmul.f32 %v1911, 0.2
      %v2774 = vmul.f32 %v1916, 0.2
      %v2775 = vmul.f32 %v1919, 0.2
      %v2776 = vmul.f32 %v1924, 0.2
      %v2777 = vmul.f32 %v1927, 0.2
      %v2778 = vmul.f32 %v1932, 0.2
      %v2779 = vmul.f32 %v1935, 0.2
      %v2780 = vmul.f32 %v1940, 0.2
      %v2781 = vmul.f32 %v1943, 0.2
      %v2782 = vmul.f32 %v1948, 0.2
      %v2783 = vmul.f32 %v1951, 0.2
      %v2784 = vmul.f32 %v1956, 0.2
      %v2785 = vmul.f32 %v1959, 0.2
      %v2786 = vmul.f32 %v1964, 0.2
      %v2787 = vmul.f32 %v1967, 0.2
      %v2788 = vmul.f32 %v1972, 0.2
      %v2789 = vmul.f32 %v1975, 0.2
      %v2790 = vmul.f32 %v1980, 0.2
      %v2791 = vmul.f32 %v1983, 0.2
      %v2792 = vmul.f32 %v1988, 0.2
      %v2793 = vmul.f32 %v1991, 0.2
      %v2794 = vmul.f32 %v1996, 0.2
      %v2795 = vmul.f32 %v1999, 0.2
      %v2796 = vmul.f32 %v2004, 0.2
      %v2797 = vmul.f32 %v2007, 0.2
      %v2798 = vmul.f32 %v2012, 0.2
      %v2799 = vmul.f32 %v2015, 0.2
      %v2800 = vmul.f32 %v2020, 0.2
      %v2801 = vmul.f32 %v2023, 0.2
      %v2802 = vmul.f32 %v2028, 0.2
      %v2803 = vmul.f32 %v2031, 0.2
      %v2804 = vmul.f32 %v2036, 0.2
      %v2805 = vmul.f32 %v2039, 0.2
      %v2806 = vmul.f32 %v2044, 0.2
      %v2807 = vmul.f32 %v2047, 0.2
      %v2808 = vmul.f32 %v2052, 0.2
      %v2809 = vmul.f32 %v2055, 0.2
      %v2810 = vmul.f32 %v2060, 0.2
      %v2811 = vmul.f32 %v2063, 0.2
      %v2812 = vmul.f32 %v2068, 0.2
      %v2813 = vmul.f32 %v2071, 0.2
      %v2814 = vmul.f32 %v2076, 0.2
      %v2815 = vmul.f32 %v2079, 0.2
      %v2816 = vmul.f32 %v2084, 0.2
      %v2817 = vmul.f32 %v2087, 0.2
      %v2818 = vmul.f32 %v2092, 0.2
      %v2819 = vmul.f32 %v2095, 0.2
      %v2820 = vmul.f32 %v2100, 0.2
      %v2821 = vmul.f32 %v2103, 0.2
      %v2822 = vmul.f32 %v2108, 0.2
      %v2823 = vmul.f32 %v2111, 0.2
      %v2824 = vmul.f32 %v2116, 0.2
      %v2825 = vmul.f32 %v2119, 0.2
      %v2826 = vmul.f32 %v2124, 0.2
      %v2827 = vmul.f32 %v2127, 0.2
      %v2828 = vmul.f32 %v2132, 0.2
      %v2829 = vmul.f32 %v2135, 0.2
      %v2830 = vmul.f32 %v2140, 0.2
      %v2831 = vmul.f32 %v2143, 0.2
      %v2832 = vmul.f32 %v2148, 0.2
      %v2833 = vmul.f32 %v2151, 0.2
      %v2834 = vmul.f32 %v2156, 0.2
      %v2835 = vmul.f32 %v2159, 0.2
      %v2836 = vmul.f32 %v2164, 0.2
      %v2837 = vmul.f32 %v2167, 0.2
      %v2838 = vmul.f32 %v2172, 0.2
      %v2839 = vmul.f32 %v2175, 0.2
      %v2840 = vmul.f32 %v2180, 0.2
      %v2841 = vmul.f32 %v2183, 0.2
      %v2842 = vmul.f32 %v2188, 0.2
      %v2843 = vmul.f32 %v2191, 0.2
      %v2844 = vmul.f32 %v2196, 0.2
      %v2845 = vmul.f32 %v2199, 0.2
      %v2846 = vmul.f32 %v2204, 0.2
      %v2847 = vmul.f32 %v2207, 0.2
      %v2848 = vmul.f32 %v2212, 0.2
      %v2849 = vmul.f32 %v2215, 0.2
      %v2850 = vmul.f32 %v2220, 0.2
      %v2851 = vmul.f32 %v2223, 0.2
      %v2852 = vmul.f32 %v2228, 0.2
      %v2853 = vmul.f32 %v2231, 0.2
      %v2854 = vmul.f32 %v2236, 0.2
      %v2855 = vmul.f32 %v2239, 0.2
      %v2856 = vmul.f32 %v2244, 0.2
      %v2857 = vmul.f32 %v2247, 0.2
      %v2858 = vmul.f32 %v2252, 0.2
      %v2859 = vmul.f32 %v2255, 0.2
      %v2860 = vmul.f32 %v2260, 0.2
      %v2861 = vmul.f32 %v2263, 0.2
      %v2862 = vmul.f32 %v2268, 0.2
      %v2863 = vmul.f32 %v2271, 0.2
      %v2864 = vmul.f32 %v2276, 0.2
      %v2865 = vmul.f32 %v2279, 0.2
      %v2866 = vmul.f32 %v2284, 0.2
      %v2867 = vmul.f32 %v2287, 0.2
      %v2868 = vmul.f32 %v2292, 0.2
      %v2869 = vmul.f32 %v2295, 0.2
      %v2870 = vmul.f32 %v2300, 0.2
      %v2871 = vmul.f32 %v2303, 0.2
      %v2872 = vmul.f32 %v2308, 0.2
      %v2873 = vmul.f32 %v2311, 0.2
      %v2874 = vmul.f32 %v2316, 0.2
      %v2875 = vmul.f32 %v2319, 0.2
      %v2876 = vmul.f32 %v2324, 0.2
      %v2877 = vmul.f32 %v2327, 0.2
      %v2878 = vmul.f32 %v2332, 0.2
      %v2879 = vmul.f32 %v2335, 0.2
      %v2880 = vmul.f32 %v2340, 0.2
      %v2881 = vmul.f32 %v2343, 0.2
      %v2882 = vmul.f32 %v2348, 0.2
      %v2883 = vmul.f32 %v2351, 0.2
      %v2884 = vmul.f32 %v2356, 0.2
      %v2885 = vmul.f32 %v2359, 0.2
      %v2886 = vmul.f32 %v2364, 0.2
      %v2887 = vmul.f32 %v2367, 0.2
      %v2888 = vmul.f32 %v2372, 0.2
      %v2889 = vmul.f32 %v2375, 0.2
      %v2890 = vsel %vm2378, %v1356, %v2634
      %v2891 = vsel %vm2379, %v1359, %v2635
      %v2892 = vsel %vm2380, %v1364, %v2636
      %v2893 = vsel %vm2381, %v1367, %v2637
      %v2894 = vsel %vm2382, %v1372, %v2638
      %v2895 = vsel %vm2383, %v1375, %v2639
      %v2896 = vsel %vm2384, %v1380, %v2640
      %v2897 = vsel %vm2385, %v1383, %v2641
      %v2898 = vsel %vm2386, %v1388, %v2642
      %v2899 = vsel %vm2387, %v1391, %v2643
      %v2900 = vsel %vm2388, %v1396, %v2644
      %v2901 = vsel %vm2389, %v1399, %v2645
      %v2902 = vsel %vm2390, %v1404, %v2646
      %v2903 = vsel %vm2391, %v1407, %v2647
      %v2904 = vsel %vm2392, %v1412, %v2648
      %v2905 = vsel %vm2393, %v1415, %v2649
      %v2906 = vsel %vm2394, %v1420, %v2650
      %v2907 = vsel %vm2395, %v1423, %v2651
      %v2908 = vsel %vm2396, %v1428, %v2652
      %v2909 = vsel %vm2397, %v1431, %v2653
      %v2910 = vsel %vm2398, %v1436, %v2654
      %v2911 = vsel %vm2399, %v1439, %v2655
      %v2912 = vsel %vm2400, %v1444, %v2656
      %v2913 = vsel %vm2401, %v1447, %v2657
      %v2914 = vsel %vm2402, %v1452, %v2658
      %v2915 = vsel %vm2403, %v1455, %v2659
      %v2916 = vsel %vm2404, %v1460, %v2660
      %v2917 = vsel %vm2405, %v1463, %v2661
      %v2918 = vsel %vm2406, %v1468, %v2662
      %v2919 = vsel %vm2407, %v1471, %v2663
      %v2920 = vsel %vm2408, %v1476, %v2664
      %v2921 = vsel %vm2409, %v1479, %v2665
      %v2922 = vsel %vm2410, %v1484, %v2666
      %v2923 = vsel %vm2411, %v1487, %v2667
      %v2924 = vsel %vm2412, %v1492, %v2668
      %v2925 = vsel %vm2413, %v1495, %v2669
      %v2926 = vsel %vm2414, %v1500, %v2670
      %v2927 = vsel %vm2415, %v1503, %v2671
      %v2928 = vsel %vm2416, %v1508, %v2672
      %v2929 = vsel %vm2417, %v1511, %v2673
      %v2930 = vsel %vm2418, %v1516, %v2674
      %v2931 = vsel %vm2419, %v1519, %v2675
      %v2932 = vsel %vm2420, %v1524, %v2676
      %v2933 = vsel %vm2421, %v1527, %v2677
      %v2934 = vsel %vm2422, %v1532, %v2678
      %v2935 = vsel %vm2423, %v1535, %v2679
      %v2936 = vsel %vm2424, %v1540, %v2680
      %v2937 = vsel %vm2425, %v1543, %v2681
      %v2938 = vsel %vm2426, %v1548, %v2682
      %v2939 = vsel %vm2427, %v1551, %v2683
      %v2940 = vsel %vm2428, %v1556, %v2684
      %v2941 = vsel %vm2429, %v1559, %v2685
      %v2942 = vsel %vm2430, %v1564, %v2686
      %v2943 = vsel %vm2431, %v1567, %v2687
      %v2944 = vsel %vm2432, %v1572, %v2688
      %v2945 = vsel %vm2433, %v1575, %v2689
      %v2946 = vsel %vm2434, %v1580, %v2690
      %v2947 = vsel %vm2435, %v1583, %v2691
      %v2948 = vsel %vm2436, %v1588, %v2692
      %v2949 = vsel %vm2437, %v1591, %v2693
      %v2950 = vsel %vm2438, %v1596, %v2694
      %v2951 = vsel %vm2439, %v1599, %v2695
      %v2952 = vsel %vm2440, %v1604, %v2696
      %v2953 = vsel %vm2441, %v1607, %v2697
      %v2954 = vsel %vm2442, %v1612, %v2698
      %v2955 = vsel %vm2443, %v1615, %v2699
      %v2956 = vsel %vm2444, %v1620, %v2700
      %v2957 = vsel %vm2445, %v1623, %v2701
      %v2958 = vsel %vm2446, %v1628, %v2702
      %v2959 = vsel %vm2447, %v1631, %v2703
      %v2960 = vsel %vm2448, %v1636, %v2704
      %v2961 = vsel %vm2449, %v1639, %v2705
      %v2962 = vsel %vm2450, %v1644, %v2706
      %v2963 = vsel %vm2451, %v1647, %v2707
      %v2964 = vsel %vm2452, %v1652, %v2708
      %v2965 = vsel %vm2453, %v1655, %v2709
      %v2966 = vsel %vm2454, %v1660, %v2710
      %v2967 = vsel %vm2455, %v1663, %v2711
      %v2968 = vsel %vm2456, %v1668, %v2712
      %v2969 = vsel %vm2457, %v1671, %v2713
      %v2970 = vsel %vm2458, %v1676, %v2714
      %v2971 = vsel %vm2459, %v1679, %v2715
      %v2972 = vsel %vm2460, %v1684, %v2716
      %v2973 = vsel %vm2461, %v1687, %v2717
      %v2974 = vsel %vm2462, %v1692, %v2718
      %v2975 = vsel %vm2463, %v1695, %v2719
      %v2976 = vsel %vm2464, %v1700, %v2720
      %v2977 = vsel %vm2465, %v1703, %v2721
      %v2978 = vsel %vm2466, %v1708, %v2722
      %v2979 = vsel %vm2467, %v1711, %v2723
      %v2980 = vsel %vm2468, %v1716, %v2724
      %v2981 = vsel %vm2469, %v1719, %v2725
      %v2982 = vsel %vm2470, %v1724, %v2726
      %v2983 = vsel %vm2471, %v1727, %v2727
      %v2984 = vsel %vm2472, %v1732, %v2728
      %v2985 = vsel %vm2473, %v1735, %v2729
      %v2986 = vsel %vm2474, %v1740, %v2730
      %v2987 = vsel %vm2475, %v1743, %v2731
      %v2988 = vsel %vm2476, %v1748, %v2732
      %v2989 = vsel %vm2477, %v1751, %v2733
      %v2990 = vsel %vm2478, %v1756, %v2734
      %v2991 = vsel %vm2479, %v1759, %v2735
      %v2992 = vsel %vm2480, %v1764, %v2736
      %v2993 = vsel %vm2481, %v1767, %v2737
      %v2994 = vsel %vm2482, %v1772, %v2738
      %v2995 = vsel %vm2483, %v1775, %v2739
      %v2996 = vsel %vm2484, %v1780, %v2740
      %v2997 = vsel %vm2485, %v1783, %v2741
      %v2998 = vsel %vm2486, %v1788, %v2742
      %v2999 = vsel %vm2487, %v1791, %v2743
      %v3000 = vsel %vm2488, %v1796, %v2744
      %v3001 = vsel %vm2489, %v1799, %v2745
      %v3002 = vsel %vm2490, %v1804, %v2746
      %v3003 = vsel %vm2491, %v1807, %v2747
      %v3004 = vsel %vm2492, %v1812, %v2748
      %v3005 = vsel %vm2493, %v1815, %v2749
      %v3006 = vsel %vm2494, %v1820, %v2750
      %v3007 = vsel %vm2495, %v1823, %v2751
      %v3008 = vsel %vm2496, %v1828, %v2752
      %v3009 = vsel %vm2497, %v1831, %v2753
      %v3010 = vsel %vm2498, %v1836, %v2754
      %v3011 = vsel %vm2499, %v1839, %v2755
      %v3012 = vsel %vm2500, %v1844, %v2756
      %v3013 = vsel %vm2501, %v1847, %v2757
      %v3014 = vsel %vm2502, %v1852, %v2758
      %v3015 = vsel %vm2503, %v1855, %v2759
      %v3016 = vsel %vm2504, %v1860, %v2760
      %v3017 = vsel %vm2505, %v1863, %v2761
      %v3018 = vsel %vm2506, %v1868, %v2762
      %v3019 = vsel %vm2507, %v1871, %v2763
      %v3020 = vsel %vm2508, %v1876, %v2764
      %v3021 = vsel %vm2509, %v1879, %v2765
      %v3022 = vsel %vm2510, %v1884, %v2766
      %v3023 = vsel %vm2511, %v1887, %v2767
      %v3024 = vsel %vm2512, %v1892, %v2768
      %v3025 = vsel %vm2513, %v1895, %v2769
      %v3026 = vsel %vm2514, %v1900, %v2770
      %v3027 = vsel %vm2515, %v1903, %v2771
      %v3028 = vsel %vm2516, %v1908, %v2772
      %v3029 = vsel %vm2517, %v1911, %v2773
      %v3030 = vsel %vm2518, %v1916, %v2774
      %v3031 = vsel %vm2519, %v1919, %v2775
      %v3032 = vsel %vm2520, %v1924, %v2776
      %v3033 = vsel %vm2521, %v1927, %v2777
      %v3034 = vsel %vm2522, %v1932, %v2778
      %v3035 = vsel %vm2523, %v1935, %v2779
      %v3036 = vsel %vm2524, %v1940, %v2780
      %v3037 = vsel %vm2525, %v1943, %v2781
      %v3038 = vsel %vm2526, %v1948, %v2782
      %v3039 = vsel %vm2527, %v1951, %v2783
      %v3040 = vsel %vm2528, %v1956, %v2784
      %v3041 = vsel %vm2529, %v1959, %v2785
      %v3042 = vsel %vm2530, %v1964, %v2786
      %v3043 = vsel %vm2531, %v1967, %v2787
      %v3044 = vsel %vm2532, %v1972, %v2788
      %v3045 = vsel %vm2533, %v1975, %v2789
      %v3046 = vsel %vm2534, %v1980, %v2790
      %v3047 = vsel %vm2535, %v1983, %v2791
      %v3048 = vsel %vm2536, %v1988, %v2792
      %v3049 = vsel %vm2537, %v1991, %v2793
      %v3050 = vsel %vm2538, %v1996, %v2794
      %v3051 = vsel %vm2539, %v1999, %v2795
      %v3052 = vsel %vm2540, %v2004, %v2796
      %v3053 = vsel %vm2541, %v2007, %v2797
      %v3054 = vsel %vm2542, %v2012, %v2798
      %v3055 = vsel %vm2543, %v2015, %v2799
      %v3056 = vsel %vm2544, %v2020, %v2800
      %v3057 = vsel %vm2545, %v2023, %v2801
      %v3058 = vsel %vm2546, %v2028, %v2802
      %v3059 = vsel %vm2547, %v2031, %v2803
      %v3060 = vsel %vm2548, %v2036, %v2804
      %v3061 = vsel %vm2549, %v2039, %v2805
      %v3062 = vsel %vm2550, %v2044, %v2806
      %v3063 = vsel %vm2551, %v2047, %v2807
      %v3064 = vsel %vm2552, %v2052, %v2808
      %v3065 = vsel %vm2553, %v2055, %v2809
      %v3066 = vsel %vm2554, %v2060, %v2810
      %v3067 = vsel %vm2555, %v2063, %v2811
      %v3068 = vsel %vm2556, %v2068, %v2812
      %v3069 = vsel %vm2557, %v2071, %v2813
      %v3070 = vsel %vm2558, %v2076, %v2814
      %v3071 = vsel %vm2559, %v2079, %v2815
      %v3072 = vsel %vm2560, %v2084, %v2816
      %v3073 = vsel %vm2561, %v2087, %v2817
      %v3074 = vsel %vm2562, %v2092, %v2818
      %v3075 = vsel %vm2563, %v2095, %v2819
      %v3076 = vsel %vm2564, %v2100, %v2820
      %v3077 = vsel %vm2565, %v2103, %v2821
      %v3078 = vsel %vm2566, %v2108, %v2822
      %v3079 = vsel %vm2567, %v2111, %v2823
      %v3080 = vsel %vm2568, %v2116, %v2824
      %v3081 = vsel %vm2569, %v2119, %v2825
      %v3082 = vsel %vm2570, %v2124, %v2826
      %v3083 = vsel %vm2571, %v2127, %v2827
      %v3084 = vsel %vm2572, %v2132, %v2828
      %v3085 = vsel %vm2573, %v2135, %v2829
      %v3086 = vsel %vm2574, %v2140, %v2830
      %v3087 = vsel %vm2575, %v2143, %v2831
      %v3088 = vsel %vm2576, %v2148, %v2832
      %v3089 = vsel %vm2577, %v2151, %v2833
      %v3090 = vsel %vm2578, %v2156, %v2834
      %v3091 = vsel %vm2579, %v2159, %v2835
      %v3092 = vsel %vm2580, %v2164, %v2836
      %v3093 = vsel %vm2581, %v2167, %v2837
      %v3094 = vsel %vm2582, %v2172, %v2838
      %v3095 = vsel %vm2583, %v2175, %v2839
      %v3096 = vsel %vm2584, %v2180, %v2840
      %v3097 = vsel %vm2585, %v2183, %v2841
      %v3098 = vsel %vm2586, %v2188, %v2842
      %v3099 = vsel %vm2587, %v2191, %v2843
      %v3100 = vsel %vm2588, %v2196, %v2844
      %v3101 = vsel %vm2589, %v2199, %v2845
      %v3102 = vsel %vm2590, %v2204, %v2846
      %v3103 = vsel %vm2591, %v2207, %v2847
      %v3104 = vsel %vm2592, %v2212, %v2848
      %v3105 = vsel %vm2593, %v2215, %v2849
      %v3106 = vsel %vm2594, %v2220, %v2850
      %v3107 = vsel %vm2595, %v2223, %v2851
      %v3108 = vsel %vm2596, %v2228, %v2852
      %v3109 = vsel %vm2597, %v2231, %v2853
      %v3110 = vsel %vm2598, %v2236, %v2854
      %v3111 = vsel %vm2599, %v2239, %v2855
      %v3112 = vsel %vm2600, %v2244, %v2856
      %v3113 = vsel %vm2601, %v2247, %v2857
      %v3114 = vsel %vm2602, %v2252, %v2858
      %v3115 = vsel %vm2603, %v2255, %v2859
      %v3116 = vsel %vm2604, %v2260, %v2860
      %v3117 = vsel %vm2605, %v2263, %v2861
      %v3118 = vsel %vm2606, %v2268, %v2862
      %v3119 = vsel %vm2607, %v2271, %v2863
      %v3120 = vsel %vm2608, %v2276, %v2864
      %v3121 = vsel %vm2609, %v2279, %v2865
      %v3122 = vsel %vm2610, %v2284, %v2866
      %v3123 = vsel %vm2611, %v2287, %v2867
      %v3124 = vsel %vm2612, %v2292, %v2868
      %v3125 = vsel %vm2613, %v2295, %v2869
      %v3126 = vsel %vm2614, %v2300, %v2870
      %v3127 = vsel %vm2615, %v2303, %v2871
      %v3128 = vsel %vm2616, %v2308, %v2872
      %v3129 = vsel %vm2617, %v2311, %v2873
      %v3130 = vsel %vm2618, %v2316, %v2874
      %v3131 = vsel %vm2619, %v2319, %v2875
      %v3132 = vsel %vm2620, %v2324, %v2876
      %v3133 = vsel %vm2621, %v2327, %v2877
      %v3134 = vsel %vm2622, %v2332, %v2878
      %v3135 = vsel %vm2623, %v2335, %v2879
      %v3136 = vsel %vm2624, %v2340, %v2880
      %v3137 = vsel %vm2625, %v2343, %v2881
      %v3138 = vsel %vm2626, %v2348, %v2882
      %v3139 = vsel %vm2627, %v2351, %v2883
      %v3140 = vsel %vm2628, %v2356, %v2884
      %v3141 = vsel %vm2629, %v2359, %v2885
      %v3142 = vsel %vm2630, %v2364, %v2886
      %v3143 = vsel %vm2631, %v2367, %v2887
      %v3144 = vsel %vm2632, %v2372, %v2888
      %v3145 = vsel %vm2633, %v2375, %v2889
      %v3146 = vpack.c.bf16 %v2891, %v2890
      %v3147 = vpack.c.bf16 %v2893, %v2892
      %v3148 = vpack.c.bf16 %v2895, %v2894
      %v3149 = vpack.c.bf16 %v2897, %v2896
      %v3150 = vpack.c.bf16 %v2899, %v2898
      %v3151 = vpack.c.bf16 %v2901, %v2900
      %v3152 = vpack.c.bf16 %v2903, %v2902
      %v3153 = vpack.c.bf16 %v2905, %v2904
      %v3154 = vpack.c.bf16 %v2907, %v2906
      %v3155 = vpack.c.bf16 %v2909, %v2908
      %v3156 = vpack.c.bf16 %v2911, %v2910
      %v3157 = vpack.c.bf16 %v2913, %v2912
      %v3158 = vpack.c.bf16 %v2915, %v2914
      %v3159 = vpack.c.bf16 %v2917, %v2916
      %v3160 = vpack.c.bf16 %v2919, %v2918
      %v3161 = vpack.c.bf16 %v2921, %v2920
      %v3162 = vpack.c.bf16 %v2923, %v2922
      %v3163 = vpack.c.bf16 %v2925, %v2924
      %v3164 = vpack.c.bf16 %v2927, %v2926
      %v3165 = vpack.c.bf16 %v2929, %v2928
      %v3166 = vpack.c.bf16 %v2931, %v2930
      %v3167 = vpack.c.bf16 %v2933, %v2932
      %v3168 = vpack.c.bf16 %v2935, %v2934
      %v3169 = vpack.c.bf16 %v2937, %v2936
      %v3170 = vpack.c.bf16 %v2939, %v2938
      %v3171 = vpack.c.bf16 %v2941, %v2940
      %v3172 = vpack.c.bf16 %v2943, %v2942
      %v3173 = vpack.c.bf16 %v2945, %v2944
      %v3174 = vpack.c.bf16 %v2947, %v2946
      %v3175 = vpack.c.bf16 %v2949, %v2948
      %v3176 = vpack.c.bf16 %v2951, %v2950
      %v3177 = vpack.c.bf16 %v2953, %v2952
      %v3178 = vpack.c.bf16 %v2955, %v2954
      %v3179 = vpack.c.bf16 %v2957, %v2956
      %v3180 = vpack.c.bf16 %v2959, %v2958
      %v3181 = vpack.c.bf16 %v2961, %v2960
      %v3182 = vpack.c.bf16 %v2963, %v2962
      %v3183 = vpack.c.bf16 %v2965, %v2964
      %v3184 = vpack.c.bf16 %v2967, %v2966
      %v3185 = vpack.c.bf16 %v2969, %v2968
      %v3186 = vpack.c.bf16 %v2971, %v2970
      %v3187 = vpack.c.bf16 %v2973, %v2972
      %v3188 = vpack.c.bf16 %v2975, %v2974
      %v3189 = vpack.c.bf16 %v2977, %v2976
      %v3190 = vpack.c.bf16 %v2979, %v2978
      %v3191 = vpack.c.bf16 %v2981, %v2980
      %v3192 = vpack.c.bf16 %v2983, %v2982
      %v3193 = vpack.c.bf16 %v2985, %v2984
      %v3194 = vpack.c.bf16 %v2987, %v2986
      %v3195 = vpack.c.bf16 %v2989, %v2988
      %v3196 = vpack.c.bf16 %v2991, %v2990
      %v3197 = vpack.c.bf16 %v2993, %v2992
      %v3198 = vpack.c.bf16 %v2995, %v2994
      %v3199 = vpack.c.bf16 %v2997, %v2996
      %v3200 = vpack.c.bf16 %v2999, %v2998
      %v3201 = vpack.c.bf16 %v3001, %v3000
      %v3202 = vpack.c.bf16 %v3003, %v3002
      %v3203 = vpack.c.bf16 %v3005, %v3004
      %v3204 = vpack.c.bf16 %v3007, %v3006
      %v3205 = vpack.c.bf16 %v3009, %v3008
      %v3206 = vpack.c.bf16 %v3011, %v3010
      %v3207 = vpack.c.bf16 %v3013, %v3012
      %v3208 = vpack.c.bf16 %v3015, %v3014
      %v3209 = vpack.c.bf16 %v3017, %v3016
      %v3210 = vpack.c.bf16 %v3019, %v3018
      %v3211 = vpack.c.bf16 %v3021, %v3020
      %v3212 = vpack.c.bf16 %v3023, %v3022
      %v3213 = vpack.c.bf16 %v3025, %v3024
      %v3214 = vpack.c.bf16 %v3027, %v3026
      %v3215 = vpack.c.bf16 %v3029, %v3028
      %v3216 = vpack.c.bf16 %v3031, %v3030
      %v3217 = vpack.c.bf16 %v3033, %v3032
      %v3218 = vpack.c.bf16 %v3035, %v3034
      %v3219 = vpack.c.bf16 %v3037, %v3036
      %v3220 = vpack.c.bf16 %v3039, %v3038
      %v3221 = vpack.c.bf16 %v3041, %v3040
      %v3222 = vpack.c.bf16 %v3043, %v3042
      %v3223 = vpack.c.bf16 %v3045, %v3044
      %v3224 = vpack.c.bf16 %v3047, %v3046
      %v3225 = vpack.c.bf16 %v3049, %v3048
      %v3226 = vpack.c.bf16 %v3051, %v3050
      %v3227 = vpack.c.bf16 %v3053, %v3052
      %v3228 = vpack.c.bf16 %v3055, %v3054
      %v3229 = vpack.c.bf16 %v3057, %v3056
      %v3230 = vpack.c.bf16 %v3059, %v3058
      %v3231 = vpack.c.bf16 %v3061, %v3060
      %v3232 = vpack.c.bf16 %v3063, %v3062
      %v3233 = vpack.c.bf16 %v3065, %v3064
      %v3234 = vpack.c.bf16 %v3067, %v3066
      %v3235 = vpack.c.bf16 %v3069, %v3068
      %v3236 = vpack.c.bf16 %v3071, %v3070
      %v3237 = vpack.c.bf16 %v3073, %v3072
      %v3238 = vpack.c.bf16 %v3075, %v3074
      %v3239 = vpack.c.bf16 %v3077, %v3076
      %v3240 = vpack.c.bf16 %v3079, %v3078
      %v3241 = vpack.c.bf16 %v3081, %v3080
      %v3242 = vpack.c.bf16 %v3083, %v3082
      %v3243 = vpack.c.bf16 %v3085, %v3084
      %v3244 = vpack.c.bf16 %v3087, %v3086
      %v3245 = vpack.c.bf16 %v3089, %v3088
      %v3246 = vpack.c.bf16 %v3091, %v3090
      %v3247 = vpack.c.bf16 %v3093, %v3092
      %v3248 = vpack.c.bf16 %v3095, %v3094
      %v3249 = vpack.c.bf16 %v3097, %v3096
      %v3250 = vpack.c.bf16 %v3099, %v3098
      %v3251 = vpack.c.bf16 %v3101, %v3100
      %v3252 = vpack.c.bf16 %v3103, %v3102
      %v3253 = vpack.c.bf16 %v3105, %v3104
      %v3254 = vpack.c.bf16 %v3107, %v3106
      %v3255 = vpack.c.bf16 %v3109, %v3108
      %v3256 = vpack.c.bf16 %v3111, %v3110
      %v3257 = vpack.c.bf16 %v3113, %v3112
      %v3258 = vpack.c.bf16 %v3115, %v3114
      %v3259 = vpack.c.bf16 %v3117, %v3116
      %v3260 = vpack.c.bf16 %v3119, %v3118
      %v3261 = vpack.c.bf16 %v3121, %v3120
      %v3262 = vpack.c.bf16 %v3123, %v3122
      %v3263 = vpack.c.bf16 %v3125, %v3124
      %v3264 = vpack.c.bf16 %v3127, %v3126
      %v3265 = vpack.c.bf16 %v3129, %v3128
      %v3266 = vpack.c.bf16 %v3131, %v3130
      %v3267 = vpack.c.bf16 %v3133, %v3132
      %v3268 = vpack.c.bf16 %v3135, %v3134
      %v3269 = vpack.c.bf16 %v3137, %v3136
      %v3270 = vpack.c.bf16 %v3139, %v3138
      %v3271 = vpack.c.bf16 %v3141, %v3140
      %v3272 = vpack.c.bf16 %v3143, %v3142
      %v3273 = vpack.c.bf16 %v3145, %v3144
      %v3402 = vunpack.c.l.b16 %v3146
      %v3403 = vunpack.c.h.b16 %v3146
      %v3404 = vunpack.c.l.b16 %v3147
      %v3405 = vunpack.c.h.b16 %v3147
      %v3406 = vunpack.c.l.b16 %v3148
      %v3407 = vunpack.c.h.b16 %v3148
      %v3408 = vunpack.c.l.b16 %v3149
      %v3409 = vunpack.c.h.b16 %v3149
      %v3410 = vunpack.c.l.b16 %v3150
      %v3411 = vunpack.c.h.b16 %v3150
      %v3412 = vunpack.c.l.b16 %v3151
      %v3413 = vunpack.c.h.b16 %v3151
      %v3414 = vunpack.c.l.b16 %v3152
      %v3415 = vunpack.c.h.b16 %v3152
      %v3416 = vunpack.c.l.b16 %v3153
      %v3417 = vunpack.c.h.b16 %v3153
      %v3418 = vunpack.c.l.b16 %v3154
      %v3419 = vunpack.c.h.b16 %v3154
      %v3420 = vunpack.c.l.b16 %v3155
      %v3421 = vunpack.c.h.b16 %v3155
      %v3422 = vunpack.c.l.b16 %v3156
      %v3423 = vunpack.c.h.b16 %v3156
      %v3424 = vunpack.c.l.b16 %v3157
      %v3425 = vunpack.c.h.b16 %v3157
      %v3426 = vunpack.c.l.b16 %v3158
      %v3427 = vunpack.c.h.b16 %v3158
      %v3428 = vunpack.c.l.b16 %v3159
      %v3429 = vunpack.c.h.b16 %v3159
      %v3430 = vunpack.c.l.b16 %v3160
      %v3431 = vunpack.c.h.b16 %v3160
      %v3432 = vunpack.c.l.b16 %v3161
      %v3433 = vunpack.c.h.b16 %v3161
      %v3434 = vunpack.c.l.b16 %v3162
      %v3435 = vunpack.c.h.b16 %v3162
      %v3436 = vunpack.c.l.b16 %v3163
      %v3437 = vunpack.c.h.b16 %v3163
      %v3438 = vunpack.c.l.b16 %v3164
      %v3439 = vunpack.c.h.b16 %v3164
      %v3440 = vunpack.c.l.b16 %v3165
      %v3441 = vunpack.c.h.b16 %v3165
      %v3442 = vunpack.c.l.b16 %v3166
      %v3443 = vunpack.c.h.b16 %v3166
      %v3444 = vunpack.c.l.b16 %v3167
      %v3445 = vunpack.c.h.b16 %v3167
      %v3446 = vunpack.c.l.b16 %v3168
      %v3447 = vunpack.c.h.b16 %v3168
      %v3448 = vunpack.c.l.b16 %v3169
      %v3449 = vunpack.c.h.b16 %v3169
      %v3450 = vunpack.c.l.b16 %v3170
      %v3451 = vunpack.c.h.b16 %v3170
      %v3452 = vunpack.c.l.b16 %v3171
      %v3453 = vunpack.c.h.b16 %v3171
      %v3454 = vunpack.c.l.b16 %v3172
      %v3455 = vunpack.c.h.b16 %v3172
      %v3456 = vunpack.c.l.b16 %v3173
      %v3457 = vunpack.c.h.b16 %v3173
      %v3458 = vunpack.c.l.b16 %v3174
      %v3459 = vunpack.c.h.b16 %v3174
      %v3460 = vunpack.c.l.b16 %v3175
      %v3461 = vunpack.c.h.b16 %v3175
      %v3462 = vunpack.c.l.b16 %v3176
      %v3463 = vunpack.c.h.b16 %v3176
      %v3464 = vunpack.c.l.b16 %v3177
      %v3465 = vunpack.c.h.b16 %v3177
      %v3466 = vunpack.c.l.b16 %v3178
      %v3467 = vunpack.c.h.b16 %v3178
      %v3468 = vunpack.c.l.b16 %v3179
      %v3469 = vunpack.c.h.b16 %v3179
      %v3470 = vunpack.c.l.b16 %v3180
      %v3471 = vunpack.c.h.b16 %v3180
      %v3472 = vunpack.c.l.b16 %v3181
      %v3473 = vunpack.c.h.b16 %v3181
      %v3474 = vunpack.c.l.b16 %v3182
      %v3475 = vunpack.c.h.b16 %v3182
      %v3476 = vunpack.c.l.b16 %v3183
      %v3477 = vunpack.c.h.b16 %v3183
      %v3478 = vunpack.c.l.b16 %v3184
      %v3479 = vunpack.c.h.b16 %v3184
      %v3480 = vunpack.c.l.b16 %v3185
      %v3481 = vunpack.c.h.b16 %v3185
      %v3482 = vunpack.c.l.b16 %v3186
      %v3483 = vunpack.c.h.b16 %v3186
      %v3484 = vunpack.c.l.b16 %v3187
      %v3485 = vunpack.c.h.b16 %v3187
      %v3486 = vunpack.c.l.b16 %v3188
      %v3487 = vunpack.c.h.b16 %v3188
      %v3488 = vunpack.c.l.b16 %v3189
      %v3489 = vunpack.c.h.b16 %v3189
      %v3490 = vunpack.c.l.b16 %v3190
      %v3491 = vunpack.c.h.b16 %v3190
      %v3492 = vunpack.c.l.b16 %v3191
      %v3493 = vunpack.c.h.b16 %v3191
      %v3494 = vunpack.c.l.b16 %v3192
      %v3495 = vunpack.c.h.b16 %v3192
      %v3496 = vunpack.c.l.b16 %v3193
      %v3497 = vunpack.c.h.b16 %v3193
      %v3498 = vunpack.c.l.b16 %v3194
      %v3499 = vunpack.c.h.b16 %v3194
      %v3500 = vunpack.c.l.b16 %v3195
      %v3501 = vunpack.c.h.b16 %v3195
      %v3502 = vunpack.c.l.b16 %v3196
      %v3503 = vunpack.c.h.b16 %v3196
      %v3504 = vunpack.c.l.b16 %v3197
      %v3505 = vunpack.c.h.b16 %v3197
      %v3506 = vunpack.c.l.b16 %v3198
      %v3507 = vunpack.c.h.b16 %v3198
      %v3508 = vunpack.c.l.b16 %v3199
      %v3509 = vunpack.c.h.b16 %v3199
      %v3510 = vunpack.c.l.b16 %v3200
      %v3511 = vunpack.c.h.b16 %v3200
      %v3512 = vunpack.c.l.b16 %v3201
      %v3513 = vunpack.c.h.b16 %v3201
      %v3514 = vunpack.c.l.b16 %v3202
      %v3515 = vunpack.c.h.b16 %v3202
      %v3516 = vunpack.c.l.b16 %v3203
      %v3517 = vunpack.c.h.b16 %v3203
      %v3518 = vunpack.c.l.b16 %v3204
      %v3519 = vunpack.c.h.b16 %v3204
      %v3520 = vunpack.c.l.b16 %v3205
      %v3521 = vunpack.c.h.b16 %v3205
      %v3522 = vunpack.c.l.b16 %v3206
      %v3523 = vunpack.c.h.b16 %v3206
      %v3524 = vunpack.c.l.b16 %v3207
      %v3525 = vunpack.c.h.b16 %v3207
      %v3526 = vunpack.c.l.b16 %v3208
      %v3527 = vunpack.c.h.b16 %v3208
      %v3528 = vunpack.c.l.b16 %v3209
      %v3529 = vunpack.c.h.b16 %v3209
      %v3530 = vunpack.c.l.b16 %v3210
      %v3531 = vunpack.c.h.b16 %v3210
      %v3532 = vunpack.c.l.b16 %v3211
      %v3533 = vunpack.c.h.b16 %v3211
      %v3534 = vunpack.c.l.b16 %v3212
      %v3535 = vunpack.c.h.b16 %v3212
      %v3536 = vunpack.c.l.b16 %v3213
      %v3537 = vunpack.c.h.b16 %v3213
      %v3538 = vunpack.c.l.b16 %v3214
      %v3539 = vunpack.c.h.b16 %v3214
      %v3540 = vunpack.c.l.b16 %v3215
      %v3541 = vunpack.c.h.b16 %v3215
      %v3542 = vunpack.c.l.b16 %v3216
      %v3543 = vunpack.c.h.b16 %v3216
      %v3544 = vunpack.c.l.b16 %v3217
      %v3545 = vunpack.c.h.b16 %v3217
      %v3546 = vunpack.c.l.b16 %v3218
      %v3547 = vunpack.c.h.b16 %v3218
      %v3548 = vunpack.c.l.b16 %v3219
      %v3549 = vunpack.c.h.b16 %v3219
      %v3550 = vunpack.c.l.b16 %v3220
      %v3551 = vunpack.c.h.b16 %v3220
      %v3552 = vunpack.c.l.b16 %v3221
      %v3553 = vunpack.c.h.b16 %v3221
      %v3554 = vunpack.c.l.b16 %v3222
      %v3555 = vunpack.c.h.b16 %v3222
      %v3556 = vunpack.c.l.b16 %v3223
      %v3557 = vunpack.c.h.b16 %v3223
      %v3558 = vunpack.c.l.b16 %v3224
      %v3559 = vunpack.c.h.b16 %v3224
      %v3560 = vunpack.c.l.b16 %v3225
      %v3561 = vunpack.c.h.b16 %v3225
      %v3562 = vunpack.c.l.b16 %v3226
      %v3563 = vunpack.c.h.b16 %v3226
      %v3564 = vunpack.c.l.b16 %v3227
      %v3565 = vunpack.c.h.b16 %v3227
      %v3566 = vunpack.c.l.b16 %v3228
      %v3567 = vunpack.c.h.b16 %v3228
      %v3568 = vunpack.c.l.b16 %v3229
      %v3569 = vunpack.c.h.b16 %v3229
      %v3570 = vunpack.c.l.b16 %v3230
      %v3571 = vunpack.c.h.b16 %v3230
      %v3572 = vunpack.c.l.b16 %v3231
      %v3573 = vunpack.c.h.b16 %v3231
      %v3574 = vunpack.c.l.b16 %v3232
      %v3575 = vunpack.c.h.b16 %v3232
      %v3576 = vunpack.c.l.b16 %v3233
      %v3577 = vunpack.c.h.b16 %v3233
      %v3578 = vunpack.c.l.b16 %v3234
      %v3579 = vunpack.c.h.b16 %v3234
      %v3580 = vunpack.c.l.b16 %v3235
      %v3581 = vunpack.c.h.b16 %v3235
      %v3582 = vunpack.c.l.b16 %v3236
      %v3583 = vunpack.c.h.b16 %v3236
      %v3584 = vunpack.c.l.b16 %v3237
      %v3585 = vunpack.c.h.b16 %v3237
      %v3586 = vunpack.c.l.b16 %v3238
      %v3587 = vunpack.c.h.b16 %v3238
      %v3588 = vunpack.c.l.b16 %v3239
      %v3589 = vunpack.c.h.b16 %v3239
      %v3590 = vunpack.c.l.b16 %v3240
      %v3591 = vunpack.c.h.b16 %v3240
      %v3592 = vunpack.c.l.b16 %v3241
      %v3593 = vunpack.c.h.b16 %v3241
      %v3594 = vunpack.c.l.b16 %v3242
      %v3595 = vunpack.c.h.b16 %v3242
      %v3596 = vunpack.c.l.b16 %v3243
      %v3597 = vunpack.c.h.b16 %v3243
      %v3598 = vunpack.c.l.b16 %v3244
      %v3599 = vunpack.c.h.b16 %v3244
      %v3600 = vunpack.c.l.b16 %v3245
      %v3601 = vunpack.c.h.b16 %v3245
      %v3602 = vunpack.c.l.b16 %v3246
      %v3603 = vunpack.c.h.b16 %v3246
      %v3604 = vunpack.c.l.b16 %v3247
      %v3605 = vunpack.c.h.b16 %v3247
      %v3606 = vunpack.c.l.b16 %v3248
      %v3607 = vunpack.c.h.b16 %v3248
      %v3608 = vunpack.c.l.b16 %v3249
      %v3609 = vunpack.c.h.b16 %v3249
      %v3610 = vunpack.c.l.b16 %v3250
      %v3611 = vunpack.c.h.b16 %v3250
      %v3612 = vunpack.c.l.b16 %v3251
      %v3613 = vunpack.c.h.b16 %v3251
      %v3614 = vunpack.c.l.b16 %v3252
      %v3615 = vunpack.c.h.b16 %v3252
      %v3616 = vunpack.c.l.b16 %v3253
      %v3617 = vunpack.c.h.b16 %v3253
      %v3618 = vunpack.c.l.b16 %v3254
      %v3619 = vunpack.c.h.b16 %v3254
      %v3620 = vunpack.c.l.b16 %v3255
      %v3621 = vunpack.c.h.b16 %v3255
      %v3622 = vunpack.c.l.b16 %v3256
      %v3623 = vunpack.c.h.b16 %v3256
      %v3624 = vunpack.c.l.b16 %v3257
      %v3625 = vunpack.c.h.b16 %v3257
      %v3626 = vunpack.c.l.b16 %v3258
      %v3627 = vunpack.c.h.b16 %v3258
      %v3628 = vunpack.c.l.b16 %v3259
      %v3629 = vunpack.c.h.b16 %v3259
      %v3630 = vunpack.c.l.b16 %v3260
      %v3631 = vunpack.c.h.b16 %v3260
      %v3632 = vunpack.c.l.b16 %v3261
      %v3633 = vunpack.c.h.b16 %v3261
      %v3634 = vunpack.c.l.b16 %v3262
      %v3635 = vunpack.c.h.b16 %v3262
      %v3636 = vunpack.c.l.b16 %v3263
      %v3637 = vunpack.c.h.b16 %v3263
      %v3638 = vunpack.c.l.b16 %v3264
      %v3639 = vunpack.c.h.b16 %v3264
      %v3640 = vunpack.c.l.b16 %v3265
      %v3641 = vunpack.c.h.b16 %v3265
      %v3642 = vunpack.c.l.b16 %v3266
      %v3643 = vunpack.c.h.b16 %v3266
      %v3644 = vunpack.c.l.b16 %v3267
      %v3645 = vunpack.c.h.b16 %v3267
      %v3646 = vunpack.c.l.b16 %v3268
      %v3647 = vunpack.c.h.b16 %v3268
      %v3648 = vunpack.c.l.b16 %v3269
      %v3649 = vunpack.c.h.b16 %v3269
      %v3650 = vunpack.c.l.b16 %v3270
      %v3651 = vunpack.c.h.b16 %v3270
      %v3652 = vunpack.c.l.b16 %v3271
      %v3653 = vunpack.c.h.b16 %v3271
      %v3654 = vunpack.c.l.b16 %v3272
      %v3655 = vunpack.c.h.b16 %v3272
      %v3656 = vunpack.c.l.b16 %v3273
      %v3657 = vunpack.c.h.b16 %v3273
      %v3658 = vpack.c.b16 %v3402, %v3402
      %v3659 = vpack.c.b16 %v3403, %v3403
      %v3660 = vpack.c.b16 %v3404, %v3404
      %v3661 = vpack.c.b16 %v3405, %v3405
      %v3662 = vpack.c.b16 %v3406, %v3406
      %v3663 = vpack.c.b16 %v3407, %v3407
      %v3664 = vpack.c.b16 %v3408, %v3408
      %v3665 = vpack.c.b16 %v3409, %v3409
      %v3666 = vpack.c.b16 %v3410, %v3410
      %v3667 = vpack.c.b16 %v3411, %v3411
      %v3668 = vpack.c.b16 %v3412, %v3412
      %v3669 = vpack.c.b16 %v3413, %v3413
      %v3670 = vpack.c.b16 %v3414, %v3414
      %v3671 = vpack.c.b16 %v3415, %v3415
      %v3672 = vpack.c.b16 %v3416, %v3416
      %v3673 = vpack.c.b16 %v3417, %v3417
      %v3674 = vpack.c.b16 %v3418, %v3418
      %v3675 = vpack.c.b16 %v3419, %v3419
      %v3676 = vpack.c.b16 %v3420, %v3420
      %v3677 = vpack.c.b16 %v3421, %v3421
      %v3678 = vpack.c.b16 %v3422, %v3422
      %v3679 = vpack.c.b16 %v3423, %v3423
      %v3680 = vpack.c.b16 %v3424, %v3424
      %v3681 = vpack.c.b16 %v3425, %v3425
      %v3682 = vpack.c.b16 %v3426, %v3426
      %v3683 = vpack.c.b16 %v3427, %v3427
      %v3684 = vpack.c.b16 %v3428, %v3428
      %v3685 = vpack.c.b16 %v3429, %v3429
      %v3686 = vpack.c.b16 %v3430, %v3430
      %v3687 = vpack.c.b16 %v3431, %v3431
      %v3688 = vpack.c.b16 %v3432, %v3432
      %v3689 = vpack.c.b16 %v3433, %v3433
      %v3690 = vpack.c.b16 %v3434, %v3434
      %v3691 = vpack.c.b16 %v3435, %v3435
      %v3692 = vpack.c.b16 %v3436, %v3436
      %v3693 = vpack.c.b16 %v3437, %v3437
      %v3694 = vpack.c.b16 %v3438, %v3438
      %v3695 = vpack.c.b16 %v3439, %v3439
      %v3696 = vpack.c.b16 %v3440, %v3440
      %v3697 = vpack.c.b16 %v3441, %v3441
      %v3698 = vpack.c.b16 %v3442, %v3442
      %v3699 = vpack.c.b16 %v3443, %v3443
      %v3700 = vpack.c.b16 %v3444, %v3444
      %v3701 = vpack.c.b16 %v3445, %v3445
      %v3702 = vpack.c.b16 %v3446, %v3446
      %v3703 = vpack.c.b16 %v3447, %v3447
      %v3704 = vpack.c.b16 %v3448, %v3448
      %v3705 = vpack.c.b16 %v3449, %v3449
      %v3706 = vpack.c.b16 %v3450, %v3450
      %v3707 = vpack.c.b16 %v3451, %v3451
      %v3708 = vpack.c.b16 %v3452, %v3452
      %v3709 = vpack.c.b16 %v3453, %v3453
      %v3710 = vpack.c.b16 %v3454, %v3454
      %v3711 = vpack.c.b16 %v3455, %v3455
      %v3712 = vpack.c.b16 %v3456, %v3456
      %v3713 = vpack.c.b16 %v3457, %v3457
      %v3714 = vpack.c.b16 %v3458, %v3458
      %v3715 = vpack.c.b16 %v3459, %v3459
      %v3716 = vpack.c.b16 %v3460, %v3460
      %v3717 = vpack.c.b16 %v3461, %v3461
      %v3718 = vpack.c.b16 %v3462, %v3462
      %v3719 = vpack.c.b16 %v3463, %v3463
      %v3720 = vpack.c.b16 %v3464, %v3464
      %v3721 = vpack.c.b16 %v3465, %v3465
      %v3722 = vpack.c.b16 %v3466, %v3466
      %v3723 = vpack.c.b16 %v3467, %v3467
      %v3724 = vpack.c.b16 %v3468, %v3468
      %v3725 = vpack.c.b16 %v3469, %v3469
      %v3726 = vpack.c.b16 %v3470, %v3470
      %v3727 = vpack.c.b16 %v3471, %v3471
      %v3728 = vpack.c.b16 %v3472, %v3472
      %v3729 = vpack.c.b16 %v3473, %v3473
      %v3730 = vpack.c.b16 %v3474, %v3474
      %v3731 = vpack.c.b16 %v3475, %v3475
      %v3732 = vpack.c.b16 %v3476, %v3476
      %v3733 = vpack.c.b16 %v3477, %v3477
      %v3734 = vpack.c.b16 %v3478, %v3478
      %v3735 = vpack.c.b16 %v3479, %v3479
      %v3736 = vpack.c.b16 %v3480, %v3480
      %v3737 = vpack.c.b16 %v3481, %v3481
      %v3738 = vpack.c.b16 %v3482, %v3482
      %v3739 = vpack.c.b16 %v3483, %v3483
      %v3740 = vpack.c.b16 %v3484, %v3484
      %v3741 = vpack.c.b16 %v3485, %v3485
      %v3742 = vpack.c.b16 %v3486, %v3486
      %v3743 = vpack.c.b16 %v3487, %v3487
      %v3744 = vpack.c.b16 %v3488, %v3488
      %v3745 = vpack.c.b16 %v3489, %v3489
      %v3746 = vpack.c.b16 %v3490, %v3490
      %v3747 = vpack.c.b16 %v3491, %v3491
      %v3748 = vpack.c.b16 %v3492, %v3492
      %v3749 = vpack.c.b16 %v3493, %v3493
      %v3750 = vpack.c.b16 %v3494, %v3494
      %v3751 = vpack.c.b16 %v3495, %v3495
      %v3752 = vpack.c.b16 %v3496, %v3496
      %v3753 = vpack.c.b16 %v3497, %v3497
      %v3754 = vpack.c.b16 %v3498, %v3498
      %v3755 = vpack.c.b16 %v3499, %v3499
      %v3756 = vpack.c.b16 %v3500, %v3500
      %v3757 = vpack.c.b16 %v3501, %v3501
      %v3758 = vpack.c.b16 %v3502, %v3502
      %v3759 = vpack.c.b16 %v3503, %v3503
      %v3760 = vpack.c.b16 %v3504, %v3504
      %v3761 = vpack.c.b16 %v3505, %v3505
      %v3762 = vpack.c.b16 %v3506, %v3506
      %v3763 = vpack.c.b16 %v3507, %v3507
      %v3764 = vpack.c.b16 %v3508, %v3508
      %v3765 = vpack.c.b16 %v3509, %v3509
      %v3766 = vpack.c.b16 %v3510, %v3510
      %v3767 = vpack.c.b16 %v3511, %v3511
      %v3768 = vpack.c.b16 %v3512, %v3512
      %v3769 = vpack.c.b16 %v3513, %v3513
      %v3770 = vpack.c.b16 %v3514, %v3514
      %v3771 = vpack.c.b16 %v3515, %v3515
      %v3772 = vpack.c.b16 %v3516, %v3516
      %v3773 = vpack.c.b16 %v3517, %v3517
      %v3774 = vpack.c.b16 %v3518, %v3518
      %v3775 = vpack.c.b16 %v3519, %v3519
      %v3776 = vpack.c.b16 %v3520, %v3520
      %v3777 = vpack.c.b16 %v3521, %v3521
      %v3778 = vpack.c.b16 %v3522, %v3522
      %v3779 = vpack.c.b16 %v3523, %v3523
      %v3780 = vpack.c.b16 %v3524, %v3524
      %v3781 = vpack.c.b16 %v3525, %v3525
      %v3782 = vpack.c.b16 %v3526, %v3526
      %v3783 = vpack.c.b16 %v3527, %v3527
      %v3784 = vpack.c.b16 %v3528, %v3528
      %v3785 = vpack.c.b16 %v3529, %v3529
      %v3786 = vpack.c.b16 %v3530, %v3530
      %v3787 = vpack.c.b16 %v3531, %v3531
      %v3788 = vpack.c.b16 %v3532, %v3532
      %v3789 = vpack.c.b16 %v3533, %v3533
      %v3790 = vpack.c.b16 %v3534, %v3534
      %v3791 = vpack.c.b16 %v3535, %v3535
      %v3792 = vpack.c.b16 %v3536, %v3536
      %v3793 = vpack.c.b16 %v3537, %v3537
      %v3794 = vpack.c.b16 %v3538, %v3538
      %v3795 = vpack.c.b16 %v3539, %v3539
      %v3796 = vpack.c.b16 %v3540, %v3540
      %v3797 = vpack.c.b16 %v3541, %v3541
      %v3798 = vpack.c.b16 %v3542, %v3542
      %v3799 = vpack.c.b16 %v3543, %v3543
      %v3800 = vpack.c.b16 %v3544, %v3544
      %v3801 = vpack.c.b16 %v3545, %v3545
      %v3802 = vpack.c.b16 %v3546, %v3546
      %v3803 = vpack.c.b16 %v3547, %v3547
      %v3804 = vpack.c.b16 %v3548, %v3548
      %v3805 = vpack.c.b16 %v3549, %v3549
      %v3806 = vpack.c.b16 %v3550, %v3550
      %v3807 = vpack.c.b16 %v3551, %v3551
      %v3808 = vpack.c.b16 %v3552, %v3552
      %v3809 = vpack.c.b16 %v3553, %v3553
      %v3810 = vpack.c.b16 %v3554, %v3554
      %v3811 = vpack.c.b16 %v3555, %v3555
      %v3812 = vpack.c.b16 %v3556, %v3556
      %v3813 = vpack.c.b16 %v3557, %v3557
      %v3814 = vpack.c.b16 %v3558, %v3558
      %v3815 = vpack.c.b16 %v3559, %v3559
      %v3816 = vpack.c.b16 %v3560, %v3560
      %v3817 = vpack.c.b16 %v3561, %v3561
      %v3818 = vpack.c.b16 %v3562, %v3562
      %v3819 = vpack.c.b16 %v3563, %v3563
      %v3820 = vpack.c.b16 %v3564, %v3564
      %v3821 = vpack.c.b16 %v3565, %v3565
      %v3822 = vpack.c.b16 %v3566, %v3566
      %v3823 = vpack.c.b16 %v3567, %v3567
      %v3824 = vpack.c.b16 %v3568, %v3568
      %v3825 = vpack.c.b16 %v3569, %v3569
      %v3826 = vpack.c.b16 %v3570, %v3570
      %v3827 = vpack.c.b16 %v3571, %v3571
      %v3828 = vpack.c.b16 %v3572, %v3572
      %v3829 = vpack.c.b16 %v3573, %v3573
      %v3830 = vpack.c.b16 %v3574, %v3574
      %v3831 = vpack.c.b16 %v3575, %v3575
      %v3832 = vpack.c.b16 %v3576, %v3576
      %v3833 = vpack.c.b16 %v3577, %v3577
      %v3834 = vpack.c.b16 %v3578, %v3578
      %v3835 = vpack.c.b16 %v3579, %v3579
      %v3836 = vpack.c.b16 %v3580, %v3580
      %v3837 = vpack.c.b16 %v3581, %v3581
      %v3838 = vpack.c.b16 %v3582, %v3582
      %v3839 = vpack.c.b16 %v3583, %v3583
      %v3840 = vpack.c.b16 %v3584, %v3584
      %v3841 = vpack.c.b16 %v3585, %v3585
      %v3842 = vpack.c.b16 %v3586, %v3586
      %v3843 = vpack.c.b16 %v3587, %v3587
      %v3844 = vpack.c.b16 %v3588, %v3588
      %v3845 = vpack.c.b16 %v3589, %v3589
      %v3846 = vpack.c.b16 %v3590, %v3590
      %v3847 = vpack.c.b16 %v3591, %v3591
      %v3848 = vpack.c.b16 %v3592, %v3592
      %v3849 = vpack.c.b16 %v3593, %v3593
      %v3850 = vpack.c.b16 %v3594, %v3594
      %v3851 = vpack.c.b16 %v3595, %v3595
      %v3852 = vpack.c.b16 %v3596, %v3596
      %v3853 = vpack.c.b16 %v3597, %v3597
      %v3854 = vpack.c.b16 %v3598, %v3598
      %v3855 = vpack.c.b16 %v3599, %v3599
      %v3856 = vpack.c.b16 %v3600, %v3600
      %v3857 = vpack.c.b16 %v3601, %v3601
      %v3858 = vpack.c.b16 %v3602, %v3602
      %v3859 = vpack.c.b16 %v3603, %v3603
      %v3860 = vpack.c.b16 %v3604, %v3604
      %v3861 = vpack.c.b16 %v3605, %v3605
      %v3862 = vpack.c.b16 %v3606, %v3606
      %v3863 = vpack.c.b16 %v3607, %v3607
      %v3864 = vpack.c.b16 %v3608, %v3608
      %v3865 = vpack.c.b16 %v3609, %v3609
      %v3866 = vpack.c.b16 %v3610, %v3610
      %v3867 = vpack.c.b16 %v3611, %v3611
      %v3868 = vpack.c.b16 %v3612, %v3612
      %v3869 = vpack.c.b16 %v3613, %v3613
      %v3870 = vpack.c.b16 %v3614, %v3614
      %v3871 = vpack.c.b16 %v3615, %v3615
      %v3872 = vpack.c.b16 %v3616, %v3616
      %v3873 = vpack.c.b16 %v3617, %v3617
      %v3874 = vpack.c.b16 %v3618, %v3618
      %v3875 = vpack.c.b16 %v3619, %v3619
      %v3876 = vpack.c.b16 %v3620, %v3620
      %v3877 = vpack.c.b16 %v3621, %v3621
      %v3878 = vpack.c.b16 %v3622, %v3622
      %v3879 = vpack.c.b16 %v3623, %v3623
      %v3880 = vpack.c.b16 %v3624, %v3624
      %v3881 = vpack.c.b16 %v3625, %v3625
      %v3882 = vpack.c.b16 %v3626, %v3626
      %v3883 = vpack.c.b16 %v3627, %v3627
      %v3884 = vpack.c.b16 %v3628, %v3628
      %v3885 = vpack.c.b16 %v3629, %v3629
      %v3886 = vpack.c.b16 %v3630, %v3630
      %v3887 = vpack.c.b16 %v3631, %v3631
      %v3888 = vpack.c.b16 %v3632, %v3632
      %v3889 = vpack.c.b16 %v3633, %v3633
      %v3890 = vpack.c.b16 %v3634, %v3634
      %v3891 = vpack.c.b16 %v3635, %v3635
      %v3892 = vpack.c.b16 %v3636, %v3636
      %v3893 = vpack.c.b16 %v3637, %v3637
      %v3894 = vpack.c.b16 %v3638, %v3638
      %v3895 = vpack.c.b16 %v3639, %v3639
      %v3896 = vpack.c.b16 %v3640, %v3640
      %v3897 = vpack.c.b16 %v3641, %v3641
      %v3898 = vpack.c.b16 %v3642, %v3642
      %v3899 = vpack.c.b16 %v3643, %v3643
      %v3900 = vpack.c.b16 %v3644, %v3644
      %v3901 = vpack.c.b16 %v3645, %v3645
      %v3902 = vpack.c.b16 %v3646, %v3646
      %v3903 = vpack.c.b16 %v3647, %v3647
      %v3904 = vpack.c.b16 %v3648, %v3648
      %v3905 = vpack.c.b16 %v3649, %v3649
      %v3906 = vpack.c.b16 %v3650, %v3650
      %v3907 = vpack.c.b16 %v3651, %v3651
      %v3908 = vpack.c.b16 %v3652, %v3652
      %v3909 = vpack.c.b16 %v3653, %v3653
      %v3910 = vpack.c.b16 %v3654, %v3654
      %v3911 = vpack.c.b16 %v3655, %v3655
      %v3912 = vpack.c.b16 %v3656, %v3656
      %v3913 = vpack.c.b16 %v3657, %v3657
      %4170 = vst [vmem:[%s223] sm:$0xf] %v3658
      %4171 = vst [vmem:[%s223 + $0x4] sm:$0xf] %v3659
      %4172 = vst [vmem:[%s223 + $0x8] sm:$0xf] %v3660
      %4173 = vst [vmem:[%s223 + $0xc] sm:$0xf] %v3661
      %4174 = vst [vmem:[%s223 + $0x10] sm:$0xf] %v3662
      %4175 = vst [vmem:[%s223 + $0x14] sm:$0xf] %v3663
      %4176 = vst [vmem:[%s223 + $0x18] sm:$0xf] %v3664
      %4177 = vst [vmem:[%s223 + $0x1c] sm:$0xf] %v3665
      %4178 = vst [vmem:[%s223 + $0x20] sm:$0xf] %v3666
      %4179 = vst [vmem:[%s223 + $0x24] sm:$0xf] %v3667
      %4180 = vst [vmem:[%s223 + $0x28] sm:$0xf] %v3668
      %4181 = vst [vmem:[%s223 + $0x2c] sm:$0xf] %v3669
      %4182 = vst [vmem:[%s223 + $0x30] sm:$0xf] %v3670
      %4183 = vst [vmem:[%s223 + $0x34] sm:$0xf] %v3671
      %4184 = vst [vmem:[%s223 + $0x38] sm:$0xf] %v3672
      %4185 = vst [vmem:[%s223 + $0x3c] sm:$0xf] %v3673
      %4186 = vst [vmem:[%s223 + $0x40] sm:$0xf] %v3674
      %4187 = vst [vmem:[%s223 + $0x44] sm:$0xf] %v3675
      %4188 = vst [vmem:[%s223 + $0x48] sm:$0xf] %v3676
      %4189 = vst [vmem:[%s223 + $0x4c] sm:$0xf] %v3677
      %4190 = vst [vmem:[%s223 + $0x50] sm:$0xf] %v3678
      %4191 = vst [vmem:[%s223 + $0x54] sm:$0xf] %v3679
      %4192 = vst [vmem:[%s223 + $0x58] sm:$0xf] %v3680
      %4193 = vst [vmem:[%s223 + $0x5c] sm:$0xf] %v3681
      %4194 = vst [vmem:[%s223 + $0x60] sm:$0xf] %v3682
      %4195 = vst [vmem:[%s223 + $0x64] sm:$0xf] %v3683
      %4196 = vst [vmem:[%s223 + $0x68] sm:$0xf] %v3684
      %4197 = vst [vmem:[%s223 + $0x6c] sm:$0xf] %v3685
      %4198 = vst [vmem:[%s223 + $0x70] sm:$0xf] %v3686
      %4199 = vst [vmem:[%s223 + $0x74] sm:$0xf] %v3687
      %4200 = vst [vmem:[%s223 + $0x78] sm:$0xf] %v3688
      %4201 = vst [vmem:[%s223 + $0x7c] sm:$0xf] %v3689
      %4202 = vst [vmem:[%s223 + $0x80] sm:$0xf] %v3690
      %4203 = vst [vmem:[%s223 + $0x84] sm:$0xf] %v3691
      %4204 = vst [vmem:[%s223 + $0x88] sm:$0xf] %v3692
      %4205 = vst [vmem:[%s223 + $0x8c] sm:$0xf] %v3693
      %4206 = vst [vmem:[%s223 + $0x90] sm:$0xf] %v3694
      %4207 = vst [vmem:[%s223 + $0x94] sm:$0xf] %v3695
      %4208 = vst [vmem:[%s223 + $0x98] sm:$0xf] %v3696
      %4209 = vst [vmem:[%s223 + $0x9c] sm:$0xf] %v3697
      %4210 = vst [vmem:[%s223 + $0xa0] sm:$0xf] %v3698
      %4211 = vst [vmem:[%s223 + $0xa4] sm:$0xf] %v3699
      %4212 = vst [vmem:[%s223 + $0xa8] sm:$0xf] %v3700
      %4213 = vst [vmem:[%s223 + $0xac] sm:$0xf] %v3701
      %4214 = vst [vmem:[%s223 + $0xb0] sm:$0xf] %v3702
      %4215 = vst [vmem:[%s223 + $0xb4] sm:$0xf] %v3703
      %4216 = vst [vmem:[%s223 + $0xb8] sm:$0xf] %v3704
      %4217 = vst [vmem:[%s223 + $0xbc] sm:$0xf] %v3705
      %4218 = vst [vmem:[%s223 + $0xc0] sm:$0xf] %v3706
      %4219 = vst [vmem:[%s223 + $0xc4] sm:$0xf] %v3707
      %4220 = vst [vmem:[%s223 + $0xc8] sm:$0xf] %v3708
      %4221 = vst [vmem:[%s223 + $0xcc] sm:$0xf] %v3709
      %4222 = vst [vmem:[%s223 + $0xd0] sm:$0xf] %v3710
      %4223 = vst [vmem:[%s223 + $0xd4] sm:$0xf] %v3711
      %4224 = vst [vmem:[%s223 + $0xd8] sm:$0xf] %v3712
      %4225 = vst [vmem:[%s223 + $0xdc] sm:$0xf] %v3713
      %4226 = vst [vmem:[%s223 + $0xe0] sm:$0xf] %v3714
      %4227 = vst [vmem:[%s223 + $0xe4] sm:$0xf] %v3715
      %4228 = vst [vmem:[%s223 + $0xe8] sm:$0xf] %v3716
      %4229 = vst [vmem:[%s223 + $0xec] sm:$0xf] %v3717
      %4230 = vst [vmem:[%s223 + $0xf0] sm:$0xf] %v3718
      %4231 = vst [vmem:[%s223 + $0xf4] sm:$0xf] %v3719
      %4232 = vst [vmem:[%s223 + $0xf8] sm:$0xf] %v3720
      %4233 = vst [vmem:[%s223 + $0xfc] sm:$0xf] %v3721
      %4234 = vst [vmem:[%s223 + $0x100] sm:$0xf] %v3722
      %4235 = vst [vmem:[%s223 + $0x104] sm:$0xf] %v3723
      %4236 = vst [vmem:[%s223 + $0x108] sm:$0xf] %v3724
      %4237 = vst [vmem:[%s223 + $0x10c] sm:$0xf] %v3725
      %4238 = vst [vmem:[%s223 + $0x110] sm:$0xf] %v3726
      %4239 = vst [vmem:[%s223 + $0x114] sm:$0xf] %v3727
      %4240 = vst [vmem:[%s223 + $0x118] sm:$0xf] %v3728
      %4241 = vst [vmem:[%s223 + $0x11c] sm:$0xf] %v3729
      %4242 = vst [vmem:[%s223 + $0x120] sm:$0xf] %v3730
      %4243 = vst [vmem:[%s223 + $0x124] sm:$0xf] %v3731
      %4244 = vst [vmem:[%s223 + $0x128] sm:$0xf] %v3732
      %4245 = vst [vmem:[%s223 + $0x12c] sm:$0xf] %v3733
      %4246 = vst [vmem:[%s223 + $0x130] sm:$0xf] %v3734
      %4247 = vst [vmem:[%s223 + $0x134] sm:$0xf] %v3735
      %4248 = vst [vmem:[%s223 + $0x138] sm:$0xf] %v3736
      %4249 = vst [vmem:[%s223 + $0x13c] sm:$0xf] %v3737
      %4250 = vst [vmem:[%s223 + $0x140] sm:$0xf] %v3738
      %4251 = vst [vmem:[%s223 + $0x144] sm:$0xf] %v3739
      %4252 = vst [vmem:[%s223 + $0x148] sm:$0xf] %v3740
      %4253 = vst [vmem:[%s223 + $0x14c] sm:$0xf] %v3741
      %4254 = vst [vmem:[%s223 + $0x150] sm:$0xf] %v3742
      %4255 = vst [vmem:[%s223 + $0x154] sm:$0xf] %v3743
      %4256 = vst [vmem:[%s223 + $0x158] sm:$0xf] %v3744
      %4257 = vst [vmem:[%s223 + $0x15c] sm:$0xf] %v3745
      %4258 = vst [vmem:[%s223 + $0x160] sm:$0xf] %v3746
      %4259 = vst [vmem:[%s223 + $0x164] sm:$0xf] %v3747
      %4260 = vst [vmem:[%s223 + $0x168] sm:$0xf] %v3748
      %4261 = vst [vmem:[%s223 + $0x16c] sm:$0xf] %v3749
      %4262 = vst [vmem:[%s223 + $0x170] sm:$0xf] %v3750
      %4263 = vst [vmem:[%s223 + $0x174] sm:$0xf] %v3751
      %4264 = vst [vmem:[%s223 + $0x178] sm:$0xf] %v3752
      %4265 = vst [vmem:[%s223 + $0x17c] sm:$0xf] %v3753
      %4266 = vst [vmem:[%s223 + $0x180] sm:$0xf] %v3754
      %4267 = vst [vmem:[%s223 + $0x184] sm:$0xf] %v3755
      %4268 = vst [vmem:[%s223 + $0x188] sm:$0xf] %v3756
      %4269 = vst [vmem:[%s223 + $0x18c] sm:$0xf] %v3757
      %4270 = vst [vmem:[%s223 + $0x190] sm:$0xf] %v3758
      %4271 = vst [vmem:[%s223 + $0x194] sm:$0xf] %v3759
      %4272 = vst [vmem:[%s223 + $0x198] sm:$0xf] %v3760
      %4273 = vst [vmem:[%s223 + $0x19c] sm:$0xf] %v3761
      %4274 = vst [vmem:[%s223 + $0x1a0] sm:$0xf] %v3762
      %4275 = vst [vmem:[%s223 + $0x1a4] sm:$0xf] %v3763
      %4276 = vst [vmem:[%s223 + $0x1a8] sm:$0xf] %v3764
      %4277 = vst [vmem:[%s223 + $0x1ac] sm:$0xf] %v3765
      %4278 = vst [vmem:[%s223 + $0x1b0] sm:$0xf] %v3766
      %4279 = vst [vmem:[%s223 + $0x1b4] sm:$0xf] %v3767
      %4280 = vst [vmem:[%s223 + $0x1b8] sm:$0xf] %v3768
      %4281 = vst [vmem:[%s223 + $0x1bc] sm:$0xf] %v3769
      %4282 = vst [vmem:[%s223 + $0x1c0] sm:$0xf] %v3770
      %4283 = vst [vmem:[%s223 + $0x1c4] sm:$0xf] %v3771
      %4284 = vst [vmem:[%s223 + $0x1c8] sm:$0xf] %v3772
      %4285 = vst [vmem:[%s223 + $0x1cc] sm:$0xf] %v3773
      %4286 = vst [vmem:[%s223 + $0x1d0] sm:$0xf] %v3774
      %4287 = vst [vmem:[%s223 + $0x1d4] sm:$0xf] %v3775
      %4288 = vst [vmem:[%s223 + $0x1d8] sm:$0xf] %v3776
      %4289 = vst [vmem:[%s223 + $0x1dc] sm:$0xf] %v3777
      %4290 = vst [vmem:[%s223 + $0x1e0] sm:$0xf] %v3778
      %4291 = vst [vmem:[%s223 + $0x1e4] sm:$0xf] %v3779
      %4292 = vst [vmem:[%s223 + $0x1e8] sm:$0xf] %v3780
      %4293 = vst [vmem:[%s223 + $0x1ec] sm:$0xf] %v3781
      %4294 = vst [vmem:[%s223 + $0x1f0] sm:$0xf] %v3782
      %4295 = vst [vmem:[%s223 + $0x1f4] sm:$0xf] %v3783
      %4296 = vst [vmem:[%s223 + $0x1f8] sm:$0xf] %v3784
      %4297 = vst [vmem:[%s223 + $0x1fc] sm:$0xf] %v3785
      %4298 = vst [vmem:[%s223 + $0x200] sm:$0xf] %v3786
      %4299 = vst [vmem:[%s223 + $0x204] sm:$0xf] %v3787
      %4300 = vst [vmem:[%s223 + $0x208] sm:$0xf] %v3788
      %4301 = vst [vmem:[%s223 + $0x20c] sm:$0xf] %v3789
      %4302 = vst [vmem:[%s223 + $0x210] sm:$0xf] %v3790
      %4303 = vst [vmem:[%s223 + $0x214] sm:$0xf] %v3791
      %4304 = vst [vmem:[%s223 + $0x218] sm:$0xf] %v3792
      %4305 = vst [vmem:[%s223 + $0x21c] sm:$0xf] %v3793
      %4306 = vst [vmem:[%s223 + $0x220] sm:$0xf] %v3794
      %4307 = vst [vmem:[%s223 + $0x224] sm:$0xf] %v3795
      %4308 = vst [vmem:[%s223 + $0x228] sm:$0xf] %v3796
      %4309 = vst [vmem:[%s223 + $0x22c] sm:$0xf] %v3797
      %4310 = vst [vmem:[%s223 + $0x230] sm:$0xf] %v3798
      %4311 = vst [vmem:[%s223 + $0x234] sm:$0xf] %v3799
      %4312 = vst [vmem:[%s223 + $0x238] sm:$0xf] %v3800
      %4313 = vst [vmem:[%s223 + $0x23c] sm:$0xf] %v3801
      %4314 = vst [vmem:[%s223 + $0x240] sm:$0xf] %v3802
      %4315 = vst [vmem:[%s223 + $0x244] sm:$0xf] %v3803
      %4316 = vst [vmem:[%s223 + $0x248] sm:$0xf] %v3804
      %4317 = vst [vmem:[%s223 + $0x24c] sm:$0xf] %v3805
      %4318 = vst [vmem:[%s223 + $0x250] sm:$0xf] %v3806
      %4319 = vst [vmem:[%s223 + $0x254] sm:$0xf] %v3807
      %4320 = vst [vmem:[%s223 + $0x258] sm:$0xf] %v3808
      %4321 = vst [vmem:[%s223 + $0x25c] sm:$0xf] %v3809
      %4322 = vst [vmem:[%s223 + $0x260] sm:$0xf] %v3810
      %4323 = vst [vmem:[%s223 + $0x264] sm:$0xf] %v3811
      %4324 = vst [vmem:[%s223 + $0x268] sm:$0xf] %v3812
      %4325 = vst [vmem:[%s223 + $0x26c] sm:$0xf] %v3813
      %4326 = vst [vmem:[%s223 + $0x270] sm:$0xf] %v3814
      %4327 = vst [vmem:[%s223 + $0x274] sm:$0xf] %v3815
      %4328 = vst [vmem:[%s223 + $0x278] sm:$0xf] %v3816
      %4329 = vst [vmem:[%s223 + $0x27c] sm:$0xf] %v3817
      %4330 = vst [vmem:[%s223 + $0x280] sm:$0xf] %v3818
      %4331 = vst [vmem:[%s223 + $0x284] sm:$0xf] %v3819
      %4332 = vst [vmem:[%s223 + $0x288] sm:$0xf] %v3820
      %4333 = vst [vmem:[%s223 + $0x28c] sm:$0xf] %v3821
      %4334 = vst [vmem:[%s223 + $0x290] sm:$0xf] %v3822
      %4335 = vst [vmem:[%s223 + $0x294] sm:$0xf] %v3823
      %4336 = vst [vmem:[%s223 + $0x298] sm:$0xf] %v3824
      %4337 = vst [vmem:[%s223 + $0x29c] sm:$0xf] %v3825
      %4338 = vst [vmem:[%s223 + $0x2a0] sm:$0xf] %v3826
      %4339 = vst [vmem:[%s223 + $0x2a4] sm:$0xf] %v3827
      %4340 = vst [vmem:[%s223 + $0x2a8] sm:$0xf] %v3828
      %4341 = vst [vmem:[%s223 + $0x2ac] sm:$0xf] %v3829
      %4342 = vst [vmem:[%s223 + $0x2b0] sm:$0xf] %v3830
      %4343 = vst [vmem:[%s223 + $0x2b4] sm:$0xf] %v3831
      %4344 = vst [vmem:[%s223 + $0x2b8] sm:$0xf] %v3832
      %4345 = vst [vmem:[%s223 + $0x2bc] sm:$0xf] %v3833
      %4346 = vst [vmem:[%s223 + $0x2c0] sm:$0xf] %v3834
      %4347 = vst [vmem:[%s223 + $0x2c4] sm:$0xf] %v3835
      %4348 = vst [vmem:[%s223 + $0x2c8] sm:$0xf] %v3836
      %4349 = vst [vmem:[%s223 + $0x2cc] sm:$0xf] %v3837
      %4350 = vst [vmem:[%s223 + $0x2d0] sm:$0xf] %v3838
      %4351 = vst [vmem:[%s223 + $0x2d4] sm:$0xf] %v3839
      %4352 = vst [vmem:[%s223 + $0x2d8] sm:$0xf] %v3840
      %4353 = vst [vmem:[%s223 + $0x2dc] sm:$0xf] %v3841
      %4354 = vst [vmem:[%s223 + $0x2e0] sm:$0xf] %v3842
      %4355 = vst [vmem:[%s223 + $0x2e4] sm:$0xf] %v3843
      %4356 = vst [vmem:[%s223 + $0x2e8] sm:$0xf] %v3844
      %4357 = vst [vmem:[%s223 + $0x2ec] sm:$0xf] %v3845
      %4358 = vst [vmem:[%s223 + $0x2f0] sm:$0xf] %v3846
      %4359 = vst [vmem:[%s223 + $0x2f4] sm:$0xf] %v3847
      %4360 = vst [vmem:[%s223 + $0x2f8] sm:$0xf] %v3848
      %4361 = vst [vmem:[%s223 + $0x2fc] sm:$0xf] %v3849
      %4362 = vst [vmem:[%s223 + $0x300] sm:$0xf] %v3850
      %4363 = vst [vmem:[%s223 + $0x304] sm:$0xf] %v3851
      %4364 = vst [vmem:[%s223 + $0x308] sm:$0xf] %v3852
      %4365 = vst [vmem:[%s223 + $0x30c] sm:$0xf] %v3853
      %4366 = vst [vmem:[%s223 + $0x310] sm:$0xf] %v3854
      %4367 = vst [vmem:[%s223 + $0x314] sm:$0xf] %v3855
      %4368 = vst [vmem:[%s223 + $0x318] sm:$0xf] %v3856
      %4369 = vst [vmem:[%s223 + $0x31c] sm:$0xf] %v3857
      %4370 = vst [vmem:[%s223 + $0x320] sm:$0xf] %v3858
      %4371 = vst [vmem:[%s223 + $0x324] sm:$0xf] %v3859
      %4372 = vst [vmem:[%s223 + $0x328] sm:$0xf] %v3860
      %4373 = vst [vmem:[%s223 + $0x32c] sm:$0xf] %v3861
      %4374 = vst [vmem:[%s223 + $0x330] sm:$0xf] %v3862
      %4375 = vst [vmem:[%s223 + $0x334] sm:$0xf] %v3863
      %4376 = vst [vmem:[%s223 + $0x338] sm:$0xf] %v3864
      %4377 = vst [vmem:[%s223 + $0x33c] sm:$0xf] %v3865
      %4378 = vst [vmem:[%s223 + $0x340] sm:$0xf] %v3866
      %4379 = vst [vmem:[%s223 + $0x344] sm:$0xf] %v3867
      %4380 = vst [vmem:[%s223 + $0x348] sm:$0xf] %v3868
      %4381 = vst [vmem:[%s223 + $0x34c] sm:$0xf] %v3869
      %4382 = vst [vmem:[%s223 + $0x350] sm:$0xf] %v3870
      %4383 = vst [vmem:[%s223 + $0x354] sm:$0xf] %v3871
      %4384 = vst [vmem:[%s223 + $0x358] sm:$0xf] %v3872
      %4385 = vst [vmem:[%s223 + $0x35c] sm:$0xf] %v3873
      %4386 = vst [vmem:[%s223 + $0x360] sm:$0xf] %v3874
      %4387 = vst [vmem:[%s223 + $0x364] sm:$0xf] %v3875
      %4388 = vst [vmem:[%s223 + $0x368] sm:$0xf] %v3876
      %4389 = vst [vmem:[%s223 + $0x36c] sm:$0xf] %v3877
      %4390 = vst [vmem:[%s223 + $0x370] sm:$0xf] %v3878
      %4391 = vst [vmem:[%s223 + $0x374] sm:$0xf] %v3879
      %4392 = vst [vmem:[%s223 + $0x378] sm:$0xf] %v3880
      %4393 = vst [vmem:[%s223 + $0x37c] sm:$0xf] %v3881
      %4394 = vst [vmem:[%s223 + $0x380] sm:$0xf] %v3882
      %4395 = vst [vmem:[%s223 + $0x384] sm:$0xf] %v3883
      %4396 = vst [vmem:[%s223 + $0x388] sm:$0xf] %v3884
      %4397 = vst [vmem:[%s223 + $0x38c] sm:$0xf] %v3885
      %4398 = vst [vmem:[%s223 + $0x390] sm:$0xf] %v3886
      %4399 = vst [vmem:[%s223 + $0x394] sm:$0xf] %v3887
      %4400 = vst [vmem:[%s223 + $0x398] sm:$0xf] %v3888
      %4401 = vst [vmem:[%s223 + $0x39c] sm:$0xf] %v3889
      %4402 = vst [vmem:[%s223 + $0x3a0] sm:$0xf] %v3890
      %4403 = vst [vmem:[%s223 + $0x3a4] sm:$0xf] %v3891
      %4404 = vst [vmem:[%s223 + $0x3a8] sm:$0xf] %v3892
      %4405 = vst [vmem:[%s223 + $0x3ac] sm:$0xf] %v3893
      %4406 = vst [vmem:[%s223 + $0x3b0] sm:$0xf] %v3894
      %4407 = vst [vmem:[%s223 + $0x3b4] sm:$0xf] %v3895
      %4408 = vst [vmem:[%s223 + $0x3b8] sm:$0xf] %v3896
      %4409 = vst [vmem:[%s223 + $0x3bc] sm:$0xf] %v3897
      %4410 = vst [vmem:[%s223 + $0x3c0] sm:$0xf] %v3898
      %4411 = vst [vmem:[%s223 + $0x3c4] sm:$0xf] %v3899
      %4412 = vst [vmem:[%s223 + $0x3c8] sm:$0xf] %v3900
      %4413 = vst [vmem:[%s223 + $0x3cc] sm:$0xf] %v3901
      %4414 = vst [vmem:[%s223 + $0x3d0] sm:$0xf] %v3902
      %4415 = vst [vmem:[%s223 + $0x3d4] sm:$0xf] %v3903
      %4416 = vst [vmem:[%s223 + $0x3d8] sm:$0xf] %v3904
      %4417 = vst [vmem:[%s223 + $0x3dc] sm:$0xf] %v3905
      %4418 = vst [vmem:[%s223 + $0x3e0] sm:$0xf] %v3906
      %4419 = vst [vmem:[%s223 + $0x3e4] sm:$0xf] %v3907
      %4420 = vst [vmem:[%s223 + $0x3e8] sm:$0xf] %v3908
      %4421 = vst [vmem:[%s223 + $0x3ec] sm:$0xf] %v3909
      %4422 = vst [vmem:[%s223 + $0x3f0] sm:$0xf] %v3910
      %4423 = vst [vmem:[%s223 + $0x3f4] sm:$0xf] %v3911
      %4424 = vst [vmem:[%s223 + $0x3f8] sm:$0xf] %v3912
      %4425 = vst [vmem:[%s223 + $0x3fc] sm:$0xf] %v3913
      %s4426 = smul.u32 256, %s18
      %p4427 = scmp.lt.s32.totalorder %s4426, 1023
      %s4428 = scalar_select %p4427, %s4426, 1023
      %p4429 = scmp.lt.s32.totalorder %s19, 0
      %s4430 = scalar_select %p4429, %s19, 0
      %s4431 = sadd.s32 %s4430, %s4428
      %s4432 = smul.addr %s4431, 4
      %s4433 = scalar_lea.vmem %s3, %s4432
      // Predicated region
      $region33: #{dccnn_forward.4} parent=31 // pred_check
        %p4434 = pneg %p124
      $region34: #{dccnn_forward.4} parent=31 // pred_check_branch
        %4436 = sbr.rel (%p4434) target = $region36
      $region35: #{dccnn_forward.4} parent=31 // pred_region
        %s4437 = smul.u32 256, %s18
      $region36: #{dccnn_forward.4} parent=31 // pred_fallthru
        _
    $region32: #{dccnn_forward.4} parent=5 // pred_fallthru
      _
    %p4438 = scmp.le.s32.totalorder 2, %s9
    // Predicated region
    $region37: #{dccnn_forward.4} parent=5 // pred_check
      %p4439 = pneg %p4438
    $region38: #{dccnn_forward.4} parent=5 // pred_check_branch
      %4441 = sbr.rel (%p4439) target = $region40
    $region39: #{dccnn_forward.4} parent=5 // pred_region
      %s4442 = ssub.s32 %s9, 2
      // Predicated region
      $region41: #{dccnn_forward.4} parent=39 // pred_check
        %p4443 = pneg %p130
      $region42: #{dccnn_forward.4} parent=39 // pred_check_branch
        %4445 = sbr.rel (%p4443) target = $region44
      $region43: #{dccnn_forward.4} parent=39 // pred_region
        %s4446 = smul.u32 256, %s20
        %p4447 = scmp.lt.s32.totalorder %s4446, 1023
        %s4448 = scalar_select %p4447, %s4446, 1023
        %p4449 = scmp.lt.s32.totalorder %s21, 0
        %s4450 = scalar_select %p4449, %s21, 0
        %s4451 = sadd.s32 %s4450, %s4448
        %s4452 = smul.addr %s4451, 4
        %s4453 = scalar_lea.vmem %s3, %s4452
      $region44: #{dccnn_forward.4} parent=39 // pred_fallthru
        _
    $region40: #{dccnn_forward.4} parent=5 // pred_fallthru
      _
  $region6: #{dccnn_forward.4} parent=0 // loop_footer
    %s13 = sadd.s32 1, %s9
  $region7: #{dccnn_forward.4} parent=0 // loop_footer_branch
    %8 = sbr.rel target = $region3
  $region8: #{dccnn_forward.4} parent=0 // loop_exit
    _

// kernel: dccnn_forward.5
$region0: #{dccnn_forward.5}
  #allocation0 [shape = 'u32[]', space=smem, size = 0x4, offset = 0x4, fixed_abs, tag = 'smem constant byte address 0x4 - core index']
  #allocation1 [shape = 'u32[144,128]{1,0:T(1,128)}', space=vmem, size = 0x12000, scoped, tag = 'internal scratch']
  %s0 = inlined_call_operand.vmem [shape: bf16[2048,384], index: 0, kind: input, shape index: {}]
  %s1 = inlined_call_operand.vmem [shape: bf16[384,128], index: 1, kind: input, shape index: {}]
  %s2 = inlined_call_operand.vmem [shape: f32[1,128], index: 2, kind: input, shape index: {}]
  %s3 = inlined_call_operand.vmem [shape: bf16[2048,128], index: 3, kind: output, shape index: {}]
  %s4 = sld [smem:[#allocation0]]
  $region45: #{dccnn_forward.5} parent=0
    _
  %s6 = ssub.s32 1, %s4
  %s7 = scalar_select 0, %s6, %s4
  loop: start=0, step=1, limit=4
  $region2: #{dccnn_forward.5} parent=0 // loop_pre_header
    _
  $region3: #{dccnn_forward.5} parent=0 // loop_header
    %s9 = sphi 0, %s13
    %p10 = scmp.ge.s32.totalorder %s9, 4
    %s16 = sphi 0, %s28
    %s17 = sphi 0, %s24
    %s18 = sphi 0, %s16
    %s19 = sphi 0, %s17
    %s20 = sphi 0, %s18
    %s21 = sphi 0, %s19
    %s31 = sphi 0, %s33
    %s34 = sphi 0, %s31
    %s35 = sphi 0, %s34
    %s51 = sphi 0, %s35
    %s57 = sphi 0, %s59
    %s60 = sphi 0, %s57
    %s61 = sphi 0, %s60
    %s77 = sphi 0, %s61
    %s83 = sphi 0, %s85
    %s86 = sphi 0, %s83
    %s87 = sphi 0, %s86
    %s103 = sphi 0, %s87
    %s111 = sphi 0, %s113
    %s114 = sphi 0, %s111
    %s115 = sphi 0, %s114
    %s131 = sphi 0, %s115
  $region4: #{dccnn_forward.5} parent=0 // loop_header_branch
    %12 = sbr.rel (%p10) target = $region8
  $region5: #{dccnn_forward.5} parent=0 // loop_body
    %s14 = ssub.s32 %s9, 1
    %s15 = ssub.s32 %s9, 2
    %s22 = sadd.s32 1, %s17
    %p23 = scmp.ge.s32.totalorder %s22, 1
    %s24 = scalar_select %p23, 0, %s22
    %s25 = sadd.s32 1, %s16
    %s26 = scalar_select %p23, %s25, %s16
    %p27 = scmp.ge.s32.totalorder %s26, 2
    %s28 = scalar_select %p27, 0, %s26
    %s29 = ssub.s32 %s16, %s28
    %p30 = scmp.eq.s32.totalorder %s29, 0
    %s32 = sadd.s32 %s31, 1
    %s33 = scalar_select %p30, %s31, %s32
    %p36 = pneg %p30
    %p37 = scmp.eq.s32.totalorder %s9, 1
    %p38 = por %p36, %p37
    %p39 = scmp.ne.s32.totalorder %s31, %s34
    %p40 = scmp.eq.s32.totalorder %s9, 0
    %p41 = por %p39, %p40
    %p42 = scmp.ne.s32.totalorder %s31, %s34
    %p43 = scmp.eq.s32.totalorder %s14, 1
    %p44 = por %p42, %p43
    %p45 = scmp.ne.s32.totalorder %s34, %s35
    %p46 = scmp.eq.s32.totalorder %s14, 0
    %p47 = por %p45, %p46
    %p48 = scmp.ne.s32.totalorder %s34, %s35
    %p49 = scmp.eq.s32.totalorder %s15, 1
    %p50 = por %p48, %p49
    %p52 = scmp.ne.s32.totalorder %s35, %s51
    %p53 = scmp.eq.s32.totalorder %s15, 0
    %p54 = por %p52, %p53
    %s55 = ssub.s32 %s17, %s24
    %p56 = scmp.eq.s32.totalorder %s55, 0
    %s58 = sadd.s32 %s57, 1
    %s59 = scalar_select %p56, %s57, %s58
    %p62 = pneg %p56
    %p63 = scmp.eq.s32.totalorder %s9, 1
    %p64 = por %p62, %p63
    %p65 = scmp.ne.s32.totalorder %s57, %s60
    %p66 = scmp.eq.s32.totalorder %s9, 0
    %p67 = por %p65, %p66
    %p68 = scmp.ne.s32.totalorder %s57, %s60
    %p69 = scmp.eq.s32.totalorder %s14, 1
    %p70 = por %p68, %p69
    %p71 = scmp.ne.s32.totalorder %s60, %s61
    %p72 = scmp.eq.s32.totalorder %s14, 0
    %p73 = por %p71, %p72
    %p74 = scmp.ne.s32.totalorder %s60, %s61
    %p75 = scmp.eq.s32.totalorder %s15, 1
    %p76 = por %p74, %p75
    %p78 = scmp.ne.s32.totalorder %s61, %s77
    %p79 = scmp.eq.s32.totalorder %s15, 0
    %p80 = por %p78, %p79
    %s81 = ssub.s32 %s17, %s24
    %p82 = scmp.eq.s32.totalorder %s81, 0
    %s84 = sadd.s32 %s83, 1
    %s85 = scalar_select %p82, %s83, %s84
    %p88 = pneg %p82
    %p89 = scmp.eq.s32.totalorder %s9, 1
    %p90 = por %p88, %p89
    %p91 = scmp.ne.s32.totalorder %s83, %s86
    %p92 = scmp.eq.s32.totalorder %s9, 0
    %p93 = por %p91, %p92
    %p94 = scmp.ne.s32.totalorder %s83, %s86
    %p95 = scmp.eq.s32.totalorder %s14, 1
    %p96 = por %p94, %p95
    %p97 = scmp.ne.s32.totalorder %s86, %s87
    %p98 = scmp.eq.s32.totalorder %s14, 0
    %p99 = por %p97, %p98
    %p100 = scmp.ne.s32.totalorder %s86, %s87
    %p101 = scmp.eq.s32.totalorder %s15, 1
    %p102 = por %p100, %p101
    %p104 = scmp.ne.s32.totalorder %s87, %s103
    %p105 = scmp.eq.s32.totalorder %s15, 0
    %p106 = por %p104, %p105
    %s107 = ssub.s32 %s16, %s28
    %s108 = ssub.s32 %s17, %s24
    %s109 = sor.u32 %s107, %s108
    %p110 = scmp.eq.s32.totalorder %s109, 0
    %s112 = sadd.s32 %s111, 1
    %s113 = scalar_select %p110, %s111, %s112
    %p116 = pneg %p110
    %p117 = scmp.eq.s32.totalorder %s9, 1
    %p118 = por %p116, %p117
    %p119 = scmp.ne.s32.totalorder %s111, %s114
    %p120 = scmp.eq.s32.totalorder %s9, 0
    %p121 = por %p119, %p120
    %p122 = scmp.ne.s32.totalorder %s111, %s114
    %p123 = scmp.eq.s32.totalorder %s14, 1
    %p124 = por %p122, %p123
    %p125 = scmp.ne.s32.totalorder %s114, %s115
    %p126 = scmp.eq.s32.totalorder %s14, 0
    %p127 = por %p125, %p126
    %p128 = scmp.ne.s32.totalorder %s114, %s115
    %p129 = scmp.eq.s32.totalorder %s15, 1
    %p130 = por %p128, %p129
    %p132 = scmp.ne.s32.totalorder %s115, %s131
    %p133 = scmp.eq.s32.totalorder %s15, 0
    %p134 = por %p132, %p133
    %p135 = scmp.le.s32.totalorder 1, %s9
    %p136 = scmp.lt.s32.totalorder %s9, 3
    %p137 = pnand %p135, %p136
    %p138 = pneg %p137
    // Predicated region
    $region9: #{dccnn_forward.5} parent=5 // pred_check
      _
    $region10: #{dccnn_forward.5} parent=5 // pred_check_branch
      %140 = sbr.rel (%p137) target = $region12
    $region11: #{dccnn_forward.5} parent=5 // pred_region
      %s141 = ssub.s32 %s9, 1
      // Predicated region
      $region13: #{dccnn_forward.5} parent=11 // pred_check
        %p142 = pneg %p73
      $region14: #{dccnn_forward.5} parent=11 // pred_check_branch
        %144 = sbr.rel (%p142) target = $region16
      $region15: #{dccnn_forward.5} parent=11 // pred_region
        %p145 = scmp.lt.s32.totalorder %s19, 0
        %s146 = scalar_select %p145, %s19, 0
        %s147 = smul.addr %s146, 4
        %s148 = scalar_lea.vmem %s1, %s147
      $region16: #{dccnn_forward.5} parent=11 // pred_fallthru
        _
      // Predicated region
      $region17: #{dccnn_forward.5} parent=11 // pred_check
        %p149 = pneg %p99
      $region18: #{dccnn_forward.5} parent=11 // pred_check_branch
        %151 = sbr.rel (%p149) target = $region20
      $region19: #{dccnn_forward.5} parent=11 // pred_region
        %p152 = scmp.lt.s32.totalorder %s19, 0
        %s153 = scalar_select %p152, %s19, 0
        %s154 = scalar_lea.vmem %s2, %s153
      $region20: #{dccnn_forward.5} parent=11 // pred_fallthru
        _
    $region12: #{dccnn_forward.5} parent=5 // pred_fallthru
      _
    %p155 = scmp.lt.s32.totalorder %s9, 2
    // Predicated region
    $region21: #{dccnn_forward.5} parent=5 // pred_check
      %p156 = pneg %p155
    $region22: #{dccnn_forward.5} parent=5 // pred_check_branch
      %158 = sbr.rel (%p156) target = $region24
    $region23: #{dccnn_forward.5} parent=5 // pred_region
      // Predicated region
      $region25: #{dccnn_forward.5} parent=23 // pred_check
        %p159 = pneg %p41
      $region26: #{dccnn_forward.5} parent=23 // pred_check_branch
        %161 = sbr.rel (%p159) target = $region28
      $region27: #{dccnn_forward.5} parent=23 // pred_region
        %s162 = smul.u32 128, %s16
        %p163 = scmp.lt.s32.totalorder %s162, 255
        %s164 = scalar_select %p163, %s162, 255
        %s165 = smul.addr %s164, 3
        %s166 = smul.addr %s165, 4
        %s167 = scalar_lea.vmem %s0, %s166
        %s168 = smul.u32 128, %s16
      $region28: #{dccnn_forward.5} parent=23 // pred_fallthru
        _
    $region24: #{dccnn_forward.5} parent=5 // pred_fallthru
      _
    %p169 = scmp.le.s32.totalorder 1, %s9
    %p170 = scmp.lt.s32.totalorder %s9, 3
    %p171 = pnand %p169, %p170
    %p172 = pneg %p171
    // Predicated region
    $region29: #{dccnn_forward.5} parent=5 // pred_check
      _
    $region30: #{dccnn_forward.5} parent=5 // pred_check_branch
      %174 = sbr.rel (%p171) target = $region32
    $region31: #{dccnn_forward.5} parent=5 // pred_region
      %s175 = ssub.s32 %s9, 1
      %s176 = smul.u32 128, %s18
      %p177 = scmp.lt.s32.totalorder %s176, 255
      %s178 = scalar_select %p177, %s176, 255
      %s179 = smul.addr %s178, 3
      %s180 = smul.addr %s179, 4
      %s181 = scalar_lea.vmem %s0, %s180
      %p182 = pneg %p47
      %p183 = pneg %p44
      %p184 = scmp.lt.s32.totalorder %s19, 0
      %s185 = scalar_select %p184, %s19, 0
      %s186 = smul.addr %s185, 4
      %s187 = scalar_lea.vmem %s1, %s186
      %p188 = pneg %p73
      %p189 = pneg %p70
      %p190 = scmp.lt.s32.totalorder %s19, 0
      %s191 = scalar_select %p190, %s19, 0
      %s192 = scalar_lea.vmem %s2, %s191
      %p193 = pneg %p99
      %p194 = pneg %p96
      %p195 = pneg %p127
      %p196 = pneg %p124
      %s197 = smul.u32 128, %s18
      %p198 = scmp.lt.s32.totalorder %s197, 255
      %s199 = scalar_select %p198, %s197, 255
      %p200 = scmp.lt.s32.totalorder %s19, 0
      %s201 = scalar_select %p200, %s19, 0
      %s202 = sadd.s32 %s201, %s199
      %s203 = smul.addr %s202, 4
      %s204 = scalar_lea.vmem %s3, %s203
      %s205 = smul.u32 128, %s18
      %p206 = scmp.lt.s32.totalorder %s205, 255
      %s207 = scalar_select %p206, %s205, 255
      %s208 = smul.addr %s207, 3
      %s209 = smul.addr %s208, 4
      %s210 = scalar_lea.vmem %s0, %s209
      %s211 = smul.u32 128, %s18
      %p212 = scmp.lt.s32.totalorder %s19, 0
      %s213 = scalar_select %p212, %s19, 0
      %s214 = smul.addr %s213, 4
      %s215 = scalar_lea.vmem %s1, %s214
      %p216 = scmp.lt.s32.totalorder %s19, 0
      %s217 = scalar_select %p216, %s19, 0
      %s218 = scalar_lea.vmem %s2, %s217
      %s219 = smul.u32 128, %s18
      %p220 = scmp.lt.s32.totalorder %s219, 255
      %s221 = scalar_select %p220, %s219, 255
      %p222 = scmp.lt.s32.totalorder %s19, 0
      %s223 = scalar_select %p222, %s19, 0
      %s224 = sadd.s32 %s223, %s221
      %s225 = smul.addr %s224, 4
      %s226 = scalar_lea.vmem %s3, %s225
      %s227 = smul.u32 128, %s18
      %v229 = vld [vmem:[%s210] sm:$0xff]
      %v230 = vld [vmem:[%s210 + $0x8] sm:$0xf]
      %v231 = vld [vmem:[%s210 + $0xc] sm:$0xff]
      %v232 = vld [vmem:[%s210 + $0x14] sm:$0xf]
      %v233 = vld [vmem:[%s210 + $0x18] sm:$0xff]
      %v234 = vld [vmem:[%s210 + $0x20] sm:$0xf]
      %v235 = vld [vmem:[%s210 + $0x24] sm:$0xff]
      %v236 = vld [vmem:[%s210 + $0x2c] sm:$0xf]
      %v237 = vld [vmem:[%s210 + $0x30] sm:$0xff]
      %v238 = vld [vmem:[%s210 + $0x38] sm:$0xf]
      %v239 = vld [vmem:[%s210 + $0x3c] sm:$0xff]
      %v240 = vld [vmem:[%s210 + $0x44] sm:$0xf]
      %v241 = vld [vmem:[%s210 + $0x48] sm:$0xff]
      %v242 = vld [vmem:[%s210 + $0x50] sm:$0xf]
      %v243 = vld [vmem:[%s210 + $0x54] sm:$0xff]
      %v244 = vld [vmem:[%s210 + $0x5c] sm:$0xf]
      %v245 = vld [vmem:[%s210 + $0x60] sm:$0xff]
      %v246 = vld [vmem:[%s210 + $0x68] sm:$0xf]
      %v247 = vld [vmem:[%s210 + $0x6c] sm:$0xff]
      %v248 = vld [vmem:[%s210 + $0x74] sm:$0xf]
      %v249 = vld [vmem:[%s210 + $0x78] sm:$0xff]
      %v250 = vld [vmem:[%s210 + $0x80] sm:$0xf]
      %v251 = vld [vmem:[%s210 + $0x84] sm:$0xff]
      %v252 = vld [vmem:[%s210 + $0x8c] sm:$0xf]
      %v253 = vld [vmem:[%s210 + $0x90] sm:$0xff]
      %v254 = vld [vmem:[%s210 + $0x98] sm:$0xf]
      %v255 = vld [vmem:[%s210 + $0x9c] sm:$0xff]
      %v256 = vld [vmem:[%s210 + $0xa4] sm:$0xf]
      %v257 = vld [vmem:[%s210 + $0xa8] sm:$0xff]
      %v258 = vld [vmem:[%s210 + $0xb0] sm:$0xf]
      %v259 = vld [vmem:[%s210 + $0xb4] sm:$0xff]
      %v260 = vld [vmem:[%s210 + $0xbc] sm:$0xf]
      %v261 = vld [vmem:[%s210 + $0xc0] sm:$0xff]
      %v262 = vld [vmem:[%s210 + $0xc8] sm:$0xf]
      %v263 = vld [vmem:[%s210 + $0xcc] sm:$0xff]
      %v264 = vld [vmem:[%s210 + $0xd4] sm:$0xf]
      %v265 = vld [vmem:[%s210 + $0xd8] sm:$0xff]
      %v266 = vld [vmem:[%s210 + $0xe0] sm:$0xf]
      %v267 = vld [vmem:[%s210 + $0xe4] sm:$0xff]
      %v268 = vld [vmem:[%s210 + $0xec] sm:$0xf]
      %v269 = vld [vmem:[%s210 + $0xf0] sm:$0xff]
      %v270 = vld [vmem:[%s210 + $0xf8] sm:$0xf]
      %v271 = vld [vmem:[%s210 + $0xfc] sm:$0xff]
      %v272 = vld [vmem:[%s210 + $0x104] sm:$0xf]
      %v273 = vld [vmem:[%s210 + $0x108] sm:$0xff]
      %v274 = vld [vmem:[%s210 + $0x110] sm:$0xf]
      %v275 = vld [vmem:[%s210 + $0x114] sm:$0xff]
      %v276 = vld [vmem:[%s210 + $0x11c] sm:$0xf]
      %v277 = vld [vmem:[%s210 + $0x120] sm:$0xff]
      %v278 = vld [vmem:[%s210 + $0x128] sm:$0xf]
      %v279 = vld [vmem:[%s210 + $0x12c] sm:$0xff]
      %v280 = vld [vmem:[%s210 + $0x134] sm:$0xf]
      %v281 = vld [vmem:[%s210 + $0x138] sm:$0xff]
      %v282 = vld [vmem:[%s210 + $0x140] sm:$0xf]
      %v283 = vld [vmem:[%s210 + $0x144] sm:$0xff]
      %v284 = vld [vmem:[%s210 + $0x14c] sm:$0xf]
      %v285 = vld [vmem:[%s210 + $0x150] sm:$0xff]
      %v286 = vld [vmem:[%s210 + $0x158] sm:$0xf]
      %v287 = vld [vmem:[%s210 + $0x15c] sm:$0xff]
      %v288 = vld [vmem:[%s210 + $0x164] sm:$0xf]
      %v289 = vld [vmem:[%s210 + $0x168] sm:$0xff]
      %v290 = vld [vmem:[%s210 + $0x170] sm:$0xf]
      %v291 = vld [vmem:[%s210 + $0x174] sm:$0xff]
      %v292 = vld [vmem:[%s210 + $0x17c] sm:$0xf]
      %v293 = vld [vmem:[%s210 + $0x180] sm:$0xff]
      %v294 = vld [vmem:[%s210 + $0x188] sm:$0xf]
      %v295 = vld [vmem:[%s210 + $0x18c] sm:$0xff]
      %v296 = vld [vmem:[%s210 + $0x194] sm:$0xf]
      %v297 = vld [vmem:[%s210 + $0x198] sm:$0xff]
      %v298 = vld [vmem:[%s210 + $0x1a0] sm:$0xf]
      %v299 = vld [vmem:[%s210 + $0x1a4] sm:$0xff]
      %v300 = vld [vmem:[%s210 + $0x1ac] sm:$0xf]
      %v301 = vld [vmem:[%s210 + $0x1b0] sm:$0xff]
      %v302 = vld [vmem:[%s210 + $0x1b8] sm:$0xf]
      %v303 = vld [vmem:[%s210 + $0x1bc] sm:$0xff]
      %v304 = vld [vmem:[%s210 + $0x1c4] sm:$0xf]
      %v305 = vld [vmem:[%s210 + $0x1c8] sm:$0xff]
      %v306 = vld [vmem:[%s210 + $0x1d0] sm:$0xf]
      %v307 = vld [vmem:[%s210 + $0x1d4] sm:$0xff]
      %v308 = vld [vmem:[%s210 + $0x1dc] sm:$0xf]
      %v309 = vld [vmem:[%s210 + $0x1e0] sm:$0xff]
      %v310 = vld [vmem:[%s210 + $0x1e8] sm:$0xf]
      %v311 = vld [vmem:[%s210 + $0x1ec] sm:$0xff]
      %v312 = vld [vmem:[%s210 + $0x1f4] sm:$0xf]
      %v313 = vld [vmem:[%s210 + $0x1f8] sm:$0xff]
      %v314 = vld [vmem:[%s210 + $0x200] sm:$0xf]
      %v315 = vld [vmem:[%s210 + $0x204] sm:$0xff]
      %v316 = vld [vmem:[%s210 + $0x20c] sm:$0xf]
      %v317 = vld [vmem:[%s210 + $0x210] sm:$0xff]
      %v318 = vld [vmem:[%s210 + $0x218] sm:$0xf]
      %v319 = vld [vmem:[%s210 + $0x21c] sm:$0xff]
      %v320 = vld [vmem:[%s210 + $0x224] sm:$0xf]
      %v321 = vld [vmem:[%s210 + $0x228] sm:$0xff]
      %v322 = vld [vmem:[%s210 + $0x230] sm:$0xf]
      %v323 = vld [vmem:[%s210 + $0x234] sm:$0xff]
      %v324 = vld [vmem:[%s210 + $0x23c] sm:$0xf]
      %v325 = vld [vmem:[%s210 + $0x240] sm:$0xff]
      %v326 = vld [vmem:[%s210 + $0x248] sm:$0xf]
      %v327 = vld [vmem:[%s210 + $0x24c] sm:$0xff]
      %v328 = vld [vmem:[%s210 + $0x254] sm:$0xf]
      %v329 = vld [vmem:[%s210 + $0x258] sm:$0xff]
      %v330 = vld [vmem:[%s210 + $0x260] sm:$0xf]
      %v331 = vld [vmem:[%s210 + $0x264] sm:$0xff]
      %v332 = vld [vmem:[%s210 + $0x26c] sm:$0xf]
      %v333 = vld [vmem:[%s210 + $0x270] sm:$0xff]
      %v334 = vld [vmem:[%s210 + $0x278] sm:$0xf]
      %v335 = vld [vmem:[%s210 + $0x27c] sm:$0xff]
      %v336 = vld [vmem:[%s210 + $0x284] sm:$0xf]
      %v337 = vld [vmem:[%s210 + $0x288] sm:$0xff]
      %v338 = vld [vmem:[%s210 + $0x290] sm:$0xf]
      %v339 = vld [vmem:[%s210 + $0x294] sm:$0xff]
      %v340 = vld [vmem:[%s210 + $0x29c] sm:$0xf]
      %v341 = vld [vmem:[%s210 + $0x2a0] sm:$0xff]
      %v342 = vld [vmem:[%s210 + $0x2a8] sm:$0xf]
      %v343 = vld [vmem:[%s210 + $0x2ac] sm:$0xff]
      %v344 = vld [vmem:[%s210 + $0x2b4] sm:$0xf]
      %v345 = vld [vmem:[%s210 + $0x2b8] sm:$0xff]
      %v346 = vld [vmem:[%s210 + $0x2c0] sm:$0xf]
      %v347 = vld [vmem:[%s210 + $0x2c4] sm:$0xff]
      %v348 = vld [vmem:[%s210 + $0x2cc] sm:$0xf]
      %v349 = vld [vmem:[%s210 + $0x2d0] sm:$0xff]
      %v350 = vld [vmem:[%s210 + $0x2d8] sm:$0xf]
      %v351 = vld [vmem:[%s210 + $0x2dc] sm:$0xff]
      %v352 = vld [vmem:[%s210 + $0x2e4] sm:$0xf]
      %v353 = vld [vmem:[%s210 + $0x2e8] sm:$0xff]
      %v354 = vld [vmem:[%s210 + $0x2f0] sm:$0xf]
      %v355 = vld [vmem:[%s210 + $0x2f4] sm:$0xff]
      %v356 = vld [vmem:[%s210 + $0x2fc] sm:$0xf]
      %v357 = vld [vmem:[%s210 + $0x300] sm:$0xff]
      %v358 = vld [vmem:[%s210 + $0x308] sm:$0xf]
      %v359 = vld [vmem:[%s210 + $0x30c] sm:$0xff]
      %v360 = vld [vmem:[%s210 + $0x314] sm:$0xf]
      %v361 = vld [vmem:[%s210 + $0x318] sm:$0xff]
      %v362 = vld [vmem:[%s210 + $0x320] sm:$0xf]
      %v363 = vld [vmem:[%s210 + $0x324] sm:$0xff]
      %v364 = vld [vmem:[%s210 + $0x32c] sm:$0xf]
      %v365 = vld [vmem:[%s210 + $0x330] sm:$0xff]
      %v366 = vld [vmem:[%s210 + $0x338] sm:$0xf]
      %v367 = vld [vmem:[%s210 + $0x33c] sm:$0xff]
      %v368 = vld [vmem:[%s210 + $0x344] sm:$0xf]
      %v369 = vld [vmem:[%s210 + $0x348] sm:$0xff]
      %v370 = vld [vmem:[%s210 + $0x350] sm:$0xf]
      %v371 = vld [vmem:[%s210 + $0x354] sm:$0xff]
      %v372 = vld [vmem:[%s210 + $0x35c] sm:$0xf]
      %v373 = vld [vmem:[%s210 + $0x360] sm:$0xff]
      %v374 = vld [vmem:[%s210 + $0x368] sm:$0xf]
      %v375 = vld [vmem:[%s210 + $0x36c] sm:$0xff]
      %v376 = vld [vmem:[%s210 + $0x374] sm:$0xf]
      %v377 = vld [vmem:[%s210 + $0x378] sm:$0xff]
      %v378 = vld [vmem:[%s210 + $0x380] sm:$0xf]
      %v379 = vld [vmem:[%s210 + $0x384] sm:$0xff]
      %v380 = vld [vmem:[%s210 + $0x38c] sm:$0xf]
      %v381 = vld [vmem:[%s210 + $0x390] sm:$0xff]
      %v382 = vld [vmem:[%s210 + $0x398] sm:$0xf]
      %v383 = vld [vmem:[%s210 + $0x39c] sm:$0xff]
      %v384 = vld [vmem:[%s210 + $0x3a4] sm:$0xf]
      %v385 = vld [vmem:[%s210 + $0x3a8] sm:$0xff]
      %v386 = vld [vmem:[%s210 + $0x3b0] sm:$0xf]
      %v387 = vld [vmem:[%s210 + $0x3b4] sm:$0xff]
      %v388 = vld [vmem:[%s210 + $0x3bc] sm:$0xf]
      %v389 = vld [vmem:[%s210 + $0x3c0] sm:$0xff]
      %v390 = vld [vmem:[%s210 + $0x3c8] sm:$0xf]
      %v391 = vld [vmem:[%s210 + $0x3cc] sm:$0xff]
      %v392 = vld [vmem:[%s210 + $0x3d4] sm:$0xf]
      %v393 = vld [vmem:[%s210 + $0x3d8] sm:$0xff]
      %v394 = vld [vmem:[%s210 + $0x3e0] sm:$0xf]
      %v395 = vld [vmem:[%s210 + $0x3e4] sm:$0xff]
      %v396 = vld [vmem:[%s210 + $0x3ec] sm:$0xf]
      %v397 = vld [vmem:[%s210 + $0x3f0] sm:$0xff]
      %v398 = vld [vmem:[%s210 + $0x3f8] sm:$0xf]
      %v399 = vld [vmem:[%s210 + $0x3fc] sm:$0xff]
      %v400 = vld [vmem:[%s210 + $0x404] sm:$0xf]
      %v401 = vld [vmem:[%s210 + $0x408] sm:$0xff]
      %v402 = vld [vmem:[%s210 + $0x410] sm:$0xf]
      %v403 = vld [vmem:[%s210 + $0x414] sm:$0xff]
      %v404 = vld [vmem:[%s210 + $0x41c] sm:$0xf]
      %v405 = vld [vmem:[%s210 + $0x420] sm:$0xff]
      %v406 = vld [vmem:[%s210 + $0x428] sm:$0xf]
      %v407 = vld [vmem:[%s210 + $0x42c] sm:$0xff]
      %v408 = vld [vmem:[%s210 + $0x434] sm:$0xf]
      %v409 = vld [vmem:[%s210 + $0x438] sm:$0xff]
      %v410 = vld [vmem:[%s210 + $0x440] sm:$0xf]
      %v411 = vld [vmem:[%s210 + $0x444] sm:$0xff]
      %v412 = vld [vmem:[%s210 + $0x44c] sm:$0xf]
      %v413 = vld [vmem:[%s210 + $0x450] sm:$0xff]
      %v414 = vld [vmem:[%s210 + $0x458] sm:$0xf]
      %v415 = vld [vmem:[%s210 + $0x45c] sm:$0xff]
      %v416 = vld [vmem:[%s210 + $0x464] sm:$0xf]
      %v417 = vld [vmem:[%s210 + $0x468] sm:$0xff]
      %v418 = vld [vmem:[%s210 + $0x470] sm:$0xf]
      %v419 = vld [vmem:[%s210 + $0x474] sm:$0xff]
      %v420 = vld [vmem:[%s210 + $0x47c] sm:$0xf]
      %v421 = vld [vmem:[%s210 + $0x480] sm:$0xff]
      %v422 = vld [vmem:[%s210 + $0x488] sm:$0xf]
      %v423 = vld [vmem:[%s210 + $0x48c] sm:$0xff]
      %v424 = vld [vmem:[%s210 + $0x494] sm:$0xf]
      %v425 = vld [vmem:[%s210 + $0x498] sm:$0xff]
      %v426 = vld [vmem:[%s210 + $0x4a0] sm:$0xf]
      %v427 = vld [vmem:[%s210 + $0x4a4] sm:$0xff]
      %v428 = vld [vmem:[%s210 + $0x4ac] sm:$0xf]
      %v429 = vld [vmem:[%s210 + $0x4b0] sm:$0xff]
      %v430 = vld [vmem:[%s210 + $0x4b8] sm:$0xf]
      %v431 = vld [vmem:[%s210 + $0x4bc] sm:$0xff]
      %v432 = vld [vmem:[%s210 + $0x4c4] sm:$0xf]
      %v433 = vld [vmem:[%s210 + $0x4c8] sm:$0xff]
      %v434 = vld [vmem:[%s210 + $0x4d0] sm:$0xf]
      %v435 = vld [vmem:[%s210 + $0x4d4] sm:$0xff]
      %v436 = vld [vmem:[%s210 + $0x4dc] sm:$0xf]
      %v437 = vld [vmem:[%s210 + $0x4e0] sm:$0xff]
      %v438 = vld [vmem:[%s210 + $0x4e8] sm:$0xf]
      %v439 = vld [vmem:[%s210 + $0x4ec] sm:$0xff]
      %v440 = vld [vmem:[%s210 + $0x4f4] sm:$0xf]
      %v441 = vld [vmem:[%s210 + $0x4f8] sm:$0xff]
      %v442 = vld [vmem:[%s210 + $0x500] sm:$0xf]
      %v443 = vld [vmem:[%s210 + $0x504] sm:$0xff]
      %v444 = vld [vmem:[%s210 + $0x50c] sm:$0xf]
      %v445 = vld [vmem:[%s210 + $0x510] sm:$0xff]
      %v446 = vld [vmem:[%s210 + $0x518] sm:$0xf]
      %v447 = vld [vmem:[%s210 + $0x51c] sm:$0xff]
      %v448 = vld [vmem:[%s210 + $0x524] sm:$0xf]
      %v449 = vld [vmem:[%s210 + $0x528] sm:$0xff]
      %v450 = vld [vmem:[%s210 + $0x530] sm:$0xf]
      %v451 = vld [vmem:[%s210 + $0x534] sm:$0xff]
      %v452 = vld [vmem:[%s210 + $0x53c] sm:$0xf]
      %v453 = vld [vmem:[%s210 + $0x540] sm:$0xff]
      %v454 = vld [vmem:[%s210 + $0x548] sm:$0xf]
      %v455 = vld [vmem:[%s210 + $0x54c] sm:$0xff]
      %v456 = vld [vmem:[%s210 + $0x554] sm:$0xf]
      %v457 = vld [vmem:[%s210 + $0x558] sm:$0xff]
      %v458 = vld [vmem:[%s210 + $0x560] sm:$0xf]
      %v459 = vld [vmem:[%s210 + $0x564] sm:$0xff]
      %v460 = vld [vmem:[%s210 + $0x56c] sm:$0xf]
      %v461 = vld [vmem:[%s210 + $0x570] sm:$0xff]
      %v462 = vld [vmem:[%s210 + $0x578] sm:$0xf]
      %v463 = vld [vmem:[%s210 + $0x57c] sm:$0xff]
      %v464 = vld [vmem:[%s210 + $0x584] sm:$0xf]
      %v465 = vld [vmem:[%s210 + $0x588] sm:$0xff]
      %v466 = vld [vmem:[%s210 + $0x590] sm:$0xf]
      %v467 = vld [vmem:[%s210 + $0x594] sm:$0xff]
      %v468 = vld [vmem:[%s210 + $0x59c] sm:$0xf]
      %v469 = vld [vmem:[%s210 + $0x5a0] sm:$0xff]
      %v470 = vld [vmem:[%s210 + $0x5a8] sm:$0xf]
      %v471 = vld [vmem:[%s210 + $0x5ac] sm:$0xff]
      %v472 = vld [vmem:[%s210 + $0x5b4] sm:$0xf]
      %v473 = vld [vmem:[%s210 + $0x5b8] sm:$0xff]
      %v474 = vld [vmem:[%s210 + $0x5c0] sm:$0xf]
      %v475 = vld [vmem:[%s210 + $0x5c4] sm:$0xff]
      %v476 = vld [vmem:[%s210 + $0x5cc] sm:$0xf]
      %v477 = vld [vmem:[%s210 + $0x5d0] sm:$0xff]
      %v478 = vld [vmem:[%s210 + $0x5d8] sm:$0xf]
      %v479 = vld [vmem:[%s210 + $0x5dc] sm:$0xff]
      %v480 = vld [vmem:[%s210 + $0x5e4] sm:$0xf]
      %v481 = vld [vmem:[%s210 + $0x5e8] sm:$0xff]
      %v482 = vld [vmem:[%s210 + $0x5f0] sm:$0xf]
      %v483 = vld [vmem:[%s210 + $0x5f4] sm:$0xff]
      %v484 = vld [vmem:[%s210 + $0x5fc] sm:$0xf]
      %v485 = vld [vmem:[%s215] sm:$0xf]
      %v486 = vld [vmem:[%s215 + $0x4] sm:$0xf]
      %v487 = vld [vmem:[%s215 + $0x8] sm:$0xf]
      %v488 = vld [vmem:[%s215 + $0xc] sm:$0xf]
      %v489 = vld [vmem:[%s215 + $0x10] sm:$0xf]
      %v490 = vld [vmem:[%s215 + $0x14] sm:$0xf]
      %v491 = vld [vmem:[%s215 + $0x18] sm:$0xf]
      %v492 = vld [vmem:[%s215 + $0x1c] sm:$0xf]
      %v493 = vld [vmem:[%s215 + $0x20] sm:$0xf]
      %v494 = vld [vmem:[%s215 + $0x24] sm:$0xf]
      %v495 = vld [vmem:[%s215 + $0x28] sm:$0xf]
      %v496 = vld [vmem:[%s215 + $0x2c] sm:$0xf]
      %v497 = vld [vmem:[%s215 + $0x30] sm:$0xf]
      %v498 = vld [vmem:[%s215 + $0x34] sm:$0xf]
      %v499 = vld [vmem:[%s215 + $0x38] sm:$0xf]
      %v500 = vld [vmem:[%s215 + $0x3c] sm:$0xf]
      %v501 = vld [vmem:[%s215 + $0x40] sm:$0xf]
      %v502 = vld [vmem:[%s215 + $0x44] sm:$0xf]
      %v503 = vld [vmem:[%s215 + $0x48] sm:$0xf]
      %v504 = vld [vmem:[%s215 + $0x4c] sm:$0xf]
      %v505 = vld [vmem:[%s215 + $0x50] sm:$0xf]
      %v506 = vld [vmem:[%s215 + $0x54] sm:$0xf]
      %v507 = vld [vmem:[%s215 + $0x58] sm:$0xf]
      %v508 = vld [vmem:[%s215 + $0x5c] sm:$0xf]
      %v509 = vld [vmem:[%s215 + $0x60] sm:$0xf]
      %v510 = vld [vmem:[%s215 + $0x64] sm:$0xf]
      %v511 = vld [vmem:[%s215 + $0x68] sm:$0xf]
      %v512 = vld [vmem:[%s215 + $0x6c] sm:$0xf]
      %v513 = vld [vmem:[%s215 + $0x70] sm:$0xf]
      %v514 = vld [vmem:[%s215 + $0x74] sm:$0xf]
      %v515 = vld [vmem:[%s215 + $0x78] sm:$0xf]
      %v516 = vld [vmem:[%s215 + $0x7c] sm:$0xf]
      %v517 = vld [vmem:[%s215 + $0x80] sm:$0xf]
      %v518 = vld [vmem:[%s215 + $0x84] sm:$0xf]
      %v519 = vld [vmem:[%s215 + $0x88] sm:$0xf]
      %v520 = vld [vmem:[%s215 + $0x8c] sm:$0xf]
      %v521 = vld [vmem:[%s215 + $0x90] sm:$0xf]
      %v522 = vld [vmem:[%s215 + $0x94] sm:$0xf]
      %v523 = vld [vmem:[%s215 + $0x98] sm:$0xf]
      %v524 = vld [vmem:[%s215 + $0x9c] sm:$0xf]
      %v525 = vld [vmem:[%s215 + $0xa0] sm:$0xf]
      %v526 = vld [vmem:[%s215 + $0xa4] sm:$0xf]
      %v527 = vld [vmem:[%s215 + $0xa8] sm:$0xf]
      %v528 = vld [vmem:[%s215 + $0xac] sm:$0xf]
      %v529 = vld [vmem:[%s215 + $0xb0] sm:$0xf]
      %v530 = vld [vmem:[%s215 + $0xb4] sm:$0xf]
      %v531 = vld [vmem:[%s215 + $0xb8] sm:$0xf]
      %v532 = vld [vmem:[%s215 + $0xbc] sm:$0xf]
      %v533 = vld [vmem:[%s218] sm:$0x1]
      %v535 = vlaneseq
      %v536 = vshrl.u32 %v535, 7
      %v537 = vsub.s32 0, %v536
      %v538 = vrot.slane %v533, %v537
      %v796 = vunpack.c.l.b16 %v229
      %v797 = vunpack.c.h.b16 %v229
      %v798 = vunpack.c.l.b16 %v230
      %v799 = vunpack.c.l.b16 %v231
      %v800 = vunpack.c.h.b16 %v231
      %v801 = vunpack.c.l.b16 %v232
      %v802 = vunpack.c.l.b16 %v233
      %v803 = vunpack.c.h.b16 %v233
      %v804 = vunpack.c.l.b16 %v234
      %v805 = vunpack.c.l.b16 %v235
      %v806 = vunpack.c.h.b16 %v235
      %v807 = vunpack.c.l.b16 %v236
      %v808 = vunpack.c.l.b16 %v237
      %v809 = vunpack.c.h.b16 %v237
      %v810 = vunpack.c.l.b16 %v238
      %v811 = vunpack.c.l.b16 %v239
      %v812 = vunpack.c.h.b16 %v239
      %v813 = vunpack.c.l.b16 %v240
      %v814 = vunpack.c.l.b16 %v241
      %v815 = vunpack.c.h.b16 %v241
      %v816 = vunpack.c.l.b16 %v242
      %v817 = vunpack.c.l.b16 %v243
      %v818 = vunpack.c.h.b16 %v243
      %v819 = vunpack.c.l.b16 %v244
      %v820 = vunpack.c.l.b16 %v245
      %v821 = vunpack.c.h.b16 %v245
      %v822 = vunpack.c.l.b16 %v246
      %v823 = vunpack.c.l.b16 %v247
      %v824 = vunpack.c.h.b16 %v247
      %v825 = vunpack.c.l.b16 %v248
      %v826 = vunpack.c.l.b16 %v249
      %v827 = vunpack.c.h.b16 %v249
      %v828 = vunpack.c.l.b16 %v250
      %v829 = vunpack.c.l.b16 %v251
      %v830 = vunpack.c.h.b16 %v251
      %v831 = vunpack.c.l.b16 %v252
      %v832 = vunpack.c.l.b16 %v253
      %v833 = vunpack.c.h.b16 %v253
      %v834 = vunpack.c.l.b16 %v254
      %v835 = vunpack.c.l.b16 %v255
      %v836 = vunpack.c.h.b16 %v255
      %v837 = vunpack.c.l.b16 %v256
      %v838 = vunpack.c.l.b16 %v257
      %v839 = vunpack.c.h.b16 %v257
      %v840 = vunpack.c.l.b16 %v258
      %v841 = vunpack.c.l.b16 %v259
      %v842 = vunpack.c.h.b16 %v259
      %v843 = vunpack.c.l.b16 %v260
      %v844 = vunpack.c.l.b16 %v261
      %v845 = vunpack.c.h.b16 %v261
      %v846 = vunpack.c.l.b16 %v262
      %v847 = vunpack.c.l.b16 %v263
      %v848 = vunpack.c.h.b16 %v263
      %v849 = vunpack.c.l.b16 %v264
      %v850 = vunpack.c.l.b16 %v265
      %v851 = vunpack.c.h.b16 %v265
      %v852 = vunpack.c.l.b16 %v266
      %v853 = vunpack.c.l.b16 %v267
      %v854 = vunpack.c.h.b16 %v267
      %v855 = vunpack.c.l.b16 %v268
      %v856 = vunpack.c.l.b16 %v269
      %v857 = vunpack.c.h.b16 %v269
      %v858 = vunpack.c.l.b16 %v270
      %v859 = vunpack.c.l.b16 %v271
      %v860 = vunpack.c.h.b16 %v271
      %v861 = vunpack.c.l.b16 %v272
      %v862 = vunpack.c.l.b16 %v273
      %v863 = vunpack.c.h.b16 %v273
      %v864 = vunpack.c.l.b16 %v274
      %v865 = vunpack.c.l.b16 %v275
      %v866 = vunpack.c.h.b16 %v275
      %v867 = vunpack.c.l.b16 %v276
      %v868 = vunpack.c.l.b16 %v277
      %v869 = vunpack.c.h.b16 %v277
      %v870 = vunpack.c.l.b16 %v278
      %v871 = vunpack.c.l.b16 %v279
      %v872 = vunpack.c.h.b16 %v279
      %v873 = vunpack.c.l.b16 %v280
      %v874 = vunpack.c.l.b16 %v281
      %v875 = vunpack.c.h.b16 %v281
      %v876 = vunpack.c.l.b16 %v282
      %v877 = vunpack.c.l.b16 %v283
      %v878 = vunpack.c.h.b16 %v283
      %v879 = vunpack.c.l.b16 %v284
      %v880 = vunpack.c.l.b16 %v285
      %v881 = vunpack.c.h.b16 %v285
      %v882 = vunpack.c.l.b16 %v286
      %v883 = vunpack.c.l.b16 %v287
      %v884 = vunpack.c.h.b16 %v287
      %v885 = vunpack.c.l.b16 %v288
      %v886 = vunpack.c.l.b16 %v289
      %v887 = vunpack.c.h.b16 %v289
      %v888 = vunpack.c.l.b16 %v290
      %v889 = vunpack.c.l.b16 %v291
      %v890 = vunpack.c.h.b16 %v291
      %v891 = vunpack.c.l.b16 %v292
      %v892 = vunpack.c.l.b16 %v293
      %v893 = vunpack.c.h.b16 %v293
      %v894 = vunpack.c.l.b16 %v294
      %v895 = vunpack.c.l.b16 %v295
      %v896 = vunpack.c.h.b16 %v295
      %v897 = vunpack.c.l.b16 %v296
      %v898 = vunpack.c.l.b16 %v297
      %v899 = vunpack.c.h.b16 %v297
      %v900 = vunpack.c.l.b16 %v298
      %v901 = vunpack.c.l.b16 %v299
      %v902 = vunpack.c.h.b16 %v299
      %v903 = vunpack.c.l.b16 %v300
      %v904 = vunpack.c.l.b16 %v301
      %v905 = vunpack.c.h.b16 %v301
      %v906 = vunpack.c.l.b16 %v302
      %v907 = vunpack.c.l.b16 %v303
      %v908 = vunpack.c.h.b16 %v303
      %v909 = vunpack.c.l.b16 %v304
      %v910 = vunpack.c.l.b16 %v305
      %v911 = vunpack.c.h.b16 %v305
      %v912 = vunpack.c.l.b16 %v306
      %v913 = vunpack.c.l.b16 %v307
      %v914 = vunpack.c.h.b16 %v307
      %v915 = vunpack.c.l.b16 %v308
      %v916 = vunpack.c.l.b16 %v309
      %v917 = vunpack.c.h.b16 %v309
      %v918 = vunpack.c.l.b16 %v310
      %v919 = vunpack.c.l.b16 %v311
      %v920 = vunpack.c.h.b16 %v311
      %v921 = vunpack.c.l.b16 %v312
      %v922 = vunpack.c.l.b16 %v313
      %v923 = vunpack.c.h.b16 %v313
      %v924 = vunpack.c.l.b16 %v314
      %v925 = vunpack.c.l.b16 %v315
      %v926 = vunpack.c.h.b16 %v315
      %v927 = vunpack.c.l.b16 %v316
      %v928 = vunpack.c.l.b16 %v317
      %v929 = vunpack.c.h.b16 %v317
      %v930 = vunpack.c.l.b16 %v318
      %v931 = vunpack.c.l.b16 %v319
      %v932 = vunpack.c.h.b16 %v319
      %v933 = vunpack.c.l.b16 %v320
      %v934 = vunpack.c.l.b16 %v321
      %v935 = vunpack.c.h.b16 %v321
      %v936 = vunpack.c.l.b16 %v322
      %v937 = vunpack.c.l.b16 %v323
      %v938 = vunpack.c.h.b16 %v323
      %v939 = vunpack.c.l.b16 %v324
      %v940 = vunpack.c.l.b16 %v325
      %v941 = vunpack.c.h.b16 %v325
      %v942 = vunpack.c.l.b16 %v326
      %v943 = vunpack.c.l.b16 %v327
      %v944 = vunpack.c.h.b16 %v327
      %v945 = vunpack.c.l.b16 %v328
      %v946 = vunpack.c.l.b16 %v329
      %v947 = vunpack.c.h.b16 %v329
      %v948 = vunpack.c.l.b16 %v330
      %v949 = vunpack.c.l.b16 %v331
      %v950 = vunpack.c.h.b16 %v331
      %v951 = vunpack.c.l.b16 %v332
      %v952 = vunpack.c.l.b16 %v333
      %v953 = vunpack.c.h.b16 %v333
      %v954 = vunpack.c.l.b16 %v334
      %v955 = vunpack.c.l.b16 %v335
      %v956 = vunpack.c.h.b16 %v335
      %v957 = vunpack.c.l.b16 %v336
      %v958 = vunpack.c.l.b16 %v337
      %v959 = vunpack.c.h.b16 %v337
      %v960 = vunpack.c.l.b16 %v338
      %v961 = vunpack.c.l.b16 %v339
      %v962 = vunpack.c.h.b16 %v339
      %v963 = vunpack.c.l.b16 %v340
      %v964 = vunpack.c.l.b16 %v341
      %v965 = vunpack.c.h.b16 %v341
      %v966 = vunpack.c.l.b16 %v342
      %v967 = vunpack.c.l.b16 %v343
      %v968 = vunpack.c.h.b16 %v343
      %v969 = vunpack.c.l.b16 %v344
      %v970 = vunpack.c.l.b16 %v345
      %v971 = vunpack.c.h.b16 %v345
      %v972 = vunpack.c.l.b16 %v346
      %v973 = vunpack.c.l.b16 %v347
      %v974 = vunpack.c.h.b16 %v347
      %v975 = vunpack.c.l.b16 %v348
      %v976 = vunpack.c.l.b16 %v349
      %v977 = vunpack.c.h.b16 %v349
      %v978 = vunpack.c.l.b16 %v350
      %v979 = vunpack.c.l.b16 %v351
      %v980 = vunpack.c.h.b16 %v351
      %v981 = vunpack.c.l.b16 %v352
      %v982 = vunpack.c.l.b16 %v353
      %v983 = vunpack.c.h.b16 %v353
      %v984 = vunpack.c.l.b16 %v354
      %v985 = vunpack.c.l.b16 %v355
      %v986 = vunpack.c.h.b16 %v355
      %v987 = vunpack.c.l.b16 %v356
      %v988 = vunpack.c.l.b16 %v357
      %v989 = vunpack.c.h.b16 %v357
      %v990 = vunpack.c.l.b16 %v358
      %v991 = vunpack.c.l.b16 %v359
      %v992 = vunpack.c.h.b16 %v359
      %v993 = vunpack.c.l.b16 %v360
      %v994 = vunpack.c.l.b16 %v361
      %v995 = vunpack.c.h.b16 %v361
      %v996 = vunpack.c.l.b16 %v362
      %v997 = vunpack.c.l.b16 %v363
      %v998 = vunpack.c.h.b16 %v363
      %v999 = vunpack.c.l.b16 %v364
      %v1000 = vunpack.c.l.b16 %v365
      %v1001 = vunpack.c.h.b16 %v365
      %v1002 = vunpack.c.l.b16 %v366
      %v1003 = vunpack.c.l.b16 %v367
      %v1004 = vunpack.c.h.b16 %v367
      %v1005 = vunpack.c.l.b16 %v368
      %v1006 = vunpack.c.l.b16 %v369
      %v1007 = vunpack.c.h.b16 %v369
      %v1008 = vunpack.c.l.b16 %v370
      %v1009 = vunpack.c.l.b16 %v371
      %v1010 = vunpack.c.h.b16 %v371
      %v1011 = vunpack.c.l.b16 %v372
      %v1012 = vunpack.c.l.b16 %v373
      %v1013 = vunpack.c.h.b16 %v373
      %v1014 = vunpack.c.l.b16 %v374
      %v1015 = vunpack.c.l.b16 %v375
      %v1016 = vunpack.c.h.b16 %v375
      %v1017 = vunpack.c.l.b16 %v376
      %v1018 = vunpack.c.l.b16 %v377
      %v1019 = vunpack.c.h.b16 %v377
      %v1020 = vunpack.c.l.b16 %v378
      %v1021 = vunpack.c.l.b16 %v379
      %v1022 = vunpack.c.h.b16 %v379
      %v1023 = vunpack.c.l.b16 %v380
      %v1024 = vunpack.c.l.b16 %v381
      %v1025 = vunpack.c.h.b16 %v381
      %v1026 = vunpack.c.l.b16 %v382
      %v1027 = vunpack.c.l.b16 %v383
      %v1028 = vunpack.c.h.b16 %v383
      %v1029 = vunpack.c.l.b16 %v384
      %v1030 = vunpack.c.l.b16 %v385
      %v1031 = vunpack.c.h.b16 %v385
      %v1032 = vunpack.c.l.b16 %v386
      %v1033 = vunpack.c.l.b16 %v387
      %v1034 = vunpack.c.h.b16 %v387
      %v1035 = vunpack.c.l.b16 %v388
      %v1036 = vunpack.c.l.b16 %v389
      %v1037 = vunpack.c.h.b16 %v389
      %v1038 = vunpack.c.l.b16 %v390
      %v1039 = vunpack.c.l.b16 %v391
      %v1040 = vunpack.c.h.b16 %v391
      %v1041 = vunpack.c.l.b16 %v392
      %v1042 = vunpack.c.l.b16 %v393
      %v1043 = vunpack.c.h.b16 %v393
      %v1044 = vunpack.c.l.b16 %v394
      %v1045 = vunpack.c.l.b16 %v395
      %v1046 = vunpack.c.h.b16 %v395
      %v1047 = vunpack.c.l.b16 %v396
      %v1048 = vunpack.c.l.b16 %v397
      %v1049 = vunpack.c.h.b16 %v397
      %v1050 = vunpack.c.l.b16 %v398
      %v1051 = vunpack.c.l.b16 %v399
      %v1052 = vunpack.c.h.b16 %v399
      %v1053 = vunpack.c.l.b16 %v400
      %v1054 = vunpack.c.l.b16 %v401
      %v1055 = vunpack.c.h.b16 %v401
      %v1056 = vunpack.c.l.b16 %v402
      %v1057 = vunpack.c.l.b16 %v403
      %v1058 = vunpack.c.h.b16 %v403
      %v1059 = vunpack.c.l.b16 %v404
      %v1060 = vunpack.c.l.b16 %v405
      %v1061 = vunpack.c.h.b16 %v405
      %v1062 = vunpack.c.l.b16 %v406
      %v1063 = vunpack.c.l.b16 %v407
      %v1064 = vunpack.c.h.b16 %v407
      %v1065 = vunpack.c.l.b16 %v408
      %v1066 = vunpack.c.l.b16 %v409
      %v1067 = vunpack.c.h.b16 %v409
      %v1068 = vunpack.c.l.b16 %v410
      %v1069 = vunpack.c.l.b16 %v411
      %v1070 = vunpack.c.h.b16 %v411
      %v1071 = vunpack.c.l.b16 %v412
      %v1072 = vunpack.c.l.b16 %v413
      %v1073 = vunpack.c.h.b16 %v413
      %v1074 = vunpack.c.l.b16 %v414
      %v1075 = vunpack.c.l.b16 %v415
      %v1076 = vunpack.c.h.b16 %v415
      %v1077 = vunpack.c.l.b16 %v416
      %v1078 = vunpack.c.l.b16 %v417
      %v1079 = vunpack.c.h.b16 %v417
      %v1080 = vunpack.c.l.b16 %v418
      %v1081 = vunpack.c.l.b16 %v419
      %v1082 = vunpack.c.h.b16 %v419
      %v1083 = vunpack.c.l.b16 %v420
      %v1084 = vunpack.c.l.b16 %v421
      %v1085 = vunpack.c.h.b16 %v421
      %v1086 = vunpack.c.l.b16 %v422
      %v1087 = vunpack.c.l.b16 %v423
      %v1088 = vunpack.c.h.b16 %v423
      %v1089 = vunpack.c.l.b16 %v424
      %v1090 = vunpack.c.l.b16 %v425
      %v1091 = vunpack.c.h.b16 %v425
      %v1092 = vunpack.c.l.b16 %v426
      %v1093 = vunpack.c.l.b16 %v427
      %v1094 = vunpack.c.h.b16 %v427
      %v1095 = vunpack.c.l.b16 %v428
      %v1096 = vunpack.c.l.b16 %v429
      %v1097 = vunpack.c.h.b16 %v429
      %v1098 = vunpack.c.l.b16 %v430
      %v1099 = vunpack.c.l.b16 %v431
      %v1100 = vunpack.c.h.b16 %v431
      %v1101 = vunpack.c.l.b16 %v432
      %v1102 = vunpack.c.l.b16 %v433
      %v1103 = vunpack.c.h.b16 %v433
      %v1104 = vunpack.c.l.b16 %v434
      %v1105 = vunpack.c.l.b16 %v435
      %v1106 = vunpack.c.h.b16 %v435
      %v1107 = vunpack.c.l.b16 %v436
      %v1108 = vunpack.c.l.b16 %v437
      %v1109 = vunpack.c.h.b16 %v437
      %v1110 = vunpack.c.l.b16 %v438
      %v1111 = vunpack.c.l.b16 %v439
      %v1112 = vunpack.c.h.b16 %v439
      %v1113 = vunpack.c.l.b16 %v440
      %v1114 = vunpack.c.l.b16 %v441
      %v1115 = vunpack.c.h.b16 %v441
      %v1116 = vunpack.c.l.b16 %v442
      %v1117 = vunpack.c.l.b16 %v443
      %v1118 = vunpack.c.h.b16 %v443
      %v1119 = vunpack.c.l.b16 %v444
      %v1120 = vunpack.c.l.b16 %v445
      %v1121 = vunpack.c.h.b16 %v445
      %v1122 = vunpack.c.l.b16 %v446
      %v1123 = vunpack.c.l.b16 %v447
      %v1124 = vunpack.c.h.b16 %v447
      %v1125 = vunpack.c.l.b16 %v448
      %v1126 = vunpack.c.l.b16 %v449
      %v1127 = vunpack.c.h.b16 %v449
      %v1128 = vunpack.c.l.b16 %v450
      %v1129 = vunpack.c.l.b16 %v451
      %v1130 = vunpack.c.h.b16 %v451
      %v1131 = vunpack.c.l.b16 %v452
      %v1132 = vunpack.c.l.b16 %v453
      %v1133 = vunpack.c.h.b16 %v453
      %v1134 = vunpack.c.l.b16 %v454
      %v1135 = vunpack.c.l.b16 %v455
      %v1136 = vunpack.c.h.b16 %v455
      %v1137 = vunpack.c.l.b16 %v456
      %v1138 = vunpack.c.l.b16 %v457
      %v1139 = vunpack.c.h.b16 %v457
      %v1140 = vunpack.c.l.b16 %v458
      %v1141 = vunpack.c.l.b16 %v459
      %v1142 = vunpack.c.h.b16 %v459
      %v1143 = vunpack.c.l.b16 %v460
      %v1144 = vunpack.c.l.b16 %v461
      %v1145 = vunpack.c.h.b16 %v461
      %v1146 = vunpack.c.l.b16 %v462
      %v1147 = vunpack.c.l.b16 %v463
      %v1148 = vunpack.c.h.b16 %v463
      %v1149 = vunpack.c.l.b16 %v464
      %v1150 = vunpack.c.l.b16 %v465
      %v1151 = vunpack.c.h.b16 %v465
      %v1152 = vunpack.c.l.b16 %v466
      %v1153 = vunpack.c.l.b16 %v467
      %v1154 = vunpack.c.h.b16 %v467
      %v1155 = vunpack.c.l.b16 %v468
      %v1156 = vunpack.c.l.b16 %v469
      %v1157 = vunpack.c.h.b16 %v469
      %v1158 = vunpack.c.l.b16 %v470
      %v1159 = vunpack.c.l.b16 %v471
      %v1160 = vunpack.c.h.b16 %v471
      %v1161 = vunpack.c.l.b16 %v472
      %v1162 = vunpack.c.l.b16 %v473
      %v1163 = vunpack.c.h.b16 %v473
      %v1164 = vunpack.c.l.b16 %v474
      %v1165 = vunpack.c.l.b16 %v475
      %v1166 = vunpack.c.h.b16 %v475
      %v1167 = vunpack.c.l.b16 %v476
      %v1168 = vunpack.c.l.b16 %v477
      %v1169 = vunpack.c.h.b16 %v477
      %v1170 = vunpack.c.l.b16 %v478
      %v1171 = vunpack.c.l.b16 %v479
      %v1172 = vunpack.c.h.b16 %v479
      %v1173 = vunpack.c.l.b16 %v480
      %v1174 = vunpack.c.l.b16 %v481
      %v1175 = vunpack.c.h.b16 %v481
      %v1176 = vunpack.c.l.b16 %v482
      %v1177 = vunpack.c.l.b16 %v483
      %v1178 = vunpack.c.h.b16 %v483
      %v1179 = vunpack.c.l.b16 %v484
      %v1180 = vpack.c.b16 %v799, %v796
      %v1181 = vpack.c.b16 %v800, %v797
      %v1182 = vpack.c.b16 %v801, %v798
      %v1183 = vpack.c.b16 %v805, %v802
      %v1184 = vpack.c.b16 %v806, %v803
      %v1185 = vpack.c.b16 %v807, %v804
      %v1186 = vpack.c.b16 %v811, %v808
      %v1187 = vpack.c.b16 %v812, %v809
      %v1188 = vpack.c.b16 %v813, %v810
      %v1189 = vpack.c.b16 %v817, %v814
      %v1190 = vpack.c.b16 %v818, %v815
      %v1191 = vpack.c.b16 %v819, %v816
      %v1192 = vpack.c.b16 %v823, %v820
      %v1193 = vpack.c.b16 %v824, %v821
      %v1194 = vpack.c.b16 %v825, %v822
      %v1195 = vpack.c.b16 %v829, %v826
      %v1196 = vpack.c.b16 %v830, %v827
      %v1197 = vpack.c.b16 %v831, %v828
      %v1198 = vpack.c.b16 %v835, %v832
      %v1199 = vpack.c.b16 %v836, %v833
      %v1200 = vpack.c.b16 %v837, %v834
      %v1201 = vpack.c.b16 %v841, %v838
      %v1202 = vpack.c.b16 %v842, %v839
      %v1203 = vpack.c.b16 %v843, %v840
      %v1204 = vpack.c.b16 %v847, %v844
      %v1205 = vpack.c.b16 %v848, %v845
      %v1206 = vpack.c.b16 %v849, %v846
      %v1207 = vpack.c.b16 %v853, %v850
      %v1208 = vpack.c.b16 %v854, %v851
      %v1209 = vpack.c.b16 %v855, %v852
      %v1210 = vpack.c.b16 %v859, %v856
      %v1211 = vpack.c.b16 %v860, %v857
      %v1212 = vpack.c.b16 %v861, %v858
      %v1213 = vpack.c.b16 %v865, %v862
      %v1214 = vpack.c.b16 %v866, %v863
      %v1215 = vpack.c.b16 %v867, %v864
      %v1216 = vpack.c.b16 %v871, %v868
      %v1217 = vpack.c.b16 %v872, %v869
      %v1218 = vpack.c.b16 %v873, %v870
      %v1219 = vpack.c.b16 %v877, %v874
      %v1220 = vpack.c.b16 %v878, %v875
      %v1221 = vpack.c.b16 %v879, %v876
      %v1222 = vpack.c.b16 %v883, %v880
      %v1223 = vpack.c.b16 %v884, %v881
      %v1224 = vpack.c.b16 %v885, %v882
      %v1225 = vpack.c.b16 %v889, %v886
      %v1226 = vpack.c.b16 %v890, %v887
      %v1227 = vpack.c.b16 %v891, %v888
      %v1228 = vpack.c.b16 %v895, %v892
      %v1229 = vpack.c.b16 %v896, %v893
      %v1230 = vpack.c.b16 %v897, %v894
      %v1231 = vpack.c.b16 %v901, %v898
      %v1232 = vpack.c.b16 %v902, %v899
      %v1233 = vpack.c.b16 %v903, %v900
      %v1234 = vpack.c.b16 %v907, %v904
      %v1235 = vpack.c.b16 %v908, %v905
      %v1236 = vpack.c.b16 %v909, %v906
      %v1237 = vpack.c.b16 %v913, %v910
      %v1238 = vpack.c.b16 %v914, %v911
      %v1239 = vpack.c.b16 %v915, %v912
      %v1240 = vpack.c.b16 %v919, %v916
      %v1241 = vpack.c.b16 %v920, %v917
      %v1242 = vpack.c.b16 %v921, %v918
      %v1243 = vpack.c.b16 %v925, %v922
      %v1244 = vpack.c.b16 %v926, %v923
      %v1245 = vpack.c.b16 %v927, %v924
      %v1246 = vpack.c.b16 %v931, %v928
      %v1247 = vpack.c.b16 %v932, %v929
      %v1248 = vpack.c.b16 %v933, %v930
      %v1249 = vpack.c.b16 %v937, %v934
      %v1250 = vpack.c.b16 %v938, %v935
      %v1251 = vpack.c.b16 %v939, %v936
      %v1252 = vpack.c.b16 %v943, %v940
      %v1253 = vpack.c.b16 %v944, %v941
      %v1254 = vpack.c.b16 %v945, %v942
      %v1255 = vpack.c.b16 %v949, %v946
      %v1256 = vpack.c.b16 %v950, %v947
      %v1257 = vpack.c.b16 %v951, %v948
      %v1258 = vpack.c.b16 %v955, %v952
      %v1259 = vpack.c.b16 %v956, %v953
      %v1260 = vpack.c.b16 %v957, %v954
      %v1261 = vpack.c.b16 %v961, %v958
      %v1262 = vpack.c.b16 %v962, %v959
      %v1263 = vpack.c.b16 %v963, %v960
      %v1264 = vpack.c.b16 %v967, %v964
      %v1265 = vpack.c.b16 %v968, %v965
      %v1266 = vpack.c.b16 %v969, %v966
      %v1267 = vpack.c.b16 %v973, %v970
      %v1268 = vpack.c.b16 %v974, %v971
      %v1269 = vpack.c.b16 %v975, %v972
      %v1270 = vpack.c.b16 %v979, %v976
      %v1271 = vpack.c.b16 %v980, %v977
      %v1272 = vpack.c.b16 %v981, %v978
      %v1273 = vpack.c.b16 %v985, %v982
      %v1274 = vpack.c.b16 %v986, %v983
      %v1275 = vpack.c.b16 %v987, %v984
      %v1276 = vpack.c.b16 %v991, %v988
      %v1277 = vpack.c.b16 %v992, %v989
      %v1278 = vpack.c.b16 %v993, %v990
      %v1279 = vpack.c.b16 %v997, %v994
      %v1280 = vpack.c.b16 %v998, %v995
      %v1281 = vpack.c.b16 %v999, %v996
      %v1282 = vpack.c.b16 %v1003, %v1000
      %v1283 = vpack.c.b16 %v1004, %v1001
      %v1284 = vpack.c.b16 %v1005, %v1002
      %v1285 = vpack.c.b16 %v1009, %v1006
      %v1286 = vpack.c.b16 %v1010, %v1007
      %v1287 = vpack.c.b16 %v1011, %v1008
      %v1288 = vpack.c.b16 %v1015, %v1012
      %v1289 = vpack.c.b16 %v1016, %v1013
      %v1290 = vpack.c.b16 %v1017, %v1014
      %v1291 = vpack.c.b16 %v1021, %v1018
      %v1292 = vpack.c.b16 %v1022, %v1019
      %v1293 = vpack.c.b16 %v1023, %v1020
      %v1294 = vpack.c.b16 %v1027, %v1024
      %v1295 = vpack.c.b16 %v1028, %v1025
      %v1296 = vpack.c.b16 %v1029, %v1026
      %v1297 = vpack.c.b16 %v1033, %v1030
      %v1298 = vpack.c.b16 %v1034, %v1031
      %v1299 = vpack.c.b16 %v1035, %v1032
      %v1300 = vpack.c.b16 %v1039, %v1036
      %v1301 = vpack.c.b16 %v1040, %v1037
      %v1302 = vpack.c.b16 %v1041, %v1038
      %v1303 = vpack.c.b16 %v1045, %v1042
      %v1304 = vpack.c.b16 %v1046, %v1043
      %v1305 = vpack.c.b16 %v1047, %v1044
      %v1306 = vpack.c.b16 %v1051, %v1048
      %v1307 = vpack.c.b16 %v1052, %v1049
      %v1308 = vpack.c.b16 %v1053, %v1050
      %v1309 = vpack.c.b16 %v1057, %v1054
      %v1310 = vpack.c.b16 %v1058, %v1055
      %v1311 = vpack.c.b16 %v1059, %v1056
      %v1312 = vpack.c.b16 %v1063, %v1060
      %v1313 = vpack.c.b16 %v1064, %v1061
      %v1314 = vpack.c.b16 %v1065, %v1062
      %v1315 = vpack.c.b16 %v1069, %v1066
      %v1316 = vpack.c.b16 %v1070, %v1067
      %v1317 = vpack.c.b16 %v1071, %v1068
      %v1318 = vpack.c.b16 %v1075, %v1072
      %v1319 = vpack.c.b16 %v1076, %v1073
      %v1320 = vpack.c.b16 %v1077, %v1074
      %v1321 = vpack.c.b16 %v1081, %v1078
      %v1322 = vpack.c.b16 %v1082, %v1079
      %v1323 = vpack.c.b16 %v1083, %v1080
      %v1324 = vpack.c.b16 %v1087, %v1084
      %v1325 = vpack.c.b16 %v1088, %v1085
      %v1326 = vpack.c.b16 %v1089, %v1086
      %v1327 = vpack.c.b16 %v1093, %v1090
      %v1328 = vpack.c.b16 %v1094, %v1091
      %v1329 = vpack.c.b16 %v1095, %v1092
      %v1330 = vpack.c.b16 %v1099, %v1096
      %v1331 = vpack.c.b16 %v1100, %v1097
      %v1332 = vpack.c.b16 %v1101, %v1098
      %v1333 = vpack.c.b16 %v1105, %v1102
      %v1334 = vpack.c.b16 %v1106, %v1103
      %v1335 = vpack.c.b16 %v1107, %v1104
      %v1336 = vpack.c.b16 %v1111, %v1108
      %v1337 = vpack.c.b16 %v1112, %v1109
      %v1338 = vpack.c.b16 %v1113, %v1110
      %v1339 = vpack.c.b16 %v1117, %v1114
      %v1340 = vpack.c.b16 %v1118, %v1115
      %v1341 = vpack.c.b16 %v1119, %v1116
      %v1342 = vpack.c.b16 %v1123, %v1120
      %v1343 = vpack.c.b16 %v1124, %v1121
      %v1344 = vpack.c.b16 %v1125, %v1122
      %v1345 = vpack.c.b16 %v1129, %v1126
      %v1346 = vpack.c.b16 %v1130, %v1127
      %v1347 = vpack.c.b16 %v1131, %v1128
      %v1348 = vpack.c.b16 %v1135, %v1132
      %v1349 = vpack.c.b16 %v1136, %v1133
      %v1350 = vpack.c.b16 %v1137, %v1134
      %v1351 = vpack.c.b16 %v1141, %v1138
      %v1352 = vpack.c.b16 %v1142, %v1139
      %v1353 = vpack.c.b16 %v1143, %v1140
      %v1354 = vpack.c.b16 %v1147, %v1144
      %v1355 = vpack.c.b16 %v1148, %v1145
      %v1356 = vpack.c.b16 %v1149, %v1146
      %v1357 = vpack.c.b16 %v1153, %v1150
      %v1358 = vpack.c.b16 %v1154, %v1151
      %v1359 = vpack.c.b16 %v1155, %v1152
      %v1360 = vpack.c.b16 %v1159, %v1156
      %v1361 = vpack.c.b16 %v1160, %v1157
      %v1362 = vpack.c.b16 %v1161, %v1158
      %v1363 = vpack.c.b16 %v1165, %v1162
      %v1364 = vpack.c.b16 %v1166, %v1163
      %v1365 = vpack.c.b16 %v1167, %v1164
      %v1366 = vpack.c.b16 %v1171, %v1168
      %v1367 = vpack.c.b16 %v1172, %v1169
      %v1368 = vpack.c.b16 %v1173, %v1170
      %v1369 = vpack.c.b16 %v1177, %v1174
      %v1370 = vpack.c.b16 %v1178, %v1175
      %v1371 = vpack.c.b16 %v1179, %v1176
      %v1612 = vunpack.c.l.b16 %v485
      %v1613 = vunpack.c.l.b16 %v486
      %v1614 = vunpack.c.l.b16 %v487
      %v1615 = vunpack.c.l.b16 %v488
      %v1616 = vunpack.c.l.b16 %v489
      %v1617 = vunpack.c.l.b16 %v490
      %v1618 = vunpack.c.l.b16 %v491
      %v1619 = vunpack.c.l.b16 %v492
      %v1620 = vunpack.c.l.b16 %v493
      %v1621 = vunpack.c.l.b16 %v494
      %v1622 = vunpack.c.l.b16 %v495
      %v1623 = vunpack.c.l.b16 %v496
      %v1624 = vunpack.c.l.b16 %v497
      %v1625 = vunpack.c.l.b16 %v498
      %v1626 = vunpack.c.l.b16 %v499
      %v1627 = vunpack.c.l.b16 %v500
      %v1628 = vunpack.c.l.b16 %v501
      %v1629 = vunpack.c.l.b16 %v502
      %v1630 = vunpack.c.l.b16 %v503
      %v1631 = vunpack.c.l.b16 %v504
      %v1632 = vunpack.c.l.b16 %v505
      %v1633 = vunpack.c.l.b16 %v506
      %v1634 = vunpack.c.l.b16 %v507
      %v1635 = vunpack.c.l.b16 %v508
      %v1636 = vunpack.c.l.b16 %v509
      %v1637 = vunpack.c.l.b16 %v510
      %v1638 = vunpack.c.l.b16 %v511
      %v1639 = vunpack.c.l.b16 %v512
      %v1640 = vunpack.c.l.b16 %v513
      %v1641 = vunpack.c.l.b16 %v514
      %v1642 = vunpack.c.l.b16 %v515
      %v1643 = vunpack.c.l.b16 %v516
      %v1644 = vunpack.c.l.b16 %v517
      %v1645 = vunpack.c.l.b16 %v518
      %v1646 = vunpack.c.l.b16 %v519
      %v1647 = vunpack.c.l.b16 %v520
      %v1648 = vunpack.c.l.b16 %v521
      %v1649 = vunpack.c.l.b16 %v522
      %v1650 = vunpack.c.l.b16 %v523
      %v1651 = vunpack.c.l.b16 %v524
      %v1652 = vunpack.c.l.b16 %v525
      %v1653 = vunpack.c.l.b16 %v526
      %v1654 = vunpack.c.l.b16 %v527
      %v1655 = vunpack.c.l.b16 %v528
      %v1656 = vunpack.c.l.b16 %v529
      %v1657 = vunpack.c.l.b16 %v530
      %v1658 = vunpack.c.l.b16 %v531
      %v1659 = vunpack.c.l.b16 %v532
      %v1660 = vpack.c.b16 %v1613, %v1612
      %v1661 = vpack.c.b16 %v1615, %v1614
      %v1662 = vpack.c.b16 %v1617, %v1616
      %v1663 = vpack.c.b16 %v1619, %v1618
      %v1664 = vpack.c.b16 %v1621, %v1620
      %v1665 = vpack.c.b16 %v1623, %v1622
      %v1666 = vpack.c.b16 %v1625, %v1624
      %v1667 = vpack.c.b16 %v1627, %v1626
      %v1668 = vpack.c.b16 %v1629, %v1628
      %v1669 = vpack.c.b16 %v1631, %v1630
      %v1670 = vpack.c.b16 %v1633, %v1632
      %v1671 = vpack.c.b16 %v1635, %v1634
      %v1672 = vpack.c.b16 %v1637, %v1636
      %v1673 = vpack.c.b16 %v1639, %v1638
      %v1674 = vpack.c.b16 %v1641, %v1640
      %v1675 = vpack.c.b16 %v1643, %v1642
      %v1676 = vpack.c.b16 %v1645, %v1644
      %v1677 = vpack.c.b16 %v1647, %v1646
      %v1678 = vpack.c.b16 %v1649, %v1648
      %v1679 = vpack.c.b16 %v1651, %v1650
      %v1680 = vpack.c.b16 %v1653, %v1652
      %v1681 = vpack.c.b16 %v1655, %v1654
      %v1682 = vpack.c.b16 %v1657, %v1656
      %v1683 = vpack.c.b16 %v1659, %v1658
      %1708 = vmatprep.subr.bf16.mxu0 0
      %1709 = vmatpush1.bf16.msra.mxu0 %v1667
      %1710 = vmatprep.subr.bf16.mxu0 0
      %1711 = vmatpush1.bf16.msra.mxu0 %v1666
      %1712 = vmatprep.subr.bf16.mxu0 0
      %1713 = vmatpush1.bf16.msra.mxu0 %v1665
      %1714 = vmatprep.subr.bf16.mxu0 0
      %1715 = vmatpush1.bf16.msra.mxu0 %v1664
      %1716 = vmatprep.subr.bf16.mxu0 0
      %1717 = vmatpush1.bf16.msra.mxu0 %v1663
      %1718 = vmatprep.subr.bf16.mxu0 0
      %1719 = vmatpush1.bf16.msra.mxu0 %v1662
      %1720 = vmatprep.subr.bf16.mxu0 0
      %1721 = vmatpush1.bf16.msra.mxu0 %v1661
      %1722 = vmatprep.subr.bf16.mxu0 0
      %1723 = vmatpush1.bf16.msra.mxu0 %v1660
      %1724 = vmatprep.subr.bf16.mxu0 0
      %1725 = vmatpush2.bf16.msra.mxu0 %v1675
      %1726 = vmatprep.subr.bf16.mxu0 0
      %1727 = vmatpush2.bf16.msra.mxu0 %v1674
      %1728 = vmatprep.subr.bf16.mxu0 0
      %1729 = vmatpush2.bf16.msra.mxu0 %v1673
      %1730 = vmatprep.subr.bf16.mxu0 0
      %1731 = vmatpush2.bf16.msra.mxu0 %v1672
      %1732 = vmatprep.subr.bf16.mxu0 0
      %1733 = vmatpush2.bf16.msra.mxu0 %v1671
      %1734 = vmatprep.subr.bf16.mxu0 0
      %1735 = vmatpush2.bf16.msra.mxu0 %v1670
      %1736 = vmatprep.subr.bf16.mxu0 0
      %1737 = vmatpush2.bf16.msra.mxu0 %v1669
      %1738 = vmatprep.subr.bf16.mxu0 0
      %1739 = vmatpush2.bf16.msra.mxu0 %v1668
      %1740 = vmatprep.mubr.bf16.mxu0 %v1181
      %1741 = vmatmul.mubr.bf16.gmra.mxu0 %v1180
      %v1742 = vpop.f32.mrf.mxu0
      %v1743 = vadd.f32 %v538, %v1742
      %v1744 = vpop.f32.mrf.mxu0
      %v1745 = vpop.f32.mrf.mxu0
      %v1746 = vadd.f32 %v538, %v1745
      %v1747 = vpop.f32.mrf.mxu0
      %1748 = vmatprep.mubr.bf16.mxu0 %v1184
      %1749 = vmatmul.mubr.bf16.gmra.mxu0 %v1183
      %v1750 = vpop.f32.mrf.mxu0
      %v1751 = vadd.f32 %v538, %v1750
      %v1752 = vpop.f32.mrf.mxu0
      %v1753 = vpop.f32.mrf.mxu0
      %v1754 = vadd.f32 %v538, %v1753
      %v1755 = vpop.f32.mrf.mxu0
      %1756 = vmatprep.mubr.bf16.mxu0 %v1187
      %1757 = vmatmul.mubr.bf16.gmra.mxu0 %v1186
      %v1758 = vpop.f32.mrf.mxu0
      %v1759 = vadd.f32 %v538, %v1758
      %v1760 = vpop.f32.mrf.mxu0
      %v1761 = vpop.f32.mrf.mxu0
      %v1762 = vadd.f32 %v538, %v1761
      %v1763 = vpop.f32.mrf.mxu0
      %1764 = vmatprep.mubr.bf16.mxu0 %v1190
      %1765 = vmatmul.mubr.bf16.gmra.mxu0 %v1189
      %v1766 = vpop.f32.mrf.mxu0
      %v1767 = vadd.f32 %v538, %v1766
      %v1768 = vpop.f32.mrf.mxu0
      %v1769 = vpop.f32.mrf.mxu0
      %v1770 = vadd.f32 %v538, %v1769
      %v1771 = vpop.f32.mrf.mxu0
      %1772 = vmatprep.mubr.bf16.mxu0 %v1193
      %1773 = vmatmul.mubr.bf16.gmra.mxu0 %v1192
      %v1774 = vpop.f32.mrf.mxu0
      %v1775 = vadd.f32 %v538, %v1774
      %v1776 = vpop.f32.mrf.mxu0
      %v1777 = vpop.f32.mrf.mxu0
      %v1778 = vadd.f32 %v538, %v1777
      %v1779 = vpop.f32.mrf.mxu0
      %1780 = vmatprep.mubr.bf16.mxu0 %v1196
      %1781 = vmatmul.mubr.bf16.gmra.mxu0 %v1195
      %v1782 = vpop.f32.mrf.mxu0
      %v1783 = vadd.f32 %v538, %v1782
      %v1784 = vpop.f32.mrf.mxu0
      %v1785 = vpop.f32.mrf.mxu0
      %v1786 = vadd.f32 %v538, %v1785
      %v1787 = vpop.f32.mrf.mxu0
      %1788 = vmatprep.mubr.bf16.mxu0 %v1199
      %1789 = vmatmul.mubr.bf16.gmra.mxu0 %v1198
      %v1790 = vpop.f32.mrf.mxu0
      %v1791 = vadd.f32 %v538, %v1790
      %v1792 = vpop.f32.mrf.mxu0
      %v1793 = vpop.f32.mrf.mxu0
      %v1794 = vadd.f32 %v538, %v1793
      %v1795 = vpop.f32.mrf.mxu0
      %1796 = vmatprep.mubr.bf16.mxu0 %v1202
      %1797 = vmatmul.mubr.bf16.gmra.mxu0 %v1201
      %v1798 = vpop.f32.mrf.mxu0
      %v1799 = vadd.f32 %v538, %v1798
      %v1800 = vpop.f32.mrf.mxu0
      %v1801 = vpop.f32.mrf.mxu0
      %v1802 = vadd.f32 %v538, %v1801
      %v1803 = vpop.f32.mrf.mxu0
      %1804 = vmatprep.mubr.bf16.mxu0 %v1205
      %1805 = vmatmul.mubr.bf16.gmra.mxu0 %v1204
      %v1806 = vpop.f32.mrf.mxu0
      %v1807 = vadd.f32 %v538, %v1806
      %v1808 = vpop.f32.mrf.mxu0
      %v1809 = vpop.f32.mrf.mxu0
      %v1810 = vadd.f32 %v538, %v1809
      %v1811 = vpop.f32.mrf.mxu0
      %1812 = vmatprep.mubr.bf16.mxu0 %v1208
      %1813 = vmatmul.mubr.bf16.gmra.mxu0 %v1207
      %v1814 = vpop.f32.mrf.mxu0
      %v1815 = vadd.f32 %v538, %v1814
      %v1816 = vpop.f32.mrf.mxu0
      %v1817 = vpop.f32.mrf.mxu0
      %v1818 = vadd.f32 %v538, %v1817
      %v1819 = vpop.f32.mrf.mxu0
      %1820 = vmatprep.mubr.bf16.mxu0 %v1211
      %1821 = vmatmul.mubr.bf16.gmra.mxu0 %v1210
      %v1822 = vpop.f32.mrf.mxu0
      %v1823 = vadd.f32 %v538, %v1822
      %v1824 = vpop.f32.mrf.mxu0
      %v1825 = vpop.f32.mrf.mxu0
      %v1826 = vadd.f32 %v538, %v1825
      %v1827 = vpop.f32.mrf.mxu0
      %1828 = vmatprep.mubr.bf16.mxu0 %v1214
      %1829 = vmatmul.mubr.bf16.gmra.mxu0 %v1213
      %v1830 = vpop.f32.mrf.mxu0
      %v1831 = vadd.f32 %v538, %v1830
      %v1832 = vpop.f32.mrf.mxu0
      %v1833 = vpop.f32.mrf.mxu0
      %v1834 = vadd.f32 %v538, %v1833
      %v1835 = vpop.f32.mrf.mxu0
      %1836 = vmatprep.mubr.bf16.mxu0 %v1217
      %1837 = vmatmul.mubr.bf16.gmra.mxu0 %v1216
      %v1838 = vpop.f32.mrf.mxu0
      %v1839 = vadd.f32 %v538, %v1838
      %v1840 = vpop.f32.mrf.mxu0
      %v1841 = vpop.f32.mrf.mxu0
      %v1842 = vadd.f32 %v538, %v1841
      %v1843 = vpop.f32.mrf.mxu0
      %1844 = vmatprep.mubr.bf16.mxu0 %v1220
      %1845 = vmatmul.mubr.bf16.gmra.mxu0 %v1219
      %v1846 = vpop.f32.mrf.mxu0
      %v1847 = vadd.f32 %v538, %v1846
      %v1848 = vpop.f32.mrf.mxu0
      %v1849 = vpop.f32.mrf.mxu0
      %v1850 = vadd.f32 %v538, %v1849
      %v1851 = vpop.f32.mrf.mxu0
      %1852 = vmatprep.mubr.bf16.mxu0 %v1223
      %1853 = vmatmul.mubr.bf16.gmra.mxu0 %v1222
      %v1854 = vpop.f32.mrf.mxu0
      %v1855 = vadd.f32 %v538, %v1854
      %v1856 = vpop.f32.mrf.mxu0
      %v1857 = vpop.f32.mrf.mxu0
      %v1858 = vadd.f32 %v538, %v1857
      %v1859 = vpop.f32.mrf.mxu0
      %1860 = vmatprep.mubr.bf16.mxu0 %v1226
      %1861 = vmatmul.mubr.bf16.gmra.mxu0 %v1225
      %v1862 = vpop.f32.mrf.mxu0
      %v1863 = vadd.f32 %v538, %v1862
      %v1864 = vpop.f32.mrf.mxu0
      %v1865 = vpop.f32.mrf.mxu0
      %v1866 = vadd.f32 %v538, %v1865
      %v1867 = vpop.f32.mrf.mxu0
      %1868 = vmatprep.mubr.bf16.mxu0 %v1229
      %1869 = vmatmul.mubr.bf16.gmra.mxu0 %v1228
      %v1870 = vpop.f32.mrf.mxu0
      %v1871 = vadd.f32 %v538, %v1870
      %v1872 = vpop.f32.mrf.mxu0
      %v1873 = vpop.f32.mrf.mxu0
      %v1874 = vadd.f32 %v538, %v1873
      %v1875 = vpop.f32.mrf.mxu0
      %1876 = vmatprep.mubr.bf16.mxu0 %v1232
      %1877 = vmatmul.mubr.bf16.gmra.mxu0 %v1231
      %v1878 = vpop.f32.mrf.mxu0
      %v1879 = vadd.f32 %v538, %v1878
      %v1880 = vpop.f32.mrf.mxu0
      %v1881 = vpop.f32.mrf.mxu0
      %v1882 = vadd.f32 %v538, %v1881
      %v1883 = vpop.f32.mrf.mxu0
      %1884 = vmatprep.mubr.bf16.mxu0 %v1235
      %1885 = vmatmul.mubr.bf16.gmra.mxu0 %v1234
      %v1886 = vpop.f32.mrf.mxu0
      %v1887 = vadd.f32 %v538, %v1886
      %v1888 = vpop.f32.mrf.mxu0
      %v1889 = vpop.f32.mrf.mxu0
      %v1890 = vadd.f32 %v538, %v1889
      %v1891 = vpop.f32.mrf.mxu0
      %1892 = vmatprep.mubr.bf16.mxu0 %v1238
      %1893 = vmatmul.mubr.bf16.gmra.mxu0 %v1237
      %v1894 = vpop.f32.mrf.mxu0
      %v1895 = vadd.f32 %v538, %v1894
      %v1896 = vpop.f32.mrf.mxu0
      %v1897 = vpop.f32.mrf.mxu0
      %v1898 = vadd.f32 %v538, %v1897
      %v1899 = vpop.f32.mrf.mxu0
      %1900 = vmatprep.mubr.bf16.mxu0 %v1241
      %1901 = vmatmul.mubr.bf16.gmra.mxu0 %v1240
      %v1902 = vpop.f32.mrf.mxu0
      %v1903 = vadd.f32 %v538, %v1902
      %v1904 = vpop.f32.mrf.mxu0
      %v1905 = vpop.f32.mrf.mxu0
      %v1906 = vadd.f32 %v538, %v1905
      %v1907 = vpop.f32.mrf.mxu0
      %1908 = vmatprep.mubr.bf16.mxu0 %v1244
      %1909 = vmatmul.mubr.bf16.gmra.mxu0 %v1243
      %v1910 = vpop.f32.mrf.mxu0
      %v1911 = vadd.f32 %v538, %v1910
      %v1912 = vpop.f32.mrf.mxu0
      %v1913 = vpop.f32.mrf.mxu0
      %v1914 = vadd.f32 %v538, %v1913
      %v1915 = vpop.f32.mrf.mxu0
      %1916 = vmatprep.mubr.bf16.mxu0 %v1247
      %1917 = vmatmul.mubr.bf16.gmra.mxu0 %v1246
      %v1918 = vpop.f32.mrf.mxu0
      %v1919 = vadd.f32 %v538, %v1918
      %v1920 = vpop.f32.mrf.mxu0
      %v1921 = vpop.f32.mrf.mxu0
      %v1922 = vadd.f32 %v538, %v1921
      %v1923 = vpop.f32.mrf.mxu0
      %1924 = vmatprep.mubr.bf16.mxu0 %v1250
      %1925 = vmatmul.mubr.bf16.gmra.mxu0 %v1249
      %v1926 = vpop.f32.mrf.mxu0
      %v1927 = vadd.f32 %v538, %v1926
      %v1928 = vpop.f32.mrf.mxu0
      %v1929 = vpop.f32.mrf.mxu0
      %v1930 = vadd.f32 %v538, %v1929
      %v1931 = vpop.f32.mrf.mxu0
      %1932 = vmatprep.mubr.bf16.mxu0 %v1253
      %1933 = vmatmul.mubr.bf16.gmra.mxu0 %v1252
      %v1934 = vpop.f32.mrf.mxu0
      %v1935 = vadd.f32 %v538, %v1934
      %v1936 = vpop.f32.mrf.mxu0
      %v1937 = vpop.f32.mrf.mxu0
      %v1938 = vadd.f32 %v538, %v1937
      %v1939 = vpop.f32.mrf.mxu0
      %1940 = vmatprep.mubr.bf16.mxu0 %v1256
      %1941 = vmatmul.mubr.bf16.gmra.mxu0 %v1255
      %v1942 = vpop.f32.mrf.mxu0
      %v1943 = vadd.f32 %v538, %v1942
      %v1944 = vpop.f32.mrf.mxu0
      %v1945 = vpop.f32.mrf.mxu0
      %v1946 = vadd.f32 %v538, %v1945
      %v1947 = vpop.f32.mrf.mxu0
      %1948 = vmatprep.mubr.bf16.mxu0 %v1259
      %1949 = vmatmul.mubr.bf16.gmra.mxu0 %v1258
      %v1950 = vpop.f32.mrf.mxu0
      %v1951 = vadd.f32 %v538, %v1950
      %v1952 = vpop.f32.mrf.mxu0
      %v1953 = vpop.f32.mrf.mxu0
      %v1954 = vadd.f32 %v538, %v1953
      %v1955 = vpop.f32.mrf.mxu0
      %1956 = vmatprep.mubr.bf16.mxu0 %v1262
      %1957 = vmatmul.mubr.bf16.gmra.mxu0 %v1261
      %v1958 = vpop.f32.mrf.mxu0
      %v1959 = vadd.f32 %v538, %v1958
      %v1960 = vpop.f32.mrf.mxu0
      %v1961 = vpop.f32.mrf.mxu0
      %v1962 = vadd.f32 %v538, %v1961
      %v1963 = vpop.f32.mrf.mxu0
      %1964 = vmatprep.mubr.bf16.mxu0 %v1265
      %1965 = vmatmul.mubr.bf16.gmra.mxu0 %v1264
      %v1966 = vpop.f32.mrf.mxu0
      %v1967 = vadd.f32 %v538, %v1966
      %v1968 = vpop.f32.mrf.mxu0
      %v1969 = vpop.f32.mrf.mxu0
      %v1970 = vadd.f32 %v538, %v1969
      %v1971 = vpop.f32.mrf.mxu0
      %1972 = vmatprep.mubr.bf16.mxu0 %v1268
      %1973 = vmatmul.mubr.bf16.gmra.mxu0 %v1267
      %v1974 = vpop.f32.mrf.mxu0
      %v1975 = vadd.f32 %v538, %v1974
      %v1976 = vpop.f32.mrf.mxu0
      %v1977 = vpop.f32.mrf.mxu0
      %v1978 = vadd.f32 %v538, %v1977
      %v1979 = vpop.f32.mrf.mxu0
      %1980 = vmatprep.mubr.bf16.mxu0 %v1271
      %1981 = vmatmul.mubr.bf16.gmra.mxu0 %v1270
      %v1982 = vpop.f32.mrf.mxu0
      %v1983 = vadd.f32 %v538, %v1982
      %v1984 = vpop.f32.mrf.mxu0
      %v1985 = vpop.f32.mrf.mxu0
      %v1986 = vadd.f32 %v538, %v1985
      %v1987 = vpop.f32.mrf.mxu0
      %1988 = vmatprep.mubr.bf16.mxu0 %v1274
      %1989 = vmatmul.mubr.bf16.gmra.mxu0 %v1273
      %v1990 = vpop.f32.mrf.mxu0
      %v1991 = vadd.f32 %v538, %v1990
      %v1992 = vpop.f32.mrf.mxu0
      %v1993 = vpop.f32.mrf.mxu0
      %v1994 = vadd.f32 %v538, %v1993
      %v1995 = vpop.f32.mrf.mxu0
      %1996 = vmatprep.mubr.bf16.mxu0 %v1277
      %1997 = vmatmul.mubr.bf16.gmra.mxu0 %v1276
      %v1998 = vpop.f32.mrf.mxu0
      %v1999 = vadd.f32 %v538, %v1998
      %v2000 = vpop.f32.mrf.mxu0
      %v2001 = vpop.f32.mrf.mxu0
      %v2002 = vadd.f32 %v538, %v2001
      %v2003 = vpop.f32.mrf.mxu0
      %2004 = vmatprep.mubr.bf16.mxu0 %v1280
      %2005 = vmatmul.mubr.bf16.gmra.mxu0 %v1279
      %v2006 = vpop.f32.mrf.mxu0
      %v2007 = vadd.f32 %v538, %v2006
      %v2008 = vpop.f32.mrf.mxu0
      %v2009 = vpop.f32.mrf.mxu0
      %v2010 = vadd.f32 %v538, %v2009
      %v2011 = vpop.f32.mrf.mxu0
      %2012 = vmatprep.mubr.bf16.mxu0 %v1283
      %2013 = vmatmul.mubr.bf16.gmra.mxu0 %v1282
      %v2014 = vpop.f32.mrf.mxu0
      %v2015 = vadd.f32 %v538, %v2014
      %v2016 = vpop.f32.mrf.mxu0
      %v2017 = vpop.f32.mrf.mxu0
      %v2018 = vadd.f32 %v538, %v2017
      %v2019 = vpop.f32.mrf.mxu0
      %2020 = vmatprep.mubr.bf16.mxu0 %v1286
      %2021 = vmatmul.mubr.bf16.gmra.mxu0 %v1285
      %v2022 = vpop.f32.mrf.mxu0
      %v2023 = vadd.f32 %v538, %v2022
      %v2024 = vpop.f32.mrf.mxu0
      %v2025 = vpop.f32.mrf.mxu0
      %v2026 = vadd.f32 %v538, %v2025
      %v2027 = vpop.f32.mrf.mxu0
      %2028 = vmatprep.mubr.bf16.mxu0 %v1289
      %2029 = vmatmul.mubr.bf16.gmra.mxu0 %v1288
      %v2030 = vpop.f32.mrf.mxu0
      %v2031 = vadd.f32 %v538, %v2030
      %v2032 = vpop.f32.mrf.mxu0
      %v2033 = vpop.f32.mrf.mxu0
      %v2034 = vadd.f32 %v538, %v2033
      %v2035 = vpop.f32.mrf.mxu0
      %2036 = vmatprep.mubr.bf16.mxu0 %v1292
      %2037 = vmatmul.mubr.bf16.gmra.mxu0 %v1291
      %v2038 = vpop.f32.mrf.mxu0
      %v2039 = vadd.f32 %v538, %v2038
      %v2040 = vpop.f32.mrf.mxu0
      %v2041 = vpop.f32.mrf.mxu0
      %v2042 = vadd.f32 %v538, %v2041
      %v2043 = vpop.f32.mrf.mxu0
      %2044 = vmatprep.mubr.bf16.mxu0 %v1295
      %2045 = vmatmul.mubr.bf16.gmra.mxu0 %v1294
      %v2046 = vpop.f32.mrf.mxu0
      %v2047 = vadd.f32 %v538, %v2046
      %v2048 = vpop.f32.mrf.mxu0
      %v2049 = vpop.f32.mrf.mxu0
      %v2050 = vadd.f32 %v538, %v2049
      %v2051 = vpop.f32.mrf.mxu0
      %2052 = vmatprep.mubr.bf16.mxu0 %v1298
      %2053 = vmatmul.mubr.bf16.gmra.mxu0 %v1297
      %v2054 = vpop.f32.mrf.mxu0
      %v2055 = vadd.f32 %v538, %v2054
      %v2056 = vpop.f32.mrf.mxu0
      %v2057 = vpop.f32.mrf.mxu0
      %v2058 = vadd.f32 %v538, %v2057
      %v2059 = vpop.f32.mrf.mxu0
      %2060 = vmatprep.mubr.bf16.mxu0 %v1301
      %2061 = vmatmul.mubr.bf16.gmra.mxu0 %v1300
      %v2062 = vpop.f32.mrf.mxu0
      %v2063 = vadd.f32 %v538, %v2062
      %v2064 = vpop.f32.mrf.mxu0
      %v2065 = vpop.f32.mrf.mxu0
      %v2066 = vadd.f32 %v538, %v2065
      %v2067 = vpop.f32.mrf.mxu0
      %2068 = vmatprep.mubr.bf16.mxu0 %v1304
      %2069 = vmatmul.mubr.bf16.gmra.mxu0 %v1303
      %v2070 = vpop.f32.mrf.mxu0
      %v2071 = vadd.f32 %v538, %v2070
      %v2072 = vpop.f32.mrf.mxu0
      %v2073 = vpop.f32.mrf.mxu0
      %v2074 = vadd.f32 %v538, %v2073
      %v2075 = vpop.f32.mrf.mxu0
      %2076 = vmatprep.mubr.bf16.mxu0 %v1307
      %2077 = vmatmul.mubr.bf16.gmra.mxu0 %v1306
      %v2078 = vpop.f32.mrf.mxu0
      %v2079 = vadd.f32 %v538, %v2078
      %v2080 = vpop.f32.mrf.mxu0
      %v2081 = vpop.f32.mrf.mxu0
      %v2082 = vadd.f32 %v538, %v2081
      %v2083 = vpop.f32.mrf.mxu0
      %2084 = vmatprep.mubr.bf16.mxu0 %v1310
      %2085 = vmatmul.mubr.bf16.gmra.mxu0 %v1309
      %v2086 = vpop.f32.mrf.mxu0
      %v2087 = vadd.f32 %v538, %v2086
      %v2088 = vpop.f32.mrf.mxu0
      %v2089 = vpop.f32.mrf.mxu0
      %v2090 = vadd.f32 %v538, %v2089
      %v2091 = vpop.f32.mrf.mxu0
      %2092 = vmatprep.mubr.bf16.mxu0 %v1313
      %2093 = vmatmul.mubr.bf16.gmra.mxu0 %v1312
      %v2094 = vpop.f32.mrf.mxu0
      %v2095 = vadd.f32 %v538, %v2094
      %v2096 = vpop.f32.mrf.mxu0
      %v2097 = vpop.f32.mrf.mxu0
      %v2098 = vadd.f32 %v538, %v2097
      %v2099 = vpop.f32.mrf.mxu0
      %2100 = vmatprep.mubr.bf16.mxu0 %v1316
      %2101 = vmatmul.mubr.bf16.gmra.mxu0 %v1315
      %v2102 = vpop.f32.mrf.mxu0
      %v2103 = vadd.f32 %v538, %v2102
      %v2104 = vpop.f32.mrf.mxu0
      %v2105 = vpop.f32.mrf.mxu0
      %v2106 = vadd.f32 %v538, %v2105
      %v2107 = vpop.f32.mrf.mxu0
      %2108 = vmatprep.mubr.bf16.mxu0 %v1319
      %2109 = vmatmul.mubr.bf16.gmra.mxu0 %v1318
      %v2110 = vpop.f32.mrf.mxu0
      %v2111 = vadd.f32 %v538, %v2110
      %v2112 = vpop.f32.mrf.mxu0
      %v2113 = vpop.f32.mrf.mxu0
      %v2114 = vadd.f32 %v538, %v2113
      %v2115 = vpop.f32.mrf.mxu0
      %2116 = vmatprep.mubr.bf16.mxu0 %v1322
      %2117 = vmatmul.mubr.bf16.gmra.mxu0 %v1321
      %v2118 = vpop.f32.mrf.mxu0
      %v2119 = vadd.f32 %v538, %v2118
      %v2120 = vpop.f32.mrf.mxu0
      %v2121 = vpop.f32.mrf.mxu0
      %v2122 = vadd.f32 %v538, %v2121
      %v2123 = vpop.f32.mrf.mxu0
      %2124 = vmatprep.mubr.bf16.mxu0 %v1325
      %2125 = vmatmul.mubr.bf16.gmra.mxu0 %v1324
      %v2126 = vpop.f32.mrf.mxu0
      %v2127 = vadd.f32 %v538, %v2126
      %v2128 = vpop.f32.mrf.mxu0
      %v2129 = vpop.f32.mrf.mxu0
      %v2130 = vadd.f32 %v538, %v2129
      %v2131 = vpop.f32.mrf.mxu0
      %2132 = vmatprep.mubr.bf16.mxu0 %v1328
      %2133 = vmatmul.mubr.bf16.gmra.mxu0 %v1327
      %v2134 = vpop.f32.mrf.mxu0
      %v2135 = vadd.f32 %v538, %v2134
      %v2136 = vpop.f32.mrf.mxu0
      %v2137 = vpop.f32.mrf.mxu0
      %v2138 = vadd.f32 %v538, %v2137
      %v2139 = vpop.f32.mrf.mxu0
      %2140 = vmatprep.mubr.bf16.mxu0 %v1331
      %2141 = vmatmul.mubr.bf16.gmra.mxu0 %v1330
      %v2142 = vpop.f32.mrf.mxu0
      %v2143 = vadd.f32 %v538, %v2142
      %v2144 = vpop.f32.mrf.mxu0
      %v2145 = vpop.f32.mrf.mxu0
      %v2146 = vadd.f32 %v538, %v2145
      %v2147 = vpop.f32.mrf.mxu0
      %2148 = vmatprep.mubr.bf16.mxu0 %v1334
      %2149 = vmatmul.mubr.bf16.gmra.mxu0 %v1333
      %v2150 = vpop.f32.mrf.mxu0
      %v2151 = vadd.f32 %v538, %v2150
      %v2152 = vpop.f32.mrf.mxu0
      %v2153 = vpop.f32.mrf.mxu0
      %v2154 = vadd.f32 %v538, %v2153
      %v2155 = vpop.f32.mrf.mxu0
      %2156 = vmatprep.mubr.bf16.mxu0 %v1337
      %2157 = vmatmul.mubr.bf16.gmra.mxu0 %v1336
      %v2158 = vpop.f32.mrf.mxu0
      %v2159 = vadd.f32 %v538, %v2158
      %v2160 = vpop.f32.mrf.mxu0
      %v2161 = vpop.f32.mrf.mxu0
      %v2162 = vadd.f32 %v538, %v2161
      %v2163 = vpop.f32.mrf.mxu0
      %2164 = vmatprep.mubr.bf16.mxu0 %v1340
      %2165 = vmatmul.mubr.bf16.gmra.mxu0 %v1339
      %v2166 = vpop.f32.mrf.mxu0
      %v2167 = vadd.f32 %v538, %v2166
      %v2168 = vpop.f32.mrf.mxu0
      %v2169 = vpop.f32.mrf.mxu0
      %v2170 = vadd.f32 %v538, %v2169
      %v2171 = vpop.f32.mrf.mxu0
      %2172 = vmatprep.mubr.bf16.mxu0 %v1343
      %2173 = vmatmul.mubr.bf16.gmra.mxu0 %v1342
      %v2174 = vpop.f32.mrf.mxu0
      %v2175 = vadd.f32 %v538, %v2174
      %v2176 = vpop.f32.mrf.mxu0
      %v2177 = vpop.f32.mrf.mxu0
      %v2178 = vadd.f32 %v538, %v2177
      %v2179 = vpop.f32.mrf.mxu0
      %2180 = vmatprep.mubr.bf16.mxu0 %v1346
      %2181 = vmatmul.mubr.bf16.gmra.mxu0 %v1345
      %v2182 = vpop.f32.mrf.mxu0
      %v2183 = vadd.f32 %v538, %v2182
      %v2184 = vpop.f32.mrf.mxu0
      %v2185 = vpop.f32.mrf.mxu0
      %v2186 = vadd.f32 %v538, %v2185
      %v2187 = vpop.f32.mrf.mxu0
      %2188 = vmatprep.mubr.bf16.mxu0 %v1349
      %2189 = vmatmul.mubr.bf16.gmra.mxu0 %v1348
      %v2190 = vpop.f32.mrf.mxu0
      %v2191 = vadd.f32 %v538, %v2190
      %v2192 = vpop.f32.mrf.mxu0
      %v2193 = vpop.f32.mrf.mxu0
      %v2194 = vadd.f32 %v538, %v2193
      %v2195 = vpop.f32.mrf.mxu0
      %2196 = vmatprep.mubr.bf16.mxu0 %v1352
      %2197 = vmatmul.mubr.bf16.gmra.mxu0 %v1351
      %v2198 = vpop.f32.mrf.mxu0
      %v2199 = vadd.f32 %v538, %v2198
      %v2200 = vpop.f32.mrf.mxu0
      %v2201 = vpop.f32.mrf.mxu0
      %v2202 = vadd.f32 %v538, %v2201
      %v2203 = vpop.f32.mrf.mxu0
      %2204 = vmatprep.mubr.bf16.mxu0 %v1355
      %2205 = vmatmul.mubr.bf16.gmra.mxu0 %v1354
      %v2206 = vpop.f32.mrf.mxu0
      %v2207 = vadd.f32 %v538, %v2206
      %v2208 = vpop.f32.mrf.mxu0
      %v2209 = vpop.f32.mrf.mxu0
      %v2210 = vadd.f32 %v538, %v2209
      %v2211 = vpop.f32.mrf.mxu0
      %2212 = vmatprep.mubr.bf16.mxu0 %v1358
      %2213 = vmatmul.mubr.bf16.gmra.mxu0 %v1357
      %v2214 = vpop.f32.mrf.mxu0
      %v2215 = vadd.f32 %v538, %v2214
      %v2216 = vpop.f32.mrf.mxu0
      %v2217 = vpop.f32.mrf.mxu0
      %v2218 = vadd.f32 %v538, %v2217
      %v2219 = vpop.f32.mrf.mxu0
      %2220 = vmatprep.mubr.bf16.mxu0 %v1361
      %2221 = vmatmul.mubr.bf16.gmra.mxu0 %v1360
      %v2222 = vpop.f32.mrf.mxu0
      %v2223 = vadd.f32 %v538, %v2222
      %v2224 = vpop.f32.mrf.mxu0
      %v2225 = vpop.f32.mrf.mxu0
      %v2226 = vadd.f32 %v538, %v2225
      %v2227 = vpop.f32.mrf.mxu0
      %2228 = vmatprep.mubr.bf16.mxu0 %v1364
      %2229 = vmatmul.mubr.bf16.gmra.mxu0 %v1363
      %v2230 = vpop.f32.mrf.mxu0
      %v2231 = vadd.f32 %v538, %v2230
      %v2232 = vpop.f32.mrf.mxu0
      %v2233 = vpop.f32.mrf.mxu0
      %v2234 = vadd.f32 %v538, %v2233
      %v2235 = vpop.f32.mrf.mxu0
      %2236 = vmatprep.mubr.bf16.mxu0 %v1367
      %2237 = vmatmul.mubr.bf16.gmra.mxu0 %v1366
      %v2238 = vpop.f32.mrf.mxu0
      %v2239 = vadd.f32 %v538, %v2238
      %v2240 = vpop.f32.mrf.mxu0
      %v2241 = vpop.f32.mrf.mxu0
      %v2242 = vadd.f32 %v538, %v2241
      %v2243 = vpop.f32.mrf.mxu0
      %2244 = vmatprep.mubr.bf16.mxu0 %v1370
      %2245 = vmatmul.mubr.bf16.gmra.mxu0 %v1369
      %v2246 = vpop.f32.mrf.mxu0
      %v2247 = vadd.f32 %v538, %v2246
      %v2248 = vpop.f32.mrf.mxu0
      %v2249 = vpop.f32.mrf.mxu0
      %v2250 = vadd.f32 %v538, %v2249
      %v2251 = vpop.f32.mrf.mxu0
      %2252 = vdwg.mxu0
      %2253 = vmatprep.subr.bf16.mxu0 0
      %2254 = vmatpush1.bf16.msra.mxu0 %v1683
      %2255 = vmatprep.subr.bf16.mxu0 0
      %2256 = vmatpush1.bf16.msra.mxu0 %v1682
      %2257 = vmatprep.subr.bf16.mxu0 0
      %2258 = vmatpush1.bf16.msra.mxu0 %v1681
      %2259 = vmatprep.subr.bf16.mxu0 0
      %2260 = vmatpush1.bf16.msra.mxu0 %v1680
      %2261 = vmatprep.subr.bf16.mxu0 0
      %2262 = vmatpush1.bf16.msra.mxu0 %v1679
      %2263 = vmatprep.subr.bf16.mxu0 0
      %2264 = vmatpush1.bf16.msra.mxu0 %v1678
      %2265 = vmatprep.subr.bf16.mxu0 0
      %2266 = vmatpush1.bf16.msra.mxu0 %v1677
      %2267 = vmatprep.subr.bf16.mxu0 0
      %2268 = vmatpush1.bf16.msra.mxu0 %v1676
      %2269 = vmatprep.subr.bf16.mxu0 0
      %2270 = vmatpush2.bf16.msra.mxu0 0
      %2271 = vmatprep.subr.bf16.mxu0 0
      %2272 = vmatpush2.bf16.msra.mxu0 0
      %2273 = vmatprep.subr.bf16.mxu0 0
      %2274 = vmatpush2.bf16.msra.mxu0 0
      %2275 = vmatprep.subr.bf16.mxu0 0
      %2276 = vmatpush2.bf16.msra.mxu0 0
      %2277 = vmatprep.subr.bf16.mxu0 0
      %2278 = vmatpush2.bf16.msra.mxu0 0
      %2279 = vmatprep.subr.bf16.mxu0 0
      %2280 = vmatpush2.bf16.msra.mxu0 0
      %2281 = vmatprep.subr.bf16.mxu0 0
      %2282 = vmatpush2.bf16.msra.mxu0 0
      %2283 = vmatprep.subr.bf16.mxu0 0
      %2284 = vmatpush2.bf16.msra.mxu0 0
      %2285 = vmatprep.mubr.bf16.mxu0 0
      %2286 = vmatmul.mubr.bf16.gmra.mxu0 %v1182
      %v2287 = vpop.f32.mrf.mxu0
      %v2288 = vadd.f32 %v1743, %v2287
      %v2289 = vpop.f32.mrf.mxu0
      %v2290 = vpop.f32.mrf.mxu0
      %v2291 = vadd.f32 %v1746, %v2290
      %v2292 = vpop.f32.mrf.mxu0
      %2293 = vmatprep.mubr.bf16.mxu0 0
      %2294 = vmatmul.mubr.bf16.gmra.mxu0 %v1185
      %v2295 = vpop.f32.mrf.mxu0
      %v2296 = vadd.f32 %v1751, %v2295
      %v2297 = vpop.f32.mrf.mxu0
      %v2298 = vpop.f32.mrf.mxu0
      %v2299 = vadd.f32 %v1754, %v2298
      %v2300 = vpop.f32.mrf.mxu0
      %2301 = vmatprep.mubr.bf16.mxu0 0
      %2302 = vmatmul.mubr.bf16.gmra.mxu0 %v1188
      %v2303 = vpop.f32.mrf.mxu0
      %v2304 = vadd.f32 %v1759, %v2303
      %v2305 = vpop.f32.mrf.mxu0
      %v2306 = vpop.f32.mrf.mxu0
      %v2307 = vadd.f32 %v1762, %v2306
      %v2308 = vpop.f32.mrf.mxu0
      %2309 = vmatprep.mubr.bf16.mxu0 0
      %2310 = vmatmul.mubr.bf16.gmra.mxu0 %v1191
      %v2311 = vpop.f32.mrf.mxu0
      %v2312 = vadd.f32 %v1767, %v2311
      %v2313 = vpop.f32.mrf.mxu0
      %v2314 = vpop.f32.mrf.mxu0
      %v2315 = vadd.f32 %v1770, %v2314
      %v2316 = vpop.f32.mrf.mxu0
      %2317 = vmatprep.mubr.bf16.mxu0 0
      %2318 = vmatmul.mubr.bf16.gmra.mxu0 %v1194
      %v2319 = vpop.f32.mrf.mxu0
      %v2320 = vadd.f32 %v1775, %v2319
      %v2321 = vpop.f32.mrf.mxu0
      %v2322 = vpop.f32.mrf.mxu0
      %v2323 = vadd.f32 %v1778, %v2322
      %v2324 = vpop.f32.mrf.mxu0
      %2325 = vmatprep.mubr.bf16.mxu0 0
      %2326 = vmatmul.mubr.bf16.gmra.mxu0 %v1197
      %v2327 = vpop.f32.mrf.mxu0
      %v2328 = vadd.f32 %v1783, %v2327
      %v2329 = vpop.f32.mrf.mxu0
      %v2330 = vpop.f32.mrf.mxu0
      %v2331 = vadd.f32 %v1786, %v2330
      %v2332 = vpop.f32.mrf.mxu0
      %2333 = vmatprep.mubr.bf16.mxu0 0
      %2334 = vmatmul.mubr.bf16.gmra.mxu0 %v1200
      %v2335 = vpop.f32.mrf.mxu0
      %v2336 = vadd.f32 %v1791, %v2335
      %v2337 = vpop.f32.mrf.mxu0
      %v2338 = vpop.f32.mrf.mxu0
      %v2339 = vadd.f32 %v1794, %v2338
      %v2340 = vpop.f32.mrf.mxu0
      %2341 = vmatprep.mubr.bf16.mxu0 0
      %2342 = vmatmul.mubr.bf16.gmra.mxu0 %v1203
      %v2343 = vpop.f32.mrf.mxu0
      %v2344 = vadd.f32 %v1799, %v2343
      %v2345 = vpop.f32.mrf.mxu0
      %v2346 = vpop.f32.mrf.mxu0
      %v2347 = vadd.f32 %v1802, %v2346
      %v2348 = vpop.f32.mrf.mxu0
      %2349 = vmatprep.mubr.bf16.mxu0 0
      %2350 = vmatmul.mubr.bf16.gmra.mxu0 %v1206
      %v2351 = vpop.f32.mrf.mxu0
      %v2352 = vadd.f32 %v1807, %v2351
      %v2353 = vpop.f32.mrf.mxu0
      %v2354 = vpop.f32.mrf.mxu0
      %v2355 = vadd.f32 %v1810, %v2354
      %v2356 = vpop.f32.mrf.mxu0
      %2357 = vmatprep.mubr.bf16.mxu0 0
      %2358 = vmatmul.mubr.bf16.gmra.mxu0 %v1209
      %v2359 = vpop.f32.mrf.mxu0
      %v2360 = vadd.f32 %v1815, %v2359
      %v2361 = vpop.f32.mrf.mxu0
      %v2362 = vpop.f32.mrf.mxu0
      %v2363 = vadd.f32 %v1818, %v2362
      %v2364 = vpop.f32.mrf.mxu0
      %2365 = vmatprep.mubr.bf16.mxu0 0
      %2366 = vmatmul.mubr.bf16.gmra.mxu0 %v1212
      %v2367 = vpop.f32.mrf.mxu0
      %v2368 = vadd.f32 %v1823, %v2367
      %v2369 = vpop.f32.mrf.mxu0
      %v2370 = vpop.f32.mrf.mxu0
      %v2371 = vadd.f32 %v1826, %v2370
      %v2372 = vpop.f32.mrf.mxu0
      %2373 = vmatprep.mubr.bf16.mxu0 0
      %2374 = vmatmul.mubr.bf16.gmra.mxu0 %v1215
      %v2375 = vpop.f32.mrf.mxu0
      %v2376 = vadd.f32 %v1831, %v2375
      %v2377 = vpop.f32.mrf.mxu0
      %v2378 = vpop.f32.mrf.mxu0
      %v2379 = vadd.f32 %v1834, %v2378
      %v2380 = vpop.f32.mrf.mxu0
      %2381 = vmatprep.mubr.bf16.mxu0 0
      %2382 = vmatmul.mubr.bf16.gmra.mxu0 %v1218
      %v2383 = vpop.f32.mrf.mxu0
      %v2384 = vadd.f32 %v1839, %v2383
      %v2385 = vpop.f32.mrf.mxu0
      %v2386 = vpop.f32.mrf.mxu0
      %v2387 = vadd.f32 %v1842, %v2386
      %v2388 = vpop.f32.mrf.mxu0
      %2389 = vmatprep.mubr.bf16.mxu0 0
      %2390 = vmatmul.mubr.bf16.gmra.mxu0 %v1221
      %v2391 = vpop.f32.mrf.mxu0
      %v2392 = vadd.f32 %v1847, %v2391
      %v2393 = vpop.f32.mrf.mxu0
      %v2394 = vpop.f32.mrf.mxu0
      %v2395 = vadd.f32 %v1850, %v2394
      %v2396 = vpop.f32.mrf.mxu0
      %2397 = vmatprep.mubr.bf16.mxu0 0
      %2398 = vmatmul.mubr.bf16.gmra.mxu0 %v1224
      %v2399 = vpop.f32.mrf.mxu0
      %v2400 = vadd.f32 %v1855, %v2399
      %v2401 = vpop.f32.mrf.mxu0
      %v2402 = vpop.f32.mrf.mxu0
      %v2403 = vadd.f32 %v1858, %v2402
      %v2404 = vpop.f32.mrf.mxu0
      %2405 = vmatprep.mubr.bf16.mxu0 0
      %2406 = vmatmul.mubr.bf16.gmra.mxu0 %v1227
      %v2407 = vpop.f32.mrf.mxu0
      %v2408 = vadd.f32 %v1863, %v2407
      %v2409 = vpop.f32.mrf.mxu0
      %v2410 = vpop.f32.mrf.mxu0
      %v2411 = vadd.f32 %v1866, %v2410
      %v2412 = vpop.f32.mrf.mxu0
      %2413 = vmatprep.mubr.bf16.mxu0 0
      %2414 = vmatmul.mubr.bf16.gmra.mxu0 %v1230
      %v2415 = vpop.f32.mrf.mxu0
      %v2416 = vadd.f32 %v1871, %v2415
      %v2417 = vpop.f32.mrf.mxu0
      %v2418 = vpop.f32.mrf.mxu0
      %v2419 = vadd.f32 %v1874, %v2418
      %v2420 = vpop.f32.mrf.mxu0
      %2421 = vmatprep.mubr.bf16.mxu0 0
      %2422 = vmatmul.mubr.bf16.gmra.mxu0 %v1233
      %v2423 = vpop.f32.mrf.mxu0
      %v2424 = vadd.f32 %v1879, %v2423
      %v2425 = vpop.f32.mrf.mxu0
      %v2426 = vpop.f32.mrf.mxu0
      %v2427 = vadd.f32 %v1882, %v2426
      %v2428 = vpop.f32.mrf.mxu0
      %2429 = vmatprep.mubr.bf16.mxu0 0
      %2430 = vmatmul.mubr.bf16.gmra.mxu0 %v1236
      %v2431 = vpop.f32.mrf.mxu0
      %v2432 = vadd.f32 %v1887, %v2431
      %v2433 = vpop.f32.mrf.mxu0
      %v2434 = vpop.f32.mrf.mxu0
      %v2435 = vadd.f32 %v1890, %v2434
      %v2436 = vpop.f32.mrf.mxu0
      %2437 = vmatprep.mubr.bf16.mxu0 0
      %2438 = vmatmul.mubr.bf16.gmra.mxu0 %v1239
      %v2439 = vpop.f32.mrf.mxu0
      %v2440 = vadd.f32 %v1895, %v2439
      %v2441 = vpop.f32.mrf.mxu0
      %v2442 = vpop.f32.mrf.mxu0
      %v2443 = vadd.f32 %v1898, %v2442
      %v2444 = vpop.f32.mrf.mxu0
      %2445 = vmatprep.mubr.bf16.mxu0 0
      %2446 = vmatmul.mubr.bf16.gmra.mxu0 %v1242
      %v2447 = vpop.f32.mrf.mxu0
      %v2448 = vadd.f32 %v1903, %v2447
      %v2449 = vpop.f32.mrf.mxu0
      %v2450 = vpop.f32.mrf.mxu0
      %v2451 = vadd.f32 %v1906, %v2450
      %v2452 = vpop.f32.mrf.mxu0
      %2453 = vmatprep.mubr.bf16.mxu0 0
      %2454 = vmatmul.mubr.bf16.gmra.mxu0 %v1245
      %v2455 = vpop.f32.mrf.mxu0
      %v2456 = vadd.f32 %v1911, %v2455
      %v2457 = vpop.f32.mrf.mxu0
      %v2458 = vpop.f32.mrf.mxu0
      %v2459 = vadd.f32 %v1914, %v2458
      %v2460 = vpop.f32.mrf.mxu0
      %2461 = vmatprep.mubr.bf16.mxu0 0
      %2462 = vmatmul.mubr.bf16.gmra.mxu0 %v1248
      %v2463 = vpop.f32.mrf.mxu0
      %v2464 = vadd.f32 %v1919, %v2463
      %v2465 = vpop.f32.mrf.mxu0
      %v2466 = vpop.f32.mrf.mxu0
      %v2467 = vadd.f32 %v1922, %v2466
      %v2468 = vpop.f32.mrf.mxu0
      %2469 = vmatprep.mubr.bf16.mxu0 0
      %2470 = vmatmul.mubr.bf16.gmra.mxu0 %v1251
      %v2471 = vpop.f32.mrf.mxu0
      %v2472 = vadd.f32 %v1927, %v2471
      %v2473 = vpop.f32.mrf.mxu0
      %v2474 = vpop.f32.mrf.mxu0
      %v2475 = vadd.f32 %v1930, %v2474
      %v2476 = vpop.f32.mrf.mxu0
      %2477 = vmatprep.mubr.bf16.mxu0 0
      %2478 = vmatmul.mubr.bf16.gmra.mxu0 %v1254
      %v2479 = vpop.f32.mrf.mxu0
      %v2480 = vadd.f32 %v1935, %v2479
      %v2481 = vpop.f32.mrf.mxu0
      %v2482 = vpop.f32.mrf.mxu0
      %v2483 = vadd.f32 %v1938, %v2482
      %v2484 = vpop.f32.mrf.mxu0
      %2485 = vmatprep.mubr.bf16.mxu0 0
      %2486 = vmatmul.mubr.bf16.gmra.mxu0 %v1257
      %v2487 = vpop.f32.mrf.mxu0
      %v2488 = vadd.f32 %v1943, %v2487
      %v2489 = vpop.f32.mrf.mxu0
      %v2490 = vpop.f32.mrf.mxu0
      %v2491 = vadd.f32 %v1946, %v2490
      %v2492 = vpop.f32.mrf.mxu0
      %2493 = vmatprep.mubr.bf16.mxu0 0
      %2494 = vmatmul.mubr.bf16.gmra.mxu0 %v1260
      %v2495 = vpop.f32.mrf.mxu0
      %v2496 = vadd.f32 %v1951, %v2495
      %v2497 = vpop.f32.mrf.mxu0
      %v2498 = vpop.f32.mrf.mxu0
      %v2499 = vadd.f32 %v1954, %v2498
      %v2500 = vpop.f32.mrf.mxu0
      %2501 = vmatprep.mubr.bf16.mxu0 0
      %2502 = vmatmul.mubr.bf16.gmra.mxu0 %v1263
      %v2503 = vpop.f32.mrf.mxu0
      %v2504 = vadd.f32 %v1959, %v2503
      %v2505 = vpop.f32.mrf.mxu0
      %v2506 = vpop.f32.mrf.mxu0
      %v2507 = vadd.f32 %v1962, %v2506
      %v2508 = vpop.f32.mrf.mxu0
      %2509 = vmatprep.mubr.bf16.mxu0 0
      %2510 = vmatmul.mubr.bf16.gmra.mxu0 %v1266
      %v2511 = vpop.f32.mrf.mxu0
      %v2512 = vadd.f32 %v1967, %v2511
      %v2513 = vpop.f32.mrf.mxu0
      %v2514 = vpop.f32.mrf.mxu0
      %v2515 = vadd.f32 %v1970, %v2514
      %v2516 = vpop.f32.mrf.mxu0
      %2517 = vmatprep.mubr.bf16.mxu0 0
      %2518 = vmatmul.mubr.bf16.gmra.mxu0 %v1269
      %v2519 = vpop.f32.mrf.mxu0
      %v2520 = vadd.f32 %v1975, %v2519
      %v2521 = vpop.f32.mrf.mxu0
      %v2522 = vpop.f32.mrf.mxu0
      %v2523 = vadd.f32 %v1978, %v2522
      %v2524 = vpop.f32.mrf.mxu0
      %2525 = vmatprep.mubr.bf16.mxu0 0
      %2526 = vmatmul.mubr.bf16.gmra.mxu0 %v1272
      %v2527 = vpop.f32.mrf.mxu0
      %v2528 = vadd.f32 %v1983, %v2527
      %v2529 = vpop.f32.mrf.mxu0
      %v2530 = vpop.f32.mrf.mxu0
      %v2531 = vadd.f32 %v1986, %v2530
      %v2532 = vpop.f32.mrf.mxu0
      %2533 = vmatprep.mubr.bf16.mxu0 0
      %2534 = vmatmul.mubr.bf16.gmra.mxu0 %v1275
      %v2535 = vpop.f32.mrf.mxu0
      %v2536 = vadd.f32 %v1991, %v2535
      %v2537 = vpop.f32.mrf.mxu0
      %v2538 = vpop.f32.mrf.mxu0
      %v2539 = vadd.f32 %v1994, %v2538
      %v2540 = vpop.f32.mrf.mxu0
      %2541 = vmatprep.mubr.bf16.mxu0 0
      %2542 = vmatmul.mubr.bf16.gmra.mxu0 %v1278
      %v2543 = vpop.f32.mrf.mxu0
      %v2544 = vadd.f32 %v1999, %v2543
      %v2545 = vpop.f32.mrf.mxu0
      %v2546 = vpop.f32.mrf.mxu0
      %v2547 = vadd.f32 %v2002, %v2546
      %v2548 = vpop.f32.mrf.mxu0
      %2549 = vmatprep.mubr.bf16.mxu0 0
      %2550 = vmatmul.mubr.bf16.gmra.mxu0 %v1281
      %v2551 = vpop.f32.mrf.mxu0
      %v2552 = vadd.f32 %v2007, %v2551
      %v2553 = vpop.f32.mrf.mxu0
      %v2554 = vpop.f32.mrf.mxu0
      %v2555 = vadd.f32 %v2010, %v2554
      %v2556 = vpop.f32.mrf.mxu0
      %2557 = vmatprep.mubr.bf16.mxu0 0
      %2558 = vmatmul.mubr.bf16.gmra.mxu0 %v1284
      %v2559 = vpop.f32.mrf.mxu0
      %v2560 = vadd.f32 %v2015, %v2559
      %v2561 = vpop.f32.mrf.mxu0
      %v2562 = vpop.f32.mrf.mxu0
      %v2563 = vadd.f32 %v2018, %v2562
      %v2564 = vpop.f32.mrf.mxu0
      %2565 = vmatprep.mubr.bf16.mxu0 0
      %2566 = vmatmul.mubr.bf16.gmra.mxu0 %v1287
      %v2567 = vpop.f32.mrf.mxu0
      %v2568 = vadd.f32 %v2023, %v2567
      %v2569 = vpop.f32.mrf.mxu0
      %v2570 = vpop.f32.mrf.mxu0
      %v2571 = vadd.f32 %v2026, %v2570
      %v2572 = vpop.f32.mrf.mxu0
      %2573 = vmatprep.mubr.bf16.mxu0 0
      %2574 = vmatmul.mubr.bf16.gmra.mxu0 %v1290
      %v2575 = vpop.f32.mrf.mxu0
      %v2576 = vadd.f32 %v2031, %v2575
      %v2577 = vpop.f32.mrf.mxu0
      %v2578 = vpop.f32.mrf.mxu0
      %v2579 = vadd.f32 %v2034, %v2578
      %v2580 = vpop.f32.mrf.mxu0
      %2581 = vmatprep.mubr.bf16.mxu0 0
      %2582 = vmatmul.mubr.bf16.gmra.mxu0 %v1293
      %v2583 = vpop.f32.mrf.mxu0
      %v2584 = vadd.f32 %v2039, %v2583
      %v2585 = vpop.f32.mrf.mxu0
      %v2586 = vpop.f32.mrf.mxu0
      %v2587 = vadd.f32 %v2042, %v2586
      %v2588 = vpop.f32.mrf.mxu0
      %2589 = vmatprep.mubr.bf16.mxu0 0
      %2590 = vmatmul.mubr.bf16.gmra.mxu0 %v1296
      %v2591 = vpop.f32.mrf.mxu0
      %v2592 = vadd.f32 %v2047, %v2591
      %v2593 = vpop.f32.mrf.mxu0
      %v2594 = vpop.f32.mrf.mxu0
      %v2595 = vadd.f32 %v2050, %v2594
      %v2596 = vpop.f32.mrf.mxu0
      %2597 = vmatprep.mubr.bf16.mxu0 0
      %2598 = vmatmul.mubr.bf16.gmra.mxu0 %v1299
      %v2599 = vpop.f32.mrf.mxu0
      %v2600 = vadd.f32 %v2055, %v2599
      %v2601 = vpop.f32.mrf.mxu0
      %v2602 = vpop.f32.mrf.mxu0
      %v2603 = vadd.f32 %v2058, %v2602
      %v2604 = vpop.f32.mrf.mxu0
      %2605 = vmatprep.mubr.bf16.mxu0 0
      %2606 = vmatmul.mubr.bf16.gmra.mxu0 %v1302
      %v2607 = vpop.f32.mrf.mxu0
      %v2608 = vadd.f32 %v2063, %v2607
      %v2609 = vpop.f32.mrf.mxu0
      %v2610 = vpop.f32.mrf.mxu0
      %v2611 = vadd.f32 %v2066, %v2610
      %v2612 = vpop.f32.mrf.mxu0
      %2613 = vmatprep.mubr.bf16.mxu0 0
      %2614 = vmatmul.mubr.bf16.gmra.mxu0 %v1305
      %v2615 = vpop.f32.mrf.mxu0
      %v2616 = vadd.f32 %v2071, %v2615
      %v2617 = vpop.f32.mrf.mxu0
      %v2618 = vpop.f32.mrf.mxu0
      %v2619 = vadd.f32 %v2074, %v2618
      %v2620 = vpop.f32.mrf.mxu0
      %2621 = vmatprep.mubr.bf16.mxu0 0
      %2622 = vmatmul.mubr.bf16.gmra.mxu0 %v1308
      %v2623 = vpop.f32.mrf.mxu0
      %v2624 = vadd.f32 %v2079, %v2623
      %v2625 = vpop.f32.mrf.mxu0
      %v2626 = vpop.f32.mrf.mxu0
      %v2627 = vadd.f32 %v2082, %v2626
      %v2628 = vpop.f32.mrf.mxu0
      %2629 = vmatprep.mubr.bf16.mxu0 0
      %2630 = vmatmul.mubr.bf16.gmra.mxu0 %v1311
      %v2631 = vpop.f32.mrf.mxu0
      %v2632 = vadd.f32 %v2087, %v2631
      %v2633 = vpop.f32.mrf.mxu0
      %v2634 = vpop.f32.mrf.mxu0
      %v2635 = vadd.f32 %v2090, %v2634
      %v2636 = vpop.f32.mrf.mxu0
      %2637 = vmatprep.mubr.bf16.mxu0 0
      %2638 = vmatmul.mubr.bf16.gmra.mxu0 %v1314
      %v2639 = vpop.f32.mrf.mxu0
      %v2640 = vadd.f32 %v2095, %v2639
      %v2641 = vpop.f32.mrf.mxu0
      %v2642 = vpop.f32.mrf.mxu0
      %v2643 = vadd.f32 %v2098, %v2642
      %v2644 = vpop.f32.mrf.mxu0
      %2645 = vmatprep.mubr.bf16.mxu0 0
      %2646 = vmatmul.mubr.bf16.gmra.mxu0 %v1317
      %v2647 = vpop.f32.mrf.mxu0
      %v2648 = vadd.f32 %v2103, %v2647
      %v2649 = vpop.f32.mrf.mxu0
      %v2650 = vpop.f32.mrf.mxu0
      %v2651 = vadd.f32 %v2106, %v2650
      %v2652 = vpop.f32.mrf.mxu0
      %2653 = vmatprep.mubr.bf16.mxu0 0
      %2654 = vmatmul.mubr.bf16.gmra.mxu0 %v1320
      %v2655 = vpop.f32.mrf.mxu0
      %v2656 = vadd.f32 %v2111, %v2655
      %v2657 = vpop.f32.mrf.mxu0
      %v2658 = vpop.f32.mrf.mxu0
      %v2659 = vadd.f32 %v2114, %v2658
      %v2660 = vpop.f32.mrf.mxu0
      %2661 = vmatprep.mubr.bf16.mxu0 0
      %2662 = vmatmul.mubr.bf16.gmra.mxu0 %v1323
      %v2663 = vpop.f32.mrf.mxu0
      %v2664 = vadd.f32 %v2119, %v2663
      %v2665 = vpop.f32.mrf.mxu0
      %v2666 = vpop.f32.mrf.mxu0
      %v2667 = vadd.f32 %v2122, %v2666
      %v2668 = vpop.f32.mrf.mxu0
      %2669 = vmatprep.mubr.bf16.mxu0 0
      %2670 = vmatmul.mubr.bf16.gmra.mxu0 %v1326
      %v2671 = vpop.f32.mrf.mxu0
      %v2672 = vadd.f32 %v2127, %v2671
      %v2673 = vpop.f32.mrf.mxu0
      %v2674 = vpop.f32.mrf.mxu0
      %v2675 = vadd.f32 %v2130, %v2674
      %v2676 = vpop.f32.mrf.mxu0
      %2677 = vmatprep.mubr.bf16.mxu0 0
      %2678 = vmatmul.mubr.bf16.gmra.mxu0 %v1329
      %v2679 = vpop.f32.mrf.mxu0
      %v2680 = vadd.f32 %v2135, %v2679
      %v2681 = vpop.f32.mrf.mxu0
      %v2682 = vpop.f32.mrf.mxu0
      %v2683 = vadd.f32 %v2138, %v2682
      %v2684 = vpop.f32.mrf.mxu0
      %2685 = vmatprep.mubr.bf16.mxu0 0
      %2686 = vmatmul.mubr.bf16.gmra.mxu0 %v1332
      %v2687 = vpop.f32.mrf.mxu0
      %v2688 = vadd.f32 %v2143, %v2687
      %v2689 = vpop.f32.mrf.mxu0
      %v2690 = vpop.f32.mrf.mxu0
      %v2691 = vadd.f32 %v2146, %v2690
      %v2692 = vpop.f32.mrf.mxu0
      %2693 = vmatprep.mubr.bf16.mxu0 0
      %2694 = vmatmul.mubr.bf16.gmra.mxu0 %v1335
      %v2695 = vpop.f32.mrf.mxu0
      %v2696 = vadd.f32 %v2151, %v2695
      %v2697 = vpop.f32.mrf.mxu0
      %v2698 = vpop.f32.mrf.mxu0
      %v2699 = vadd.f32 %v2154, %v2698
      %v2700 = vpop.f32.mrf.mxu0
      %2701 = vmatprep.mubr.bf16.mxu0 0
      %2702 = vmatmul.mubr.bf16.gmra.mxu0 %v1338
      %v2703 = vpop.f32.mrf.mxu0
      %v2704 = vadd.f32 %v2159, %v2703
      %v2705 = vpop.f32.mrf.mxu0
      %v2706 = vpop.f32.mrf.mxu0
      %v2707 = vadd.f32 %v2162, %v2706
      %v2708 = vpop.f32.mrf.mxu0
      %2709 = vmatprep.mubr.bf16.mxu0 0
      %2710 = vmatmul.mubr.bf16.gmra.mxu0 %v1341
      %v2711 = vpop.f32.mrf.mxu0
      %v2712 = vadd.f32 %v2167, %v2711
      %v2713 = vpop.f32.mrf.mxu0
      %v2714 = vpop.f32.mrf.mxu0
      %v2715 = vadd.f32 %v2170, %v2714
      %v2716 = vpop.f32.mrf.mxu0
      %2717 = vmatprep.mubr.bf16.mxu0 0
      %2718 = vmatmul.mubr.bf16.gmra.mxu0 %v1344
      %v2719 = vpop.f32.mrf.mxu0
      %v2720 = vadd.f32 %v2175, %v2719
      %v2721 = vpop.f32.mrf.mxu0
      %v2722 = vpop.f32.mrf.mxu0
      %v2723 = vadd.f32 %v2178, %v2722
      %v2724 = vpop.f32.mrf.mxu0
      %2725 = vmatprep.mubr.bf16.mxu0 0
      %2726 = vmatmul.mubr.bf16.gmra.mxu0 %v1347
      %v2727 = vpop.f32.mrf.mxu0
      %v2728 = vadd.f32 %v2183, %v2727
      %v2729 = vpop.f32.mrf.mxu0
      %v2730 = vpop.f32.mrf.mxu0
      %v2731 = vadd.f32 %v2186, %v2730
      %v2732 = vpop.f32.mrf.mxu0
      %2733 = vmatprep.mubr.bf16.mxu0 0
      %2734 = vmatmul.mubr.bf16.gmra.mxu0 %v1350
      %v2735 = vpop.f32.mrf.mxu0
      %v2736 = vadd.f32 %v2191, %v2735
      %v2737 = vpop.f32.mrf.mxu0
      %v2738 = vpop.f32.mrf.mxu0
      %v2739 = vadd.f32 %v2194, %v2738
      %v2740 = vpop.f32.mrf.mxu0
      %2741 = vmatprep.mubr.bf16.mxu0 0
      %2742 = vmatmul.mubr.bf16.gmra.mxu0 %v1353
      %v2743 = vpop.f32.mrf.mxu0
      %v2744 = vadd.f32 %v2199, %v2743
      %v2745 = vpop.f32.mrf.mxu0
      %v2746 = vpop.f32.mrf.mxu0
      %v2747 = vadd.f32 %v2202, %v2746
      %v2748 = vpop.f32.mrf.mxu0
      %2749 = vmatprep.mubr.bf16.mxu0 0
      %2750 = vmatmul.mubr.bf16.gmra.mxu0 %v1356
      %v2751 = vpop.f32.mrf.mxu0
      %v2752 = vadd.f32 %v2207, %v2751
      %v2753 = vpop.f32.mrf.mxu0
      %v2754 = vpop.f32.mrf.mxu0
      %v2755 = vadd.f32 %v2210, %v2754
      %v2756 = vpop.f32.mrf.mxu0
      %2757 = vmatprep.mubr.bf16.mxu0 0
      %2758 = vmatmul.mubr.bf16.gmra.mxu0 %v1359
      %v2759 = vpop.f32.mrf.mxu0
      %v2760 = vadd.f32 %v2215, %v2759
      %v2761 = vpop.f32.mrf.mxu0
      %v2762 = vpop.f32.mrf.mxu0
      %v2763 = vadd.f32 %v2218, %v2762
      %v2764 = vpop.f32.mrf.mxu0
      %2765 = vmatprep.mubr.bf16.mxu0 0
      %2766 = vmatmul.mubr.bf16.gmra.mxu0 %v1362
      %v2767 = vpop.f32.mrf.mxu0
      %v2768 = vadd.f32 %v2223, %v2767
      %v2769 = vpop.f32.mrf.mxu0
      %v2770 = vpop.f32.mrf.mxu0
      %v2771 = vadd.f32 %v2226, %v2770
      %v2772 = vpop.f32.mrf.mxu0
      %2773 = vmatprep.mubr.bf16.mxu0 0
      %2774 = vmatmul.mubr.bf16.gmra.mxu0 %v1365
      %v2775 = vpop.f32.mrf.mxu0
      %v2776 = vadd.f32 %v2231, %v2775
      %v2777 = vpop.f32.mrf.mxu0
      %v2778 = vpop.f32.mrf.mxu0
      %v2779 = vadd.f32 %v2234, %v2778
      %v2780 = vpop.f32.mrf.mxu0
      %2781 = vmatprep.mubr.bf16.mxu0 0
      %2782 = vmatmul.mubr.bf16.gmra.mxu0 %v1368
      %v2783 = vpop.f32.mrf.mxu0
      %v2784 = vadd.f32 %v2239, %v2783
      %v2785 = vpop.f32.mrf.mxu0
      %v2786 = vpop.f32.mrf.mxu0
      %v2787 = vadd.f32 %v2242, %v2786
      %v2788 = vpop.f32.mrf.mxu0
      %2789 = vmatprep.mubr.bf16.mxu0 0
      %2790 = vmatmul.mubr.bf16.gmra.mxu0 %v1371
      %v2791 = vpop.f32.mrf.mxu0
      %v2792 = vadd.f32 %v2247, %v2791
      %v2793 = vpop.f32.mrf.mxu0
      %v2794 = vpop.f32.mrf.mxu0
      %v2795 = vadd.f32 %v2250, %v2794
      %v2796 = vpop.f32.mrf.mxu0
      %2797 = vdwg.mxu0
      %vm2798 = vcmp.ge.f32.partialorder %v2288, 0.0
      %vm2799 = vcmp.ge.f32.partialorder %v2291, 0.0
      %vm2800 = vcmp.ge.f32.partialorder %v2296, 0.0
      %vm2801 = vcmp.ge.f32.partialorder %v2299, 0.0
      %vm2802 = vcmp.ge.f32.partialorder %v2304, 0.0
      %vm2803 = vcmp.ge.f32.partialorder %v2307, 0.0
      %vm2804 = vcmp.ge.f32.partialorder %v2312, 0.0
      %vm2805 = vcmp.ge.f32.partialorder %v2315, 0.0
      %vm2806 = vcmp.ge.f32.partialorder %v2320, 0.0
      %vm2807 = vcmp.ge.f32.partialorder %v2323, 0.0
      %vm2808 = vcmp.ge.f32.partialorder %v2328, 0.0
      %vm2809 = vcmp.ge.f32.partialorder %v2331, 0.0
      %vm2810 = vcmp.ge.f32.partialorder %v2336, 0.0
      %vm2811 = vcmp.ge.f32.partialorder %v2339, 0.0
      %vm2812 = vcmp.ge.f32.partialorder %v2344, 0.0
      %vm2813 = vcmp.ge.f32.partialorder %v2347, 0.0
      %vm2814 = vcmp.ge.f32.partialorder %v2352, 0.0
      %vm2815 = vcmp.ge.f32.partialorder %v2355, 0.0
      %vm2816 = vcmp.ge.f32.partialorder %v2360, 0.0
      %vm2817 = vcmp.ge.f32.partialorder %v2363, 0.0
      %vm2818 = vcmp.ge.f32.partialorder %v2368, 0.0
      %vm2819 = vcmp.ge.f32.partialorder %v2371, 0.0
      %vm2820 = vcmp.ge.f32.partialorder %v2376, 0.0
      %vm2821 = vcmp.ge.f32.partialorder %v2379, 0.0
      %vm2822 = vcmp.ge.f32.partialorder %v2384, 0.0
      %vm2823 = vcmp.ge.f32.partialorder %v2387, 0.0
      %vm2824 = vcmp.ge.f32.partialorder %v2392, 0.0
      %vm2825 = vcmp.ge.f32.partialorder %v2395, 0.0
      %vm2826 = vcmp.ge.f32.partialorder %v2400, 0.0
      %vm2827 = vcmp.ge.f32.partialorder %v2403, 0.0
      %vm2828 = vcmp.ge.f32.partialorder %v2408, 0.0
      %vm2829 = vcmp.ge.f32.partialorder %v2411, 0.0
      %vm2830 = vcmp.ge.f32.partialorder %v2416, 0.0
      %vm2831 = vcmp.ge.f32.partialorder %v2419, 0.0
      %vm2832 = vcmp.ge.f32.partialorder %v2424, 0.0
      %vm2833 = vcmp.ge.f32.partialorder %v2427, 0.0
      %vm2834 = vcmp.ge.f32.partialorder %v2432, 0.0
      %vm2835 = vcmp.ge.f32.partialorder %v2435, 0.0
      %vm2836 = vcmp.ge.f32.partialorder %v2440, 0.0
      %vm2837 = vcmp.ge.f32.partialorder %v2443, 0.0
      %vm2838 = vcmp.ge.f32.partialorder %v2448, 0.0
      %vm2839 = vcmp.ge.f32.partialorder %v2451, 0.0
      %vm2840 = vcmp.ge.f32.partialorder %v2456, 0.0
      %vm2841 = vcmp.ge.f32.partialorder %v2459, 0.0
      %vm2842 = vcmp.ge.f32.partialorder %v2464, 0.0
      %vm2843 = vcmp.ge.f32.partialorder %v2467, 0.0
      %vm2844 = vcmp.ge.f32.partialorder %v2472, 0.0
      %vm2845 = vcmp.ge.f32.partialorder %v2475, 0.0
      %vm2846 = vcmp.ge.f32.partialorder %v2480, 0.0
      %vm2847 = vcmp.ge.f32.partialorder %v2483, 0.0
      %vm2848 = vcmp.ge.f32.partialorder %v2488, 0.0
      %vm2849 = vcmp.ge.f32.partialorder %v2491, 0.0
      %vm2850 = vcmp.ge.f32.partialorder %v2496, 0.0
      %vm2851 = vcmp.ge.f32.partialorder %v2499, 0.0
      %vm2852 = vcmp.ge.f32.partialorder %v2504, 0.0
      %vm2853 = vcmp.ge.f32.partialorder %v2507, 0.0
      %vm2854 = vcmp.ge.f32.partialorder %v2512, 0.0
      %vm2855 = vcmp.ge.f32.partialorder %v2515, 0.0
      %vm2856 = vcmp.ge.f32.partialorder %v2520, 0.0
      %vm2857 = vcmp.ge.f32.partialorder %v2523, 0.0
      %vm2858 = vcmp.ge.f32.partialorder %v2528, 0.0
      %vm2859 = vcmp.ge.f32.partialorder %v2531, 0.0
      %vm2860 = vcmp.ge.f32.partialorder %v2536, 0.0
      %vm2861 = vcmp.ge.f32.partialorder %v2539, 0.0
      %vm2862 = vcmp.ge.f32.partialorder %v2544, 0.0
      %vm2863 = vcmp.ge.f32.partialorder %v2547, 0.0
      %vm2864 = vcmp.ge.f32.partialorder %v2552, 0.0
      %vm2865 = vcmp.ge.f32.partialorder %v2555, 0.0
      %vm2866 = vcmp.ge.f32.partialorder %v2560, 0.0
      %vm2867 = vcmp.ge.f32.partialorder %v2563, 0.0
      %vm2868 = vcmp.ge.f32.partialorder %v2568, 0.0
      %vm2869 = vcmp.ge.f32.partialorder %v2571, 0.0
      %vm2870 = vcmp.ge.f32.partialorder %v2576, 0.0
      %vm2871 = vcmp.ge.f32.partialorder %v2579, 0.0
      %vm2872 = vcmp.ge.f32.partialorder %v2584, 0.0
      %vm2873 = vcmp.ge.f32.partialorder %v2587, 0.0
      %vm2874 = vcmp.ge.f32.partialorder %v2592, 0.0
      %vm2875 = vcmp.ge.f32.partialorder %v2595, 0.0
      %vm2876 = vcmp.ge.f32.partialorder %v2600, 0.0
      %vm2877 = vcmp.ge.f32.partialorder %v2603, 0.0
      %vm2878 = vcmp.ge.f32.partialorder %v2608, 0.0
      %vm2879 = vcmp.ge.f32.partialorder %v2611, 0.0
      %vm2880 = vcmp.ge.f32.partialorder %v2616, 0.0
      %vm2881 = vcmp.ge.f32.partialorder %v2619, 0.0
      %vm2882 = vcmp.ge.f32.partialorder %v2624, 0.0
      %vm2883 = vcmp.ge.f32.partialorder %v2627, 0.0
      %vm2884 = vcmp.ge.f32.partialorder %v2632, 0.0
      %vm2885 = vcmp.ge.f32.partialorder %v2635, 0.0
      %vm2886 = vcmp.ge.f32.partialorder %v2640, 0.0
      %vm2887 = vcmp.ge.f32.partialorder %v2643, 0.0
      %vm2888 = vcmp.ge.f32.partialorder %v2648, 0.0
      %vm2889 = vcmp.ge.f32.partialorder %v2651, 0.0
      %vm2890 = vcmp.ge.f32.partialorder %v2656, 0.0
      %vm2891 = vcmp.ge.f32.partialorder %v2659, 0.0
      %vm2892 = vcmp.ge.f32.partialorder %v2664, 0.0
      %vm2893 = vcmp.ge.f32.partialorder %v2667, 0.0
      %vm2894 = vcmp.ge.f32.partialorder %v2672, 0.0
      %vm2895 = vcmp.ge.f32.partialorder %v2675, 0.0
      %vm2896 = vcmp.ge.f32.partialorder %v2680, 0.0
      %vm2897 = vcmp.ge.f32.partialorder %v2683, 0.0
      %vm2898 = vcmp.ge.f32.partialorder %v2688, 0.0
      %vm2899 = vcmp.ge.f32.partialorder %v2691, 0.0
      %vm2900 = vcmp.ge.f32.partialorder %v2696, 0.0
      %vm2901 = vcmp.ge.f32.partialorder %v2699, 0.0
      %vm2902 = vcmp.ge.f32.partialorder %v2704, 0.0
      %vm2903 = vcmp.ge.f32.partialorder %v2707, 0.0
      %vm2904 = vcmp.ge.f32.partialorder %v2712, 0.0
      %vm2905 = vcmp.ge.f32.partialorder %v2715, 0.0
      %vm2906 = vcmp.ge.f32.partialorder %v2720, 0.0
      %vm2907 = vcmp.ge.f32.partialorder %v2723, 0.0
      %vm2908 = vcmp.ge.f32.partialorder %v2728, 0.0
      %vm2909 = vcmp.ge.f32.partialorder %v2731, 0.0
      %vm2910 = vcmp.ge.f32.partialorder %v2736, 0.0
      %vm2911 = vcmp.ge.f32.partialorder %v2739, 0.0
      %vm2912 = vcmp.ge.f32.partialorder %v2744, 0.0
      %vm2913 = vcmp.ge.f32.partialorder %v2747, 0.0
      %vm2914 = vcmp.ge.f32.partialorder %v2752, 0.0
      %vm2915 = vcmp.ge.f32.partialorder %v2755, 0.0
      %vm2916 = vcmp.ge.f32.partialorder %v2760, 0.0
      %vm2917 = vcmp.ge.f32.partialorder %v2763, 0.0
      %vm2918 = vcmp.ge.f32.partialorder %v2768, 0.0
      %vm2919 = vcmp.ge.f32.partialorder %v2771, 0.0
      %vm2920 = vcmp.ge.f32.partialorder %v2776, 0.0
      %vm2921 = vcmp.ge.f32.partialorder %v2779, 0.0
      %vm2922 = vcmp.ge.f32.partialorder %v2784, 0.0
      %vm2923 = vcmp.ge.f32.partialorder %v2787, 0.0
      %vm2924 = vcmp.ge.f32.partialorder %v2792, 0.0
      %vm2925 = vcmp.ge.f32.partialorder %v2795, 0.0
      %v2926 = vmul.f32 %v2288, 0.2
      %v2927 = vmul.f32 %v2291, 0.2
      %v2928 = vmul.f32 %v2296, 0.2
      %v2929 = vmul.f32 %v2299, 0.2
      %v2930 = vmul.f32 %v2304, 0.2
      %v2931 = vmul.f32 %v2307, 0.2
      %v2932 = vmul.f32 %v2312, 0.2
      %v2933 = vmul.f32 %v2315, 0.2
      %v2934 = vmul.f32 %v2320, 0.2
      %v2935 = vmul.f32 %v2323, 0.2
      %v2936 = vmul.f32 %v2328, 0.2
      %v2937 = vmul.f32 %v2331, 0.2
      %v2938 = vmul.f32 %v2336, 0.2
      %v2939 = vmul.f32 %v2339, 0.2
      %v2940 = vmul.f32 %v2344, 0.2
      %v2941 = vmul.f32 %v2347, 0.2
      %v2942 = vmul.f32 %v2352, 0.2
      %v2943 = vmul.f32 %v2355, 0.2
      %v2944 = vmul.f32 %v2360, 0.2
      %v2945 = vmul.f32 %v2363, 0.2
      %v2946 = vmul.f32 %v2368, 0.2
      %v2947 = vmul.f32 %v2371, 0.2
      %v2948 = vmul.f32 %v2376, 0.2
      %v2949 = vmul.f32 %v2379, 0.2
      %v2950 = vmul.f32 %v2384, 0.2
      %v2951 = vmul.f32 %v2387, 0.2
      %v2952 = vmul.f32 %v2392, 0.2
      %v2953 = vmul.f32 %v2395, 0.2
      %v2954 = vmul.f32 %v2400, 0.2
      %v2955 = vmul.f32 %v2403, 0.2
      %v2956 = vmul.f32 %v2408, 0.2
      %v2957 = vmul.f32 %v2411, 0.2
      %v2958 = vmul.f32 %v2416, 0.2
      %v2959 = vmul.f32 %v2419, 0.2
      %v2960 = vmul.f32 %v2424, 0.2
      %v2961 = vmul.f32 %v2427, 0.2
      %v2962 = vmul.f32 %v2432, 0.2
      %v2963 = vmul.f32 %v2435, 0.2
      %v2964 = vmul.f32 %v2440, 0.2
      %v2965 = vmul.f32 %v2443, 0.2
      %v2966 = vmul.f32 %v2448, 0.2
      %v2967 = vmul.f32 %v2451, 0.2
      %v2968 = vmul.f32 %v2456, 0.2
      %v2969 = vmul.f32 %v2459, 0.2
      %v2970 = vmul.f32 %v2464, 0.2
      %v2971 = vmul.f32 %v2467, 0.2
      %v2972 = vmul.f32 %v2472, 0.2
      %v2973 = vmul.f32 %v2475, 0.2
      %v2974 = vmul.f32 %v2480, 0.2
      %v2975 = vmul.f32 %v2483, 0.2
      %v2976 = vmul.f32 %v2488, 0.2
      %v2977 = vmul.f32 %v2491, 0.2
      %v2978 = vmul.f32 %v2496, 0.2
      %v2979 = vmul.f32 %v2499, 0.2
      %v2980 = vmul.f32 %v2504, 0.2
      %v2981 = vmul.f32 %v2507, 0.2
      %v2982 = vmul.f32 %v2512, 0.2
      %v2983 = vmul.f32 %v2515, 0.2
      %v2984 = vmul.f32 %v2520, 0.2
      %v2985 = vmul.f32 %v2523, 0.2
      %v2986 = vmul.f32 %v2528, 0.2
      %v2987 = vmul.f32 %v2531, 0.2
      %v2988 = vmul.f32 %v2536, 0.2
      %v2989 = vmul.f32 %v2539, 0.2
      %v2990 = vmul.f32 %v2544, 0.2
      %v2991 = vmul.f32 %v2547, 0.2
      %v2992 = vmul.f32 %v2552, 0.2
      %v2993 = vmul.f32 %v2555, 0.2
      %v2994 = vmul.f32 %v2560, 0.2
      %v2995 = vmul.f32 %v2563, 0.2
      %v2996 = vmul.f32 %v2568, 0.2
      %v2997 = vmul.f32 %v2571, 0.2
      %v2998 = vmul.f32 %v2576, 0.2
      %v2999 = vmul.f32 %v2579, 0.2
      %v3000 = vmul.f32 %v2584, 0.2
      %v3001 = vmul.f32 %v2587, 0.2
      %v3002 = vmul.f32 %v2592, 0.2
      %v3003 = vmul.f32 %v2595, 0.2
      %v3004 = vmul.f32 %v2600, 0.2
      %v3005 = vmul.f32 %v2603, 0.2
      %v3006 = vmul.f32 %v2608, 0.2
      %v3007 = vmul.f32 %v2611, 0.2
      %v3008 = vmul.f32 %v2616, 0.2
      %v3009 = vmul.f32 %v2619, 0.2
      %v3010 = vmul.f32 %v2624, 0.2
      %v3011 = vmul.f32 %v2627, 0.2
      %v3012 = vmul.f32 %v2632, 0.2
      %v3013 = vmul.f32 %v2635, 0.2
      %v3014 = vmul.f32 %v2640, 0.2
      %v3015 = vmul.f32 %v2643, 0.2
      %v3016 = vmul.f32 %v2648, 0.2
      %v3017 = vmul.f32 %v2651, 0.2
      %v3018 = vmul.f32 %v2656, 0.2
      %v3019 = vmul.f32 %v2659, 0.2
      %v3020 = vmul.f32 %v2664, 0.2
      %v3021 = vmul.f32 %v2667, 0.2
      %v3022 = vmul.f32 %v2672, 0.2
      %v3023 = vmul.f32 %v2675, 0.2
      %v3024 = vmul.f32 %v2680, 0.2
      %v3025 = vmul.f32 %v2683, 0.2
      %v3026 = vmul.f32 %v2688, 0.2
      %v3027 = vmul.f32 %v2691, 0.2
      %v3028 = vmul.f32 %v2696, 0.2
      %v3029 = vmul.f32 %v2699, 0.2
      %v3030 = vmul.f32 %v2704, 0.2
      %v3031 = vmul.f32 %v2707, 0.2
      %v3032 = vmul.f32 %v2712, 0.2
      %v3033 = vmul.f32 %v2715, 0.2
      %v3034 = vmul.f32 %v2720, 0.2
      %v3035 = vmul.f32 %v2723, 0.2
      %v3036 = vmul.f32 %v2728, 0.2
      %v3037 = vmul.f32 %v2731, 0.2
      %v3038 = vmul.f32 %v2736, 0.2
      %v3039 = vmul.f32 %v2739, 0.2
      %v3040 = vmul.f32 %v2744, 0.2
      %v3041 = vmul.f32 %v2747, 0.2
      %v3042 = vmul.f32 %v2752, 0.2
      %v3043 = vmul.f32 %v2755, 0.2
      %v3044 = vmul.f32 %v2760, 0.2
      %v3045 = vmul.f32 %v2763, 0.2
      %v3046 = vmul.f32 %v2768, 0.2
      %v3047 = vmul.f32 %v2771, 0.2
      %v3048 = vmul.f32 %v2776, 0.2
      %v3049 = vmul.f32 %v2779, 0.2
      %v3050 = vmul.f32 %v2784, 0.2
      %v3051 = vmul.f32 %v2787, 0.2
      %v3052 = vmul.f32 %v2792, 0.2
      %v3053 = vmul.f32 %v2795, 0.2
      %v3054 = vsel %vm2798, %v2288, %v2926
      %v3055 = vsel %vm2799, %v2291, %v2927
      %v3056 = vsel %vm2800, %v2296, %v2928
      %v3057 = vsel %vm2801, %v2299, %v2929
      %v3058 = vsel %vm2802, %v2304, %v2930
      %v3059 = vsel %vm2803, %v2307, %v2931
      %v3060 = vsel %vm2804, %v2312, %v2932
      %v3061 = vsel %vm2805, %v2315, %v2933
      %v3062 = vsel %vm2806, %v2320, %v2934
      %v3063 = vsel %vm2807, %v2323, %v2935
      %v3064 = vsel %vm2808, %v2328, %v2936
      %v3065 = vsel %vm2809, %v2331, %v2937
      %v3066 = vsel %vm2810, %v2336, %v2938
      %v3067 = vsel %vm2811, %v2339, %v2939
      %v3068 = vsel %vm2812, %v2344, %v2940
      %v3069 = vsel %vm2813, %v2347, %v2941
      %v3070 = vsel %vm2814, %v2352, %v2942
      %v3071 = vsel %vm2815, %v2355, %v2943
      %v3072 = vsel %vm2816, %v2360, %v2944
      %v3073 = vsel %vm2817, %v2363, %v2945
      %v3074 = vsel %vm2818, %v2368, %v2946
      %v3075 = vsel %vm2819, %v2371, %v2947
      %v3076 = vsel %vm2820, %v2376, %v2948
      %v3077 = vsel %vm2821, %v2379, %v2949
      %v3078 = vsel %vm2822, %v2384, %v2950
      %v3079 = vsel %vm2823, %v2387, %v2951
      %v3080 = vsel %vm2824, %v2392, %v2952
      %v3081 = vsel %vm2825, %v2395, %v2953
      %v3082 = vsel %vm2826, %v2400, %v2954
      %v3083 = vsel %vm2827, %v2403, %v2955
      %v3084 = vsel %vm2828, %v2408, %v2956
      %v3085 = vsel %vm2829, %v2411, %v2957
      %v3086 = vsel %vm2830, %v2416, %v2958
      %v3087 = vsel %vm2831, %v2419, %v2959
      %v3088 = vsel %vm2832, %v2424, %v2960
      %v3089 = vsel %vm2833, %v2427, %v2961
      %v3090 = vsel %vm2834, %v2432, %v2962
      %v3091 = vsel %vm2835, %v2435, %v2963
      %v3092 = vsel %vm2836, %v2440, %v2964
      %v3093 = vsel %vm2837, %v2443, %v2965
      %v3094 = vsel %vm2838, %v2448, %v2966
      %v3095 = vsel %vm2839, %v2451, %v2967
      %v3096 = vsel %vm2840, %v2456, %v2968
      %v3097 = vsel %vm2841, %v2459, %v2969
      %v3098 = vsel %vm2842, %v2464, %v2970
      %v3099 = vsel %vm2843, %v2467, %v2971
      %v3100 = vsel %vm2844, %v2472, %v2972
      %v3101 = vsel %vm2845, %v2475, %v2973
      %v3102 = vsel %vm2846, %v2480, %v2974
      %v3103 = vsel %vm2847, %v2483, %v2975
      %v3104 = vsel %vm2848, %v2488, %v2976
      %v3105 = vsel %vm2849, %v2491, %v2977
      %v3106 = vsel %vm2850, %v2496, %v2978
      %v3107 = vsel %vm2851, %v2499, %v2979
      %v3108 = vsel %vm2852, %v2504, %v2980
      %v3109 = vsel %vm2853, %v2507, %v2981
      %v3110 = vsel %vm2854, %v2512, %v2982
      %v3111 = vsel %vm2855, %v2515, %v2983
      %v3112 = vsel %vm2856, %v2520, %v2984
      %v3113 = vsel %vm2857, %v2523, %v2985
      %v3114 = vsel %vm2858, %v2528, %v2986
      %v3115 = vsel %vm2859, %v2531, %v2987
      %v3116 = vsel %vm2860, %v2536, %v2988
      %v3117 = vsel %vm2861, %v2539, %v2989
      %v3118 = vsel %vm2862, %v2544, %v2990
      %v3119 = vsel %vm2863, %v2547, %v2991
      %v3120 = vsel %vm2864, %v2552, %v2992
      %v3121 = vsel %vm2865, %v2555, %v2993
      %v3122 = vsel %vm2866, %v2560, %v2994
      %v3123 = vsel %vm2867, %v2563, %v2995
      %v3124 = vsel %vm2868, %v2568, %v2996
      %v3125 = vsel %vm2869, %v2571, %v2997
      %v3126 = vsel %vm2870, %v2576, %v2998
      %v3127 = vsel %vm2871, %v2579, %v2999
      %v3128 = vsel %vm2872, %v2584, %v3000
      %v3129 = vsel %vm2873, %v2587, %v3001
      %v3130 = vsel %vm2874, %v2592, %v3002
      %v3131 = vsel %vm2875, %v2595, %v3003
      %v3132 = vsel %vm2876, %v2600, %v3004
      %v3133 = vsel %vm2877, %v2603, %v3005
      %v3134 = vsel %vm2878, %v2608, %v3006
      %v3135 = vsel %vm2879, %v2611, %v3007
      %v3136 = vsel %vm2880, %v2616, %v3008
      %v3137 = vsel %vm2881, %v2619, %v3009
      %v3138 = vsel %vm2882, %v2624, %v3010
      %v3139 = vsel %vm2883, %v2627, %v3011
      %v3140 = vsel %vm2884, %v2632, %v3012
      %v3141 = vsel %vm2885, %v2635, %v3013
      %v3142 = vsel %vm2886, %v2640, %v3014
      %v3143 = vsel %vm2887, %v2643, %v3015
      %v3144 = vsel %vm2888, %v2648, %v3016
      %v3145 = vsel %vm2889, %v2651, %v3017
      %v3146 = vsel %vm2890, %v2656, %v3018
      %v3147 = vsel %vm2891, %v2659, %v3019
      %v3148 = vsel %vm2892, %v2664, %v3020
      %v3149 = vsel %vm2893, %v2667, %v3021
      %v3150 = vsel %vm2894, %v2672, %v3022
      %v3151 = vsel %vm2895, %v2675, %v3023
      %v3152 = vsel %vm2896, %v2680, %v3024
      %v3153 = vsel %vm2897, %v2683, %v3025
      %v3154 = vsel %vm2898, %v2688, %v3026
      %v3155 = vsel %vm2899, %v2691, %v3027
      %v3156 = vsel %vm2900, %v2696, %v3028
      %v3157 = vsel %vm2901, %v2699, %v3029
      %v3158 = vsel %vm2902, %v2704, %v3030
      %v3159 = vsel %vm2903, %v2707, %v3031
      %v3160 = vsel %vm2904, %v2712, %v3032
      %v3161 = vsel %vm2905, %v2715, %v3033
      %v3162 = vsel %vm2906, %v2720, %v3034
      %v3163 = vsel %vm2907, %v2723, %v3035
      %v3164 = vsel %vm2908, %v2728, %v3036
      %v3165 = vsel %vm2909, %v2731, %v3037
      %v3166 = vsel %vm2910, %v2736, %v3038
      %v3167 = vsel %vm2911, %v2739, %v3039
      %v3168 = vsel %vm2912, %v2744, %v3040
      %v3169 = vsel %vm2913, %v2747, %v3041
      %v3170 = vsel %vm2914, %v2752, %v3042
      %v3171 = vsel %vm2915, %v2755, %v3043
      %v3172 = vsel %vm2916, %v2760, %v3044
      %v3173 = vsel %vm2917, %v2763, %v3045
      %v3174 = vsel %vm2918, %v2768, %v3046
      %v3175 = vsel %vm2919, %v2771, %v3047
      %v3176 = vsel %vm2920, %v2776, %v3048
      %v3177 = vsel %vm2921, %v2779, %v3049
      %v3178 = vsel %vm2922, %v2784, %v3050
      %v3179 = vsel %vm2923, %v2787, %v3051
      %v3180 = vsel %vm2924, %v2792, %v3052
      %v3181 = vsel %vm2925, %v2795, %v3053
      %v3182 = vpack.c.bf16 %v3055, %v3054
      %v3183 = vpack.c.bf16 %v3057, %v3056
      %v3184 = vpack.c.bf16 %v3059, %v3058
      %v3185 = vpack.c.bf16 %v3061, %v3060
      %v3186 = vpack.c.bf16 %v3063, %v3062
      %v3187 = vpack.c.bf16 %v3065, %v3064
      %v3188 = vpack.c.bf16 %v3067, %v3066
      %v3189 = vpack.c.bf16 %v3069, %v3068
      %v3190 = vpack.c.bf16 %v3071, %v3070
      %v3191 = vpack.c.bf16 %v3073, %v3072
      %v3192 = vpack.c.bf16 %v3075, %v3074
      %v3193 = vpack.c.bf16 %v3077, %v3076
      %v3194 = vpack.c.bf16 %v3079, %v3078
      %v3195 = vpack.c.bf16 %v3081, %v3080
      %v3196 = vpack.c.bf16 %v3083, %v3082
      %v3197 = vpack.c.bf16 %v3085, %v3084
      %v3198 = vpack.c.bf16 %v3087, %v3086
      %v3199 = vpack.c.bf16 %v3089, %v3088
      %v3200 = vpack.c.bf16 %v3091, %v3090
      %v3201 = vpack.c.bf16 %v3093, %v3092
      %v3202 = vpack.c.bf16 %v3095, %v3094
      %v3203 = vpack.c.bf16 %v3097, %v3096
      %v3204 = vpack.c.bf16 %v3099, %v3098
      %v3205 = vpack.c.bf16 %v3101, %v3100
      %v3206 = vpack.c.bf16 %v3103, %v3102
      %v3207 = vpack.c.bf16 %v3105, %v3104
      %v3208 = vpack.c.bf16 %v3107, %v3106
      %v3209 = vpack.c.bf16 %v3109, %v3108
      %v3210 = vpack.c.bf16 %v3111, %v3110
      %v3211 = vpack.c.bf16 %v3113, %v3112
      %v3212 = vpack.c.bf16 %v3115, %v3114
      %v3213 = vpack.c.bf16 %v3117, %v3116
      %v3214 = vpack.c.bf16 %v3119, %v3118
      %v3215 = vpack.c.bf16 %v3121, %v3120
      %v3216 = vpack.c.bf16 %v3123, %v3122
      %v3217 = vpack.c.bf16 %v3125, %v3124
      %v3218 = vpack.c.bf16 %v3127, %v3126
      %v3219 = vpack.c.bf16 %v3129, %v3128
      %v3220 = vpack.c.bf16 %v3131, %v3130
      %v3221 = vpack.c.bf16 %v3133, %v3132
      %v3222 = vpack.c.bf16 %v3135, %v3134
      %v3223 = vpack.c.bf16 %v3137, %v3136
      %v3224 = vpack.c.bf16 %v3139, %v3138
      %v3225 = vpack.c.bf16 %v3141, %v3140
      %v3226 = vpack.c.bf16 %v3143, %v3142
      %v3227 = vpack.c.bf16 %v3145, %v3144
      %v3228 = vpack.c.bf16 %v3147, %v3146
      %v3229 = vpack.c.bf16 %v3149, %v3148
      %v3230 = vpack.c.bf16 %v3151, %v3150
      %v3231 = vpack.c.bf16 %v3153, %v3152
      %v3232 = vpack.c.bf16 %v3155, %v3154
      %v3233 = vpack.c.bf16 %v3157, %v3156
      %v3234 = vpack.c.bf16 %v3159, %v3158
      %v3235 = vpack.c.bf16 %v3161, %v3160
      %v3236 = vpack.c.bf16 %v3163, %v3162
      %v3237 = vpack.c.bf16 %v3165, %v3164
      %v3238 = vpack.c.bf16 %v3167, %v3166
      %v3239 = vpack.c.bf16 %v3169, %v3168
      %v3240 = vpack.c.bf16 %v3171, %v3170
      %v3241 = vpack.c.bf16 %v3173, %v3172
      %v3242 = vpack.c.bf16 %v3175, %v3174
      %v3243 = vpack.c.bf16 %v3177, %v3176
      %v3244 = vpack.c.bf16 %v3179, %v3178
      %v3245 = vpack.c.bf16 %v3181, %v3180
      %v3310 = vunpack.c.l.b16 %v3182
      %v3311 = vunpack.c.h.b16 %v3182
      %v3312 = vunpack.c.l.b16 %v3183
      %v3313 = vunpack.c.h.b16 %v3183
      %v3314 = vunpack.c.l.b16 %v3184
      %v3315 = vunpack.c.h.b16 %v3184
      %v3316 = vunpack.c.l.b16 %v3185
      %v3317 = vunpack.c.h.b16 %v3185
      %v3318 = vunpack.c.l.b16 %v3186
      %v3319 = vunpack.c.h.b16 %v3186
      %v3320 = vunpack.c.l.b16 %v3187
      %v3321 = vunpack.c.h.b16 %v3187
      %v3322 = vunpack.c.l.b16 %v3188
      %v3323 = vunpack.c.h.b16 %v3188
      %v3324 = vunpack.c.l.b16 %v3189
      %v3325 = vunpack.c.h.b16 %v3189
      %v3326 = vunpack.c.l.b16 %v3190
      %v3327 = vunpack.c.h.b16 %v3190
      %v3328 = vunpack.c.l.b16 %v3191
      %v3329 = vunpack.c.h.b16 %v3191
      %v3330 = vunpack.c.l.b16 %v3192
      %v3331 = vunpack.c.h.b16 %v3192
      %v3332 = vunpack.c.l.b16 %v3193
      %v3333 = vunpack.c.h.b16 %v3193
      %v3334 = vunpack.c.l.b16 %v3194
      %v3335 = vunpack.c.h.b16 %v3194
      %v3336 = vunpack.c.l.b16 %v3195
      %v3337 = vunpack.c.h.b16 %v3195
      %v3338 = vunpack.c.l.b16 %v3196
      %v3339 = vunpack.c.h.b16 %v3196
      %v3340 = vunpack.c.l.b16 %v3197
      %v3341 = vunpack.c.h.b16 %v3197
      %v3342 = vunpack.c.l.b16 %v3198
      %v3343 = vunpack.c.h.b16 %v3198
      %v3344 = vunpack.c.l.b16 %v3199
      %v3345 = vunpack.c.h.b16 %v3199
      %v3346 = vunpack.c.l.b16 %v3200
      %v3347 = vunpack.c.h.b16 %v3200
      %v3348 = vunpack.c.l.b16 %v3201
      %v3349 = vunpack.c.h.b16 %v3201
      %v3350 = vunpack.c.l.b16 %v3202
      %v3351 = vunpack.c.h.b16 %v3202
      %v3352 = vunpack.c.l.b16 %v3203
      %v3353 = vunpack.c.h.b16 %v3203
      %v3354 = vunpack.c.l.b16 %v3204
      %v3355 = vunpack.c.h.b16 %v3204
      %v3356 = vunpack.c.l.b16 %v3205
      %v3357 = vunpack.c.h.b16 %v3205
      %v3358 = vunpack.c.l.b16 %v3206
      %v3359 = vunpack.c.h.b16 %v3206
      %v3360 = vunpack.c.l.b16 %v3207
      %v3361 = vunpack.c.h.b16 %v3207
      %v3362 = vunpack.c.l.b16 %v3208
      %v3363 = vunpack.c.h.b16 %v3208
      %v3364 = vunpack.c.l.b16 %v3209
      %v3365 = vunpack.c.h.b16 %v3209
      %v3366 = vunpack.c.l.b16 %v3210
      %v3367 = vunpack.c.h.b16 %v3210
      %v3368 = vunpack.c.l.b16 %v3211
      %v3369 = vunpack.c.h.b16 %v3211
      %v3370 = vunpack.c.l.b16 %v3212
      %v3371 = vunpack.c.h.b16 %v3212
      %v3372 = vunpack.c.l.b16 %v3213
      %v3373 = vunpack.c.h.b16 %v3213
      %v3374 = vunpack.c.l.b16 %v3214
      %v3375 = vunpack.c.h.b16 %v3214
      %v3376 = vunpack.c.l.b16 %v3215
      %v3377 = vunpack.c.h.b16 %v3215
      %v3378 = vunpack.c.l.b16 %v3216
      %v3379 = vunpack.c.h.b16 %v3216
      %v3380 = vunpack.c.l.b16 %v3217
      %v3381 = vunpack.c.h.b16 %v3217
      %v3382 = vunpack.c.l.b16 %v3218
      %v3383 = vunpack.c.h.b16 %v3218
      %v3384 = vunpack.c.l.b16 %v3219
      %v3385 = vunpack.c.h.b16 %v3219
      %v3386 = vunpack.c.l.b16 %v3220
      %v3387 = vunpack.c.h.b16 %v3220
      %v3388 = vunpack.c.l.b16 %v3221
      %v3389 = vunpack.c.h.b16 %v3221
      %v3390 = vunpack.c.l.b16 %v3222
      %v3391 = vunpack.c.h.b16 %v3222
      %v3392 = vunpack.c.l.b16 %v3223
      %v3393 = vunpack.c.h.b16 %v3223
      %v3394 = vunpack.c.l.b16 %v3224
      %v3395 = vunpack.c.h.b16 %v3224
      %v3396 = vunpack.c.l.b16 %v3225
      %v3397 = vunpack.c.h.b16 %v3225
      %v3398 = vunpack.c.l.b16 %v3226
      %v3399 = vunpack.c.h.b16 %v3226
      %v3400 = vunpack.c.l.b16 %v3227
      %v3401 = vunpack.c.h.b16 %v3227
      %v3402 = vunpack.c.l.b16 %v3228
      %v3403 = vunpack.c.h.b16 %v3228
      %v3404 = vunpack.c.l.b16 %v3229
      %v3405 = vunpack.c.h.b16 %v3229
      %v3406 = vunpack.c.l.b16 %v3230
      %v3407 = vunpack.c.h.b16 %v3230
      %v3408 = vunpack.c.l.b16 %v3231
      %v3409 = vunpack.c.h.b16 %v3231
      %v3410 = vunpack.c.l.b16 %v3232
      %v3411 = vunpack.c.h.b16 %v3232
      %v3412 = vunpack.c.l.b16 %v3233
      %v3413 = vunpack.c.h.b16 %v3233
      %v3414 = vunpack.c.l.b16 %v3234
      %v3415 = vunpack.c.h.b16 %v3234
      %v3416 = vunpack.c.l.b16 %v3235
      %v3417 = vunpack.c.h.b16 %v3235
      %v3418 = vunpack.c.l.b16 %v3236
      %v3419 = vunpack.c.h.b16 %v3236
      %v3420 = vunpack.c.l.b16 %v3237
      %v3421 = vunpack.c.h.b16 %v3237
      %v3422 = vunpack.c.l.b16 %v3238
      %v3423 = vunpack.c.h.b16 %v3238
      %v3424 = vunpack.c.l.b16 %v3239
      %v3425 = vunpack.c.h.b16 %v3239
      %v3426 = vunpack.c.l.b16 %v3240
      %v3427 = vunpack.c.h.b16 %v3240
      %v3428 = vunpack.c.l.b16 %v3241
      %v3429 = vunpack.c.h.b16 %v3241
      %v3430 = vunpack.c.l.b16 %v3242
      %v3431 = vunpack.c.h.b16 %v3242
      %v3432 = vunpack.c.l.b16 %v3243
      %v3433 = vunpack.c.h.b16 %v3243
      %v3434 = vunpack.c.l.b16 %v3244
      %v3435 = vunpack.c.h.b16 %v3244
      %v3436 = vunpack.c.l.b16 %v3245
      %v3437 = vunpack.c.h.b16 %v3245
      %v3438 = vpack.c.b16 %v3310, %v3310
      %v3439 = vpack.c.b16 %v3311, %v3311
      %v3440 = vpack.c.b16 %v3312, %v3312
      %v3441 = vpack.c.b16 %v3313, %v3313
      %v3442 = vpack.c.b16 %v3314, %v3314
      %v3443 = vpack.c.b16 %v3315, %v3315
      %v3444 = vpack.c.b16 %v3316, %v3316
      %v3445 = vpack.c.b16 %v3317, %v3317
      %v3446 = vpack.c.b16 %v3318, %v3318
      %v3447 = vpack.c.b16 %v3319, %v3319
      %v3448 = vpack.c.b16 %v3320, %v3320
      %v3449 = vpack.c.b16 %v3321, %v3321
      %v3450 = vpack.c.b16 %v3322, %v3322
      %v3451 = vpack.c.b16 %v3323, %v3323
      %v3452 = vpack.c.b16 %v3324, %v3324
      %v3453 = vpack.c.b16 %v3325, %v3325
      %v3454 = vpack.c.b16 %v3326, %v3326
      %v3455 = vpack.c.b16 %v3327, %v3327
      %v3456 = vpack.c.b16 %v3328, %v3328
      %v3457 = vpack.c.b16 %v3329, %v3329
      %v3458 = vpack.c.b16 %v3330, %v3330
      %v3459 = vpack.c.b16 %v3331, %v3331
      %v3460 = vpack.c.b16 %v3332, %v3332
      %v3461 = vpack.c.b16 %v3333, %v3333
      %v3462 = vpack.c.b16 %v3334, %v3334
      %v3463 = vpack.c.b16 %v3335, %v3335
      %v3464 = vpack.c.b16 %v3336, %v3336
      %v3465 = vpack.c.b16 %v3337, %v3337
      %v3466 = vpack.c.b16 %v3338, %v3338
      %v3467 = vpack.c.b16 %v3339, %v3339
      %v3468 = vpack.c.b16 %v3340, %v3340
      %v3469 = vpack.c.b16 %v3341, %v3341
      %v3470 = vpack.c.b16 %v3342, %v3342
      %v3471 = vpack.c.b16 %v3343, %v3343
      %v3472 = vpack.c.b16 %v3344, %v3344
      %v3473 = vpack.c.b16 %v3345, %v3345
      %v3474 = vpack.c.b16 %v3346, %v3346
      %v3475 = vpack.c.b16 %v3347, %v3347
      %v3476 = vpack.c.b16 %v3348, %v3348
      %v3477 = vpack.c.b16 %v3349, %v3349
      %v3478 = vpack.c.b16 %v3350, %v3350
      %v3479 = vpack.c.b16 %v3351, %v3351
      %v3480 = vpack.c.b16 %v3352, %v3352
      %v3481 = vpack.c.b16 %v3353, %v3353
      %v3482 = vpack.c.b16 %v3354, %v3354
      %v3483 = vpack.c.b16 %v3355, %v3355
      %v3484 = vpack.c.b16 %v3356, %v3356
      %v3485 = vpack.c.b16 %v3357, %v3357
      %v3486 = vpack.c.b16 %v3358, %v3358
      %v3487 = vpack.c.b16 %v3359, %v3359
      %v3488 = vpack.c.b16 %v3360, %v3360
      %v3489 = vpack.c.b16 %v3361, %v3361
      %v3490 = vpack.c.b16 %v3362, %v3362
      %v3491 = vpack.c.b16 %v3363, %v3363
      %v3492 = vpack.c.b16 %v3364, %v3364
      %v3493 = vpack.c.b16 %v3365, %v3365
      %v3494 = vpack.c.b16 %v3366, %v3366
      %v3495 = vpack.c.b16 %v3367, %v3367
      %v3496 = vpack.c.b16 %v3368, %v3368
      %v3497 = vpack.c.b16 %v3369, %v3369
      %v3498 = vpack.c.b16 %v3370, %v3370
      %v3499 = vpack.c.b16 %v3371, %v3371
      %v3500 = vpack.c.b16 %v3372, %v3372
      %v3501 = vpack.c.b16 %v3373, %v3373
      %v3502 = vpack.c.b16 %v3374, %v3374
      %v3503 = vpack.c.b16 %v3375, %v3375
      %v3504 = vpack.c.b16 %v3376, %v3376
      %v3505 = vpack.c.b16 %v3377, %v3377
      %v3506 = vpack.c.b16 %v3378, %v3378
      %v3507 = vpack.c.b16 %v3379, %v3379
      %v3508 = vpack.c.b16 %v3380, %v3380
      %v3509 = vpack.c.b16 %v3381, %v3381
      %v3510 = vpack.c.b16 %v3382, %v3382
      %v3511 = vpack.c.b16 %v3383, %v3383
      %v3512 = vpack.c.b16 %v3384, %v3384
      %v3513 = vpack.c.b16 %v3385, %v3385
      %v3514 = vpack.c.b16 %v3386, %v3386
      %v3515 = vpack.c.b16 %v3387, %v3387
      %v3516 = vpack.c.b16 %v3388, %v3388
      %v3517 = vpack.c.b16 %v3389, %v3389
      %v3518 = vpack.c.b16 %v3390, %v3390
      %v3519 = vpack.c.b16 %v3391, %v3391
      %v3520 = vpack.c.b16 %v3392, %v3392
      %v3521 = vpack.c.b16 %v3393, %v3393
      %v3522 = vpack.c.b16 %v3394, %v3394
      %v3523 = vpack.c.b16 %v3395, %v3395
      %v3524 = vpack.c.b16 %v3396, %v3396
      %v3525 = vpack.c.b16 %v3397, %v3397
      %v3526 = vpack.c.b16 %v3398, %v3398
      %v3527 = vpack.c.b16 %v3399, %v3399
      %v3528 = vpack.c.b16 %v3400, %v3400
      %v3529 = vpack.c.b16 %v3401, %v3401
      %v3530 = vpack.c.b16 %v3402, %v3402
      %v3531 = vpack.c.b16 %v3403, %v3403
      %v3532 = vpack.c.b16 %v3404, %v3404
      %v3533 = vpack.c.b16 %v3405, %v3405
      %v3534 = vpack.c.b16 %v3406, %v3406
      %v3535 = vpack.c.b16 %v3407, %v3407
      %v3536 = vpack.c.b16 %v3408, %v3408
      %v3537 = vpack.c.b16 %v3409, %v3409
      %v3538 = vpack.c.b16 %v3410, %v3410
      %v3539 = vpack.c.b16 %v3411, %v3411
      %v3540 = vpack.c.b16 %v3412, %v3412
      %v3541 = vpack.c.b16 %v3413, %v3413
      %v3542 = vpack.c.b16 %v3414, %v3414
      %v3543 = vpack.c.b16 %v3415, %v3415
      %v3544 = vpack.c.b16 %v3416, %v3416
      %v3545 = vpack.c.b16 %v3417, %v3417
      %v3546 = vpack.c.b16 %v3418, %v3418
      %v3547 = vpack.c.b16 %v3419, %v3419
      %v3548 = vpack.c.b16 %v3420, %v3420
      %v3549 = vpack.c.b16 %v3421, %v3421
      %v3550 = vpack.c.b16 %v3422, %v3422
      %v3551 = vpack.c.b16 %v3423, %v3423
      %v3552 = vpack.c.b16 %v3424, %v3424
      %v3553 = vpack.c.b16 %v3425, %v3425
      %v3554 = vpack.c.b16 %v3426, %v3426
      %v3555 = vpack.c.b16 %v3427, %v3427
      %v3556 = vpack.c.b16 %v3428, %v3428
      %v3557 = vpack.c.b16 %v3429, %v3429
      %v3558 = vpack.c.b16 %v3430, %v3430
      %v3559 = vpack.c.b16 %v3431, %v3431
      %v3560 = vpack.c.b16 %v3432, %v3432
      %v3561 = vpack.c.b16 %v3433, %v3433
      %v3562 = vpack.c.b16 %v3434, %v3434
      %v3563 = vpack.c.b16 %v3435, %v3435
      %v3564 = vpack.c.b16 %v3436, %v3436
      %v3565 = vpack.c.b16 %v3437, %v3437
      %3694 = vst [vmem:[%s226] sm:$0xf] %v3438
      %3695 = vst [vmem:[%s226 + $0x4] sm:$0xf] %v3439
      %3696 = vst [vmem:[%s226 + $0x8] sm:$0xf] %v3440
      %3697 = vst [vmem:[%s226 + $0xc] sm:$0xf] %v3441
      %3698 = vst [vmem:[%s226 + $0x10] sm:$0xf] %v3442
      %3699 = vst [vmem:[%s226 + $0x14] sm:$0xf] %v3443
      %3700 = vst [vmem:[%s226 + $0x18] sm:$0xf] %v3444
      %3701 = vst [vmem:[%s226 + $0x1c] sm:$0xf] %v3445
      %3702 = vst [vmem:[%s226 + $0x20] sm:$0xf] %v3446
      %3703 = vst [vmem:[%s226 + $0x24] sm:$0xf] %v3447
      %3704 = vst [vmem:[%s226 + $0x28] sm:$0xf] %v3448
      %3705 = vst [vmem:[%s226 + $0x2c] sm:$0xf] %v3449
      %3706 = vst [vmem:[%s226 + $0x30] sm:$0xf] %v3450
      %3707 = vst [vmem:[%s226 + $0x34] sm:$0xf] %v3451
      %3708 = vst [vmem:[%s226 + $0x38] sm:$0xf] %v3452
      %3709 = vst [vmem:[%s226 + $0x3c] sm:$0xf] %v3453
      %3710 = vst [vmem:[%s226 + $0x40] sm:$0xf] %v3454
      %3711 = vst [vmem:[%s226 + $0x44] sm:$0xf] %v3455
      %3712 = vst [vmem:[%s226 + $0x48] sm:$0xf] %v3456
      %3713 = vst [vmem:[%s226 + $0x4c] sm:$0xf] %v3457
      %3714 = vst [vmem:[%s226 + $0x50] sm:$0xf] %v3458
      %3715 = vst [vmem:[%s226 + $0x54] sm:$0xf] %v3459
      %3716 = vst [vmem:[%s226 + $0x58] sm:$0xf] %v3460
      %3717 = vst [vmem:[%s226 + $0x5c] sm:$0xf] %v3461
      %3718 = vst [vmem:[%s226 + $0x60] sm:$0xf] %v3462
      %3719 = vst [vmem:[%s226 + $0x64] sm:$0xf] %v3463
      %3720 = vst [vmem:[%s226 + $0x68] sm:$0xf] %v3464
      %3721 = vst [vmem:[%s226 + $0x6c] sm:$0xf] %v3465
      %3722 = vst [vmem:[%s226 + $0x70] sm:$0xf] %v3466
      %3723 = vst [vmem:[%s226 + $0x74] sm:$0xf] %v3467
      %3724 = vst [vmem:[%s226 + $0x78] sm:$0xf] %v3468
      %3725 = vst [vmem:[%s226 + $0x7c] sm:$0xf] %v3469
      %3726 = vst [vmem:[%s226 + $0x80] sm:$0xf] %v3470
      %3727 = vst [vmem:[%s226 + $0x84] sm:$0xf] %v3471
      %3728 = vst [vmem:[%s226 + $0x88] sm:$0xf] %v3472
      %3729 = vst [vmem:[%s226 + $0x8c] sm:$0xf] %v3473
      %3730 = vst [vmem:[%s226 + $0x90] sm:$0xf] %v3474
      %3731 = vst [vmem:[%s226 + $0x94] sm:$0xf] %v3475
      %3732 = vst [vmem:[%s226 + $0x98] sm:$0xf] %v3476
      %3733 = vst [vmem:[%s226 + $0x9c] sm:$0xf] %v3477
      %3734 = vst [vmem:[%s226 + $0xa0] sm:$0xf] %v3478
      %3735 = vst [vmem:[%s226 + $0xa4] sm:$0xf] %v3479
      %3736 = vst [vmem:[%s226 + $0xa8] sm:$0xf] %v3480
      %3737 = vst [vmem:[%s226 + $0xac] sm:$0xf] %v3481
      %3738 = vst [vmem:[%s226 + $0xb0] sm:$0xf] %v3482
      %3739 = vst [vmem:[%s226 + $0xb4] sm:$0xf] %v3483
      %3740 = vst [vmem:[%s226 + $0xb8] sm:$0xf] %v3484
      %3741 = vst [vmem:[%s226 + $0xbc] sm:$0xf] %v3485
      %3742 = vst [vmem:[%s226 + $0xc0] sm:$0xf] %v3486
      %3743 = vst [vmem:[%s226 + $0xc4] sm:$0xf] %v3487
      %3744 = vst [vmem:[%s226 + $0xc8] sm:$0xf] %v3488
      %3745 = vst [vmem:[%s226 + $0xcc] sm:$0xf] %v3489
      %3746 = vst [vmem:[%s226 + $0xd0] sm:$0xf] %v3490
      %3747 = vst [vmem:[%s226 + $0xd4] sm:$0xf] %v3491
      %3748 = vst [vmem:[%s226 + $0xd8] sm:$0xf] %v3492
      %3749 = vst [vmem:[%s226 + $0xdc] sm:$0xf] %v3493
      %3750 = vst [vmem:[%s226 + $0xe0] sm:$0xf] %v3494
      %3751 = vst [vmem:[%s226 + $0xe4] sm:$0xf] %v3495
      %3752 = vst [vmem:[%s226 + $0xe8] sm:$0xf] %v3496
      %3753 = vst [vmem:[%s226 + $0xec] sm:$0xf] %v3497
      %3754 = vst [vmem:[%s226 + $0xf0] sm:$0xf] %v3498
      %3755 = vst [vmem:[%s226 + $0xf4] sm:$0xf] %v3499
      %3756 = vst [vmem:[%s226 + $0xf8] sm:$0xf] %v3500
      %3757 = vst [vmem:[%s226 + $0xfc] sm:$0xf] %v3501
      %3758 = vst [vmem:[%s226 + $0x100] sm:$0xf] %v3502
      %3759 = vst [vmem:[%s226 + $0x104] sm:$0xf] %v3503
      %3760 = vst [vmem:[%s226 + $0x108] sm:$0xf] %v3504
      %3761 = vst [vmem:[%s226 + $0x10c] sm:$0xf] %v3505
      %3762 = vst [vmem:[%s226 + $0x110] sm:$0xf] %v3506
      %3763 = vst [vmem:[%s226 + $0x114] sm:$0xf] %v3507
      %3764 = vst [vmem:[%s226 + $0x118] sm:$0xf] %v3508
      %3765 = vst [vmem:[%s226 + $0x11c] sm:$0xf] %v3509
      %3766 = vst [vmem:[%s226 + $0x120] sm:$0xf] %v3510
      %3767 = vst [vmem:[%s226 + $0x124] sm:$0xf] %v3511
      %3768 = vst [vmem:[%s226 + $0x128] sm:$0xf] %v3512
      %3769 = vst [vmem:[%s226 + $0x12c] sm:$0xf] %v3513
      %3770 = vst [vmem:[%s226 + $0x130] sm:$0xf] %v3514
      %3771 = vst [vmem:[%s226 + $0x134] sm:$0xf] %v3515
      %3772 = vst [vmem:[%s226 + $0x138] sm:$0xf] %v3516
      %3773 = vst [vmem:[%s226 + $0x13c] sm:$0xf] %v3517
      %3774 = vst [vmem:[%s226 + $0x140] sm:$0xf] %v3518
      %3775 = vst [vmem:[%s226 + $0x144] sm:$0xf] %v3519
      %3776 = vst [vmem:[%s226 + $0x148] sm:$0xf] %v3520
      %3777 = vst [vmem:[%s226 + $0x14c] sm:$0xf] %v3521
      %3778 = vst [vmem:[%s226 + $0x150] sm:$0xf] %v3522
      %3779 = vst [vmem:[%s226 + $0x154] sm:$0xf] %v3523
      %3780 = vst [vmem:[%s226 + $0x158] sm:$0xf] %v3524
      %3781 = vst [vmem:[%s226 + $0x15c] sm:$0xf] %v3525
      %3782 = vst [vmem:[%s226 + $0x160] sm:$0xf] %v3526
      %3783 = vst [vmem:[%s226 + $0x164] sm:$0xf] %v3527
      %3784 = vst [vmem:[%s226 + $0x168] sm:$0xf] %v3528
      %3785 = vst [vmem:[%s226 + $0x16c] sm:$0xf] %v3529
      %3786 = vst [vmem:[%s226 + $0x170] sm:$0xf] %v3530
      %3787 = vst [vmem:[%s226 + $0x174] sm:$0xf] %v3531
      %3788 = vst [vmem:[%s226 + $0x178] sm:$0xf] %v3532
      %3789 = vst [vmem:[%s226 + $0x17c] sm:$0xf] %v3533
      %3790 = vst [vmem:[%s226 + $0x180] sm:$0xf] %v3534
      %3791 = vst [vmem:[%s226 + $0x184] sm:$0xf] %v3535
      %3792 = vst [vmem:[%s226 + $0x188] sm:$0xf] %v3536
      %3793 = vst [vmem:[%s226 + $0x18c] sm:$0xf] %v3537
      %3794 = vst [vmem:[%s226 + $0x190] sm:$0xf] %v3538
      %3795 = vst [vmem:[%s226 + $0x194] sm:$0xf] %v3539
      %3796 = vst [vmem:[%s226 + $0x198] sm:$0xf] %v3540
      %3797 = vst [vmem:[%s226 + $0x19c] sm:$0xf] %v3541
      %3798 = vst [vmem:[%s226 + $0x1a0] sm:$0xf] %v3542
      %3799 = vst [vmem:[%s226 + $0x1a4] sm:$0xf] %v3543
      %3800 = vst [vmem:[%s226 + $0x1a8] sm:$0xf] %v3544
      %3801 = vst [vmem:[%s226 + $0x1ac] sm:$0xf] %v3545
      %3802 = vst [vmem:[%s226 + $0x1b0] sm:$0xf] %v3546
      %3803 = vst [vmem:[%s226 + $0x1b4] sm:$0xf] %v3547
      %3804 = vst [vmem:[%s226 + $0x1b8] sm:$0xf] %v3548
      %3805 = vst [vmem:[%s226 + $0x1bc] sm:$0xf] %v3549
      %3806 = vst [vmem:[%s226 + $0x1c0] sm:$0xf] %v3550
      %3807 = vst [vmem:[%s226 + $0x1c4] sm:$0xf] %v3551
      %3808 = vst [vmem:[%s226 + $0x1c8] sm:$0xf] %v3552
      %3809 = vst [vmem:[%s226 + $0x1cc] sm:$0xf] %v3553
      %3810 = vst [vmem:[%s226 + $0x1d0] sm:$0xf] %v3554
      %3811 = vst [vmem:[%s226 + $0x1d4] sm:$0xf] %v3555
      %3812 = vst [vmem:[%s226 + $0x1d8] sm:$0xf] %v3556
      %3813 = vst [vmem:[%s226 + $0x1dc] sm:$0xf] %v3557
      %3814 = vst [vmem:[%s226 + $0x1e0] sm:$0xf] %v3558
      %3815 = vst [vmem:[%s226 + $0x1e4] sm:$0xf] %v3559
      %3816 = vst [vmem:[%s226 + $0x1e8] sm:$0xf] %v3560
      %3817 = vst [vmem:[%s226 + $0x1ec] sm:$0xf] %v3561
      %3818 = vst [vmem:[%s226 + $0x1f0] sm:$0xf] %v3562
      %3819 = vst [vmem:[%s226 + $0x1f4] sm:$0xf] %v3563
      %3820 = vst [vmem:[%s226 + $0x1f8] sm:$0xf] %v3564
      %3821 = vst [vmem:[%s226 + $0x1fc] sm:$0xf] %v3565
      %s3822 = smul.u32 128, %s18
      %p3823 = scmp.lt.s32.totalorder %s3822, 255
      %s3824 = scalar_select %p3823, %s3822, 255
      %p3825 = scmp.lt.s32.totalorder %s19, 0
      %s3826 = scalar_select %p3825, %s19, 0
      %s3827 = sadd.s32 %s3826, %s3824
      %s3828 = smul.addr %s3827, 4
      %s3829 = scalar_lea.vmem %s3, %s3828
      // Predicated region
      $region33: #{dccnn_forward.5} parent=31 // pred_check
        %p3830 = pneg %p124
      $region34: #{dccnn_forward.5} parent=31 // pred_check_branch
        %3832 = sbr.rel (%p3830) target = $region36
      $region35: #{dccnn_forward.5} parent=31 // pred_region
        %s3833 = smul.u32 128, %s18
      $region36: #{dccnn_forward.5} parent=31 // pred_fallthru
        _
    $region32: #{dccnn_forward.5} parent=5 // pred_fallthru
      _
    %p3834 = scmp.le.s32.totalorder 2, %s9
    // Predicated region
    $region37: #{dccnn_forward.5} parent=5 // pred_check
      %p3835 = pneg %p3834
    $region38: #{dccnn_forward.5} parent=5 // pred_check_branch
      %3837 = sbr.rel (%p3835) target = $region40
    $region39: #{dccnn_forward.5} parent=5 // pred_region
      %s3838 = ssub.s32 %s9, 2
      // Predicated region
      $region41: #{dccnn_forward.5} parent=39 // pred_check
        %p3839 = pneg %p130
      $region42: #{dccnn_forward.5} parent=39 // pred_check_branch
        %3841 = sbr.rel (%p3839) target = $region44
      $region43: #{dccnn_forward.5} parent=39 // pred_region
        %s3842 = smul.u32 128, %s20
        %p3843 = scmp.lt.s32.totalorder %s3842, 255
        %s3844 = scalar_select %p3843, %s3842, 255
        %p3845 = scmp.lt.s32.totalorder %s21, 0
        %s3846 = scalar_select %p3845, %s21, 0
        %s3847 = sadd.s32 %s3846, %s3844
        %s3848 = smul.addr %s3847, 4
        %s3849 = scalar_lea.vmem %s3, %s3848
      $region44: #{dccnn_forward.5} parent=39 // pred_fallthru
        _
    $region40: #{dccnn_forward.5} parent=5 // pred_fallthru
      _
  $region6: #{dccnn_forward.5} parent=0 // loop_footer
    %s13 = sadd.s32 1, %s9
  $region7: #{dccnn_forward.5} parent=0 // loop_footer_branch
    %8 = sbr.rel target = $region3
  $region8: #{dccnn_forward.5} parent=0 // loop_exit
    _

// kernel: dccnn_forward.6
$region0: #{dccnn_forward.6}
  #allocation0 [shape = 'u32[]', space=smem, size = 0x4, offset = 0x4, fixed_abs, tag = 'smem constant byte address 0x4 - core index']
  #allocation1 [shape = 'u32[144,128]{1,0:T(1,128)}', space=vmem, size = 0x12000, scoped, tag = 'internal scratch']
  %s0 = inlined_call_operand.vmem [shape: bf16[512,640], index: 0, kind: input, shape index: {}]
  %s1 = inlined_call_operand.vmem [shape: bf16[640,128], index: 1, kind: input, shape index: {}]
  %s2 = inlined_call_operand.vmem [shape: f32[1,128], index: 2, kind: input, shape index: {}]
  %s3 = inlined_call_operand.vmem [shape: bf16[512,128], index: 3, kind: output, shape index: {}]
  %s4 = sld [smem:[#allocation0]]
  $region45: #{dccnn_forward.6} parent=0
    _
  %s6 = ssub.s32 1, %s4
  %s7 = scalar_select 0, %s6, %s4
  loop: start=0, step=1, limit=4
  $region2: #{dccnn_forward.6} parent=0 // loop_pre_header
    _
  $region3: #{dccnn_forward.6} parent=0 // loop_header
    %s9 = sphi 0, %s13
    %p10 = scmp.ge.s32.totalorder %s9, 4
    %s16 = sphi 0, %s28
    %s17 = sphi 0, %s24
    %s18 = sphi 0, %s16
    %s19 = sphi 0, %s17
    %s20 = sphi 0, %s18
    %s21 = sphi 0, %s19
    %s31 = sphi 0, %s33
    %s34 = sphi 0, %s31
    %s35 = sphi 0, %s34
    %s51 = sphi 0, %s35
    %s57 = sphi 0, %s59
    %s60 = sphi 0, %s57
    %s61 = sphi 0, %s60
    %s77 = sphi 0, %s61
    %s83 = sphi 0, %s85
    %s86 = sphi 0, %s83
    %s87 = sphi 0, %s86
    %s103 = sphi 0, %s87
    %s111 = sphi 0, %s113
    %s114 = sphi 0, %s111
    %s115 = sphi 0, %s114
    %s131 = sphi 0, %s115
  $region4: #{dccnn_forward.6} parent=0 // loop_header_branch
    %12 = sbr.rel (%p10) target = $region8
  $region5: #{dccnn_forward.6} parent=0 // loop_body
    %s14 = ssub.s32 %s9, 1
    %s15 = ssub.s32 %s9, 2
    %s22 = sadd.s32 1, %s17
    %p23 = scmp.ge.s32.totalorder %s22, 1
    %s24 = scalar_select %p23, 0, %s22
    %s25 = sadd.s32 1, %s16
    %s26 = scalar_select %p23, %s25, %s16
    %p27 = scmp.ge.s32.totalorder %s26, 2
    %s28 = scalar_select %p27, 0, %s26
    %s29 = ssub.s32 %s16, %s28
    %p30 = scmp.eq.s32.totalorder %s29, 0
    %s32 = sadd.s32 %s31, 1
    %s33 = scalar_select %p30, %s31, %s32
    %p36 = pneg %p30
    %p37 = scmp.eq.s32.totalorder %s9, 1
    %p38 = por %p36, %p37
    %p39 = scmp.ne.s32.totalorder %s31, %s34
    %p40 = scmp.eq.s32.totalorder %s9, 0
    %p41 = por %p39, %p40
    %p42 = scmp.ne.s32.totalorder %s31, %s34
    %p43 = scmp.eq.s32.totalorder %s14, 1
    %p44 = por %p42, %p43
    %p45 = scmp.ne.s32.totalorder %s34, %s35
    %p46 = scmp.eq.s32.totalorder %s14, 0
    %p47 = por %p45, %p46
    %p48 = scmp.ne.s32.totalorder %s34, %s35
    %p49 = scmp.eq.s32.totalorder %s15, 1
    %p50 = por %p48, %p49
    %p52 = scmp.ne.s32.totalorder %s35, %s51
    %p53 = scmp.eq.s32.totalorder %s15, 0
    %p54 = por %p52, %p53
    %s55 = ssub.s32 %s17, %s24
    %p56 = scmp.eq.s32.totalorder %s55, 0
    %s58 = sadd.s32 %s57, 1
    %s59 = scalar_select %p56, %s57, %s58
    %p62 = pneg %p56
    %p63 = scmp.eq.s32.totalorder %s9, 1
    %p64 = por %p62, %p63
    %p65 = scmp.ne.s32.totalorder %s57, %s60
    %p66 = scmp.eq.s32.totalorder %s9, 0
    %p67 = por %p65, %p66
    %p68 = scmp.ne.s32.totalorder %s57, %s60
    %p69 = scmp.eq.s32.totalorder %s14, 1
    %p70 = por %p68, %p69
    %p71 = scmp.ne.s32.totalorder %s60, %s61
    %p72 = scmp.eq.s32.totalorder %s14, 0
    %p73 = por %p71, %p72
    %p74 = scmp.ne.s32.totalorder %s60, %s61
    %p75 = scmp.eq.s32.totalorder %s15, 1
    %p76 = por %p74, %p75
    %p78 = scmp.ne.s32.totalorder %s61, %s77
    %p79 = scmp.eq.s32.totalorder %s15, 0
    %p80 = por %p78, %p79
    %s81 = ssub.s32 %s17, %s24
    %p82 = scmp.eq.s32.totalorder %s81, 0
    %s84 = sadd.s32 %s83, 1
    %s85 = scalar_select %p82, %s83, %s84
    %p88 = pneg %p82
    %p89 = scmp.eq.s32.totalorder %s9, 1
    %p90 = por %p88, %p89
    %p91 = scmp.ne.s32.totalorder %s83, %s86
    %p92 = scmp.eq.s32.totalorder %s9, 0
    %p93 = por %p91, %p92
    %p94 = scmp.ne.s32.totalorder %s83, %s86
    %p95 = scmp.eq.s32.totalorder %s14, 1
    %p96 = por %p94, %p95
    %p97 = scmp.ne.s32.totalorder %s86, %s87
    %p98 = scmp.eq.s32.totalorder %s14, 0
    %p99 = por %p97, %p98
    %p100 = scmp.ne.s32.totalorder %s86, %s87
    %p101 = scmp.eq.s32.totalorder %s15, 1
    %p102 = por %p100, %p101
    %p104 = scmp.ne.s32.totalorder %s87, %s103
    %p105 = scmp.eq.s32.totalorder %s15, 0
    %p106 = por %p104, %p105
    %s107 = ssub.s32 %s16, %s28
    %s108 = ssub.s32 %s17, %s24
    %s109 = sor.u32 %s107, %s108
    %p110 = scmp.eq.s32.totalorder %s109, 0
    %s112 = sadd.s32 %s111, 1
    %s113 = scalar_select %p110, %s111, %s112
    %p116 = pneg %p110
    %p117 = scmp.eq.s32.totalorder %s9, 1
    %p118 = por %p116, %p117
    %p119 = scmp.ne.s32.totalorder %s111, %s114
    %p120 = scmp.eq.s32.totalorder %s9, 0
    %p121 = por %p119, %p120
    %p122 = scmp.ne.s32.totalorder %s111, %s114
    %p123 = scmp.eq.s32.totalorder %s14, 1
    %p124 = por %p122, %p123
    %p125 = scmp.ne.s32.totalorder %s114, %s115
    %p126 = scmp.eq.s32.totalorder %s14, 0
    %p127 = por %p125, %p126
    %p128 = scmp.ne.s32.totalorder %s114, %s115
    %p129 = scmp.eq.s32.totalorder %s15, 1
    %p130 = por %p128, %p129
    %p132 = scmp.ne.s32.totalorder %s115, %s131
    %p133 = scmp.eq.s32.totalorder %s15, 0
    %p134 = por %p132, %p133
    %p135 = scmp.le.s32.totalorder 1, %s9
    %p136 = scmp.lt.s32.totalorder %s9, 3
    %p137 = pnand %p135, %p136
    %p138 = pneg %p137
    // Predicated region
    $region9: #{dccnn_forward.6} parent=5 // pred_check
      _
    $region10: #{dccnn_forward.6} parent=5 // pred_check_branch
      %140 = sbr.rel (%p137) target = $region12
    $region11: #{dccnn_forward.6} parent=5 // pred_region
      %s141 = ssub.s32 %s9, 1
      // Predicated region
      $region13: #{dccnn_forward.6} parent=11 // pred_check
        %p142 = pneg %p73
      $region14: #{dccnn_forward.6} parent=11 // pred_check_branch
        %144 = sbr.rel (%p142) target = $region16
      $region15: #{dccnn_forward.6} parent=11 // pred_region
        %p145 = scmp.lt.s32.totalorder %s19, 0
        %s146 = scalar_select %p145, %s19, 0
        %s147 = smul.addr %s146, 4
        %s148 = scalar_lea.vmem %s1, %s147
      $region16: #{dccnn_forward.6} parent=11 // pred_fallthru
        _
      // Predicated region
      $region17: #{dccnn_forward.6} parent=11 // pred_check
        %p149 = pneg %p99
      $region18: #{dccnn_forward.6} parent=11 // pred_check_branch
        %151 = sbr.rel (%p149) target = $region20
      $region19: #{dccnn_forward.6} parent=11 // pred_region
        %p152 = scmp.lt.s32.totalorder %s19, 0
        %s153 = scalar_select %p152, %s19, 0
        %s154 = scalar_lea.vmem %s2, %s153
      $region20: #{dccnn_forward.6} parent=11 // pred_fallthru
        _
    $region12: #{dccnn_forward.6} parent=5 // pred_fallthru
      _
    %p155 = scmp.lt.s32.totalorder %s9, 2
    // Predicated region
    $region21: #{dccnn_forward.6} parent=5 // pred_check
      %p156 = pneg %p155
    $region22: #{dccnn_forward.6} parent=5 // pred_check_branch
      %158 = sbr.rel (%p156) target = $region24
    $region23: #{dccnn_forward.6} parent=5 // pred_region
      // Predicated region
      $region25: #{dccnn_forward.6} parent=23 // pred_check
        %p159 = pneg %p41
      $region26: #{dccnn_forward.6} parent=23 // pred_check_branch
        %161 = sbr.rel (%p159) target = $region28
      $region27: #{dccnn_forward.6} parent=23 // pred_region
        %s162 = smul.u32 32, %s16
        %p163 = scmp.lt.s32.totalorder %s162, 63
        %s164 = scalar_select %p163, %s162, 63
        %s165 = smul.addr %s164, 5
        %s166 = smul.addr %s165, 4
        %s167 = scalar_lea.vmem %s0, %s166
        %s168 = smul.u32 32, %s16
      $region28: #{dccnn_forward.6} parent=23 // pred_fallthru
        _
    $region24: #{dccnn_forward.6} parent=5 // pred_fallthru
      _
    %p169 = scmp.le.s32.totalorder 1, %s9
    %p170 = scmp.lt.s32.totalorder %s9, 3
    %p171 = pnand %p169, %p170
    %p172 = pneg %p171
    // Predicated region
    $region29: #{dccnn_forward.6} parent=5 // pred_check
      _
    $region30: #{dccnn_forward.6} parent=5 // pred_check_branch
      %174 = sbr.rel (%p171) target = $region32
    $region31: #{dccnn_forward.6} parent=5 // pred_region
      %s175 = ssub.s32 %s9, 1
      %s176 = smul.u32 32, %s18
      %p177 = scmp.lt.s32.totalorder %s176, 63
      %s178 = scalar_select %p177, %s176, 63
      %s179 = smul.addr %s178, 5
      %s180 = smul.addr %s179, 4
      %s181 = scalar_lea.vmem %s0, %s180
      %p182 = pneg %p47
      %p183 = pneg %p44
      %p184 = scmp.lt.s32.totalorder %s19, 0
      %s185 = scalar_select %p184, %s19, 0
      %s186 = smul.addr %s185, 4
      %s187 = scalar_lea.vmem %s1, %s186
      %p188 = pneg %p73
      %p189 = pneg %p70
      %p190 = scmp.lt.s32.totalorder %s19, 0
      %s191 = scalar_select %p190, %s19, 0
      %s192 = scalar_lea.vmem %s2, %s191
      %p193 = pneg %p99
      %p194 = pneg %p96
      %p195 = pneg %p127
      %p196 = pneg %p124
      %s197 = smul.u32 32, %s18
      %p198 = scmp.lt.s32.totalorder %s197, 63
      %s199 = scalar_select %p198, %s197, 63
      %p200 = scmp.lt.s32.totalorder %s19, 0
      %s201 = scalar_select %p200, %s19, 0
      %s202 = sadd.s32 %s201, %s199
      %s203 = smul.addr %s202, 4
      %s204 = scalar_lea.vmem %s3, %s203
      %s205 = smul.u32 32, %s18
      %p206 = scmp.lt.s32.totalorder %s205, 63
      %s207 = scalar_select %p206, %s205, 63
      %s208 = smul.addr %s207, 5
      %s209 = smul.addr %s208, 4
      %s210 = scalar_lea.vmem %s0, %s209
      %s211 = smul.u32 32, %s18
      %p212 = scmp.lt.s32.totalorder %s19, 0
      %s213 = scalar_select %p212, %s19, 0
      %s214 = smul.addr %s213, 4
      %s215 = scalar_lea.vmem %s1, %s214
      %p216 = scmp.lt.s32.totalorder %s19, 0
      %s217 = scalar_select %p216, %s19, 0
      %s218 = scalar_lea.vmem %s2, %s217
      %s219 = smul.u32 32, %s18
      %p220 = scmp.lt.s32.totalorder %s219, 63
      %s221 = scalar_select %p220, %s219, 63
      %p222 = scmp.lt.s32.totalorder %s19, 0
      %s223 = scalar_select %p222, %s19, 0
      %s224 = sadd.s32 %s223, %s221
      %s225 = smul.addr %s224, 4
      %s226 = scalar_lea.vmem %s3, %s225
      %s227 = smul.u32 32, %s18
      %v229 = vld [vmem:[%s210] sm:$0xff]
      %v230 = vld [vmem:[%s210 + $0x8] sm:$0xff]
      %v231 = vld [vmem:[%s210 + $0x10] sm:$0xf]
      %v232 = vld [vmem:[%s210 + $0x14] sm:$0xff]
      %v233 = vld [vmem:[%s210 + $0x1c] sm:$0xff]
      %v234 = vld [vmem:[%s210 + $0x24] sm:$0xf]
      %v235 = vld [vmem:[%s210 + $0x28] sm:$0xff]
      %v236 = vld [vmem:[%s210 + $0x30] sm:$0xff]
      %v237 = vld [vmem:[%s210 + $0x38] sm:$0xf]
      %v238 = vld [vmem:[%s210 + $0x3c] sm:$0xff]
      %v239 = vld [vmem:[%s210 + $0x44] sm:$0xff]
      %v240 = vld [vmem:[%s210 + $0x4c] sm:$0xf]
      %v241 = vld [vmem:[%s210 + $0x50] sm:$0xff]
      %v242 = vld [vmem:[%s210 + $0x58] sm:$0xff]
      %v243 = vld [vmem:[%s210 + $0x60] sm:$0xf]
      %v244 = vld [vmem:[%s210 + $0x64] sm:$0xff]
      %v245 = vld [vmem:[%s210 + $0x6c] sm:$0xff]
      %v246 = vld [vmem:[%s210 + $0x74] sm:$0xf]
      %v247 = vld [vmem:[%s210 + $0x78] sm:$0xff]
      %v248 = vld [vmem:[%s210 + $0x80] sm:$0xff]
      %v249 = vld [vmem:[%s210 + $0x88] sm:$0xf]
      %v250 = vld [vmem:[%s210 + $0x8c] sm:$0xff]
      %v251 = vld [vmem:[%s210 + $0x94] sm:$0xff]
      %v252 = vld [vmem:[%s210 + $0x9c] sm:$0xf]
      %v253 = vld [vmem:[%s210 + $0xa0] sm:$0xff]
      %v254 = vld [vmem:[%s210 + $0xa8] sm:$0xff]
      %v255 = vld [vmem:[%s210 + $0xb0] sm:$0xf]
      %v256 = vld [vmem:[%s210 + $0xb4] sm:$0xff]
      %v257 = vld [vmem:[%s210 + $0xbc] sm:$0xff]
      %v258 = vld [vmem:[%s210 + $0xc4] sm:$0xf]
      %v259 = vld [vmem:[%s210 + $0xc8] sm:$0xff]
      %v260 = vld [vmem:[%s210 + $0xd0] sm:$0xff]
      %v261 = vld [vmem:[%s210 + $0xd8] sm:$0xf]
      %v262 = vld [vmem:[%s210 + $0xdc] sm:$0xff]
      %v263 = vld [vmem:[%s210 + $0xe4] sm:$0xff]
      %v264 = vld [vmem:[%s210 + $0xec] sm:$0xf]
      %v265 = vld [vmem:[%s210 + $0xf0] sm:$0xff]
      %v266 = vld [vmem:[%s210 + $0xf8] sm:$0xff]
      %v267 = vld [vmem:[%s210 + $0x100] sm:$0xf]
      %v268 = vld [vmem:[%s210 + $0x104] sm:$0xff]
      %v269 = vld [vmem:[%s210 + $0x10c] sm:$0xff]
      %v270 = vld [vmem:[%s210 + $0x114] sm:$0xf]
      %v271 = vld [vmem:[%s210 + $0x118] sm:$0xff]
      %v272 = vld [vmem:[%s210 + $0x120] sm:$0xff]
      %v273 = vld [vmem:[%s210 + $0x128] sm:$0xf]
      %v274 = vld [vmem:[%s210 + $0x12c] sm:$0xff]
      %v275 = vld [vmem:[%s210 + $0x134] sm:$0xff]
      %v276 = vld [vmem:[%s210 + $0x13c] sm:$0xf]
      %v277 = vld [vmem:[%s210 + $0x140] sm:$0xff]
      %v278 = vld [vmem:[%s210 + $0x148] sm:$0xff]
      %v279 = vld [vmem:[%s210 + $0x150] sm:$0xf]
      %v280 = vld [vmem:[%s210 + $0x154] sm:$0xff]
      %v281 = vld [vmem:[%s210 + $0x15c] sm:$0xff]
      %v282 = vld [vmem:[%s210 + $0x164] sm:$0xf]
      %v283 = vld [vmem:[%s210 + $0x168] sm:$0xff]
      %v284 = vld [vmem:[%s210 + $0x170] sm:$0xff]
      %v285 = vld [vmem:[%s210 + $0x178] sm:$0xf]
      %v286 = vld [vmem:[%s210 + $0x17c] sm:$0xff]
      %v287 = vld [vmem:[%s210 + $0x184] sm:$0xff]
      %v288 = vld [vmem:[%s210 + $0x18c] sm:$0xf]
      %v289 = vld [vmem:[%s210 + $0x190] sm:$0xff]
      %v290 = vld [vmem:[%s210 + $0x198] sm:$0xff]
      %v291 = vld [vmem:[%s210 + $0x1a0] sm:$0xf]
      %v292 = vld [vmem:[%s210 + $0x1a4] sm:$0xff]
      %v293 = vld [vmem:[%s210 + $0x1ac] sm:$0xff]
      %v294 = vld [vmem:[%s210 + $0x1b4] sm:$0xf]
      %v295 = vld [vmem:[%s210 + $0x1b8] sm:$0xff]
      %v296 = vld [vmem:[%s210 + $0x1c0] sm:$0xff]
      %v297 = vld [vmem:[%s210 + $0x1c8] sm:$0xf]
      %v298 = vld [vmem:[%s210 + $0x1cc] sm:$0xff]
      %v299 = vld [vmem:[%s210 + $0x1d4] sm:$0xff]
      %v300 = vld [vmem:[%s210 + $0x1dc] sm:$0xf]
      %v301 = vld [vmem:[%s210 + $0x1e0] sm:$0xff]
      %v302 = vld [vmem:[%s210 + $0x1e8] sm:$0xff]
      %v303 = vld [vmem:[%s210 + $0x1f0] sm:$0xf]
      %v304 = vld [vmem:[%s210 + $0x1f4] sm:$0xff]
      %v305 = vld [vmem:[%s210 + $0x1fc] sm:$0xff]
      %v306 = vld [vmem:[%s210 + $0x204] sm:$0xf]
      %v307 = vld [vmem:[%s210 + $0x208] sm:$0xff]
      %v308 = vld [vmem:[%s210 + $0x210] sm:$0xff]
      %v309 = vld [vmem:[%s210 + $0x218] sm:$0xf]
      %v310 = vld [vmem:[%s210 + $0x21c] sm:$0xff]
      %v311 = vld [vmem:[%s210 + $0x224] sm:$0xff]
      %v312 = vld [vmem:[%s210 + $0x22c] sm:$0xf]
      %v313 = vld [vmem:[%s210 + $0x230] sm:$0xff]
      %v314 = vld [vmem:[%s210 + $0x238] sm:$0xff]
      %v315 = vld [vmem:[%s210 + $0x240] sm:$0xf]
      %v316 = vld [vmem:[%s210 + $0x244] sm:$0xff]
      %v317 = vld [vmem:[%s210 + $0x24c] sm:$0xff]
      %v318 = vld [vmem:[%s210 + $0x254] sm:$0xf]
      %v319 = vld [vmem:[%s210 + $0x258] sm:$0xff]
      %v320 = vld [vmem:[%s210 + $0x260] sm:$0xff]
      %v321 = vld [vmem:[%s210 + $0x268] sm:$0xf]
      %v322 = vld [vmem:[%s210 + $0x26c] sm:$0xff]
      %v323 = vld [vmem:[%s210 + $0x274] sm:$0xff]
      %v324 = vld [vmem:[%s210 + $0x27c] sm:$0xf]
      %v325 = vld [vmem:[%s215] sm:$0xf]
      %v326 = vld [vmem:[%s215 + $0x4] sm:$0xf]
      %v327 = vld [vmem:[%s215 + $0x8] sm:$0xf]
      %v328 = vld [vmem:[%s215 + $0xc] sm:$0xf]
      %v329 = vld [vmem:[%s215 + $0x10] sm:$0xf]
      %v330 = vld [vmem:[%s215 + $0x14] sm:$0xf]
      %v331 = vld [vmem:[%s215 + $0x18] sm:$0xf]
      %v332 = vld [vmem:[%s215 + $0x1c] sm:$0xf]
      %v333 = vld [vmem:[%s215 + $0x20] sm:$0xf]
      %v334 = vld [vmem:[%s215 + $0x24] sm:$0xf]
      %v335 = vld [vmem:[%s215 + $0x28] sm:$0xf]
      %v336 = vld [vmem:[%s215 + $0x2c] sm:$0xf]
      %v337 = vld [vmem:[%s215 + $0x30] sm:$0xf]
      %v338 = vld [vmem:[%s215 + $0x34] sm:$0xf]
      %v339 = vld [vmem:[%s215 + $0x38] sm:$0xf]
      %v340 = vld [vmem:[%s215 + $0x3c] sm:$0xf]
      %v341 = vld [vmem:[%s215 + $0x40] sm:$0xf]
      %v342 = vld [vmem:[%s215 + $0x44] sm:$0xf]
      %v343 = vld [vmem:[%s215 + $0x48] sm:$0xf]
      %v344 = vld [vmem:[%s215 + $0x4c] sm:$0xf]
      %v345 = vld [vmem:[%s215 + $0x50] sm:$0xf]
      %v346 = vld [vmem:[%s215 + $0x54] sm:$0xf]
      %v347 = vld [vmem:[%s215 + $0x58] sm:$0xf]
      %v348 = vld [vmem:[%s215 + $0x5c] sm:$0xf]
      %v349 = vld [vmem:[%s215 + $0x60] sm:$0xf]
      %v350 = vld [vmem:[%s215 + $0x64] sm:$0xf]
      %v351 = vld [vmem:[%s215 + $0x68] sm:$0xf]
      %v352 = vld [vmem:[%s215 + $0x6c] sm:$0xf]
      %v353 = vld [vmem:[%s215 + $0x70] sm:$0xf]
      %v354 = vld [vmem:[%s215 + $0x74] sm:$0xf]
      %v355 = vld [vmem:[%s215 + $0x78] sm:$0xf]
      %v356 = vld [vmem:[%s215 + $0x7c] sm:$0xf]
      %v357 = vld [vmem:[%s215 + $0x80] sm:$0xf]
      %v358 = vld [vmem:[%s215 + $0x84] sm:$0xf]
      %v359 = vld [vmem:[%s215 + $0x88] sm:$0xf]
      %v360 = vld [vmem:[%s215 + $0x8c] sm:$0xf]
      %v361 = vld [vmem:[%s215 + $0x90] sm:$0xf]
      %v362 = vld [vmem:[%s215 + $0x94] sm:$0xf]
      %v363 = vld [vmem:[%s215 + $0x98] sm:$0xf]
      %v364 = vld [vmem:[%s215 + $0x9c] sm:$0xf]
      %v365 = vld [vmem:[%s215 + $0xa0] sm:$0xf]
      %v366 = vld [vmem:[%s215 + $0xa4] sm:$0xf]
      %v367 = vld [vmem:[%s215 + $0xa8] sm:$0xf]
      %v368 = vld [vmem:[%s215 + $0xac] sm:$0xf]
      %v369 = vld [vmem:[%s215 + $0xb0] sm:$0xf]
      %v370 = vld [vmem:[%s215 + $0xb4] sm:$0xf]
      %v371 = vld [vmem:[%s215 + $0xb8] sm:$0xf]
      %v372 = vld [vmem:[%s215 + $0xbc] sm:$0xf]
      %v373 = vld [vmem:[%s215 + $0xc0] sm:$0xf]
      %v374 = vld [vmem:[%s215 + $0xc4] sm:$0xf]
      %v375 = vld [vmem:[%s215 + $0xc8] sm:$0xf]
      %v376 = vld [vmem:[%s215 + $0xcc] sm:$0xf]
      %v377 = vld [vmem:[%s215 + $0xd0] sm:$0xf]
      %v378 = vld [vmem:[%s215 + $0xd4] sm:$0xf]
      %v379 = vld [vmem:[%s215 + $0xd8] sm:$0xf]
      %v380 = vld [vmem:[%s215 + $0xdc] sm:$0xf]
      %v381 = vld [vmem:[%s215 + $0xe0] sm:$0xf]
      %v382 = vld [vmem:[%s215 + $0xe4] sm:$0xf]
      %v383 = vld [vmem:[%s215 + $0xe8] sm:$0xf]
      %v384 = vld [vmem:[%s215 + $0xec] sm:$0xf]
      %v385 = vld [vmem:[%s215 + $0xf0] sm:$0xf]
      %v386 = vld [vmem:[%s215 + $0xf4] sm:$0xf]
      %v387 = vld [vmem:[%s215 + $0xf8] sm:$0xf]
      %v388 = vld [vmem:[%s215 + $0xfc] sm:$0xf]
      %v389 = vld [vmem:[%s215 + $0x100] sm:$0xf]
      %v390 = vld [vmem:[%s215 + $0x104] sm:$0xf]
      %v391 = vld [vmem:[%s215 + $0x108] sm:$0xf]
      %v392 = vld [vmem:[%s215 + $0x10c] sm:$0xf]
      %v393 = vld [vmem:[%s215 + $0x110] sm:$0xf]
      %v394 = vld [vmem:[%s215 + $0x114] sm:$0xf]
      %v395 = vld [vmem:[%s215 + $0x118] sm:$0xf]
      %v396 = vld [vmem:[%s215 + $0x11c] sm:$0xf]
      %v397 = vld [vmem:[%s215 + $0x120] sm:$0xf]
      %v398 = vld [vmem:[%s215 + $0x124] sm:$0xf]
      %v399 = vld [vmem:[%s215 + $0x128] sm:$0xf]
      %v400 = vld [vmem:[%s215 + $0x12c] sm:$0xf]
      %v401 = vld [vmem:[%s215 + $0x130] sm:$0xf]
      %v402 = vld [vmem:[%s215 + $0x134] sm:$0xf]
      %v403 = vld [vmem:[%s215 + $0x138] sm:$0xf]
      %v404 = vld [vmem:[%s215 + $0x13c] sm:$0xf]
      %v405 = vld [vmem:[%s218] sm:$0x1]
      %v407 = vlaneseq
      %v408 = vshrl.u32 %v407, 7
      %v409 = vsub.s32 0, %v408
      %v410 = vrot.slane %v405, %v409
      %v508 = vunpack.c.l.b16 %v229
      %v509 = vunpack.c.h.b16 %v229
      %v510 = vunpack.c.l.b16 %v230
      %v511 = vunpack.c.h.b16 %v230
      %v512 = vunpack.c.l.b16 %v231
      %v513 = vunpack.c.l.b16 %v232
      %v514 = vunpack.c.h.b16 %v232
      %v515 = vunpack.c.l.b16 %v233
      %v516 = vunpack.c.h.b16 %v233
      %v517 = vunpack.c.l.b16 %v234
      %v518 = vunpack.c.l.b16 %v235
      %v519 = vunpack.c.h.b16 %v235
      %v520 = vunpack.c.l.b16 %v236
      %v521 = vunpack.c.h.b16 %v236
      %v522 = vunpack.c.l.b16 %v237
      %v523 = vunpack.c.l.b16 %v238
      %v524 = vunpack.c.h.b16 %v238
      %v525 = vunpack.c.l.b16 %v239
      %v526 = vunpack.c.h.b16 %v239
      %v527 = vunpack.c.l.b16 %v240
      %v528 = vunpack.c.l.b16 %v241
      %v529 = vunpack.c.h.b16 %v241
      %v530 = vunpack.c.l.b16 %v242
      %v531 = vunpack.c.h.b16 %v242
      %v532 = vunpack.c.l.b16 %v243
      %v533 = vunpack.c.l.b16 %v244
      %v534 = vunpack.c.h.b16 %v244
      %v535 = vunpack.c.l.b16 %v245
      %v536 = vunpack.c.h.b16 %v245
      %v537 = vunpack.c.l.b16 %v246
      %v538 = vunpack.c.l.b16 %v247
      %v539 = vunpack.c.h.b16 %v247
      %v540 = vunpack.c.l.b16 %v248
      %v541 = vunpack.c.h.b16 %v248
      %v542 = vunpack.c.l.b16 %v249
      %v543 = vunpack.c.l.b16 %v250
      %v544 = vunpack.c.h.b16 %v250
      %v545 = vunpack.c.l.b16 %v251
      %v546 = vunpack.c.h.b16 %v251
      %v547 = vunpack.c.l.b16 %v252
      %v548 = vunpack.c.l.b16 %v253
      %v549 = vunpack.c.h.b16 %v253
      %v550 = vunpack.c.l.b16 %v254
      %v551 = vunpack.c.h.b16 %v254
      %v552 = vunpack.c.l.b16 %v255
      %v553 = vunpack.c.l.b16 %v256
      %v554 = vunpack.c.h.b16 %v256
      %v555 = vunpack.c.l.b16 %v257
      %v556 = vunpack.c.h.b16 %v257
      %v557 = vunpack.c.l.b16 %v258
      %v558 = vunpack.c.l.b16 %v259
      %v559 = vunpack.c.h.b16 %v259
      %v560 = vunpack.c.l.b16 %v260
      %v561 = vunpack.c.h.b16 %v260
      %v562 = vunpack.c.l.b16 %v261
      %v563 = vunpack.c.l.b16 %v262
      %v564 = vunpack.c.h.b16 %v262
      %v565 = vunpack.c.l.b16 %v263
      %v566 = vunpack.c.h.b16 %v263
      %v567 = vunpack.c.l.b16 %v264
      %v568 = vunpack.c.l.b16 %v265
      %v569 = vunpack.c.h.b16 %v265
      %v570 = vunpack.c.l.b16 %v266
      %v571 = vunpack.c.h.b16 %v266
      %v572 = vunpack.c.l.b16 %v267
      %v573 = vunpack.c.l.b16 %v268
      %v574 = vunpack.c.h.b16 %v268
      %v575 = vunpack.c.l.b16 %v269
      %v576 = vunpack.c.h.b16 %v269
      %v577 = vunpack.c.l.b16 %v270
      %v578 = vunpack.c.l.b16 %v271
      %v579 = vunpack.c.h.b16 %v271
      %v580 = vunpack.c.l.b16 %v272
      %v581 = vunpack.c.h.b16 %v272
      %v582 = vunpack.c.l.b16 %v273
      %v583 = vunpack.c.l.b16 %v274
      %v584 = vunpack.c.h.b16 %v274
      %v585 = vunpack.c.l.b16 %v275
      %v586 = vunpack.c.h.b16 %v275
      %v587 = vunpack.c.l.b16 %v276
      %v588 = vunpack.c.l.b16 %v277
      %v589 = vunpack.c.h.b16 %v277
      %v590 = vunpack.c.l.b16 %v278
      %v591 = vunpack.c.h.b16 %v278
      %v592 = vunpack.c.l.b16 %v279
      %v593 = vunpack.c.l.b16 %v280
      %v594 = vunpack.c.h.b16 %v280
      %v595 = vunpack.c.l.b16 %v281
      %v596 = vunpack.c.h.b16 %v281
      %v597 = vunpack.c.l.b16 %v282
      %v598 = vunpack.c.l.b16 %v283
      %v599 = vunpack.c.h.b16 %v283
      %v600 = vunpack.c.l.b16 %v284
      %v601 = vunpack.c.h.b16 %v284
      %v602 = vunpack.c.l.b16 %v285
      %v603 = vunpack.c.l.b16 %v286
      %v604 = vunpack.c.h.b16 %v286
      %v605 = vunpack.c.l.b16 %v287
      %v606 = vunpack.c.h.b16 %v287
      %v607 = vunpack.c.l.b16 %v288
      %v608 = vunpack.c.l.b16 %v289
      %v609 = vunpack.c.h.b16 %v289
      %v610 = vunpack.c.l.b16 %v290
      %v611 = vunpack.c.h.b16 %v290
      %v612 = vunpack.c.l.b16 %v291
      %v613 = vunpack.c.l.b16 %v292
      %v614 = vunpack.c.h.b16 %v292
      %v615 = vunpack.c.l.b16 %v293
      %v616 = vunpack.c.h.b16 %v293
      %v617 = vunpack.c.l.b16 %v294
      %v618 = vunpack.c.l.b16 %v295
      %v619 = vunpack.c.h.b16 %v295
      %v620 = vunpack.c.l.b16 %v296
      %v621 = vunpack.c.h.b16 %v296
      %v622 = vunpack.c.l.b16 %v297
      %v623 = vunpack.c.l.b16 %v298
      %v624 = vunpack.c.h.b16 %v298
      %v625 = vunpack.c.l.b16 %v299
      %v626 = vunpack.c.h.b16 %v299
      %v627 = vunpack.c.l.b16 %v300
      %v628 = vunpack.c.l.b16 %v301
      %v629 = vunpack.c.h.b16 %v301
      %v630 = vunpack.c.l.b16 %v302
      %v631 = vunpack.c.h.b16 %v302
      %v632 = vunpack.c.l.b16 %v303
      %v633 = vunpack.c.l.b16 %v304
      %v634 = vunpack.c.h.b16 %v304
      %v635 = vunpack.c.l.b16 %v305
      %v636 = vunpack.c.h.b16 %v305
      %v637 = vunpack.c.l.b16 %v306
      %v638 = vunpack.c.l.b16 %v307
      %v639 = vunpack.c.h.b16 %v307
      %v640 = vunpack.c.l.b16 %v308
      %v641 = vunpack.c.h.b16 %v308
      %v642 = vunpack.c.l.b16 %v309
      %v643 = vunpack.c.l.b16 %v310
      %v644 = vunpack.c.h.b16 %v310
      %v645 = vunpack.c.l.b16 %v311
      %v646 = vunpack.c.h.b16 %v311
      %v647 = vunpack.c.l.b16 %v312
      %v648 = vunpack.c.l.b16 %v313
      %v649 = vunpack.c.h.b16 %v313
      %v650 = vunpack.c.l.b16 %v314
      %v651 = vunpack.c.h.b16 %v314
      %v652 = vunpack.c.l.b16 %v315
      %v653 = vunpack.c.l.b16 %v316
      %v654 = vunpack.c.h.b16 %v316
      %v655 = vunpack.c.l.b16 %v317
      %v656 = vunpack.c.h.b16 %v317
      %v657 = vunpack.c.l.b16 %v318
      %v658 = vunpack.c.l.b16 %v319
      %v659 = vunpack.c.h.b16 %v319
      %v660 = vunpack.c.l.b16 %v320
      %v661 = vunpack.c.h.b16 %v320
      %v662 = vunpack.c.l.b16 %v321
      %v663 = vunpack.c.l.b16 %v322
      %v664 = vunpack.c.h.b16 %v322
      %v665 = vunpack.c.l.b16 %v323
      %v666 = vunpack.c.h.b16 %v323
      %v667 = vunpack.c.l.b16 %v324
      %v668 = vpack.c.b16 %v513, %v508
      %v669 = vpack.c.b16 %v514, %v509
      %v670 = vpack.c.b16 %v515, %v510
      %v671 = vpack.c.b16 %v516, %v511
      %v672 = vpack.c.b16 %v517, %v512
      %v673 = vpack.c.b16 %v523, %v518
      %v674 = vpack.c.b16 %v524, %v519
      %v675 = vpack.c.b16 %v525, %v520
      %v676 = vpack.c.b16 %v526, %v521
      %v677 = vpack.c.b16 %v527, %v522
      %v678 = vpack.c.b16 %v533, %v528
      %v679 = vpack.c.b16 %v534, %v529
      %v680 = vpack.c.b16 %v535, %v530
      %v681 = vpack.c.b16 %v536, %v531
      %v682 = vpack.c.b16 %v537, %v532
      %v683 = vpack.c.b16 %v543, %v538
      %v684 = vpack.c.b16 %v544, %v539
      %v685 = vpack.c.b16 %v545, %v540
      %v686 = vpack.c.b16 %v546, %v541
      %v687 = vpack.c.b16 %v547, %v542
      %v688 = vpack.c.b16 %v553, %v548
      %v689 = vpack.c.b16 %v554, %v549
      %v690 = vpack.c.b16 %v555, %v550
      %v691 = vpack.c.b16 %v556, %v551
      %v692 = vpack.c.b16 %v557, %v552
      %v693 = vpack.c.b16 %v563, %v558
      %v694 = vpack.c.b16 %v564, %v559
      %v695 = vpack.c.b16 %v565, %v560
      %v696 = vpack.c.b16 %v566, %v561
      %v697 = vpack.c.b16 %v567, %v562
      %v698 = vpack.c.b16 %v573, %v568
      %v699 = vpack.c.b16 %v574, %v569
      %v700 = vpack.c.b16 %v575, %v570
      %v701 = vpack.c.b16 %v576, %v571
      %v702 = vpack.c.b16 %v577, %v572
      %v703 = vpack.c.b16 %v583, %v578
      %v704 = vpack.c.b16 %v584, %v579
      %v705 = vpack.c.b16 %v585, %v580
      %v706 = vpack.c.b16 %v586, %v581
      %v707 = vpack.c.b16 %v587, %v582
      %v708 = vpack.c.b16 %v593, %v588
      %v709 = vpack.c.b16 %v594, %v589
      %v710 = vpack.c.b16 %v595, %v590
      %v711 = vpack.c.b16 %v596, %v591
      %v712 = vpack.c.b16 %v597, %v592
      %v713 = vpack.c.b16 %v603, %v598
      %v714 = vpack.c.b16 %v604, %v599
      %v715 = vpack.c.b16 %v605, %v600
      %v716 = vpack.c.b16 %v606, %v601
      %v717 = vpack.c.b16 %v607, %v602
      %v718 = vpack.c.b16 %v613, %v608
      %v719 = vpack.c.b16 %v614, %v609
      %v720 = vpack.c.b16 %v615, %v610
      %v721 = vpack.c.b16 %v616, %v611
      %v722 = vpack.c.b16 %v617, %v612
      %v723 = vpack.c.b16 %v623, %v618
      %v724 = vpack.c.b16 %v624, %v619
      %v725 = vpack.c.b16 %v625, %v620
      %v726 = vpack.c.b16 %v626, %v621
      %v727 = vpack.c.b16 %v627, %v622
      %v728 = vpack.c.b16 %v633, %v628
      %v729 = vpack.c.b16 %v634, %v629
      %v730 = vpack.c.b16 %v635, %v630
      %v731 = vpack.c.b16 %v636, %v631
      %v732 = vpack.c.b16 %v637, %v632
      %v733 = vpack.c.b16 %v643, %v638
      %v734 = vpack.c.b16 %v644, %v639
      %v735 = vpack.c.b16 %v645, %v640
      %v736 = vpack.c.b16 %v646, %v641
      %v737 = vpack.c.b16 %v647, %v642
      %v738 = vpack.c.b16 %v653, %v648
      %v739 = vpack.c.b16 %v654, %v649
      %v740 = vpack.c.b16 %v655, %v650
      %v741 = vpack.c.b16 %v656, %v651
      %v742 = vpack.c.b16 %v657, %v652
      %v743 = vpack.c.b16 %v663, %v658
      %v744 = vpack.c.b16 %v664, %v659
      %v745 = vpack.c.b16 %v665, %v660
      %v746 = vpack.c.b16 %v666, %v661
      %v747 = vpack.c.b16 %v667, %v662
      %v908 = vunpack.c.l.b16 %v325
      %v909 = vunpack.c.l.b16 %v326
      %v910 = vunpack.c.l.b16 %v327
      %v911 = vunpack.c.l.b16 %v328
      %v912 = vunpack.c.l.b16 %v329
      %v913 = vunpack.c.l.b16 %v330
      %v914 = vunpack.c.l.b16 %v331
      %v915 = vunpack.c.l.b16 %v332
      %v916 = vunpack.c.l.b16 %v333
      %v917 = vunpack.c.l.b16 %v334
      %v918 = vunpack.c.l.b16 %v335
      %v919 = vunpack.c.l.b16 %v336
      %v920 = vunpack.c.l.b16 %v337
      %v921 = vunpack.c.l.b16 %v338
      %v922 = vunpack.c.l.b16 %v339
      %v923 = vunpack.c.l.b16 %v340
      %v924 = vunpack.c.l.b16 %v341
      %v925 = vunpack.c.l.b16 %v342
      %v926 = vunpack.c.l.b16 %v343
      %v927 = vunpack.c.l.b16 %v344
      %v928 = vunpack.c.l.b16 %v345
      %v929 = vunpack.c.l.b16 %v346
      %v930 = vunpack.c.l.b16 %v347
      %v931 = vunpack.c.l.b16 %v348
      %v932 = vunpack.c.l.b16 %v349
      %v933 = vunpack.c.l.b16 %v350
      %v934 = vunpack.c.l.b16 %v351
      %v935 = vunpack.c.l.b16 %v352
      %v936 = vunpack.c.l.b16 %v353
      %v937 = vunpack.c.l.b16 %v354
      %v938 = vunpack.c.l.b16 %v355
      %v939 = vunpack.c.l.b16 %v356
      %v940 = vunpack.c.l.b16 %v357
      %v941 = vunpack.c.l.b16 %v358
      %v942 = vunpack.c.l.b16 %v359
      %v943 = vunpack.c.l.b16 %v360
      %v944 = vunpack.c.l.b16 %v361
      %v945 = vunpack.c.l.b16 %v362
      %v946 = vunpack.c.l.b16 %v363
      %v947 = vunpack.c.l.b16 %v364
      %v948 = vunpack.c.l.b16 %v365
      %v949 = vunpack.c.l.b16 %v366
      %v950 = vunpack.c.l.b16 %v367
      %v951 = vunpack.c.l.b16 %v368
      %v952 = vunpack.c.l.b16 %v369
      %v953 = vunpack.c.l.b16 %v370
      %v954 = vunpack.c.l.b16 %v371
      %v955 = vunpack.c.l.b16 %v372
      %v956 = vunpack.c.l.b16 %v373
      %v957 = vunpack.c.l.b16 %v374
      %v958 = vunpack.c.l.b16 %v375
      %v959 = vunpack.c.l.b16 %v376
      %v960 = vunpack.c.l.b16 %v377
      %v961 = vunpack.c.l.b16 %v378
      %v962 = vunpack.c.l.b16 %v379
      %v963 = vunpack.c.l.b16 %v380
      %v964 = vunpack.c.l.b16 %v381
      %v965 = vunpack.c.l.b16 %v382
      %v966 = vunpack.c.l.b16 %v383
      %v967 = vunpack.c.l.b16 %v384
      %v968 = vunpack.c.l.b16 %v385
      %v969 = vunpack.c.l.b16 %v386
      %v970 = vunpack.c.l.b16 %v387
      %v971 = vunpack.c.l.b16 %v388
      %v972 = vunpack.c.l.b16 %v389
      %v973 = vunpack.c.l.b16 %v390
      %v974 = vunpack.c.l.b16 %v391
      %v975 = vunpack.c.l.b16 %v392
      %v976 = vunpack.c.l.b16 %v393
      %v977 = vunpack.c.l.b16 %v394
      %v978 = vunpack.c.l.b16 %v395
      %v979 = vunpack.c.l.b16 %v396
      %v980 = vunpack.c.l.b16 %v397
      %v981 = vunpack.c.l.b16 %v398
      %v982 = vunpack.c.l.b16 %v399
      %v983 = vunpack.c.l.b16 %v400
      %v984 = vunpack.c.l.b16 %v401
      %v985 = vunpack.c.l.b16 %v402
      %v986 = vunpack.c.l.b16 %v403
      %v987 = vunpack.c.l.b16 %v404
      %v988 = vpack.c.b16 %v909, %v908
      %v989 = vpack.c.b16 %v911, %v910
      %v990 = vpack.c.b16 %v913, %v912
      %v991 = vpack.c.b16 %v915, %v914
      %v992 = vpack.c.b16 %v917, %v916
      %v993 = vpack.c.b16 %v919, %v918
      %v994 = vpack.c.b16 %v921, %v920
      %v995 = vpack.c.b16 %v923, %v922
      %v996 = vpack.c.b16 %v925, %v924
      %v997 = vpack.c.b16 %v927, %v926
      %v998 = vpack.c.b16 %v929, %v928
      %v999 = vpack.c.b16 %v931, %v930
      %v1000 = vpack.c.b16 %v933, %v932
      %v1001 = vpack.c.b16 %v935, %v934
      %v1002 = vpack.c.b16 %v937, %v936
      %v1003 = vpack.c.b16 %v939, %v938
      %v1004 = vpack.c.b16 %v941, %v940
      %v1005 = vpack.c.b16 %v943, %v942
      %v1006 = vpack.c.b16 %v945, %v944
      %v1007 = vpack.c.b16 %v947, %v946
      %v1008 = vpack.c.b16 %v949, %v948
      %v1009 = vpack.c.b16 %v951, %v950
      %v1010 = vpack.c.b16 %v953, %v952
      %v1011 = vpack.c.b16 %v955, %v954
      %v1012 = vpack.c.b16 %v957, %v956
      %v1013 = vpack.c.b16 %v959, %v958
      %v1014 = vpack.c.b16 %v961, %v960
      %v1015 = vpack.c.b16 %v963, %v962
      %v1016 = vpack.c.b16 %v965, %v964
      %v1017 = vpack.c.b16 %v967, %v966
      %v1018 = vpack.c.b16 %v969, %v968
      %v1019 = vpack.c.b16 %v971, %v970
      %v1020 = vpack.c.b16 %v973, %v972
      %v1021 = vpack.c.b16 %v975, %v974
      %v1022 = vpack.c.b16 %v977, %v976
      %v1023 = vpack.c.b16 %v979, %v978
      %v1024 = vpack.c.b16 %v981, %v980
      %v1025 = vpack.c.b16 %v983, %v982
      %v1026 = vpack.c.b16 %v985, %v984
      %v1027 = vpack.c.b16 %v987, %v986
      %1068 = vmatprep.subr.bf16.mxu0 0
      %1069 = vmatpush1.bf16.msra.mxu0 %v995
      %1070 = vmatprep.subr.bf16.mxu0 0
      %1071 = vmatpush1.bf16.msra.mxu0 %v994
      %1072 = vmatprep.subr.bf16.mxu0 0
      %1073 = vmatpush1.bf16.msra.mxu0 %v993
      %1074 = vmatprep.subr.bf16.mxu0 0
      %1075 = vmatpush1.bf16.msra.mxu0 %v992
      %1076 = vmatprep.subr.bf16.mxu0 0
      %1077 = vmatpush1.bf16.msra.mxu0 %v991
      %1078 = vmatprep.subr.bf16.mxu0 0
      %1079 = vmatpush1.bf16.msra.mxu0 %v990
      %1080 = vmatprep.subr.bf16.mxu0 0
      %1081 = vmatpush1.bf16.msra.mxu0 %v989
      %1082 = vmatprep.subr.bf16.mxu0 0
      %1083 = vmatpush1.bf16.msra.mxu0 %v988
      %1084 = vmatprep.subr.bf16.mxu0 0
      %1085 = vmatpush2.bf16.msra.mxu0 %v1003
      %1086 = vmatprep.subr.bf16.mxu0 0
      %1087 = vmatpush2.bf16.msra.mxu0 %v1002
      %1088 = vmatprep.subr.bf16.mxu0 0
      %1089 = vmatpush2.bf16.msra.mxu0 %v1001
      %1090 = vmatprep.subr.bf16.mxu0 0
      %1091 = vmatpush2.bf16.msra.mxu0 %v1000
      %1092 = vmatprep.subr.bf16.mxu0 0
      %1093 = vmatpush2.bf16.msra.mxu0 %v999
      %1094 = vmatprep.subr.bf16.mxu0 0
      %1095 = vmatpush2.bf16.msra.mxu0 %v998
      %1096 = vmatprep.subr.bf16.mxu0 0
      %1097 = vmatpush2.bf16.msra.mxu0 %v997
      %1098 = vmatprep.subr.bf16.mxu0 0
      %1099 = vmatpush2.bf16.msra.mxu0 %v996
      %1100 = vmatprep.mubr.bf16.mxu0 %v669
      %1101 = vmatmul.mubr.bf16.gmra.mxu0 %v668
      %v1102 = vpop.f32.mrf.mxu0
      %v1103 = vadd.f32 %v410, %v1102
      %v1104 = vpop.f32.mrf.mxu0
      %v1105 = vpop.f32.mrf.mxu0
      %v1106 = vadd.f32 %v410, %v1105
      %v1107 = vpop.f32.mrf.mxu0
      %1108 = vmatprep.mubr.bf16.mxu0 %v674
      %1109 = vmatmul.mubr.bf16.gmra.mxu0 %v673
      %v1110 = vpop.f32.mrf.mxu0
      %v1111 = vadd.f32 %v410, %v1110
      %v1112 = vpop.f32.mrf.mxu0
      %v1113 = vpop.f32.mrf.mxu0
      %v1114 = vadd.f32 %v410, %v1113
      %v1115 = vpop.f32.mrf.mxu0
      %1116 = vmatprep.mubr.bf16.mxu0 %v679
      %1117 = vmatmul.mubr.bf16.gmra.mxu0 %v678
      %v1118 = vpop.f32.mrf.mxu0
      %v1119 = vadd.f32 %v410, %v1118
      %v1120 = vpop.f32.mrf.mxu0
      %v1121 = vpop.f32.mrf.mxu0
      %v1122 = vadd.f32 %v410, %v1121
      %v1123 = vpop.f32.mrf.mxu0
      %1124 = vmatprep.mubr.bf16.mxu0 %v684
      %1125 = vmatmul.mubr.bf16.gmra.mxu0 %v683
      %v1126 = vpop.f32.mrf.mxu0
      %v1127 = vadd.f32 %v410, %v1126
      %v1128 = vpop.f32.mrf.mxu0
      %v1129 = vpop.f32.mrf.mxu0
      %v1130 = vadd.f32 %v410, %v1129
      %v1131 = vpop.f32.mrf.mxu0
      %1132 = vmatprep.mubr.bf16.mxu0 %v689
      %1133 = vmatmul.mubr.bf16.gmra.mxu0 %v688
      %v1134 = vpop.f32.mrf.mxu0
      %v1135 = vadd.f32 %v410, %v1134
      %v1136 = vpop.f32.mrf.mxu0
      %v1137 = vpop.f32.mrf.mxu0
      %v1138 = vadd.f32 %v410, %v1137
      %v1139 = vpop.f32.mrf.mxu0
      %1140 = vmatprep.mubr.bf16.mxu0 %v694
      %1141 = vmatmul.mubr.bf16.gmra.mxu0 %v693
      %v1142 = vpop.f32.mrf.mxu0
      %v1143 = vadd.f32 %v410, %v1142
      %v1144 = vpop.f32.mrf.mxu0
      %v1145 = vpop.f32.mrf.mxu0
      %v1146 = vadd.f32 %v410, %v1145
      %v1147 = vpop.f32.mrf.mxu0
      %1148 = vmatprep.mubr.bf16.mxu0 %v699
      %1149 = vmatmul.mubr.bf16.gmra.mxu0 %v698
      %v1150 = vpop.f32.mrf.mxu0
      %v1151 = vadd.f32 %v410, %v1150
      %v1152 = vpop.f32.mrf.mxu0
      %v1153 = vpop.f32.mrf.mxu0
      %v1154 = vadd.f32 %v410, %v1153
      %v1155 = vpop.f32.mrf.mxu0
      %1156 = vmatprep.mubr.bf16.mxu0 %v704
      %1157 = vmatmul.mubr.bf16.gmra.mxu0 %v703
      %v1158 = vpop.f32.mrf.mxu0
      %v1159 = vadd.f32 %v410, %v1158
      %v1160 = vpop.f32.mrf.mxu0
      %v1161 = vpop.f32.mrf.mxu0
      %v1162 = vadd.f32 %v410, %v1161
      %v1163 = vpop.f32.mrf.mxu0
      %1164 = vmatprep.mubr.bf16.mxu0 %v709
      %1165 = vmatmul.mubr.bf16.gmra.mxu0 %v708
      %v1166 = vpop.f32.mrf.mxu0
      %v1167 = vadd.f32 %v410, %v1166
      %v1168 = vpop.f32.mrf.mxu0
      %v1169 = vpop.f32.mrf.mxu0
      %v1170 = vadd.f32 %v410, %v1169
      %v1171 = vpop.f32.mrf.mxu0
      %1172 = vmatprep.mubr.bf16.mxu0 %v714
      %1173 = vmatmul.mubr.bf16.gmra.mxu0 %v713
      %v1174 = vpop.f32.mrf.mxu0
      %v1175 = vadd.f32 %v410, %v1174
      %v1176 = vpop.f32.mrf.mxu0
      %v1177 = vpop.f32.mrf.mxu0
      %v1178 = vadd.f32 %v410, %v1177
      %v1179 = vpop.f32.mrf.mxu0
      %1180 = vmatprep.mubr.bf16.mxu0 %v719
      %1181 = vmatmul.mubr.bf16.gmra.mxu0 %v718
      %v1182 = vpop.f32.mrf.mxu0
      %v1183 = vadd.f32 %v410, %v1182
      %v1184 = vpop.f32.mrf.mxu0
      %v1185 = vpop.f32.mrf.mxu0
      %v1186 = vadd.f32 %v410, %v1185
      %v1187 = vpop.f32.mrf.mxu0
      %1188 = vmatprep.mubr.bf16.mxu0 %v724
      %1189 = vmatmul.mubr.bf16.gmra.mxu0 %v723
      %v1190 = vpop.f32.mrf.mxu0
      %v1191 = vadd.f32 %v410, %v1190
      %v1192 = vpop.f32.mrf.mxu0
      %v1193 = vpop.f32.mrf.mxu0
      %v1194 = vadd.f32 %v410, %v1193
      %v1195 = vpop.f32.mrf.mxu0
      %1196 = vmatprep.mubr.bf16.mxu0 %v729
      %1197 = vmatmul.mubr.bf16.gmra.mxu0 %v728
      %v1198 = vpop.f32.mrf.mxu0
      %v1199 = vadd.f32 %v410, %v1198
      %v1200 = vpop.f32.mrf.mxu0
      %v1201 = vpop.f32.mrf.mxu0
      %v1202 = vadd.f32 %v410, %v1201
      %v1203 = vpop.f32.mrf.mxu0
      %1204 = vmatprep.mubr.bf16.mxu0 %v734
      %1205 = vmatmul.mubr.bf16.gmra.mxu0 %v733
      %v1206 = vpop.f32.mrf.mxu0
      %v1207 = vadd.f32 %v410, %v1206
      %v1208 = vpop.f32.mrf.mxu0
      %v1209 = vpop.f32.mrf.mxu0
      %v1210 = vadd.f32 %v410, %v1209
      %v1211 = vpop.f32.mrf.mxu0
      %1212 = vmatprep.mubr.bf16.mxu0 %v739
      %1213 = vmatmul.mubr.bf16.gmra.mxu0 %v738
      %v1214 = vpop.f32.mrf.mxu0
      %v1215 = vadd.f32 %v410, %v1214
      %v1216 = vpop.f32.mrf.mxu0
      %v1217 = vpop.f32.mrf.mxu0
      %v1218 = vadd.f32 %v410, %v1217
      %v1219 = vpop.f32.mrf.mxu0
      %1220 = vmatprep.mubr.bf16.mxu0 %v744
      %1221 = vmatmul.mubr.bf16.gmra.mxu0 %v743
      %v1222 = vpop.f32.mrf.mxu0
      %v1223 = vadd.f32 %v410, %v1222
      %v1224 = vpop.f32.mrf.mxu0
      %v1225 = vpop.f32.mrf.mxu0
      %v1226 = vadd.f32 %v410, %v1225
      %v1227 = vpop.f32.mrf.mxu0
      %1228 = vdwg.mxu0
      %1229 = vmatprep.subr.bf16.mxu0 0
      %1230 = vmatpush1.bf16.msra.mxu0 %v1011
      %1231 = vmatprep.subr.bf16.mxu0 0
      %1232 = vmatpush1.bf16.msra.mxu0 %v1010
      %1233 = vmatprep.subr.bf16.mxu0 0
      %1234 = vmatpush1.bf16.msra.mxu0 %v1009
      %1235 = vmatprep.subr.bf16.mxu0 0
      %1236 = vmatpush1.bf16.msra.mxu0 %v1008
      %1237 = vmatprep.subr.bf16.mxu0 0
      %1238 = vmatpush1.bf16.msra.mxu0 %v1007
      %1239 = vmatprep.subr.bf16.mxu0 0
      %1240 = vmatpush1.bf16.msra.mxu0 %v1006
      %1241 = vmatprep.subr.bf16.mxu0 0
      %1242 = vmatpush1.bf16.msra.mxu0 %v1005
      %1243 = vmatprep.subr.bf16.mxu0 0
      %1244 = vmatpush1.bf16.msra.mxu0 %v1004
      %1245 = vmatprep.subr.bf16.mxu0 0
      %1246 = vmatpush2.bf16.msra.mxu0 %v1019
      %1247 = vmatprep.subr.bf16.mxu0 0
      %1248 = vmatpush2.bf16.msra.mxu0 %v1018
      %1249 = vmatprep.subr.bf16.mxu0 0
      %1250 = vmatpush2.bf16.msra.mxu0 %v1017
      %1251 = vmatprep.subr.bf16.mxu0 0
      %1252 = vmatpush2.bf16.msra.mxu0 %v1016
      %1253 = vmatprep.subr.bf16.mxu0 0
      %1254 = vmatpush2.bf16.msra.mxu0 %v1015
      %1255 = vmatprep.subr.bf16.mxu0 0
      %1256 = vmatpush2.bf16.msra.mxu0 %v1014
      %1257 = vmatprep.subr.bf16.mxu0 0
      %1258 = vmatpush2.bf16.msra.mxu0 %v1013
      %1259 = vmatprep.subr.bf16.mxu0 0
      %1260 = vmatpush2.bf16.msra.mxu0 %v1012
      %1261 = vmatprep.mubr.bf16.mxu0 %v671
      %1262 = vmatmul.mubr.bf16.gmra.mxu0 %v670
      %v1263 = vpop.f32.mrf.mxu0
      %v1264 = vadd.f32 %v1103, %v1263
      %v1265 = vpop.f32.mrf.mxu0
      %v1266 = vpop.f32.mrf.mxu0
      %v1267 = vadd.f32 %v1106, %v1266
      %v1268 = vpop.f32.mrf.mxu0
      %1269 = vmatprep.mubr.bf16.mxu0 %v676
      %1270 = vmatmul.mubr.bf16.gmra.mxu0 %v675
      %v1271 = vpop.f32.mrf.mxu0
      %v1272 = vadd.f32 %v1111, %v1271
      %v1273 = vpop.f32.mrf.mxu0
      %v1274 = vpop.f32.mrf.mxu0
      %v1275 = vadd.f32 %v1114, %v1274
      %v1276 = vpop.f32.mrf.mxu0
      %1277 = vmatprep.mubr.bf16.mxu0 %v681
      %1278 = vmatmul.mubr.bf16.gmra.mxu0 %v680
      %v1279 = vpop.f32.mrf.mxu0
      %v1280 = vadd.f32 %v1119, %v1279
      %v1281 = vpop.f32.mrf.mxu0
      %v1282 = vpop.f32.mrf.mxu0
      %v1283 = vadd.f32 %v1122, %v1282
      %v1284 = vpop.f32.mrf.mxu0
      %1285 = vmatprep.mubr.bf16.mxu0 %v686
      %1286 = vmatmul.mubr.bf16.gmra.mxu0 %v685
      %v1287 = vpop.f32.mrf.mxu0
      %v1288 = vadd.f32 %v1127, %v1287
      %v1289 = vpop.f32.mrf.mxu0
      %v1290 = vpop.f32.mrf.mxu0
      %v1291 = vadd.f32 %v1130, %v1290
      %v1292 = vpop.f32.mrf.mxu0
      %1293 = vmatprep.mubr.bf16.mxu0 %v691
      %1294 = vmatmul.mubr.bf16.gmra.mxu0 %v690
      %v1295 = vpop.f32.mrf.mxu0
      %v1296 = vadd.f32 %v1135, %v1295
      %v1297 = vpop.f32.mrf.mxu0
      %v1298 = vpop.f32.mrf.mxu0
      %v1299 = vadd.f32 %v1138, %v1298
      %v1300 = vpop.f32.mrf.mxu0
      %1301 = vmatprep.mubr.bf16.mxu0 %v696
      %1302 = vmatmul.mubr.bf16.gmra.mxu0 %v695
      %v1303 = vpop.f32.mrf.mxu0
      %v1304 = vadd.f32 %v1143, %v1303
      %v1305 = vpop.f32.mrf.mxu0
      %v1306 = vpop.f32.mrf.mxu0
      %v1307 = vadd.f32 %v1146, %v1306
      %v1308 = vpop.f32.mrf.mxu0
      %1309 = vmatprep.mubr.bf16.mxu0 %v701
      %1310 = vmatmul.mubr.bf16.gmra.mxu0 %v700
      %v1311 = vpop.f32.mrf.mxu0
      %v1312 = vadd.f32 %v1151, %v1311
      %v1313 = vpop.f32.mrf.mxu0
      %v1314 = vpop.f32.mrf.mxu0
      %v1315 = vadd.f32 %v1154, %v1314
      %v1316 = vpop.f32.mrf.mxu0
      %1317 = vmatprep.mubr.bf16.mxu0 %v706
      %1318 = vmatmul.mubr.bf16.gmra.mxu0 %v705
      %v1319 = vpop.f32.mrf.mxu0
      %v1320 = vadd.f32 %v1159, %v1319
      %v1321 = vpop.f32.mrf.mxu0
      %v1322 = vpop.f32.mrf.mxu0
      %v1323 = vadd.f32 %v1162, %v1322
      %v1324 = vpop.f32.mrf.mxu0
      %1325 = vmatprep.mubr.bf16.mxu0 %v711
      %1326 = vmatmul.mubr.bf16.gmra.mxu0 %v710
      %v1327 = vpop.f32.mrf.mxu0
      %v1328 = vadd.f32 %v1167, %v1327
      %v1329 = vpop.f32.mrf.mxu0
      %v1330 = vpop.f32.mrf.mxu0
      %v1331 = vadd.f32 %v1170, %v1330
      %v1332 = vpop.f32.mrf.mxu0
      %1333 = vmatprep.mubr.bf16.mxu0 %v716
      %1334 = vmatmul.mubr.bf16.gmra.mxu0 %v715
      %v1335 = vpop.f32.mrf.mxu0
      %v1336 = vadd.f32 %v1175, %v1335
      %v1337 = vpop.f32.mrf.mxu0
      %v1338 = vpop.f32.mrf.mxu0
      %v1339 = vadd.f32 %v1178, %v1338
      %v1340 = vpop.f32.mrf.mxu0
      %1341 = vmatprep.mubr.bf16.mxu0 %v721
      %1342 = vmatmul.mubr.bf16.gmra.mxu0 %v720
      %v1343 = vpop.f32.mrf.mxu0
      %v1344 = vadd.f32 %v1183, %v1343
      %v1345 = vpop.f32.mrf.mxu0
      %v1346 = vpop.f32.mrf.mxu0
      %v1347 = vadd.f32 %v1186, %v1346
      %v1348 = vpop.f32.mrf.mxu0
      %1349 = vmatprep.mubr.bf16.mxu0 %v726
      %1350 = vmatmul.mubr.bf16.gmra.mxu0 %v725
      %v1351 = vpop.f32.mrf.mxu0
      %v1352 = vadd.f32 %v1191, %v1351
      %v1353 = vpop.f32.mrf.mxu0
      %v1354 = vpop.f32.mrf.mxu0
      %v1355 = vadd.f32 %v1194, %v1354
      %v1356 = vpop.f32.mrf.mxu0
      %1357 = vmatprep.mubr.bf16.mxu0 %v731
      %1358 = vmatmul.mubr.bf16.gmra.mxu0 %v730
      %v1359 = vpop.f32.mrf.mxu0
      %v1360 = vadd.f32 %v1199, %v1359
      %v1361 = vpop.f32.mrf.mxu0
      %v1362 = vpop.f32.mrf.mxu0
      %v1363 = vadd.f32 %v1202, %v1362
      %v1364 = vpop.f32.mrf.mxu0
      %1365 = vmatprep.mubr.bf16.mxu0 %v736
      %1366 = vmatmul.mubr.bf16.gmra.mxu0 %v735
      %v1367 = vpop.f32.mrf.mxu0
      %v1368 = vadd.f32 %v1207, %v1367
      %v1369 = vpop.f32.mrf.mxu0
      %v1370 = vpop.f32.mrf.mxu0
      %v1371 = vadd.f32 %v1210, %v1370
      %v1372 = vpop.f32.mrf.mxu0
      %1373 = vmatprep.mubr.bf16.mxu0 %v741
      %1374 = vmatmul.mubr.bf16.gmra.mxu0 %v740
      %v1375 = vpop.f32.mrf.mxu0
      %v1376 = vadd.f32 %v1215, %v1375
      %v1377 = vpop.f32.mrf.mxu0
      %v1378 = vpop.f32.mrf.mxu0
      %v1379 = vadd.f32 %v1218, %v1378
      %v1380 = vpop.f32.mrf.mxu0
      %1381 = vmatprep.mubr.bf16.mxu0 %v746
      %1382 = vmatmul.mubr.bf16.gmra.mxu0 %v745
      %v1383 = vpop.f32.mrf.mxu0
      %v1384 = vadd.f32 %v1223, %v1383
      %v1385 = vpop.f32.mrf.mxu0
      %v1386 = vpop.f32.mrf.mxu0
      %v1387 = vadd.f32 %v1226, %v1386
      %v1388 = vpop.f32.mrf.mxu0
      %1389 = vdwg.mxu0
      %1390 = vmatprep.subr.bf16.mxu0 0
      %1391 = vmatpush1.bf16.msra.mxu0 %v1027
      %1392 = vmatprep.subr.bf16.mxu0 0
      %1393 = vmatpush1.bf16.msra.mxu0 %v1026
      %1394 = vmatprep.subr.bf16.mxu0 0
      %1395 = vmatpush1.bf16.msra.mxu0 %v1025
      %1396 = vmatprep.subr.bf16.mxu0 0
      %1397 = vmatpush1.bf16.msra.mxu0 %v1024
      %1398 = vmatprep.subr.bf16.mxu0 0
      %1399 = vmatpush1.bf16.msra.mxu0 %v1023
      %1400 = vmatprep.subr.bf16.mxu0 0
      %1401 = vmatpush1.bf16.msra.mxu0 %v1022
      %1402 = vmatprep.subr.bf16.mxu0 0
      %1403 = vmatpush1.bf16.msra.mxu0 %v1021
      %1404 = vmatprep.subr.bf16.mxu0 0
      %1405 = vmatpush1.bf16.msra.mxu0 %v1020
      %1406 = vmatprep.subr.bf16.mxu0 0
      %1407 = vmatpush2.bf16.msra.mxu0 0
      %1408 = vmatprep.subr.bf16.mxu0 0
      %1409 = vmatpush2.bf16.msra.mxu0 0
      %1410 = vmatprep.subr.bf16.mxu0 0
      %1411 = vmatpush2.bf16.msra.mxu0 0
      %1412 = vmatprep.subr.bf16.mxu0 0
      %1413 = vmatpush2.bf16.msra.mxu0 0
      %1414 = vmatprep.subr.bf16.mxu0 0
      %1415 = vmatpush2.bf16.msra.mxu0 0
      %1416 = vmatprep.subr.bf16.mxu0 0
      %1417 = vmatpush2.bf16.msra.mxu0 0
      %1418 = vmatprep.subr.bf16.mxu0 0
      %1419 = vmatpush2.bf16.msra.mxu0 0
      %1420 = vmatprep.subr.bf16.mxu0 0
      %1421 = vmatpush2.bf16.msra.mxu0 0
      %1422 = vmatprep.mubr.bf16.mxu0 0
      %1423 = vmatmul.mubr.bf16.gmra.mxu0 %v672
      %v1424 = vpop.f32.mrf.mxu0
      %v1425 = vadd.f32 %v1264, %v1424
      %v1426 = vpop.f32.mrf.mxu0
      %v1427 = vpop.f32.mrf.mxu0
      %v1428 = vadd.f32 %v1267, %v1427
      %v1429 = vpop.f32.mrf.mxu0
      %1430 = vmatprep.mubr.bf16.mxu0 0
      %1431 = vmatmul.mubr.bf16.gmra.mxu0 %v677
      %v1432 = vpop.f32.mrf.mxu0
      %v1433 = vadd.f32 %v1272, %v1432
      %v1434 = vpop.f32.mrf.mxu0
      %v1435 = vpop.f32.mrf.mxu0
      %v1436 = vadd.f32 %v1275, %v1435
      %v1437 = vpop.f32.mrf.mxu0
      %1438 = vmatprep.mubr.bf16.mxu0 0
      %1439 = vmatmul.mubr.bf16.gmra.mxu0 %v682
      %v1440 = vpop.f32.mrf.mxu0
      %v1441 = vadd.f32 %v1280, %v1440
      %v1442 = vpop.f32.mrf.mxu0
      %v1443 = vpop.f32.mrf.mxu0
      %v1444 = vadd.f32 %v1283, %v1443
      %v1445 = vpop.f32.mrf.mxu0
      %1446 = vmatprep.mubr.bf16.mxu0 0
      %1447 = vmatmul.mubr.bf16.gmra.mxu0 %v687
      %v1448 = vpop.f32.mrf.mxu0
      %v1449 = vadd.f32 %v1288, %v1448
      %v1450 = vpop.f32.mrf.mxu0
      %v1451 = vpop.f32.mrf.mxu0
      %v1452 = vadd.f32 %v1291, %v1451
      %v1453 = vpop.f32.mrf.mxu0
      %1454 = vmatprep.mubr.bf16.mxu0 0
      %1455 = vmatmul.mubr.bf16.gmra.mxu0 %v692
      %v1456 = vpop.f32.mrf.mxu0
      %v1457 = vadd.f32 %v1296, %v1456
      %v1458 = vpop.f32.mrf.mxu0
      %v1459 = vpop.f32.mrf.mxu0
      %v1460 = vadd.f32 %v1299, %v1459
      %v1461 = vpop.f32.mrf.mxu0
      %1462 = vmatprep.mubr.bf16.mxu0 0
      %1463 = vmatmul.mubr.bf16.gmra.mxu0 %v697
      %v1464 = vpop.f32.mrf.mxu0
      %v1465 = vadd.f32 %v1304, %v1464
      %v1466 = vpop.f32.mrf.mxu0
      %v1467 = vpop.f32.mrf.mxu0
      %v1468 = vadd.f32 %v1307, %v1467
      %v1469 = vpop.f32.mrf.mxu0
      %1470 = vmatprep.mubr.bf16.mxu0 0
      %1471 = vmatmul.mubr.bf16.gmra.mxu0 %v702
      %v1472 = vpop.f32.mrf.mxu0
      %v1473 = vadd.f32 %v1312, %v1472
      %v1474 = vpop.f32.mrf.mxu0
      %v1475 = vpop.f32.mrf.mxu0
      %v1476 = vadd.f32 %v1315, %v1475
      %v1477 = vpop.f32.mrf.mxu0
      %1478 = vmatprep.mubr.bf16.mxu0 0
      %1479 = vmatmul.mubr.bf16.gmra.mxu0 %v707
      %v1480 = vpop.f32.mrf.mxu0
      %v1481 = vadd.f32 %v1320, %v1480
      %v1482 = vpop.f32.mrf.mxu0
      %v1483 = vpop.f32.mrf.mxu0
      %v1484 = vadd.f32 %v1323, %v1483
      %v1485 = vpop.f32.mrf.mxu0
      %1486 = vmatprep.mubr.bf16.mxu0 0
      %1487 = vmatmul.mubr.bf16.gmra.mxu0 %v712
      %v1488 = vpop.f32.mrf.mxu0
      %v1489 = vadd.f32 %v1328, %v1488
      %v1490 = vpop.f32.mrf.mxu0
      %v1491 = vpop.f32.mrf.mxu0
      %v1492 = vadd.f32 %v1331, %v1491
      %v1493 = vpop.f32.mrf.mxu0
      %1494 = vmatprep.mubr.bf16.mxu0 0
      %1495 = vmatmul.mubr.bf16.gmra.mxu0 %v717
      %v1496 = vpop.f32.mrf.mxu0
      %v1497 = vadd.f32 %v1336, %v1496
      %v1498 = vpop.f32.mrf.mxu0
      %v1499 = vpop.f32.mrf.mxu0
      %v1500 = vadd.f32 %v1339, %v1499
      %v1501 = vpop.f32.mrf.mxu0
      %1502 = vmatprep.mubr.bf16.mxu0 0
      %1503 = vmatmul.mubr.bf16.gmra.mxu0 %v722
      %v1504 = vpop.f32.mrf.mxu0
      %v1505 = vadd.f32 %v1344, %v1504
      %v1506 = vpop.f32.mrf.mxu0
      %v1507 = vpop.f32.mrf.mxu0
      %v1508 = vadd.f32 %v1347, %v1507
      %v1509 = vpop.f32.mrf.mxu0
      %1510 = vmatprep.mubr.bf16.mxu0 0
      %1511 = vmatmul.mubr.bf16.gmra.mxu0 %v727
      %v1512 = vpop.f32.mrf.mxu0
      %v1513 = vadd.f32 %v1352, %v1512
      %v1514 = vpop.f32.mrf.mxu0
      %v1515 = vpop.f32.mrf.mxu0
      %v1516 = vadd.f32 %v1355, %v1515
      %v1517 = vpop.f32.mrf.mxu0
      %1518 = vmatprep.mubr.bf16.mxu0 0
      %1519 = vmatmul.mubr.bf16.gmra.mxu0 %v732
      %v1520 = vpop.f32.mrf.mxu0
      %v1521 = vadd.f32 %v1360, %v1520
      %v1522 = vpop.f32.mrf.mxu0
      %v1523 = vpop.f32.mrf.mxu0
      %v1524 = vadd.f32 %v1363, %v1523
      %v1525 = vpop.f32.mrf.mxu0
      %1526 = vmatprep.mubr.bf16.mxu0 0
      %1527 = vmatmul.mubr.bf16.gmra.mxu0 %v737
      %v1528 = vpop.f32.mrf.mxu0
      %v1529 = vadd.f32 %v1368, %v1528
      %v1530 = vpop.f32.mrf.mxu0
      %v1531 = vpop.f32.mrf.mxu0
      %v1532 = vadd.f32 %v1371, %v1531
      %v1533 = vpop.f32.mrf.mxu0
      %1534 = vmatprep.mubr.bf16.mxu0 0
      %1535 = vmatmul.mubr.bf16.gmra.mxu0 %v742
      %v1536 = vpop.f32.mrf.mxu0
      %v1537 = vadd.f32 %v1376, %v1536
      %v1538 = vpop.f32.mrf.mxu0
      %v1539 = vpop.f32.mrf.mxu0
      %v1540 = vadd.f32 %v1379, %v1539
      %v1541 = vpop.f32.mrf.mxu0
      %1542 = vmatprep.mubr.bf16.mxu0 0
      %1543 = vmatmul.mubr.bf16.gmra.mxu0 %v747
      %v1544 = vpop.f32.mrf.mxu0
      %v1545 = vadd.f32 %v1384, %v1544
      %v1546 = vpop.f32.mrf.mxu0
      %v1547 = vpop.f32.mrf.mxu0
      %v1548 = vadd.f32 %v1387, %v1547
      %v1549 = vpop.f32.mrf.mxu0
      %1550 = vdwg.mxu0
      %vm1551 = vcmp.ge.f32.partialorder %v1425, 0.0
      %vm1552 = vcmp.ge.f32.partialorder %v1428, 0.0
      %vm1553 = vcmp.ge.f32.partialorder %v1433, 0.0
      %vm1554 = vcmp.ge.f32.partialorder %v1436, 0.0
      %vm1555 = vcmp.ge.f32.partialorder %v1441, 0.0
      %vm1556 = vcmp.ge.f32.partialorder %v1444, 0.0
      %vm1557 = vcmp.ge.f32.partialorder %v1449, 0.0
      %vm1558 = vcmp.ge.f32.partialorder %v1452, 0.0
      %vm1559 = vcmp.ge.f32.partialorder %v1457, 0.0
      %vm1560 = vcmp.ge.f32.partialorder %v1460, 0.0
      %vm1561 = vcmp.ge.f32.partialorder %v1465, 0.0
      %vm1562 = vcmp.ge.f32.partialorder %v1468, 0.0
      %vm1563 = vcmp.ge.f32.partialorder %v1473, 0.0
      %vm1564 = vcmp.ge.f32.partialorder %v1476, 0.0
      %vm1565 = vcmp.ge.f32.partialorder %v1481, 0.0
      %vm1566 = vcmp.ge.f32.partialorder %v1484, 0.0
      %vm1567 = vcmp.ge.f32.partialorder %v1489, 0.0
      %vm1568 = vcmp.ge.f32.partialorder %v1492, 0.0
      %vm1569 = vcmp.ge.f32.partialorder %v1497, 0.0
      %vm1570 = vcmp.ge.f32.partialorder %v1500, 0.0
      %vm1571 = vcmp.ge.f32.partialorder %v1505, 0.0
      %vm1572 = vcmp.ge.f32.partialorder %v1508, 0.0
      %vm1573 = vcmp.ge.f32.partialorder %v1513, 0.0
      %vm1574 = vcmp.ge.f32.partialorder %v1516, 0.0
      %vm1575 = vcmp.ge.f32.partialorder %v1521, 0.0
      %vm1576 = vcmp.ge.f32.partialorder %v1524, 0.0
      %vm1577 = vcmp.ge.f32.partialorder %v1529, 0.0
      %vm1578 = vcmp.ge.f32.partialorder %v1532, 0.0
      %vm1579 = vcmp.ge.f32.partialorder %v1537, 0.0
      %vm1580 = vcmp.ge.f32.partialorder %v1540, 0.0
      %vm1581 = vcmp.ge.f32.partialorder %v1545, 0.0
      %vm1582 = vcmp.ge.f32.partialorder %v1548, 0.0
      %v1583 = vmul.f32 %v1425, 0.2
      %v1584 = vmul.f32 %v1428, 0.2
      %v1585 = vmul.f32 %v1433, 0.2
      %v1586 = vmul.f32 %v1436, 0.2
      %v1587 = vmul.f32 %v1441, 0.2
      %v1588 = vmul.f32 %v1444, 0.2
      %v1589 = vmul.f32 %v1449, 0.2
      %v1590 = vmul.f32 %v1452, 0.2
      %v1591 = vmul.f32 %v1457, 0.2
      %v1592 = vmul.f32 %v1460, 0.2
      %v1593 = vmul.f32 %v1465, 0.2
      %v1594 = vmul.f32 %v1468, 0.2
      %v1595 = vmul.f32 %v1473, 0.2
      %v1596 = vmul.f32 %v1476, 0.2
      %v1597 = vmul.f32 %v1481, 0.2
      %v1598 = vmul.f32 %v1484, 0.2
      %v1599 = vmul.f32 %v1489, 0.2
      %v1600 = vmul.f32 %v1492, 0.2
      %v1601 = vmul.f32 %v1497, 0.2
      %v1602 = vmul.f32 %v1500, 0.2
      %v1603 = vmul.f32 %v1505, 0.2
      %v1604 = vmul.f32 %v1508, 0.2
      %v1605 = vmul.f32 %v1513, 0.2
      %v1606 = vmul.f32 %v1516, 0.2
      %v1607 = vmul.f32 %v1521, 0.2
      %v1608 = vmul.f32 %v1524, 0.2
      %v1609 = vmul.f32 %v1529, 0.2
      %v1610 = vmul.f32 %v1532, 0.2
      %v1611 = vmul.f32 %v1537, 0.2
      %v1612 = vmul.f32 %v1540, 0.2
      %v1613 = vmul.f32 %v1545, 0.2
      %v1614 = vmul.f32 %v1548, 0.2
      %v1615 = vsel %vm1551, %v1425, %v1583
      %v1616 = vsel %vm1552, %v1428, %v1584
      %v1617 = vsel %vm1553, %v1433, %v1585
      %v1618 = vsel %vm1554, %v1436, %v1586
      %v1619 = vsel %vm1555, %v1441, %v1587
      %v1620 = vsel %vm1556, %v1444, %v1588
      %v1621 = vsel %vm1557, %v1449, %v1589
      %v1622 = vsel %vm1558, %v1452, %v1590
      %v1623 = vsel %vm1559, %v1457, %v1591
      %v1624 = vsel %vm1560, %v1460, %v1592
      %v1625 = vsel %vm1561, %v1465, %v1593
      %v1626 = vsel %vm1562, %v1468, %v1594
      %v1627 = vsel %vm1563, %v1473, %v1595
      %v1628 = vsel %vm1564, %v1476, %v1596
      %v1629 = vsel %vm1565, %v1481, %v1597
      %v1630 = vsel %vm1566, %v1484, %v1598
      %v1631 = vsel %vm1567, %v1489, %v1599
      %v1632 = vsel %vm1568, %v1492, %v1600
      %v1633 = vsel %vm1569, %v1497, %v1601
      %v1634 = vsel %vm1570, %v1500, %v1602
      %v1635 = vsel %vm1571, %v1505, %v1603
      %v1636 = vsel %vm1572, %v1508, %v1604
      %v1637 = vsel %vm1573, %v1513, %v1605
      %v1638 = vsel %vm1574, %v1516, %v1606
      %v1639 = vsel %vm1575, %v1521, %v1607
      %v1640 = vsel %vm1576, %v1524, %v1608
      %v1641 = vsel %vm1577, %v1529, %v1609
      %v1642 = vsel %vm1578, %v1532, %v1610
      %v1643 = vsel %vm1579, %v1537, %v1611
      %v1644 = vsel %vm1580, %v1540, %v1612
      %v1645 = vsel %vm1581, %v1545, %v1613
      %v1646 = vsel %vm1582, %v1548, %v1614
      %v1647 = vpack.c.bf16 %v1616, %v1615
      %v1648 = vpack.c.bf16 %v1618, %v1617
      %v1649 = vpack.c.bf16 %v1620, %v1619
      %v1650 = vpack.c.bf16 %v1622, %v1621
      %v1651 = vpack.c.bf16 %v1624, %v1623
      %v1652 = vpack.c.bf16 %v1626, %v1625
      %v1653 = vpack.c.bf16 %v1628, %v1627
      %v1654 = vpack.c.bf16 %v1630, %v1629
      %v1655 = vpack.c.bf16 %v1632, %v1631
      %v1656 = vpack.c.bf16 %v1634, %v1633
      %v1657 = vpack.c.bf16 %v1636, %v1635
      %v1658 = vpack.c.bf16 %v1638, %v1637
      %v1659 = vpack.c.bf16 %v1640, %v1639
      %v1660 = vpack.c.bf16 %v1642, %v1641
      %v1661 = vpack.c.bf16 %v1644, %v1643
      %v1662 = vpack.c.bf16 %v1646, %v1645
      %v1679 = vunpack.c.l.b16 %v1647
      %v1680 = vunpack.c.h.b16 %v1647
      %v1681 = vunpack.c.l.b16 %v1648
      %v1682 = vunpack.c.h.b16 %v1648
      %v1683 = vunpack.c.l.b16 %v1649
      %v1684 = vunpack.c.h.b16 %v1649
      %v1685 = vunpack.c.l.b16 %v1650
      %v1686 = vunpack.c.h.b16 %v1650
      %v1687 = vunpack.c.l.b16 %v1651
      %v1688 = vunpack.c.h.b16 %v1651
      %v1689 = vunpack.c.l.b16 %v1652
      %v1690 = vunpack.c.h.b16 %v1652
      %v1691 = vunpack.c.l.b16 %v1653
      %v1692 = vunpack.c.h.b16 %v1653
      %v1693 = vunpack.c.l.b16 %v1654
      %v1694 = vunpack.c.h.b16 %v1654
      %v1695 = vunpack.c.l.b16 %v1655
      %v1696 = vunpack.c.h.b16 %v1655
      %v1697 = vunpack.c.l.b16 %v1656
      %v1698 = vunpack.c.h.b16 %v1656
      %v1699 = vunpack.c.l.b16 %v1657
      %v1700 = vunpack.c.h.b16 %v1657
      %v1701 = vunpack.c.l.b16 %v1658
      %v1702 = vunpack.c.h.b16 %v1658
      %v1703 = vunpack.c.l.b16 %v1659
      %v1704 = vunpack.c.h.b16 %v1659
      %v1705 = vunpack.c.l.b16 %v1660
      %v1706 = vunpack.c.h.b16 %v1660
      %v1707 = vunpack.c.l.b16 %v1661
      %v1708 = vunpack.c.h.b16 %v1661
      %v1709 = vunpack.c.l.b16 %v1662
      %v1710 = vunpack.c.h.b16 %v1662
      %v1711 = vpack.c.b16 %v1679, %v1679
      %v1712 = vpack.c.b16 %v1680, %v1680
      %v1713 = vpack.c.b16 %v1681, %v1681
      %v1714 = vpack.c.b16 %v1682, %v1682
      %v1715 = vpack.c.b16 %v1683, %v1683
      %v1716 = vpack.c.b16 %v1684, %v1684
      %v1717 = vpack.c.b16 %v1685, %v1685
      %v1718 = vpack.c.b16 %v1686, %v1686
      %v1719 = vpack.c.b16 %v1687, %v1687
      %v1720 = vpack.c.b16 %v1688, %v1688
      %v1721 = vpack.c.b16 %v1689, %v1689
      %v1722 = vpack.c.b16 %v1690, %v1690
      %v1723 = vpack.c.b16 %v1691, %v1691
      %v1724 = vpack.c.b16 %v1692, %v1692
      %v1725 = vpack.c.b16 %v1693, %v1693
      %v1726 = vpack.c.b16 %v1694, %v1694
      %v1727 = vpack.c.b16 %v1695, %v1695
      %v1728 = vpack.c.b16 %v1696, %v1696
      %v1729 = vpack.c.b16 %v1697, %v1697
      %v1730 = vpack.c.b16 %v1698, %v1698
      %v1731 = vpack.c.b16 %v1699, %v1699
      %v1732 = vpack.c.b16 %v1700, %v1700
      %v1733 = vpack.c.b16 %v1701, %v1701
      %v1734 = vpack.c.b16 %v1702, %v1702
      %v1735 = vpack.c.b16 %v1703, %v1703
      %v1736 = vpack.c.b16 %v1704, %v1704
      %v1737 = vpack.c.b16 %v1705, %v1705
      %v1738 = vpack.c.b16 %v1706, %v1706
      %v1739 = vpack.c.b16 %v1707, %v1707
      %v1740 = vpack.c.b16 %v1708, %v1708
      %v1741 = vpack.c.b16 %v1709, %v1709
      %v1742 = vpack.c.b16 %v1710, %v1710
      %1775 = vst [vmem:[%s226] sm:$0xf] %v1711
      %1776 = vst [vmem:[%s226 + $0x4] sm:$0xf] %v1712
      %1777 = vst [vmem:[%s226 + $0x8] sm:$0xf] %v1713
      %1778 = vst [vmem:[%s226 + $0xc] sm:$0xf] %v1714
      %1779 = vst [vmem:[%s226 + $0x10] sm:$0xf] %v1715
      %1780 = vst [vmem:[%s226 + $0x14] sm:$0xf] %v1716
      %1781 = vst [vmem:[%s226 + $0x18] sm:$0xf] %v1717
      %1782 = vst [vmem:[%s226 + $0x1c] sm:$0xf] %v1718
      %1783 = vst [vmem:[%s226 + $0x20] sm:$0xf] %v1719
      %1784 = vst [vmem:[%s226 + $0x24] sm:$0xf] %v1720
      %1785 = vst [vmem:[%s226 + $0x28] sm:$0xf] %v1721
      %1786 = vst [vmem:[%s226 + $0x2c] sm:$0xf] %v1722
      %1787 = vst [vmem:[%s226 + $0x30] sm:$0xf] %v1723
      %1788 = vst [vmem:[%s226 + $0x34] sm:$0xf] %v1724
      %1789 = vst [vmem:[%s226 + $0x38] sm:$0xf] %v1725
      %1790 = vst [vmem:[%s226 + $0x3c] sm:$0xf] %v1726
      %1791 = vst [vmem:[%s226 + $0x40] sm:$0xf] %v1727
      %1792 = vst [vmem:[%s226 + $0x44] sm:$0xf] %v1728
      %1793 = vst [vmem:[%s226 + $0x48] sm:$0xf] %v1729
      %1794 = vst [vmem:[%s226 + $0x4c] sm:$0xf] %v1730
      %1795 = vst [vmem:[%s226 + $0x50] sm:$0xf] %v1731
      %1796 = vst [vmem:[%s226 + $0x54] sm:$0xf] %v1732
      %1797 = vst [vmem:[%s226 + $0x58] sm:$0xf] %v1733
      %1798 = vst [vmem:[%s226 + $0x5c] sm:$0xf] %v1734
      %1799 = vst [vmem:[%s226 + $0x60] sm:$0xf] %v1735
      %1800 = vst [vmem:[%s226 + $0x64] sm:$0xf] %v1736
      %1801 = vst [vmem:[%s226 + $0x68] sm:$0xf] %v1737
      %1802 = vst [vmem:[%s226 + $0x6c] sm:$0xf] %v1738
      %1803 = vst [vmem:[%s226 + $0x70] sm:$0xf] %v1739
      %1804 = vst [vmem:[%s226 + $0x74] sm:$0xf] %v1740
      %1805 = vst [vmem:[%s226 + $0x78] sm:$0xf] %v1741
      %1806 = vst [vmem:[%s226 + $0x7c] sm:$0xf] %v1742
      %s1807 = smul.u32 32, %s18
      %p1808 = scmp.lt.s32.totalorder %s1807, 63
      %s1809 = scalar_select %p1808, %s1807, 63
      %p1810 = scmp.lt.s32.totalorder %s19, 0
      %s1811 = scalar_select %p1810, %s19, 0
      %s1812 = sadd.s32 %s1811, %s1809
      %s1813 = smul.addr %s1812, 4
      %s1814 = scalar_lea.vmem %s3, %s1813
      // Predicated region
      $region33: #{dccnn_forward.6} parent=31 // pred_check
        %p1815 = pneg %p124
      $region34: #{dccnn_forward.6} parent=31 // pred_check_branch
        %1817 = sbr.rel (%p1815) target = $region36
      $region35: #{dccnn_forward.6} parent=31 // pred_region
        %s1818 = smul.u32 32, %s18
      $region36: #{dccnn_forward.6} parent=31 // pred_fallthru
        _
    $region32: #{dccnn_forward.6} parent=5 // pred_fallthru
      _
    %p1819 = scmp.le.s32.totalorder 2, %s9
    // Predicated region
    $region37: #{dccnn_forward.6} parent=5 // pred_check
      %p1820 = pneg %p1819
    $region38: #{dccnn_forward.6} parent=5 // pred_check_branch
      %1822 = sbr.rel (%p1820) target = $region40
    $region39: #{dccnn_forward.6} parent=5 // pred_region
      %s1823 = ssub.s32 %s9, 2
      // Predicated region
      $region41: #{dccnn_forward.6} parent=39 // pred_check
        %p1824 = pneg %p130
      $region42: #{dccnn_forward.6} parent=39 // pred_check_branch
        %1826 = sbr.rel (%p1824) target = $region44
      $region43: #{dccnn_forward.6} parent=39 // pred_region
        %s1827 = smul.u32 32, %s20
        %p1828 = scmp.lt.s32.totalorder %s1827, 63
        %s1829 = scalar_select %p1828, %s1827, 63
        %p1830 = scmp.lt.s32.totalorder %s21, 0
        %s1831 = scalar_select %p1830, %s21, 0
        %s1832 = sadd.s32 %s1831, %s1829
        %s1833 = smul.addr %s1832, 4
        %s1834 = scalar_lea.vmem %s3, %s1833
      $region44: #{dccnn_forward.6} parent=39 // pred_fallthru
        _
    $region40: #{dccnn_forward.6} parent=5 // pred_fallthru
      _
  $region6: #{dccnn_forward.6} parent=0 // loop_footer
    %s13 = sadd.s32 1, %s9
  $region7: #{dccnn_forward.6} parent=0 // loop_footer_branch
    %8 = sbr.rel target = $region3
  $region8: #{dccnn_forward.6} parent=0 // loop_exit
    _

// kernel: dccnn_forward.7
$region0: #{dccnn_forward.7}
  #allocation0 [shape = 'u32[]', space=smem, size = 0x4, offset = 0x4, fixed_abs, tag = 'smem constant byte address 0x4 - core index']
  #allocation1 [shape = 'u32[144,128]{1,0:T(1,128)}', space=vmem, size = 0x12000, scoped, tag = 'internal scratch']
  %s0 = inlined_call_operand.vmem [shape: bf16[128,1152], index: 0, kind: input, shape index: {}]
  %s1 = inlined_call_operand.vmem [shape: bf16[1152,256], index: 1, kind: input, shape index: {}]
  %s2 = inlined_call_operand.vmem [shape: f32[1,256], index: 2, kind: input, shape index: {}]
  %s3 = inlined_call_operand.vmem [shape: bf16[128,256], index: 3, kind: output, shape index: {}]
  %s4 = sld [smem:[#allocation0]]
  $region45: #{dccnn_forward.7} parent=0
    _
  %s6 = ssub.s32 1, %s4
  %s7 = scalar_select 0, %s6, %s4
  loop: start=0, step=1, limit=4
  $region2: #{dccnn_forward.7} parent=0 // loop_pre_header
    _
  $region3: #{dccnn_forward.7} parent=0 // loop_header
    %s9 = sphi 0, %s13
    %p10 = scmp.ge.s32.totalorder %s9, 4
    %s16 = sphi 0, %s28
    %s17 = sphi 0, %s24
    %s18 = sphi 0, %s16
    %s19 = sphi 0, %s17
    %s20 = sphi 0, %s18
    %s21 = sphi 0, %s19
    %s31 = sphi 0, %s33
    %s34 = sphi 0, %s31
    %s35 = sphi 0, %s34
    %s51 = sphi 0, %s35
    %s57 = sphi 0, %s59
    %s60 = sphi 0, %s57
    %s61 = sphi 0, %s60
    %s77 = sphi 0, %s61
    %s83 = sphi 0, %s85
    %s86 = sphi 0, %s83
    %s87 = sphi 0, %s86
    %s103 = sphi 0, %s87
    %s111 = sphi 0, %s113
    %s114 = sphi 0, %s111
    %s115 = sphi 0, %s114
    %s131 = sphi 0, %s115
  $region4: #{dccnn_forward.7} parent=0 // loop_header_branch
    %12 = sbr.rel (%p10) target = $region8
  $region5: #{dccnn_forward.7} parent=0 // loop_body
    %s14 = ssub.s32 %s9, 1
    %s15 = ssub.s32 %s9, 2
    %s22 = sadd.s32 1, %s17
    %p23 = scmp.ge.s32.totalorder %s22, 1
    %s24 = scalar_select %p23, 0, %s22
    %s25 = sadd.s32 1, %s16
    %s26 = scalar_select %p23, %s25, %s16
    %p27 = scmp.ge.s32.totalorder %s26, 2
    %s28 = scalar_select %p27, 0, %s26
    %s29 = ssub.s32 %s16, %s28
    %p30 = scmp.eq.s32.totalorder %s29, 0
    %s32 = sadd.s32 %s31, 1
    %s33 = scalar_select %p30, %s31, %s32
    %p36 = pneg %p30
    %p37 = scmp.eq.s32.totalorder %s9, 1
    %p38 = por %p36, %p37
    %p39 = scmp.ne.s32.totalorder %s31, %s34
    %p40 = scmp.eq.s32.totalorder %s9, 0
    %p41 = por %p39, %p40
    %p42 = scmp.ne.s32.totalorder %s31, %s34
    %p43 = scmp.eq.s32.totalorder %s14, 1
    %p44 = por %p42, %p43
    %p45 = scmp.ne.s32.totalorder %s34, %s35
    %p46 = scmp.eq.s32.totalorder %s14, 0
    %p47 = por %p45, %p46
    %p48 = scmp.ne.s32.totalorder %s34, %s35
    %p49 = scmp.eq.s32.totalorder %s15, 1
    %p50 = por %p48, %p49
    %p52 = scmp.ne.s32.totalorder %s35, %s51
    %p53 = scmp.eq.s32.totalorder %s15, 0
    %p54 = por %p52, %p53
    %s55 = ssub.s32 %s17, %s24
    %p56 = scmp.eq.s32.totalorder %s55, 0
    %s58 = sadd.s32 %s57, 1
    %s59 = scalar_select %p56, %s57, %s58
    %p62 = pneg %p56
    %p63 = scmp.eq.s32.totalorder %s9, 1
    %p64 = por %p62, %p63
    %p65 = scmp.ne.s32.totalorder %s57, %s60
    %p66 = scmp.eq.s32.totalorder %s9, 0
    %p67 = por %p65, %p66
    %p68 = scmp.ne.s32.totalorder %s57, %s60
    %p69 = scmp.eq.s32.totalorder %s14, 1
    %p70 = por %p68, %p69
    %p71 = scmp.ne.s32.totalorder %s60, %s61
    %p72 = scmp.eq.s32.totalorder %s14, 0
    %p73 = por %p71, %p72
    %p74 = scmp.ne.s32.totalorder %s60, %s61
    %p75 = scmp.eq.s32.totalorder %s15, 1
    %p76 = por %p74, %p75
    %p78 = scmp.ne.s32.totalorder %s61, %s77
    %p79 = scmp.eq.s32.totalorder %s15, 0
    %p80 = por %p78, %p79
    %s81 = ssub.s32 %s17, %s24
    %p82 = scmp.eq.s32.totalorder %s81, 0
    %s84 = sadd.s32 %s83, 1
    %s85 = scalar_select %p82, %s83, %s84
    %p88 = pneg %p82
    %p89 = scmp.eq.s32.totalorder %s9, 1
    %p90 = por %p88, %p89
    %p91 = scmp.ne.s32.totalorder %s83, %s86
    %p92 = scmp.eq.s32.totalorder %s9, 0
    %p93 = por %p91, %p92
    %p94 = scmp.ne.s32.totalorder %s83, %s86
    %p95 = scmp.eq.s32.totalorder %s14, 1
    %p96 = por %p94, %p95
    %p97 = scmp.ne.s32.totalorder %s86, %s87
    %p98 = scmp.eq.s32.totalorder %s14, 0
    %p99 = por %p97, %p98
    %p100 = scmp.ne.s32.totalorder %s86, %s87
    %p101 = scmp.eq.s32.totalorder %s15, 1
    %p102 = por %p100, %p101
    %p104 = scmp.ne.s32.totalorder %s87, %s103
    %p105 = scmp.eq.s32.totalorder %s15, 0
    %p106 = por %p104, %p105
    %s107 = ssub.s32 %s16, %s28
    %s108 = ssub.s32 %s17, %s24
    %s109 = sor.u32 %s107, %s108
    %p110 = scmp.eq.s32.totalorder %s109, 0
    %s112 = sadd.s32 %s111, 1
    %s113 = scalar_select %p110, %s111, %s112
    %p116 = pneg %p110
    %p117 = scmp.eq.s32.totalorder %s9, 1
    %p118 = por %p116, %p117
    %p119 = scmp.ne.s32.totalorder %s111, %s114
    %p120 = scmp.eq.s32.totalorder %s9, 0
    %p121 = por %p119, %p120
    %p122 = scmp.ne.s32.totalorder %s111, %s114
    %p123 = scmp.eq.s32.totalorder %s14, 1
    %p124 = por %p122, %p123
    %p125 = scmp.ne.s32.totalorder %s114, %s115
    %p126 = scmp.eq.s32.totalorder %s14, 0
    %p127 = por %p125, %p126
    %p128 = scmp.ne.s32.totalorder %s114, %s115
    %p129 = scmp.eq.s32.totalorder %s15, 1
    %p130 = por %p128, %p129
    %p132 = scmp.ne.s32.totalorder %s115, %s131
    %p133 = scmp.eq.s32.totalorder %s15, 0
    %p134 = por %p132, %p133
    %p135 = scmp.le.s32.totalorder 1, %s9
    %p136 = scmp.lt.s32.totalorder %s9, 3
    %p137 = pnand %p135, %p136
    %p138 = pneg %p137
    // Predicated region
    $region9: #{dccnn_forward.7} parent=5 // pred_check
      _
    $region10: #{dccnn_forward.7} parent=5 // pred_check_branch
      %140 = sbr.rel (%p137) target = $region12
    $region11: #{dccnn_forward.7} parent=5 // pred_region
      %s141 = ssub.s32 %s9, 1
      // Predicated region
      $region13: #{dccnn_forward.7} parent=11 // pred_check
        %p142 = pneg %p73
      $region14: #{dccnn_forward.7} parent=11 // pred_check_branch
        %144 = sbr.rel (%p142) target = $region16
      $region15: #{dccnn_forward.7} parent=11 // pred_region
        %s145 = smul.u32 2, %s19
        %p146 = scmp.lt.s32.totalorder %s145, 1
        %s147 = scalar_select %p146, %s145, 1
        %s148 = smul.addr %s147, 4
        %s149 = scalar_lea.vmem %s1, %s148
        %s150 = smul.u32 2, %s19
      $region16: #{dccnn_forward.7} parent=11 // pred_fallthru
        _
      // Predicated region
      $region17: #{dccnn_forward.7} parent=11 // pred_check
        %p151 = pneg %p99
      $region18: #{dccnn_forward.7} parent=11 // pred_check_branch
        %153 = sbr.rel (%p151) target = $region20
      $region19: #{dccnn_forward.7} parent=11 // pred_region
        %s154 = smul.u32 2, %s19
        %p155 = scmp.lt.s32.totalorder %s154, 1
        %s156 = scalar_select %p155, %s154, 1
        %s157 = scalar_lea.vmem %s2, %s156
        %s158 = smul.u32 2, %s19
      $region20: #{dccnn_forward.7} parent=11 // pred_fallthru
        _
    $region12: #{dccnn_forward.7} parent=5 // pred_fallthru
      _
    %p159 = scmp.lt.s32.totalorder %s9, 2
    // Predicated region
    $region21: #{dccnn_forward.7} parent=5 // pred_check
      %p160 = pneg %p159
    $region22: #{dccnn_forward.7} parent=5 // pred_check_branch
      %162 = sbr.rel (%p160) target = $region24
    $region23: #{dccnn_forward.7} parent=5 // pred_region
      // Predicated region
      $region25: #{dccnn_forward.7} parent=23 // pred_check
        %p163 = pneg %p41
      $region26: #{dccnn_forward.7} parent=23 // pred_check_branch
        %165 = sbr.rel (%p163) target = $region28
      $region27: #{dccnn_forward.7} parent=23 // pred_region
        %s166 = smul.u32 8, %s16
        %p167 = scmp.lt.s32.totalorder %s166, 15
        %s168 = scalar_select %p167, %s166, 15
        %s169 = smul.addr %s168, 9
        %s170 = smul.addr %s169, 4
        %s171 = scalar_lea.vmem %s0, %s170
        %s172 = smul.u32 8, %s16
      $region28: #{dccnn_forward.7} parent=23 // pred_fallthru
        _
    $region24: #{dccnn_forward.7} parent=5 // pred_fallthru
      _
    %p173 = scmp.le.s32.totalorder 1, %s9
    %p174 = scmp.lt.s32.totalorder %s9, 3
    %p175 = pnand %p173, %p174
    %p176 = pneg %p175
    // Predicated region
    $region29: #{dccnn_forward.7} parent=5 // pred_check
      _
    $region30: #{dccnn_forward.7} parent=5 // pred_check_branch
      %178 = sbr.rel (%p175) target = $region32
    $region31: #{dccnn_forward.7} parent=5 // pred_region
      %s179 = ssub.s32 %s9, 1
      %s180 = smul.u32 8, %s18
      %p181 = scmp.lt.s32.totalorder %s180, 15
      %s182 = scalar_select %p181, %s180, 15
      %s183 = smul.addr %s182, 9
      %s184 = smul.addr %s183, 4
      %s185 = scalar_lea.vmem %s0, %s184
      %p186 = pneg %p47
      %p187 = pneg %p44
      %s188 = smul.u32 2, %s19
      %p189 = scmp.lt.s32.totalorder %s188, 1
      %s190 = scalar_select %p189, %s188, 1
      %s191 = smul.addr %s190, 4
      %s192 = scalar_lea.vmem %s1, %s191
      %p193 = pneg %p73
      %p194 = pneg %p70
      %s195 = smul.u32 2, %s19
      %p196 = scmp.lt.s32.totalorder %s195, 1
      %s197 = scalar_select %p196, %s195, 1
      %s198 = scalar_lea.vmem %s2, %s197
      %p199 = pneg %p99
      %p200 = pneg %p96
      %p201 = pneg %p127
      %p202 = pneg %p124
      %s203 = smul.u32 8, %s18
      %s204 = smul.u32 2, %s19
      %p205 = scmp.lt.s32.totalorder %s203, 15
      %s206 = scalar_select %p205, %s203, 15
      %p207 = scmp.lt.s32.totalorder %s204, 1
      %s208 = scalar_select %p207, %s204, 1
      %s209 = smul.addr %s206, 2
      %s210 = sadd.s32 %s208, %s209
      %s211 = smul.addr %s210, 4
      %s212 = scalar_lea.vmem %s3, %s211
      %s213 = smul.u32 8, %s18
      %p214 = scmp.lt.s32.totalorder %s213, 15
      %s215 = scalar_select %p214, %s213, 15
      %s216 = smul.addr %s215, 9
      %s217 = smul.addr %s216, 4
      %s218 = scalar_lea.vmem %s0, %s217
      %s219 = smul.u32 8, %s18
      %s220 = smul.u32 2, %s19
      %p221 = scmp.lt.s32.totalorder %s220, 1
      %s222 = scalar_select %p221, %s220, 1
      %s223 = smul.addr %s222, 4
      %s224 = scalar_lea.vmem %s1, %s223
      %s225 = smul.u32 2, %s19
      %s226 = smul.u32 2, %s19
      %p227 = scmp.lt.s32.totalorder %s226, 1
      %s228 = scalar_select %p227, %s226, 1
      %s229 = scalar_lea.vmem %s2, %s228
      %s230 = smul.u32 2, %s19
      %s231 = smul.u32 8, %s18
      %s232 = smul.u32 2, %s19
      %p233 = scmp.lt.s32.totalorder %s231, 15
      %s234 = scalar_select %p233, %s231, 15
      %p235 = scmp.lt.s32.totalorder %s232, 1
      %s236 = scalar_select %p235, %s232, 1
      %s237 = smul.addr %s234, 2
      %s238 = sadd.s32 %s236, %s237
      %s239 = smul.addr %s238, 4
      %s240 = scalar_lea.vmem %s3, %s239
      %s241 = smul.u32 8, %s18
      %s242 = smul.u32 2, %s19
      %v244 = vld [vmem:[%s218] sm:$0xff]
      %v245 = vld [vmem:[%s218 + $0x8] sm:$0xff]
      %v246 = vld [vmem:[%s218 + $0x10] sm:$0xff]
      %v247 = vld [vmem:[%s218 + $0x18] sm:$0xff]
      %v248 = vld [vmem:[%s218 + $0x20] sm:$0xf]
      %v249 = vld [vmem:[%s218 + $0x24] sm:$0xff]
      %v250 = vld [vmem:[%s218 + $0x2c] sm:$0xff]
      %v251 = vld [vmem:[%s218 + $0x34] sm:$0xff]
      %v252 = vld [vmem:[%s218 + $0x3c] sm:$0xff]
      %v253 = vld [vmem:[%s218 + $0x44] sm:$0xf]
      %v254 = vld [vmem:[%s218 + $0x48] sm:$0xff]
      %v255 = vld [vmem:[%s218 + $0x50] sm:$0xff]
      %v256 = vld [vmem:[%s218 + $0x58] sm:$0xff]
      %v257 = vld [vmem:[%s218 + $0x60] sm:$0xff]
      %v258 = vld [vmem:[%s218 + $0x68] sm:$0xf]
      %v259 = vld [vmem:[%s218 + $0x6c] sm:$0xff]
      %v260 = vld [vmem:[%s218 + $0x74] sm:$0xff]
      %v261 = vld [vmem:[%s218 + $0x7c] sm:$0xff]
      %v262 = vld [vmem:[%s218 + $0x84] sm:$0xff]
      %v263 = vld [vmem:[%s218 + $0x8c] sm:$0xf]
      %v264 = vld [vmem:[%s218 + $0x90] sm:$0xff]
      %v265 = vld [vmem:[%s218 + $0x98] sm:$0xff]
      %v266 = vld [vmem:[%s218 + $0xa0] sm:$0xff]
      %v267 = vld [vmem:[%s218 + $0xa8] sm:$0xff]
      %v268 = vld [vmem:[%s218 + $0xb0] sm:$0xf]
      %v269 = vld [vmem:[%s218 + $0xb4] sm:$0xff]
      %v270 = vld [vmem:[%s218 + $0xbc] sm:$0xff]
      %v271 = vld [vmem:[%s218 + $0xc4] sm:$0xff]
      %v272 = vld [vmem:[%s218 + $0xcc] sm:$0xff]
      %v273 = vld [vmem:[%s218 + $0xd4] sm:$0xf]
      %v274 = vld [vmem:[%s218 + $0xd8] sm:$0xff]
      %v275 = vld [vmem:[%s218 + $0xe0] sm:$0xff]
      %v276 = vld [vmem:[%s218 + $0xe8] sm:$0xff]
      %v277 = vld [vmem:[%s218 + $0xf0] sm:$0xff]
      %v278 = vld [vmem:[%s218 + $0xf8] sm:$0xf]
      %v279 = vld [vmem:[%s218 + $0xfc] sm:$0xff]
      %v280 = vld [vmem:[%s218 + $0x104] sm:$0xff]
      %v281 = vld [vmem:[%s218 + $0x10c] sm:$0xff]
      %v282 = vld [vmem:[%s218 + $0x114] sm:$0xff]
      %v283 = vld [vmem:[%s218 + $0x11c] sm:$0xf]
      %v284 = vld [vmem:[%s224] sm:$0xff]
      %v285 = vld [vmem:[%s224 + $0x8] sm:$0xff]
      %v286 = vld [vmem:[%s224 + $0x10] sm:$0xff]
      %v287 = vld [vmem:[%s224 + $0x18] sm:$0xff]
      %v288 = vld [vmem:[%s224 + $0x20] sm:$0xff]
      %v289 = vld [vmem:[%s224 + $0x28] sm:$0xff]
      %v290 = vld [vmem:[%s224 + $0x30] sm:$0xff]
      %v291 = vld [vmem:[%s224 + $0x38] sm:$0xff]
      %v292 = vld [vmem:[%s224 + $0x40] sm:$0xff]
      %v293 = vld [vmem:[%s224 + $0x48] sm:$0xff]
      %v294 = vld [vmem:[%s224 + $0x50] sm:$0xff]
      %v295 = vld [vmem:[%s224 + $0x58] sm:$0xff]
      %v296 = vld [vmem:[%s224 + $0x60] sm:$0xff]
      %v297 = vld [vmem:[%s224 + $0x68] sm:$0xff]
      %v298 = vld [vmem:[%s224 + $0x70] sm:$0xff]
      %v299 = vld [vmem:[%s224 + $0x78] sm:$0xff]
      %v300 = vld [vmem:[%s224 + $0x80] sm:$0xff]
      %v301 = vld [vmem:[%s224 + $0x88] sm:$0xff]
      %v302 = vld [vmem:[%s224 + $0x90] sm:$0xff]
      %v303 = vld [vmem:[%s224 + $0x98] sm:$0xff]
      %v304 = vld [vmem:[%s224 + $0xa0] sm:$0xff]
      %v305 = vld [vmem:[%s224 + $0xa8] sm:$0xff]
      %v306 = vld [vmem:[%s224 + $0xb0] sm:$0xff]
      %v307 = vld [vmem:[%s224 + $0xb8] sm:$0xff]
      %v308 = vld [vmem:[%s224 + $0xc0] sm:$0xff]
      %v309 = vld [vmem:[%s224 + $0xc8] sm:$0xff]
      %v310 = vld [vmem:[%s224 + $0xd0] sm:$0xff]
      %v311 = vld [vmem:[%s224 + $0xd8] sm:$0xff]
      %v312 = vld [vmem:[%s224 + $0xe0] sm:$0xff]
      %v313 = vld [vmem:[%s224 + $0xe8] sm:$0xff]
      %v314 = vld [vmem:[%s224 + $0xf0] sm:$0xff]
      %v315 = vld [vmem:[%s224 + $0xf8] sm:$0xff]
      %v316 = vld [vmem:[%s224 + $0x100] sm:$0xff]
      %v317 = vld [vmem:[%s224 + $0x108] sm:$0xff]
      %v318 = vld [vmem:[%s224 + $0x110] sm:$0xff]
      %v319 = vld [vmem:[%s224 + $0x118] sm:$0xff]
      %v320 = vld [vmem:[%s224 + $0x120] sm:$0xff]
      %v321 = vld [vmem:[%s224 + $0x128] sm:$0xff]
      %v322 = vld [vmem:[%s224 + $0x130] sm:$0xff]
      %v323 = vld [vmem:[%s224 + $0x138] sm:$0xff]
      %v324 = vld [vmem:[%s224 + $0x140] sm:$0xff]
      %v325 = vld [vmem:[%s224 + $0x148] sm:$0xff]
      %v326 = vld [vmem:[%s224 + $0x150] sm:$0xff]
      %v327 = vld [vmem:[%s224 + $0x158] sm:$0xff]
      %v328 = vld [vmem:[%s224 + $0x160] sm:$0xff]
      %v329 = vld [vmem:[%s224 + $0x168] sm:$0xff]
      %v330 = vld [vmem:[%s224 + $0x170] sm:$0xff]
      %v331 = vld [vmem:[%s224 + $0x178] sm:$0xff]
      %v332 = vld [vmem:[%s224 + $0x180] sm:$0xff]
      %v333 = vld [vmem:[%s224 + $0x188] sm:$0xff]
      %v334 = vld [vmem:[%s224 + $0x190] sm:$0xff]
      %v335 = vld [vmem:[%s224 + $0x198] sm:$0xff]
      %v336 = vld [vmem:[%s224 + $0x1a0] sm:$0xff]
      %v337 = vld [vmem:[%s224 + $0x1a8] sm:$0xff]
      %v338 = vld [vmem:[%s224 + $0x1b0] sm:$0xff]
      %v339 = vld [vmem:[%s224 + $0x1b8] sm:$0xff]
      %v340 = vld [vmem:[%s224 + $0x1c0] sm:$0xff]
      %v341 = vld [vmem:[%s224 + $0x1c8] sm:$0xff]
      %v342 = vld [vmem:[%s224 + $0x1d0] sm:$0xff]
      %v343 = vld [vmem:[%s224 + $0x1d8] sm:$0xff]
      %v344 = vld [vmem:[%s224 + $0x1e0] sm:$0xff]
      %v345 = vld [vmem:[%s224 + $0x1e8] sm:$0xff]
      %v346 = vld [vmem:[%s224 + $0x1f0] sm:$0xff]
      %v347 = vld [vmem:[%s224 + $0x1f8] sm:$0xff]
      %v348 = vld [vmem:[%s224 + $0x200] sm:$0xff]
      %v349 = vld [vmem:[%s224 + $0x208] sm:$0xff]
      %v350 = vld [vmem:[%s224 + $0x210] sm:$0xff]
      %v351 = vld [vmem:[%s224 + $0x218] sm:$0xff]
      %v352 = vld [vmem:[%s224 + $0x220] sm:$0xff]
      %v353 = vld [vmem:[%s224 + $0x228] sm:$0xff]
      %v354 = vld [vmem:[%s224 + $0x230] sm:$0xff]
      %v355 = vld [vmem:[%s224 + $0x238] sm:$0xff]
      %v356 = vld [vmem:[%s224 + $0x240] sm:$0xff]
      %v357 = vld [vmem:[%s224 + $0x248] sm:$0xff]
      %v358 = vld [vmem:[%s224 + $0x250] sm:$0xff]
      %v359 = vld [vmem:[%s224 + $0x258] sm:$0xff]
      %v360 = vld [vmem:[%s224 + $0x260] sm:$0xff]
      %v361 = vld [vmem:[%s224 + $0x268] sm:$0xff]
      %v362 = vld [vmem:[%s224 + $0x270] sm:$0xff]
      %v363 = vld [vmem:[%s224 + $0x278] sm:$0xff]
      %v364 = vld [vmem:[%s224 + $0x280] sm:$0xff]
      %v365 = vld [vmem:[%s224 + $0x288] sm:$0xff]
      %v366 = vld [vmem:[%s224 + $0x290] sm:$0xff]
      %v367 = vld [vmem:[%s224 + $0x298] sm:$0xff]
      %v368 = vld [vmem:[%s224 + $0x2a0] sm:$0xff]
      %v369 = vld [vmem:[%s224 + $0x2a8] sm:$0xff]
      %v370 = vld [vmem:[%s224 + $0x2b0] sm:$0xff]
      %v371 = vld [vmem:[%s224 + $0x2b8] sm:$0xff]
      %v372 = vld [vmem:[%s224 + $0x2c0] sm:$0xff]
      %v373 = vld [vmem:[%s224 + $0x2c8] sm:$0xff]
      %v374 = vld [vmem:[%s224 + $0x2d0] sm:$0xff]
      %v375 = vld [vmem:[%s224 + $0x2d8] sm:$0xff]
      %v376 = vld [vmem:[%s224 + $0x2e0] sm:$0xff]
      %v377 = vld [vmem:[%s224 + $0x2e8] sm:$0xff]
      %v378 = vld [vmem:[%s224 + $0x2f0] sm:$0xff]
      %v379 = vld [vmem:[%s224 + $0x2f8] sm:$0xff]
      %v380 = vld [vmem:[%s224 + $0x300] sm:$0xff]
      %v381 = vld [vmem:[%s224 + $0x308] sm:$0xff]
      %v382 = vld [vmem:[%s224 + $0x310] sm:$0xff]
      %v383 = vld [vmem:[%s224 + $0x318] sm:$0xff]
      %v384 = vld [vmem:[%s224 + $0x320] sm:$0xff]
      %v385 = vld [vmem:[%s224 + $0x328] sm:$0xff]
      %v386 = vld [vmem:[%s224 + $0x330] sm:$0xff]
      %v387 = vld [vmem:[%s224 + $0x338] sm:$0xff]
      %v388 = vld [vmem:[%s224 + $0x340] sm:$0xff]
      %v389 = vld [vmem:[%s224 + $0x348] sm:$0xff]
      %v390 = vld [vmem:[%s224 + $0x350] sm:$0xff]
      %v391 = vld [vmem:[%s224 + $0x358] sm:$0xff]
      %v392 = vld [vmem:[%s224 + $0x360] sm:$0xff]
      %v393 = vld [vmem:[%s224 + $0x368] sm:$0xff]
      %v394 = vld [vmem:[%s224 + $0x370] sm:$0xff]
      %v395 = vld [vmem:[%s224 + $0x378] sm:$0xff]
      %v396 = vld [vmem:[%s224 + $0x380] sm:$0xff]
      %v397 = vld [vmem:[%s224 + $0x388] sm:$0xff]
      %v398 = vld [vmem:[%s224 + $0x390] sm:$0xff]
      %v399 = vld [vmem:[%s224 + $0x398] sm:$0xff]
      %v400 = vld [vmem:[%s224 + $0x3a0] sm:$0xff]
      %v401 = vld [vmem:[%s224 + $0x3a8] sm:$0xff]
      %v402 = vld [vmem:[%s224 + $0x3b0] sm:$0xff]
      %v403 = vld [vmem:[%s224 + $0x3b8] sm:$0xff]
      %v404 = vld [vmem:[%s224 + $0x3c0] sm:$0xff]
      %v405 = vld [vmem:[%s224 + $0x3c8] sm:$0xff]
      %v406 = vld [vmem:[%s224 + $0x3d0] sm:$0xff]
      %v407 = vld [vmem:[%s224 + $0x3d8] sm:$0xff]
      %v408 = vld [vmem:[%s224 + $0x3e0] sm:$0xff]
      %v409 = vld [vmem:[%s224 + $0x3e8] sm:$0xff]
      %v410 = vld [vmem:[%s224 + $0x3f0] sm:$0xff]
      %v411 = vld [vmem:[%s224 + $0x3f8] sm:$0xff]
      %v412 = vld [vmem:[%s224 + $0x400] sm:$0xff]
      %v413 = vld [vmem:[%s224 + $0x408] sm:$0xff]
      %v414 = vld [vmem:[%s224 + $0x410] sm:$0xff]
      %v415 = vld [vmem:[%s224 + $0x418] sm:$0xff]
      %v416 = vld [vmem:[%s224 + $0x420] sm:$0xff]
      %v417 = vld [vmem:[%s224 + $0x428] sm:$0xff]
      %v418 = vld [vmem:[%s224 + $0x430] sm:$0xff]
      %v419 = vld [vmem:[%s224 + $0x438] sm:$0xff]
      %v420 = vld [vmem:[%s224 + $0x440] sm:$0xff]
      %v421 = vld [vmem:[%s224 + $0x448] sm:$0xff]
      %v422 = vld [vmem:[%s224 + $0x450] sm:$0xff]
      %v423 = vld [vmem:[%s224 + $0x458] sm:$0xff]
      %v424 = vld [vmem:[%s224 + $0x460] sm:$0xff]
      %v425 = vld [vmem:[%s224 + $0x468] sm:$0xff]
      %v426 = vld [vmem:[%s224 + $0x470] sm:$0xff]
      %v427 = vld [vmem:[%s224 + $0x478] sm:$0xff]
      %v428 = vld [vmem:[%s229] sm:$0x3]
      %v430 = vlaneseq
      %v431 = vshrl.u32 %v430, 7
      %v432 = vsub.s32 0, %v431
      %v433 = vrot.slane %v428, %v432
      %v434 = vlaneseq
      %v435 = vshrl.u32 %v434, 7
      %v436 = vsub.s32 1, %v435
      %v437 = vrot.slane %v428, %v436
      %v480 = vunpack.c.l.b16 %v244
      %v481 = vunpack.c.h.b16 %v244
      %v482 = vunpack.c.l.b16 %v245
      %v483 = vunpack.c.h.b16 %v245
      %v484 = vunpack.c.l.b16 %v246
      %v485 = vunpack.c.h.b16 %v246
      %v486 = vunpack.c.l.b16 %v247
      %v487 = vunpack.c.h.b16 %v247
      %v488 = vunpack.c.l.b16 %v248
      %v489 = vunpack.c.l.b16 %v249
      %v490 = vunpack.c.h.b16 %v249
      %v491 = vunpack.c.l.b16 %v250
      %v492 = vunpack.c.h.b16 %v250
      %v493 = vunpack.c.l.b16 %v251
      %v494 = vunpack.c.h.b16 %v251
      %v495 = vunpack.c.l.b16 %v252
      %v496 = vunpack.c.h.b16 %v252
      %v497 = vunpack.c.l.b16 %v253
      %v498 = vunpack.c.l.b16 %v254
      %v499 = vunpack.c.h.b16 %v254
      %v500 = vunpack.c.l.b16 %v255
      %v501 = vunpack.c.h.b16 %v255
      %v502 = vunpack.c.l.b16 %v256
      %v503 = vunpack.c.h.b16 %v256
      %v504 = vunpack.c.l.b16 %v257
      %v505 = vunpack.c.h.b16 %v257
      %v506 = vunpack.c.l.b16 %v258
      %v507 = vunpack.c.l.b16 %v259
      %v508 = vunpack.c.h.b16 %v259
      %v509 = vunpack.c.l.b16 %v260
      %v510 = vunpack.c.h.b16 %v260
      %v511 = vunpack.c.l.b16 %v261
      %v512 = vunpack.c.h.b16 %v261
      %v513 = vunpack.c.l.b16 %v262
      %v514 = vunpack.c.h.b16 %v262
      %v515 = vunpack.c.l.b16 %v263
      %v516 = vunpack.c.l.b16 %v264
      %v517 = vunpack.c.h.b16 %v264
      %v518 = vunpack.c.l.b16 %v265
      %v519 = vunpack.c.h.b16 %v265
      %v520 = vunpack.c.l.b16 %v266
      %v521 = vunpack.c.h.b16 %v266
      %v522 = vunpack.c.l.b16 %v267
      %v523 = vunpack.c.h.b16 %v267
      %v524 = vunpack.c.l.b16 %v268
      %v525 = vunpack.c.l.b16 %v269
      %v526 = vunpack.c.h.b16 %v269
      %v527 = vunpack.c.l.b16 %v270
      %v528 = vunpack.c.h.b16 %v270
      %v529 = vunpack.c.l.b16 %v271
      %v530 = vunpack.c.h.b16 %v271
      %v531 = vunpack.c.l.b16 %v272
      %v532 = vunpack.c.h.b16 %v272
      %v533 = vunpack.c.l.b16 %v273
      %v534 = vunpack.c.l.b16 %v274
      %v535 = vunpack.c.h.b16 %v274
      %v536 = vunpack.c.l.b16 %v275
      %v537 = vunpack.c.h.b16 %v275
      %v538 = vunpack.c.l.b16 %v276
      %v539 = vunpack.c.h.b16 %v276
      %v540 = vunpack.c.l.b16 %v277
      %v541 = vunpack.c.h.b16 %v277
      %v542 = vunpack.c.l.b16 %v278
      %v543 = vunpack.c.l.b16 %v279
      %v544 = vunpack.c.h.b16 %v279
      %v545 = vunpack.c.l.b16 %v280
      %v546 = vunpack.c.h.b16 %v280
      %v547 = vunpack.c.l.b16 %v281
      %v548 = vunpack.c.h.b16 %v281
      %v549 = vunpack.c.l.b16 %v282
      %v550 = vunpack.c.h.b16 %v282
      %v551 = vunpack.c.l.b16 %v283
      %v552 = vpack.c.b16 %v489, %v480
      %v553 = vpack.c.b16 %v490, %v481
      %v554 = vpack.c.b16 %v491, %v482
      %v555 = vpack.c.b16 %v492, %v483
      %v556 = vpack.c.b16 %v493, %v484
      %v557 = vpack.c.b16 %v494, %v485
      %v558 = vpack.c.b16 %v495, %v486
      %v559 = vpack.c.b16 %v496, %v487
      %v560 = vpack.c.b16 %v497, %v488
      %v561 = vpack.c.b16 %v507, %v498
      %v562 = vpack.c.b16 %v508, %v499
      %v563 = vpack.c.b16 %v509, %v500
      %v564 = vpack.c.b16 %v510, %v501
      %v565 = vpack.c.b16 %v511, %v502
      %v566 = vpack.c.b16 %v512, %v503
      %v567 = vpack.c.b16 %v513, %v504
      %v568 = vpack.c.b16 %v514, %v505
      %v569 = vpack.c.b16 %v515, %v506
      %v570 = vpack.c.b16 %v525, %v516
      %v571 = vpack.c.b16 %v526, %v517
      %v572 = vpack.c.b16 %v527, %v518
      %v573 = vpack.c.b16 %v528, %v519
      %v574 = vpack.c.b16 %v529, %v520
      %v575 = vpack.c.b16 %v530, %v521
      %v576 = vpack.c.b16 %v531, %v522
      %v577 = vpack.c.b16 %v532, %v523
      %v578 = vpack.c.b16 %v533, %v524
      %v579 = vpack.c.b16 %v543, %v534
      %v580 = vpack.c.b16 %v544, %v535
      %v581 = vpack.c.b16 %v545, %v536
      %v582 = vpack.c.b16 %v546, %v537
      %v583 = vpack.c.b16 %v547, %v538
      %v584 = vpack.c.b16 %v548, %v539
      %v585 = vpack.c.b16 %v549, %v540
      %v586 = vpack.c.b16 %v550, %v541
      %v587 = vpack.c.b16 %v551, %v542
      %v768 = vunpack.c.l.b16 %v284
      %v769 = vunpack.c.h.b16 %v284
      %v770 = vunpack.c.l.b16 %v285
      %v771 = vunpack.c.h.b16 %v285
      %v772 = vunpack.c.l.b16 %v286
      %v773 = vunpack.c.h.b16 %v286
      %v774 = vunpack.c.l.b16 %v287
      %v775 = vunpack.c.h.b16 %v287
      %v776 = vunpack.c.l.b16 %v288
      %v777 = vunpack.c.h.b16 %v288
      %v778 = vunpack.c.l.b16 %v289
      %v779 = vunpack.c.h.b16 %v289
      %v780 = vunpack.c.l.b16 %v290
      %v781 = vunpack.c.h.b16 %v290
      %v782 = vunpack.c.l.b16 %v291
      %v783 = vunpack.c.h.b16 %v291
      %v784 = vunpack.c.l.b16 %v292
      %v785 = vunpack.c.h.b16 %v292
      %v786 = vunpack.c.l.b16 %v293
      %v787 = vunpack.c.h.b16 %v293
      %v788 = vunpack.c.l.b16 %v294
      %v789 = vunpack.c.h.b16 %v294
      %v790 = vunpack.c.l.b16 %v295
      %v791 = vunpack.c.h.b16 %v295
      %v792 = vunpack.c.l.b16 %v296
      %v793 = vunpack.c.h.b16 %v296
      %v794 = vunpack.c.l.b16 %v297
      %v795 = vunpack.c.h.b16 %v297
      %v796 = vunpack.c.l.b16 %v298
      %v797 = vunpack.c.h.b16 %v298
      %v798 = vunpack.c.l.b16 %v299
      %v799 = vunpack.c.h.b16 %v299
      %v800 = vunpack.c.l.b16 %v300
      %v801 = vunpack.c.h.b16 %v300
      %v802 = vunpack.c.l.b16 %v301
      %v803 = vunpack.c.h.b16 %v301
      %v804 = vunpack.c.l.b16 %v302
      %v805 = vunpack.c.h.b16 %v302
      %v806 = vunpack.c.l.b16 %v303
      %v807 = vunpack.c.h.b16 %v303
      %v808 = vunpack.c.l.b16 %v304
      %v809 = vunpack.c.h.b16 %v304
      %v810 = vunpack.c.l.b16 %v305
      %v811 = vunpack.c.h.b16 %v305
      %v812 = vunpack.c.l.b16 %v306
      %v813 = vunpack.c.h.b16 %v306
      %v814 = vunpack.c.l.b16 %v307
      %v815 = vunpack.c.h.b16 %v307
      %v816 = vunpack.c.l.b16 %v308
      %v817 = vunpack.c.h.b16 %v308
      %v818 = vunpack.c.l.b16 %v309
      %v819 = vunpack.c.h.b16 %v309
      %v820 = vunpack.c.l.b16 %v310
      %v821 = vunpack.c.h.b16 %v310
      %v822 = vunpack.c.l.b16 %v311
      %v823 = vunpack.c.h.b16 %v311
      %v824 = vunpack.c.l.b16 %v312
      %v825 = vunpack.c.h.b16 %v312
      %v826 = vunpack.c.l.b16 %v313
      %v827 = vunpack.c.h.b16 %v313
      %v828 = vunpack.c.l.b16 %v314
      %v829 = vunpack.c.h.b16 %v314
      %v830 = vunpack.c.l.b16 %v315
      %v831 = vunpack.c.h.b16 %v315
      %v832 = vunpack.c.l.b16 %v316
      %v833 = vunpack.c.h.b16 %v316
      %v834 = vunpack.c.l.b16 %v317
      %v835 = vunpack.c.h.b16 %v317
      %v836 = vunpack.c.l.b16 %v318
      %v837 = vunpack.c.h.b16 %v318
      %v838 = vunpack.c.l.b16 %v319
      %v839 = vunpack.c.h.b16 %v319
      %v840 = vunpack.c.l.b16 %v320
      %v841 = vunpack.c.h.b16 %v320
      %v842 = vunpack.c.l.b16 %v321
      %v843 = vunpack.c.h.b16 %v321
      %v844 = vunpack.c.l.b16 %v322
      %v845 = vunpack.c.h.b16 %v322
      %v846 = vunpack.c.l.b16 %v323
      %v847 = vunpack.c.h.b16 %v323
      %v848 = vunpack.c.l.b16 %v324
      %v849 = vunpack.c.h.b16 %v324
      %v850 = vunpack.c.l.b16 %v325
      %v851 = vunpack.c.h.b16 %v325
      %v852 = vunpack.c.l.b16 %v326
      %v853 = vunpack.c.h.b16 %v326
      %v854 = vunpack.c.l.b16 %v327
      %v855 = vunpack.c.h.b16 %v327
      %v856 = vunpack.c.l.b16 %v328
      %v857 = vunpack.c.h.b16 %v328
      %v858 = vunpack.c.l.b16 %v329
      %v859 = vunpack.c.h.b16 %v329
      %v860 = vunpack.c.l.b16 %v330
      %v861 = vunpack.c.h.b16 %v330
      %v862 = vunpack.c.l.b16 %v331
      %v863 = vunpack.c.h.b16 %v331
      %v864 = vunpack.c.l.b16 %v332
      %v865 = vunpack.c.h.b16 %v332
      %v866 = vunpack.c.l.b16 %v333
      %v867 = vunpack.c.h.b16 %v333
      %v868 = vunpack.c.l.b16 %v334
      %v869 = vunpack.c.h.b16 %v334
      %v870 = vunpack.c.l.b16 %v335
      %v871 = vunpack.c.h.b16 %v335
      %v872 = vunpack.c.l.b16 %v336
      %v873 = vunpack.c.h.b16 %v336
      %v874 = vunpack.c.l.b16 %v337
      %v875 = vunpack.c.h.b16 %v337
      %v876 = vunpack.c.l.b16 %v338
      %v877 = vunpack.c.h.b16 %v338
      %v878 = vunpack.c.l.b16 %v339
      %v879 = vunpack.c.h.b16 %v339
      %v880 = vunpack.c.l.b16 %v340
      %v881 = vunpack.c.h.b16 %v340
      %v882 = vunpack.c.l.b16 %v341
      %v883 = vunpack.c.h.b16 %v341
      %v884 = vunpack.c.l.b16 %v342
      %v885 = vunpack.c.h.b16 %v342
      %v886 = vunpack.c.l.b16 %v343
      %v887 = vunpack.c.h.b16 %v343
      %v888 = vunpack.c.l.b16 %v344
      %v889 = vunpack.c.h.b16 %v344
      %v890 = vunpack.c.l.b16 %v345
      %v891 = vunpack.c.h.b16 %v345
      %v892 = vunpack.c.l.b16 %v346
      %v893 = vunpack.c.h.b16 %v346
      %v894 = vunpack.c.l.b16 %v347
      %v895 = vunpack.c.h.b16 %v347
      %v896 = vunpack.c.l.b16 %v348
      %v897 = vunpack.c.h.b16 %v348
      %v898 = vunpack.c.l.b16 %v349
      %v899 = vunpack.c.h.b16 %v349
      %v900 = vunpack.c.l.b16 %v350
      %v901 = vunpack.c.h.b16 %v350
      %v902 = vunpack.c.l.b16 %v351
      %v903 = vunpack.c.h.b16 %v351
      %v904 = vunpack.c.l.b16 %v352
      %v905 = vunpack.c.h.b16 %v352
      %v906 = vunpack.c.l.b16 %v353
      %v907 = vunpack.c.h.b16 %v353
      %v908 = vunpack.c.l.b16 %v354
      %v909 = vunpack.c.h.b16 %v354
      %v910 = vunpack.c.l.b16 %v355
      %v911 = vunpack.c.h.b16 %v355
      %v912 = vunpack.c.l.b16 %v356
      %v913 = vunpack.c.h.b16 %v356
      %v914 = vunpack.c.l.b16 %v357
      %v915 = vunpack.c.h.b16 %v357
      %v916 = vunpack.c.l.b16 %v358
      %v917 = vunpack.c.h.b16 %v358
      %v918 = vunpack.c.l.b16 %v359
      %v919 = vunpack.c.h.b16 %v359
      %v920 = vunpack.c.l.b16 %v360
      %v921 = vunpack.c.h.b16 %v360
      %v922 = vunpack.c.l.b16 %v361
      %v923 = vunpack.c.h.b16 %v361
      %v924 = vunpack.c.l.b16 %v362
      %v925 = vunpack.c.h.b16 %v362
      %v926 = vunpack.c.l.b16 %v363
      %v927 = vunpack.c.h.b16 %v363
      %v928 = vunpack.c.l.b16 %v364
      %v929 = vunpack.c.h.b16 %v364
      %v930 = vunpack.c.l.b16 %v365
      %v931 = vunpack.c.h.b16 %v365
      %v932 = vunpack.c.l.b16 %v366
      %v933 = vunpack.c.h.b16 %v366
      %v934 = vunpack.c.l.b16 %v367
      %v935 = vunpack.c.h.b16 %v367
      %v936 = vunpack.c.l.b16 %v368
      %v937 = vunpack.c.h.b16 %v368
      %v938 = vunpack.c.l.b16 %v369
      %v939 = vunpack.c.h.b16 %v369
      %v940 = vunpack.c.l.b16 %v370
      %v941 = vunpack.c.h.b16 %v370
      %v942 = vunpack.c.l.b16 %v371
      %v943 = vunpack.c.h.b16 %v371
      %v944 = vunpack.c.l.b16 %v372
      %v945 = vunpack.c.h.b16 %v372
      %v946 = vunpack.c.l.b16 %v373
      %v947 = vunpack.c.h.b16 %v373
      %v948 = vunpack.c.l.b16 %v374
      %v949 = vunpack.c.h.b16 %v374
      %v950 = vunpack.c.l.b16 %v375
      %v951 = vunpack.c.h.b16 %v375
      %v952 = vunpack.c.l.b16 %v376
      %v953 = vunpack.c.h.b16 %v376
      %v954 = vunpack.c.l.b16 %v377
      %v955 = vunpack.c.h.b16 %v377
      %v956 = vunpack.c.l.b16 %v378
      %v957 = vunpack.c.h.b16 %v378
      %v958 = vunpack.c.l.b16 %v379
      %v959 = vunpack.c.h.b16 %v379
      %v960 = vunpack.c.l.b16 %v380
      %v961 = vunpack.c.h.b16 %v380
      %v962 = vunpack.c.l.b16 %v381
      %v963 = vunpack.c.h.b16 %v381
      %v964 = vunpack.c.l.b16 %v382
      %v965 = vunpack.c.h.b16 %v382
      %v966 = vunpack.c.l.b16 %v383
      %v967 = vunpack.c.h.b16 %v383
      %v968 = vunpack.c.l.b16 %v384
      %v969 = vunpack.c.h.b16 %v384
      %v970 = vunpack.c.l.b16 %v385
      %v971 = vunpack.c.h.b16 %v385
      %v972 = vunpack.c.l.b16 %v386
      %v973 = vunpack.c.h.b16 %v386
      %v974 = vunpack.c.l.b16 %v387
      %v975 = vunpack.c.h.b16 %v387
      %v976 = vunpack.c.l.b16 %v388
      %v977 = vunpack.c.h.b16 %v388
      %v978 = vunpack.c.l.b16 %v389
      %v979 = vunpack.c.h.b16 %v389
      %v980 = vunpack.c.l.b16 %v390
      %v981 = vunpack.c.h.b16 %v390
      %v982 = vunpack.c.l.b16 %v391
      %v983 = vunpack.c.h.b16 %v391
      %v984 = vunpack.c.l.b16 %v392
      %v985 = vunpack.c.h.b16 %v392
      %v986 = vunpack.c.l.b16 %v393
      %v987 = vunpack.c.h.b16 %v393
      %v988 = vunpack.c.l.b16 %v394
      %v989 = vunpack.c.h.b16 %v394
      %v990 = vunpack.c.l.b16 %v395
      %v991 = vunpack.c.h.b16 %v395
      %v992 = vunpack.c.l.b16 %v396
      %v993 = vunpack.c.h.b16 %v396
      %v994 = vunpack.c.l.b16 %v397
      %v995 = vunpack.c.h.b16 %v397
      %v996 = vunpack.c.l.b16 %v398
      %v997 = vunpack.c.h.b16 %v398
      %v998 = vunpack.c.l.b16 %v399
      %v999 = vunpack.c.h.b16 %v399
      %v1000 = vunpack.c.l.b16 %v400
      %v1001 = vunpack.c.h.b16 %v400
      %v1002 = vunpack.c.l.b16 %v401
      %v1003 = vunpack.c.h.b16 %v401
      %v1004 = vunpack.c.l.b16 %v402
      %v1005 = vunpack.c.h.b16 %v402
      %v1006 = vunpack.c.l.b16 %v403
      %v1007 = vunpack.c.h.b16 %v403
      %v1008 = vunpack.c.l.b16 %v404
      %v1009 = vunpack.c.h.b16 %v404
      %v1010 = vunpack.c.l.b16 %v405
      %v1011 = vunpack.c.h.b16 %v405
      %v1012 = vunpack.c.l.b16 %v406
      %v1013 = vunpack.c.h.b16 %v406
      %v1014 = vunpack.c.l.b16 %v407
      %v1015 = vunpack.c.h.b16 %v407
      %v1016 = vunpack.c.l.b16 %v408
      %v1017 = vunpack.c.h.b16 %v408
      %v1018 = vunpack.c.l.b16 %v409
      %v1019 = vunpack.c.h.b16 %v409
      %v1020 = vunpack.c.l.b16 %v410
      %v1021 = vunpack.c.h.b16 %v410
      %v1022 = vunpack.c.l.b16 %v411
      %v1023 = vunpack.c.h.b16 %v411
      %v1024 = vunpack.c.l.b16 %v412
      %v1025 = vunpack.c.h.b16 %v412
      %v1026 = vunpack.c.l.b16 %v413
      %v1027 = vunpack.c.h.b16 %v413
      %v1028 = vunpack.c.l.b16 %v414
      %v1029 = vunpack.c.h.b16 %v414
      %v1030 = vunpack.c.l.b16 %v415
      %v1031 = vunpack.c.h.b16 %v415
      %v1032 = vunpack.c.l.b16 %v416
      %v1033 = vunpack.c.h.b16 %v416
      %v1034 = vunpack.c.l.b16 %v417
      %v1035 = vunpack.c.h.b16 %v417
      %v1036 = vunpack.c.l.b16 %v418
      %v1037 = vunpack.c.h.b16 %v418
      %v1038 = vunpack.c.l.b16 %v419
      %v1039 = vunpack.c.h.b16 %v419
      %v1040 = vunpack.c.l.b16 %v420
      %v1041 = vunpack.c.h.b16 %v420
      %v1042 = vunpack.c.l.b16 %v421
      %v1043 = vunpack.c.h.b16 %v421
      %v1044 = vunpack.c.l.b16 %v422
      %v1045 = vunpack.c.h.b16 %v422
      %v1046 = vunpack.c.l.b16 %v423
      %v1047 = vunpack.c.h.b16 %v423
      %v1048 = vunpack.c.l.b16 %v424
      %v1049 = vunpack.c.h.b16 %v424
      %v1050 = vunpack.c.l.b16 %v425
      %v1051 = vunpack.c.h.b16 %v425
      %v1052 = vunpack.c.l.b16 %v426
      %v1053 = vunpack.c.h.b16 %v426
      %v1054 = vunpack.c.l.b16 %v427
      %v1055 = vunpack.c.h.b16 %v427
      %v1056 = vpack.c.b16 %v770, %v768
      %v1057 = vpack.c.b16 %v771, %v769
      %v1058 = vpack.c.b16 %v774, %v772
      %v1059 = vpack.c.b16 %v775, %v773
      %v1060 = vpack.c.b16 %v778, %v776
      %v1061 = vpack.c.b16 %v779, %v777
      %v1062 = vpack.c.b16 %v782, %v780
      %v1063 = vpack.c.b16 %v783, %v781
      %v1064 = vpack.c.b16 %v786, %v784
      %v1065 = vpack.c.b16 %v787, %v785
      %v1066 = vpack.c.b16 %v790, %v788
      %v1067 = vpack.c.b16 %v791, %v789
      %v1068 = vpack.c.b16 %v794, %v792
      %v1069 = vpack.c.b16 %v795, %v793
      %v1070 = vpack.c.b16 %v798, %v796
      %v1071 = vpack.c.b16 %v799, %v797
      %v1072 = vpack.c.b16 %v802, %v800
      %v1073 = vpack.c.b16 %v803, %v801
      %v1074 = vpack.c.b16 %v806, %v804
      %v1075 = vpack.c.b16 %v807, %v805
      %v1076 = vpack.c.b16 %v810, %v808
      %v1077 = vpack.c.b16 %v811, %v809
      %v1078 = vpack.c.b16 %v814, %v812
      %v1079 = vpack.c.b16 %v815, %v813
      %v1080 = vpack.c.b16 %v818, %v816
      %v1081 = vpack.c.b16 %v819, %v817
      %v1082 = vpack.c.b16 %v822, %v820
      %v1083 = vpack.c.b16 %v823, %v821
      %v1084 = vpack.c.b16 %v826, %v824
      %v1085 = vpack.c.b16 %v827, %v825
      %v1086 = vpack.c.b16 %v830, %v828
      %v1087 = vpack.c.b16 %v831, %v829
      %v1088 = vpack.c.b16 %v834, %v832
      %v1089 = vpack.c.b16 %v835, %v833
      %v1090 = vpack.c.b16 %v838, %v836
      %v1091 = vpack.c.b16 %v839, %v837
      %v1092 = vpack.c.b16 %v842, %v840
      %v1093 = vpack.c.b16 %v843, %v841
      %v1094 = vpack.c.b16 %v846, %v844
      %v1095 = vpack.c.b16 %v847, %v845
      %v1096 = vpack.c.b16 %v850, %v848
      %v1097 = vpack.c.b16 %v851, %v849
      %v1098 = vpack.c.b16 %v854, %v852
      %v1099 = vpack.c.b16 %v855, %v853
      %v1100 = vpack.c.b16 %v858, %v856
      %v1101 = vpack.c.b16 %v859, %v857
      %v1102 = vpack.c.b16 %v862, %v860
      %v1103 = vpack.c.b16 %v863, %v861
      %v1104 = vpack.c.b16 %v866, %v864
      %v1105 = vpack.c.b16 %v867, %v865
      %v1106 = vpack.c.b16 %v870, %v868
      %v1107 = vpack.c.b16 %v871, %v869
      %v1108 = vpack.c.b16 %v874, %v872
      %v1109 = vpack.c.b16 %v875, %v873
      %v1110 = vpack.c.b16 %v878, %v876
      %v1111 = vpack.c.b16 %v879, %v877
      %v1112 = vpack.c.b16 %v882, %v880
      %v1113 = vpack.c.b16 %v883, %v881
      %v1114 = vpack.c.b16 %v886, %v884
      %v1115 = vpack.c.b16 %v887, %v885
      %v1116 = vpack.c.b16 %v890, %v888
      %v1117 = vpack.c.b16 %v891, %v889
      %v1118 = vpack.c.b16 %v894, %v892
      %v1119 = vpack.c.b16 %v895, %v893
      %v1120 = vpack.c.b16 %v898, %v896
      %v1121 = vpack.c.b16 %v899, %v897
      %v1122 = vpack.c.b16 %v902, %v900
      %v1123 = vpack.c.b16 %v903, %v901
      %v1124 = vpack.c.b16 %v906, %v904
      %v1125 = vpack.c.b16 %v907, %v905
      %v1126 = vpack.c.b16 %v910, %v908
      %v1127 = vpack.c.b16 %v911, %v909
      %v1128 = vpack.c.b16 %v914, %v912
      %v1129 = vpack.c.b16 %v915, %v913
      %v1130 = vpack.c.b16 %v918, %v916
      %v1131 = vpack.c.b16 %v919, %v917
      %v1132 = vpack.c.b16 %v922, %v920
      %v1133 = vpack.c.b16 %v923, %v921
      %v1134 = vpack.c.b16 %v926, %v924
      %v1135 = vpack.c.b16 %v927, %v925
      %v1136 = vpack.c.b16 %v930, %v928
      %v1137 = vpack.c.b16 %v931, %v929
      %v1138 = vpack.c.b16 %v934, %v932
      %v1139 = vpack.c.b16 %v935, %v933
      %v1140 = vpack.c.b16 %v938, %v936
      %v1141 = vpack.c.b16 %v939, %v937
      %v1142 = vpack.c.b16 %v942, %v940
      %v1143 = vpack.c.b16 %v943, %v941
      %v1144 = vpack.c.b16 %v946, %v944
      %v1145 = vpack.c.b16 %v947, %v945
      %v1146 = vpack.c.b16 %v950, %v948
      %v1147 = vpack.c.b16 %v951, %v949
      %v1148 = vpack.c.b16 %v954, %v952
      %v1149 = vpack.c.b16 %v955, %v953
      %v1150 = vpack.c.b16 %v958, %v956
      %v1151 = vpack.c.b16 %v959, %v957
      %v1152 = vpack.c.b16 %v962, %v960
      %v1153 = vpack.c.b16 %v963, %v961
      %v1154 = vpack.c.b16 %v966, %v964
      %v1155 = vpack.c.b16 %v967, %v965
      %v1156 = vpack.c.b16 %v970, %v968
      %v1157 = vpack.c.b16 %v971, %v969
      %v1158 = vpack.c.b16 %v974, %v972
      %v1159 = vpack.c.b16 %v975, %v973
      %v1160 = vpack.c.b16 %v978, %v976
      %v1161 = vpack.c.b16 %v979, %v977
      %v1162 = vpack.c.b16 %v982, %v980
      %v1163 = vpack.c.b16 %v983, %v981
      %v1164 = vpack.c.b16 %v986, %v984
      %v1165 = vpack.c.b16 %v987, %v985
      %v1166 = vpack.c.b16 %v990, %v988
      %v1167 = vpack.c.b16 %v991, %v989
      %v1168 = vpack.c.b16 %v994, %v992
      %v1169 = vpack.c.b16 %v995, %v993
      %v1170 = vpack.c.b16 %v998, %v996
      %v1171 = vpack.c.b16 %v999, %v997
      %v1172 = vpack.c.b16 %v1002, %v1000
      %v1173 = vpack.c.b16 %v1003, %v1001
      %v1174 = vpack.c.b16 %v1006, %v1004
      %v1175 = vpack.c.b16 %v1007, %v1005
      %v1176 = vpack.c.b16 %v1010, %v1008
      %v1177 = vpack.c.b16 %v1011, %v1009
      %v1178 = vpack.c.b16 %v1014, %v1012
      %v1179 = vpack.c.b16 %v1015, %v1013
      %v1180 = vpack.c.b16 %v1018, %v1016
      %v1181 = vpack.c.b16 %v1019, %v1017
      %v1182 = vpack.c.b16 %v1022, %v1020
      %v1183 = vpack.c.b16 %v1023, %v1021
      %v1184 = vpack.c.b16 %v1026, %v1024
      %v1185 = vpack.c.b16 %v1027, %v1025
      %v1186 = vpack.c.b16 %v1030, %v1028
      %v1187 = vpack.c.b16 %v1031, %v1029
      %v1188 = vpack.c.b16 %v1034, %v1032
      %v1189 = vpack.c.b16 %v1035, %v1033
      %v1190 = vpack.c.b16 %v1038, %v1036
      %v1191 = vpack.c.b16 %v1039, %v1037
      %v1192 = vpack.c.b16 %v1042, %v1040
      %v1193 = vpack.c.b16 %v1043, %v1041
      %v1194 = vpack.c.b16 %v1046, %v1044
      %v1195 = vpack.c.b16 %v1047, %v1045
      %v1196 = vpack.c.b16 %v1050, %v1048
      %v1197 = vpack.c.b16 %v1051, %v1049
      %v1198 = vpack.c.b16 %v1054, %v1052
      %v1199 = vpack.c.b16 %v1055, %v1053
      %1344 = vmatprep.subr.bf16.mxu0 %v1071
      %1345 = vmatpush1.bf16.msra.mxu0 %v1070
      %1346 = vmatprep.subr.bf16.mxu0 %v1069
      %1347 = vmatpush1.bf16.msra.mxu0 %v1068
      %1348 = vmatprep.subr.bf16.mxu0 %v1067
      %1349 = vmatpush1.bf16.msra.mxu0 %v1066
      %1350 = vmatprep.subr.bf16.mxu0 %v1065
      %1351 = vmatpush1.bf16.msra.mxu0 %v1064
      %1352 = vmatprep.subr.bf16.mxu0 %v1063
      %1353 = vmatpush1.bf16.msra.mxu0 %v1062
      %1354 = vmatprep.subr.bf16.mxu0 %v1061
      %1355 = vmatpush1.bf16.msra.mxu0 %v1060
      %1356 = vmatprep.subr.bf16.mxu0 %v1059
      %1357 = vmatpush1.bf16.msra.mxu0 %v1058
      %1358 = vmatprep.subr.bf16.mxu0 %v1057
      %1359 = vmatpush1.bf16.msra.mxu0 %v1056
      %1360 = vmatprep.subr.bf16.mxu0 %v1087
      %1361 = vmatpush2.bf16.msra.mxu0 %v1086
      %1362 = vmatprep.subr.bf16.mxu0 %v1085
      %1363 = vmatpush2.bf16.msra.mxu0 %v1084
      %1364 = vmatprep.subr.bf16.mxu0 %v1083
      %1365 = vmatpush2.bf16.msra.mxu0 %v1082
      %1366 = vmatprep.subr.bf16.mxu0 %v1081
      %1367 = vmatpush2.bf16.msra.mxu0 %v1080
      %1368 = vmatprep.subr.bf16.mxu0 %v1079
      %1369 = vmatpush2.bf16.msra.mxu0 %v1078
      %1370 = vmatprep.subr.bf16.mxu0 %v1077
      %1371 = vmatpush2.bf16.msra.mxu0 %v1076
      %1372 = vmatprep.subr.bf16.mxu0 %v1075
      %1373 = vmatpush2.bf16.msra.mxu0 %v1074
      %1374 = vmatprep.subr.bf16.mxu0 %v1073
      %1375 = vmatpush2.bf16.msra.mxu0 %v1072
      %1376 = vmatprep.mubr.bf16.mxu0 %v553
      %1377 = vmatmul.mubr.bf16.gmra.mxu0 %v552
      %v1378 = vpop.f32.mrf.mxu0
      %v1379 = vadd.f32 %v433, %v1378
      %v1380 = vpop.f32.mrf.mxu0
      %v1381 = vadd.f32 %v437, %v1380
      %v1382 = vpop.f32.mrf.mxu0
      %v1383 = vadd.f32 %v433, %v1382
      %v1384 = vpop.f32.mrf.mxu0
      %v1385 = vadd.f32 %v437, %v1384
      %1386 = vmatprep.mubr.bf16.mxu0 %v562
      %1387 = vmatmul.mubr.bf16.gmra.mxu0 %v561
      %v1388 = vpop.f32.mrf.mxu0
      %v1389 = vadd.f32 %v433, %v1388
      %v1390 = vpop.f32.mrf.mxu0
      %v1391 = vadd.f32 %v437, %v1390
      %v1392 = vpop.f32.mrf.mxu0
      %v1393 = vadd.f32 %v433, %v1392
      %v1394 = vpop.f32.mrf.mxu0
      %v1395 = vadd.f32 %v437, %v1394
      %1396 = vmatprep.mubr.bf16.mxu0 %v571
      %1397 = vmatmul.mubr.bf16.gmra.mxu0 %v570
      %v1398 = vpop.f32.mrf.mxu0
      %v1399 = vadd.f32 %v433, %v1398
      %v1400 = vpop.f32.mrf.mxu0
      %v1401 = vadd.f32 %v437, %v1400
      %v1402 = vpop.f32.mrf.mxu0
      %v1403 = vadd.f32 %v433, %v1402
      %v1404 = vpop.f32.mrf.mxu0
      %v1405 = vadd.f32 %v437, %v1404
      %1406 = vmatprep.mubr.bf16.mxu0 %v580
      %1407 = vmatmul.mubr.bf16.gmra.mxu0 %v579
      %v1408 = vpop.f32.mrf.mxu0
      %v1409 = vadd.f32 %v433, %v1408
      %v1410 = vpop.f32.mrf.mxu0
      %v1411 = vadd.f32 %v437, %v1410
      %v1412 = vpop.f32.mrf.mxu0
      %v1413 = vadd.f32 %v433, %v1412
      %v1414 = vpop.f32.mrf.mxu0
      %v1415 = vadd.f32 %v437, %v1414
      %1416 = vdwg.mxu0
      %1417 = vmatprep.subr.bf16.mxu0 %v1103
      %1418 = vmatpush1.bf16.msra.mxu0 %v1102
      %1419 = vmatprep.subr.bf16.mxu0 %v1101
      %1420 = vmatpush1.bf16.msra.mxu0 %v1100
      %1421 = vmatprep.subr.bf16.mxu0 %v1099
      %1422 = vmatpush1.bf16.msra.mxu0 %v1098
      %1423 = vmatprep.subr.bf16.mxu0 %v1097
      %1424 = vmatpush1.bf16.msra.mxu0 %v1096
      %1425 = vmatprep.subr.bf16.mxu0 %v1095
      %1426 = vmatpush1.bf16.msra.mxu0 %v1094
      %1427 = vmatprep.subr.bf16.mxu0 %v1093
      %1428 = vmatpush1.bf16.msra.mxu0 %v1092
      %1429 = vmatprep.subr.bf16.mxu0 %v1091
      %1430 = vmatpush1.bf16.msra.mxu0 %v1090
      %1431 = vmatprep.subr.bf16.mxu0 %v1089
      %1432 = vmatpush1.bf16.msra.mxu0 %v1088
      %1433 = vmatprep.subr.bf16.mxu0 %v1119
      %1434 = vmatpush2.bf16.msra.mxu0 %v1118
      %1435 = vmatprep.subr.bf16.mxu0 %v1117
      %1436 = vmatpush2.bf16.msra.mxu0 %v1116
      %1437 = vmatprep.subr.bf16.mxu0 %v1115
      %1438 = vmatpush2.bf16.msra.mxu0 %v1114
      %1439 = vmatprep.subr.bf16.mxu0 %v1113
      %1440 = vmatpush2.bf16.msra.mxu0 %v1112
      %1441 = vmatprep.subr.bf16.mxu0 %v1111
      %1442 = vmatpush2.bf16.msra.mxu0 %v1110
      %1443 = vmatprep.subr.bf16.mxu0 %v1109
      %1444 = vmatpush2.bf16.msra.mxu0 %v1108
      %1445 = vmatprep.subr.bf16.mxu0 %v1107
      %1446 = vmatpush2.bf16.msra.mxu0 %v1106
      %1447 = vmatprep.subr.bf16.mxu0 %v1105
      %1448 = vmatpush2.bf16.msra.mxu0 %v1104
      %1449 = vmatprep.mubr.bf16.mxu0 %v555
      %1450 = vmatmul.mubr.bf16.gmra.mxu0 %v554
      %v1451 = vpop.f32.mrf.mxu0
      %v1452 = vadd.f32 %v1379, %v1451
      %v1453 = vpop.f32.mrf.mxu0
      %v1454 = vadd.f32 %v1381, %v1453
      %v1455 = vpop.f32.mrf.mxu0
      %v1456 = vadd.f32 %v1383, %v1455
      %v1457 = vpop.f32.mrf.mxu0
      %v1458 = vadd.f32 %v1385, %v1457
      %1459 = vmatprep.mubr.bf16.mxu0 %v564
      %1460 = vmatmul.mubr.bf16.gmra.mxu0 %v563
      %v1461 = vpop.f32.mrf.mxu0
      %v1462 = vadd.f32 %v1389, %v1461
      %v1463 = vpop.f32.mrf.mxu0
      %v1464 = vadd.f32 %v1391, %v1463
      %v1465 = vpop.f32.mrf.mxu0
      %v1466 = vadd.f32 %v1393, %v1465
      %v1467 = vpop.f32.mrf.mxu0
      %v1468 = vadd.f32 %v1395, %v1467
      %1469 = vmatprep.mubr.bf16.mxu0 %v573
      %1470 = vmatmul.mubr.bf16.gmra.mxu0 %v572
      %v1471 = vpop.f32.mrf.mxu0
      %v1472 = vadd.f32 %v1399, %v1471
      %v1473 = vpop.f32.mrf.mxu0
      %v1474 = vadd.f32 %v1401, %v1473
      %v1475 = vpop.f32.mrf.mxu0
      %v1476 = vadd.f32 %v1403, %v1475
      %v1477 = vpop.f32.mrf.mxu0
      %v1478 = vadd.f32 %v1405, %v1477
      %1479 = vmatprep.mubr.bf16.mxu0 %v582
      %1480 = vmatmul.mubr.bf16.gmra.mxu0 %v581
      %v1481 = vpop.f32.mrf.mxu0
      %v1482 = vadd.f32 %v1409, %v1481
      %v1483 = vpop.f32.mrf.mxu0
      %v1484 = vadd.f32 %v1411, %v1483
      %v1485 = vpop.f32.mrf.mxu0
      %v1486 = vadd.f32 %v1413, %v1485
      %v1487 = vpop.f32.mrf.mxu0
      %v1488 = vadd.f32 %v1415, %v1487
      %1489 = vdwg.mxu0
      %1490 = vmatprep.subr.bf16.mxu0 %v1135
      %1491 = vmatpush1.bf16.msra.mxu0 %v1134
      %1492 = vmatprep.subr.bf16.mxu0 %v1133
      %1493 = vmatpush1.bf16.msra.mxu0 %v1132
      %1494 = vmatprep.subr.bf16.mxu0 %v1131
      %1495 = vmatpush1.bf16.msra.mxu0 %v1130
      %1496 = vmatprep.subr.bf16.mxu0 %v1129
      %1497 = vmatpush1.bf16.msra.mxu0 %v1128
      %1498 = vmatprep.subr.bf16.mxu0 %v1127
      %1499 = vmatpush1.bf16.msra.mxu0 %v1126
      %1500 = vmatprep.subr.bf16.mxu0 %v1125
      %1501 = vmatpush1.bf16.msra.mxu0 %v1124
      %1502 = vmatprep.subr.bf16.mxu0 %v1123
      %1503 = vmatpush1.bf16.msra.mxu0 %v1122
      %1504 = vmatprep.subr.bf16.mxu0 %v1121
      %1505 = vmatpush1.bf16.msra.mxu0 %v1120
      %1506 = vmatprep.subr.bf16.mxu0 %v1151
      %1507 = vmatpush2.bf16.msra.mxu0 %v1150
      %1508 = vmatprep.subr.bf16.mxu0 %v1149
      %1509 = vmatpush2.bf16.msra.mxu0 %v1148
      %1510 = vmatprep.subr.bf16.mxu0 %v1147
      %1511 = vmatpush2.bf16.msra.mxu0 %v1146
      %1512 = vmatprep.subr.bf16.mxu0 %v1145
      %1513 = vmatpush2.bf16.msra.mxu0 %v1144
      %1514 = vmatprep.subr.bf16.mxu0 %v1143
      %1515 = vmatpush2.bf16.msra.mxu0 %v1142
      %1516 = vmatprep.subr.bf16.mxu0 %v1141
      %1517 = vmatpush2.bf16.msra.mxu0 %v1140
      %1518 = vmatprep.subr.bf16.mxu0 %v1139
      %1519 = vmatpush2.bf16.msra.mxu0 %v1138
      %1520 = vmatprep.subr.bf16.mxu0 %v1137
      %1521 = vmatpush2.bf16.msra.mxu0 %v1136
      %1522 = vmatprep.mubr.bf16.mxu0 %v557
      %1523 = vmatmul.mubr.bf16.gmra.mxu0 %v556
      %v1524 = vpop.f32.mrf.mxu0
      %v1525 = vadd.f32 %v1452, %v1524
      %v1526 = vpop.f32.mrf.mxu0
      %v1527 = vadd.f32 %v1454, %v1526
      %v1528 = vpop.f32.mrf.mxu0
      %v1529 = vadd.f32 %v1456, %v1528
      %v1530 = vpop.f32.mrf.mxu0
      %v1531 = vadd.f32 %v1458, %v1530
      %1532 = vmatprep.mubr.bf16.mxu0 %v566
      %1533 = vmatmul.mubr.bf16.gmra.mxu0 %v565
      %v1534 = vpop.f32.mrf.mxu0
      %v1535 = vadd.f32 %v1462, %v1534
      %v1536 = vpop.f32.mrf.mxu0
      %v1537 = vadd.f32 %v1464, %v1536
      %v1538 = vpop.f32.mrf.mxu0
      %v1539 = vadd.f32 %v1466, %v1538
      %v1540 = vpop.f32.mrf.mxu0
      %v1541 = vadd.f32 %v1468, %v1540
      %1542 = vmatprep.mubr.bf16.mxu0 %v575
      %1543 = vmatmul.mubr.bf16.gmra.mxu0 %v574
      %v1544 = vpop.f32.mrf.mxu0
      %v1545 = vadd.f32 %v1472, %v1544
      %v1546 = vpop.f32.mrf.mxu0
      %v1547 = vadd.f32 %v1474, %v1546
      %v1548 = vpop.f32.mrf.mxu0
      %v1549 = vadd.f32 %v1476, %v1548
      %v1550 = vpop.f32.mrf.mxu0
      %v1551 = vadd.f32 %v1478, %v1550
      %1552 = vmatprep.mubr.bf16.mxu0 %v584
      %1553 = vmatmul.mubr.bf16.gmra.mxu0 %v583
      %v1554 = vpop.f32.mrf.mxu0
      %v1555 = vadd.f32 %v1482, %v1554
      %v1556 = vpop.f32.mrf.mxu0
      %v1557 = vadd.f32 %v1484, %v1556
      %v1558 = vpop.f32.mrf.mxu0
      %v1559 = vadd.f32 %v1486, %v1558
      %v1560 = vpop.f32.mrf.mxu0
      %v1561 = vadd.f32 %v1488, %v1560
      %1562 = vdwg.mxu0
      %1563 = vmatprep.subr.bf16.mxu0 %v1167
      %1564 = vmatpush1.bf16.msra.mxu0 %v1166
      %1565 = vmatprep.subr.bf16.mxu0 %v1165
      %1566 = vmatpush1.bf16.msra.mxu0 %v1164
      %1567 = vmatprep.subr.bf16.mxu0 %v1163
      %1568 = vmatpush1.bf16.msra.mxu0 %v1162
      %1569 = vmatprep.subr.bf16.mxu0 %v1161
      %1570 = vmatpush1.bf16.msra.mxu0 %v1160
      %1571 = vmatprep.subr.bf16.mxu0 %v1159
      %1572 = vmatpush1.bf16.msra.mxu0 %v1158
      %1573 = vmatprep.subr.bf16.mxu0 %v1157
      %1574 = vmatpush1.bf16.msra.mxu0 %v1156
      %1575 = vmatprep.subr.bf16.mxu0 %v1155
      %1576 = vmatpush1.bf16.msra.mxu0 %v1154
      %1577 = vmatprep.subr.bf16.mxu0 %v1153
      %1578 = vmatpush1.bf16.msra.mxu0 %v1152
      %1579 = vmatprep.subr.bf16.mxu0 %v1183
      %1580 = vmatpush2.bf16.msra.mxu0 %v1182
      %1581 = vmatprep.subr.bf16.mxu0 %v1181
      %1582 = vmatpush2.bf16.msra.mxu0 %v1180
      %1583 = vmatprep.subr.bf16.mxu0 %v1179
      %1584 = vmatpush2.bf16.msra.mxu0 %v1178
      %1585 = vmatprep.subr.bf16.mxu0 %v1177
      %1586 = vmatpush2.bf16.msra.mxu0 %v1176
      %1587 = vmatprep.subr.bf16.mxu0 %v1175
      %1588 = vmatpush2.bf16.msra.mxu0 %v1174
      %1589 = vmatprep.subr.bf16.mxu0 %v1173
      %1590 = vmatpush2.bf16.msra.mxu0 %v1172
      %1591 = vmatprep.subr.bf16.mxu0 %v1171
      %1592 = vmatpush2.bf16.msra.mxu0 %v1170
      %1593 = vmatprep.subr.bf16.mxu0 %v1169
      %1594 = vmatpush2.bf16.msra.mxu0 %v1168
      %1595 = vmatprep.mubr.bf16.mxu0 %v559
      %1596 = vmatmul.mubr.bf16.gmra.mxu0 %v558
      %v1597 = vpop.f32.mrf.mxu0
      %v1598 = vadd.f32 %v1525, %v1597
      %v1599 = vpop.f32.mrf.mxu0
      %v1600 = vadd.f32 %v1527, %v1599
      %v1601 = vpop.f32.mrf.mxu0
      %v1602 = vadd.f32 %v1529, %v1601
      %v1603 = vpop.f32.mrf.mxu0
      %v1604 = vadd.f32 %v1531, %v1603
      %1605 = vmatprep.mubr.bf16.mxu0 %v568
      %1606 = vmatmul.mubr.bf16.gmra.mxu0 %v567
      %v1607 = vpop.f32.mrf.mxu0
      %v1608 = vadd.f32 %v1535, %v1607
      %v1609 = vpop.f32.mrf.mxu0
      %v1610 = vadd.f32 %v1537, %v1609
      %v1611 = vpop.f32.mrf.mxu0
      %v1612 = vadd.f32 %v1539, %v1611
      %v1613 = vpop.f32.mrf.mxu0
      %v1614 = vadd.f32 %v1541, %v1613
      %1615 = vmatprep.mubr.bf16.mxu0 %v577
      %1616 = vmatmul.mubr.bf16.gmra.mxu0 %v576
      %v1617 = vpop.f32.mrf.mxu0
      %v1618 = vadd.f32 %v1545, %v1617
      %v1619 = vpop.f32.mrf.mxu0
      %v1620 = vadd.f32 %v1547, %v1619
      %v1621 = vpop.f32.mrf.mxu0
      %v1622 = vadd.f32 %v1549, %v1621
      %v1623 = vpop.f32.mrf.mxu0
      %v1624 = vadd.f32 %v1551, %v1623
      %1625 = vmatprep.mubr.bf16.mxu0 %v586
      %1626 = vmatmul.mubr.bf16.gmra.mxu0 %v585
      %v1627 = vpop.f32.mrf.mxu0
      %v1628 = vadd.f32 %v1555, %v1627
      %v1629 = vpop.f32.mrf.mxu0
      %v1630 = vadd.f32 %v1557, %v1629
      %v1631 = vpop.f32.mrf.mxu0
      %v1632 = vadd.f32 %v1559, %v1631
      %v1633 = vpop.f32.mrf.mxu0
      %v1634 = vadd.f32 %v1561, %v1633
      %1635 = vdwg.mxu0
      %1636 = vmatprep.subr.bf16.mxu0 %v1199
      %1637 = vmatpush1.bf16.msra.mxu0 %v1198
      %1638 = vmatprep.subr.bf16.mxu0 %v1197
      %1639 = vmatpush1.bf16.msra.mxu0 %v1196
      %1640 = vmatprep.subr.bf16.mxu0 %v1195
      %1641 = vmatpush1.bf16.msra.mxu0 %v1194
      %1642 = vmatprep.subr.bf16.mxu0 %v1193
      %1643 = vmatpush1.bf16.msra.mxu0 %v1192
      %1644 = vmatprep.subr.bf16.mxu0 %v1191
      %1645 = vmatpush1.bf16.msra.mxu0 %v1190
      %1646 = vmatprep.subr.bf16.mxu0 %v1189
      %1647 = vmatpush1.bf16.msra.mxu0 %v1188
      %1648 = vmatprep.subr.bf16.mxu0 %v1187
      %1649 = vmatpush1.bf16.msra.mxu0 %v1186
      %1650 = vmatprep.subr.bf16.mxu0 %v1185
      %1651 = vmatpush1.bf16.msra.mxu0 %v1184
      %1652 = vmatprep.subr.bf16.mxu0 0
      %1653 = vmatpush2.bf16.msra.mxu0 0
      %1654 = vmatprep.subr.bf16.mxu0 0
      %1655 = vmatpush2.bf16.msra.mxu0 0
      %1656 = vmatprep.subr.bf16.mxu0 0
      %1657 = vmatpush2.bf16.msra.mxu0 0
      %1658 = vmatprep.subr.bf16.mxu0 0
      %1659 = vmatpush2.bf16.msra.mxu0 0
      %1660 = vmatprep.subr.bf16.mxu0 0
      %1661 = vmatpush2.bf16.msra.mxu0 0
      %1662 = vmatprep.subr.bf16.mxu0 0
      %1663 = vmatpush2.bf16.msra.mxu0 0
      %1664 = vmatprep.subr.bf16.mxu0 0
      %1665 = vmatpush2.bf16.msra.mxu0 0
      %1666 = vmatprep.subr.bf16.mxu0 0
      %1667 = vmatpush2.bf16.msra.mxu0 0
      %1668 = vmatprep.mubr.bf16.mxu0 0
      %1669 = vmatmul.mubr.bf16.gmra.mxu0 %v560
      %v1670 = vpop.f32.mrf.mxu0
      %v1671 = vadd.f32 %v1598, %v1670
      %v1672 = vpop.f32.mrf.mxu0
      %v1673 = vadd.f32 %v1600, %v1672
      %v1674 = vpop.f32.mrf.mxu0
      %v1675 = vadd.f32 %v1602, %v1674
      %v1676 = vpop.f32.mrf.mxu0
      %v1677 = vadd.f32 %v1604, %v1676
      %1678 = vmatprep.mubr.bf16.mxu0 0
      %1679 = vmatmul.mubr.bf16.gmra.mxu0 %v569
      %v1680 = vpop.f32.mrf.mxu0
      %v1681 = vadd.f32 %v1608, %v1680
      %v1682 = vpop.f32.mrf.mxu0
      %v1683 = vadd.f32 %v1610, %v1682
      %v1684 = vpop.f32.mrf.mxu0
      %v1685 = vadd.f32 %v1612, %v1684
      %v1686 = vpop.f32.mrf.mxu0
      %v1687 = vadd.f32 %v1614, %v1686
      %1688 = vmatprep.mubr.bf16.mxu0 0
      %1689 = vmatmul.mubr.bf16.gmra.mxu0 %v578
      %v1690 = vpop.f32.mrf.mxu0
      %v1691 = vadd.f32 %v1618, %v1690
      %v1692 = vpop.f32.mrf.mxu0
      %v1693 = vadd.f32 %v1620, %v1692
      %v1694 = vpop.f32.mrf.mxu0
      %v1695 = vadd.f32 %v1622, %v1694
      %v1696 = vpop.f32.mrf.mxu0
      %v1697 = vadd.f32 %v1624, %v1696
      %1698 = vmatprep.mubr.bf16.mxu0 0
      %1699 = vmatmul.mubr.bf16.gmra.mxu0 %v587
      %v1700 = vpop.f32.mrf.mxu0
      %v1701 = vadd.f32 %v1628, %v1700
      %v1702 = vpop.f32.mrf.mxu0
      %v1703 = vadd.f32 %v1630, %v1702
      %v1704 = vpop.f32.mrf.mxu0
      %v1705 = vadd.f32 %v1632, %v1704
      %v1706 = vpop.f32.mrf.mxu0
      %v1707 = vadd.f32 %v1634, %v1706
      %1708 = vdwg.mxu0
      %vm1709 = vcmp.ge.f32.partialorder %v1671, 0.0
      %vm1710 = vcmp.ge.f32.partialorder %v1673, 0.0
      %vm1711 = vcmp.ge.f32.partialorder %v1675, 0.0
      %vm1712 = vcmp.ge.f32.partialorder %v1677, 0.0
      %vm1713 = vcmp.ge.f32.partialorder %v1681, 0.0
      %vm1714 = vcmp.ge.f32.partialorder %v1683, 0.0
      %vm1715 = vcmp.ge.f32.partialorder %v1685, 0.0
      %vm1716 = vcmp.ge.f32.partialorder %v1687, 0.0
      %vm1717 = vcmp.ge.f32.partialorder %v1691, 0.0
      %vm1718 = vcmp.ge.f32.partialorder %v1693, 0.0
      %vm1719 = vcmp.ge.f32.partialorder %v1695, 0.0
      %vm1720 = vcmp.ge.f32.partialorder %v1697, 0.0
      %vm1721 = vcmp.ge.f32.partialorder %v1701, 0.0
      %vm1722 = vcmp.ge.f32.partialorder %v1703, 0.0
      %vm1723 = vcmp.ge.f32.partialorder %v1705, 0.0
      %vm1724 = vcmp.ge.f32.partialorder %v1707, 0.0
      %v1725 = vmul.f32 %v1671, 0.2
      %v1726 = vmul.f32 %v1673, 0.2
      %v1727 = vmul.f32 %v1675, 0.2
      %v1728 = vmul.f32 %v1677, 0.2
      %v1729 = vmul.f32 %v1681, 0.2
      %v1730 = vmul.f32 %v1683, 0.2
      %v1731 = vmul.f32 %v1685, 0.2
      %v1732 = vmul.f32 %v1687, 0.2
      %v1733 = vmul.f32 %v1691, 0.2
      %v1734 = vmul.f32 %v1693, 0.2
      %v1735 = vmul.f32 %v1695, 0.2
      %v1736 = vmul.f32 %v1697, 0.2
      %v1737 = vmul.f32 %v1701, 0.2
      %v1738 = vmul.f32 %v1703, 0.2
      %v1739 = vmul.f32 %v1705, 0.2
      %v1740 = vmul.f32 %v1707, 0.2
      %v1741 = vsel %vm1709, %v1671, %v1725
      %v1742 = vsel %vm1710, %v1673, %v1726
      %v1743 = vsel %vm1711, %v1675, %v1727
      %v1744 = vsel %vm1712, %v1677, %v1728
      %v1745 = vsel %vm1713, %v1681, %v1729
      %v1746 = vsel %vm1714, %v1683, %v1730
      %v1747 = vsel %vm1715, %v1685, %v1731
      %v1748 = vsel %vm1716, %v1687, %v1732
      %v1749 = vsel %vm1717, %v1691, %v1733
      %v1750 = vsel %vm1718, %v1693, %v1734
      %v1751 = vsel %vm1719, %v1695, %v1735
      %v1752 = vsel %vm1720, %v1697, %v1736
      %v1753 = vsel %vm1721, %v1701, %v1737
      %v1754 = vsel %vm1722, %v1703, %v1738
      %v1755 = vsel %vm1723, %v1705, %v1739
      %v1756 = vsel %vm1724, %v1707, %v1740
      %v1757 = vpack.c.bf16 %v1743, %v1741
      %v1758 = vpack.c.bf16 %v1744, %v1742
      %v1759 = vpack.c.bf16 %v1747, %v1745
      %v1760 = vpack.c.bf16 %v1748, %v1746
      %v1761 = vpack.c.bf16 %v1751, %v1749
      %v1762 = vpack.c.bf16 %v1752, %v1750
      %v1763 = vpack.c.bf16 %v1755, %v1753
      %v1764 = vpack.c.bf16 %v1756, %v1754
      %v1773 = vunpack.c.l.b16 %v1757
      %v1774 = vunpack.c.l.b16 %v1758
      %v1775 = vunpack.c.h.b16 %v1757
      %v1776 = vunpack.c.h.b16 %v1758
      %v1777 = vunpack.c.l.b16 %v1759
      %v1778 = vunpack.c.l.b16 %v1760
      %v1779 = vunpack.c.h.b16 %v1759
      %v1780 = vunpack.c.h.b16 %v1760
      %v1781 = vunpack.c.l.b16 %v1761
      %v1782 = vunpack.c.l.b16 %v1762
      %v1783 = vunpack.c.h.b16 %v1761
      %v1784 = vunpack.c.h.b16 %v1762
      %v1785 = vunpack.c.l.b16 %v1763
      %v1786 = vunpack.c.l.b16 %v1764
      %v1787 = vunpack.c.h.b16 %v1763
      %v1788 = vunpack.c.h.b16 %v1764
      %v1789 = vpack.c.b16 %v1774, %v1773
      %v1790 = vpack.c.b16 %v1776, %v1775
      %v1791 = vpack.c.b16 %v1778, %v1777
      %v1792 = vpack.c.b16 %v1780, %v1779
      %v1793 = vpack.c.b16 %v1782, %v1781
      %v1794 = vpack.c.b16 %v1784, %v1783
      %v1795 = vpack.c.b16 %v1786, %v1785
      %v1796 = vpack.c.b16 %v1788, %v1787
      %1805 = vst [vmem:[%s240] sm:$0xff] %v1789
      %1806 = vst [vmem:[%s240 + $0x8] sm:$0xff] %v1790
      %1807 = vst [vmem:[%s240 + $0x10] sm:$0xff] %v1791
      %1808 = vst [vmem:[%s240 + $0x18] sm:$0xff] %v1792
      %1809 = vst [vmem:[%s240 + $0x20] sm:$0xff] %v1793
      %1810 = vst [vmem:[%s240 + $0x28] sm:$0xff] %v1794
      %1811 = vst [vmem:[%s240 + $0x30] sm:$0xff] %v1795
      %1812 = vst [vmem:[%s240 + $0x38] sm:$0xff] %v1796
      %s1813 = smul.u32 8, %s18
      %s1814 = smul.u32 2, %s19
      %p1815 = scmp.lt.s32.totalorder %s1813, 15
      %s1816 = scalar_select %p1815, %s1813, 15
      %p1817 = scmp.lt.s32.totalorder %s1814, 1
      %s1818 = scalar_select %p1817, %s1814, 1
      %s1819 = smul.addr %s1816, 2
      %s1820 = sadd.s32 %s1818, %s1819
      %s1821 = smul.addr %s1820, 4
      %s1822 = scalar_lea.vmem %s3, %s1821
      // Predicated region
      $region33: #{dccnn_forward.7} parent=31 // pred_check
        %p1823 = pneg %p124
      $region34: #{dccnn_forward.7} parent=31 // pred_check_branch
        %1825 = sbr.rel (%p1823) target = $region36
      $region35: #{dccnn_forward.7} parent=31 // pred_region
        %s1826 = smul.u32 8, %s18
        %s1827 = smul.u32 2, %s19
      $region36: #{dccnn_forward.7} parent=31 // pred_fallthru
        _
    $region32: #{dccnn_forward.7} parent=5 // pred_fallthru
      _
    %p1828 = scmp.le.s32.totalorder 2, %s9
    // Predicated region
    $region37: #{dccnn_forward.7} parent=5 // pred_check
      %p1829 = pneg %p1828
    $region38: #{dccnn_forward.7} parent=5 // pred_check_branch
      %1831 = sbr.rel (%p1829) target = $region40
    $region39: #{dccnn_forward.7} parent=5 // pred_region
      %s1832 = ssub.s32 %s9, 2
      // Predicated region
      $region41: #{dccnn_forward.7} parent=39 // pred_check
        %p1833 = pneg %p130
      $region42: #{dccnn_forward.7} parent=39 // pred_check_branch
        %1835 = sbr.rel (%p1833) target = $region44
      $region43: #{dccnn_forward.7} parent=39 // pred_region
        %s1836 = smul.u32 8, %s20
        %s1837 = smul.u32 2, %s21
        %p1838 = scmp.lt.s32.totalorder %s1836, 15
        %s1839 = scalar_select %p1838, %s1836, 15
        %p1840 = scmp.lt.s32.totalorder %s1837, 1
        %s1841 = scalar_select %p1840, %s1837, 1
        %s1842 = smul.addr %s1839, 2
        %s1843 = sadd.s32 %s1841, %s1842
        %s1844 = smul.addr %s1843, 4
        %s1845 = scalar_lea.vmem %s3, %s1844
      $region44: #{dccnn_forward.7} parent=39 // pred_fallthru
        _
    $region40: #{dccnn_forward.7} parent=5 // pred_fallthru
      _
  $region6: #{dccnn_forward.7} parent=0 // loop_footer
    %s13 = sadd.s32 1, %s9
  $region7: #{dccnn_forward.7} parent=0 // loop_footer_branch
    %8 = sbr.rel target = $region3
  $region8: #{dccnn_forward.7} parent=0 // loop_exit
    _

</llo_original>
